<compile_context>
chip_gen: v6e
topology: v6e:2x2x1
jax: 0.10.0
libtpu: 0.0.40
codegen_flags: <defaults>
</compile_context>

<pallas_src>
import functools

import jax
import jax.numpy as jnp
from jax import lax
from jax.experimental import pallas as pl
from jax.experimental.pallas import tpu as pltpu


# --------------------------------------------------------------------------- #
# helpers (match torch reference semantics)
# --------------------------------------------------------------------------- #
def split_dimension(total_dim, num):
    if total_dim % num == 0:
        dims = [total_dim // num for _ in range(num)]
    else:
        dims = [total_dim // num for _ in range(num - 1)]
        dims += [total_dim - sum(dims)]
    return dims


def _l2_normalize(x, eps=1e-12):
    n = jnp.sqrt(jnp.sum(x * x, axis=-1, keepdims=True))
    return x / jnp.maximum(n, eps)


def _round_up(x, m):
    return (x + m - 1) // m * m


@functools.lru_cache(maxsize=None)
def _argmax_lowers():
    """Feature probe: does the installed Mosaic lowering support fused in-kernel argmax?

    The perf review asks for a single fused jnp.argmax; if the lowering rejects it
    (older Mosaic), fall back to the known-good manual first-index argmax so the
    kernel always compiles and runs.
    """
    def probe(x_ref, o_ref):
        o_ref[...] = jnp.argmax(x_ref[...], axis=-1, keepdims=True).astype(jnp.int32)

    try:
        out = pl.pallas_call(
            probe, out_shape=jax.ShapeDtypeStruct((8, 1), jnp.int32),
        )(jnp.arange(8 * 128, dtype=jnp.float32).reshape(8, 128))
        return bool(jax.block_until_ready(out)[0, 0] == 127)
    except Exception:   # LoweringException / NotImplementedError on old jax
        return False


def _choose_tiling(n_rows, h_total, num_pvqs, num_streams, K, d, mxu_dtype):
    """Pick (row_tile, padded_rows, vmem_limit_bytes), generation aware.

    v7x: 64 MiB VMEM/TC and 2 TCs -> prefer >=4 grid tiles (megacore) and keep the
    working set under ~38 MiB.  v5e/v6e: 128 MiB, 1 TC -> tiles up to 1024 rows.
    The live set is dominated by the (tn, K) similarity / one-hot temporaries of
    the unrolled stream loop, so the cap is derived from tn*K bytes, not just the
    VMEM size.  Per-step overhead (~0.35us) is negligible vs. compute, so smaller
    tiles are essentially free.
    """
    mxu_bytes = jnp.dtype(mxu_dtype).itemsize
    try:
        vmem_cap = pltpu.get_tpu_info().vmem_capacity_bytes
    except Exception:
        vmem_cap = 64 << 20
    small_vmem = vmem_cap < (96 << 20)                  # v7x (64 MiB / TensorCore)
    budget = (38 << 20) if small_vmem else (80 << 20)
    hard_cap = 512 if small_vmem else 1024
    if K > 1024:
        hard_cap //= 2

    P, S = num_pvqs, num_streams
    ht_pad = _round_up(h_total, 128)                    # lane padding of the row tiles
    code_pad = _round_up(P * S, 128)
    d_pad = _round_up(d, 16 if mxu_bytes == 2 else 8)   # sublane padding of d
    fixed = (2 * 4 * 2 * h_total * P * d                # wd + wu (f32, double-buffered)
             + 2 * mxu_bytes * P * S * d_pad * K        # lane-dense codebooks (dbl-buffered)
             + (4 << 20))                               # compiler scratch / headroom

    def est(tn):
        io = 2 * tn * (4 * 2 * ht_pad + 4 * code_pad)   # dbl-buffered z in, z_q out, codes
        live = 4 * tn * K * 4 + tn * K * mxu_bytes      # iota + sim + masks + one-hot
        return fixed + io + live

    # prefer >= 4 grid tiles (v7x megacore); rows/tile must be a multiple of 8 sublanes
    tn = max(8, min(hard_cap, _round_up(max(n_rows // 4, 1), 8)))
    while tn > 8 and est(tn) > budget:
        tn = max(8, (tn // 2) // 8 * 8)

    padded_rows = _round_up(n_rows, tn)
    vmem_limit = int(min(vmem_cap - (8 << 20), max(est(tn) + (8 << 20), 32 << 20)))
    return tn, padded_rows, vmem_limit


# --------------------------------------------------------------------------- #
# fused Pallas kernel: all product groups + all residual streams, one row tile
# --------------------------------------------------------------------------- #
def _make_fused_kernel(num_pvqs, num_streams, K, d, freeze_vq, mxu_dtype,
                       use_argmax, row_tile, n_valid_rows):
    P, S = num_pvqs, num_streams
    mask_rows = n_valid_rows is not None    # padded rows present -> mask them out of the loss

    def kernel(z_ref, wd_ref, wu_ref, cbn_ref, zq_ref, codes_ref, ss_ref):
        # z_ref:     (tn, Ht)       f32 input rows for this tile
        # wd_ref:    (Ht, P*d)      f32 block-diagonal proj_down
        # wu_ref:    (P*d, Ht)      f32 block-diagonal proj_up
        # cbn_ref:   (P*S, d, K)    pre-L2-normalized codebooks, lane-dense (K last)
        # zq_ref:    (tn, Ht)       f32 output (already proj_up'ed)
        # codes_ref: (tn, P*S)      int32 codes, column = m*S + s
        # ss_ref:    (1, 1, 128)    per-tile sum of squared quantization errors
        tn = z_ref.shape[0]
        z = z_ref[...]

        # fused proj_down for all groups (block-diagonal weight), f32 on the MXU
        z_down = jnp.dot(z, wd_ref[...], preferred_element_type=jnp.float32)   # (tn, P*d)

        # hoisted iotas (JAX does not CSE broadcast_in_dim; keep them out of the loop)
        iota_k = lax.broadcasted_iota(jnp.int32, (tn, K), 1)
        iota_s = lax.broadcasted_iota(jnp.int32, (tn, S), 1)

        ss_vec = jnp.zeros((tn, d), jnp.float32)   # squared-error accumulator (one reduce at end)
        zq_parts, code_parts = [], []

        for m in range(P):  # small static loop over product groups
            res0 = z_down[:, m * d:(m + 1) * d]                                # (tn, d)

            def stream_body(s, carry, m=m):
                residual, zq_acc, ss_acc, codes_m = carry
                cb = cbn_ref[m * S + s]                                        # (d, K)
                # Codebook rows are pre-normalized, so argmax of the raw inner
                # product equals the cosine-NN argmax: no per-step rsqrt/normalize.
                sim = lax.dot_general(residual.astype(mxu_dtype), cb,
                                      (((1,), (0,)), ((), ())),
                                      preferred_element_type=jnp.float32)      # (tn, K)
                if use_argmax:
                    # single fused first-index argmax (review item #1)
                    idx = jnp.argmax(sim, axis=-1, keepdims=True).astype(jnp.int32)
                else:
                    # fallback: manual first-index argmax (max -> masked-min)
                    max_sim = jnp.max(sim, axis=-1, keepdims=True)
                    idx = jnp.min(jnp.where(sim >= max_sim, iota_k, jnp.int32(K)),
                                  axis=-1, keepdims=True)
                onehot = (iota_k == idx).astype(mxu_dtype)                     # (tn, K)
                # one-hot gather of the normalized codebook row: contract the K axes
                # (lane-dense RHS, no relayout).  bf16 operands, f32 accumulate.
                z_q_i = lax.dot_general(onehot, cb, (((1,), (1,)), ((), ())),
                                        preferred_element_type=jnp.float32)    # (tn, d)

                diff = residual - z_q_i
                codes_m = jnp.where(iota_s == s, idx, codes_m)                 # (tn, S)
                return (diff, zq_acc + z_q_i, ss_acc + diff * diff, codes_m)

            _, zq_m, ss_vec, codes_m = lax.fori_loop(
                0, S, stream_body,
                (res0, jnp.zeros_like(res0), ss_vec, jnp.zeros((tn, S), jnp.int32)),
                unroll=True)

            zq_parts.append(zq_m)
            code_parts.append(codes_m)

        zq_down = jnp.concatenate(zq_parts, axis=1)                            # (tn, P*d)

        if freeze_vq:   # static branch: z_q_m = z_e_m + z_q_m*0, losses zeroed
            zq_down = z_down
            ss_vec = jnp.zeros_like(ss_vec)

        if mask_rows:   # padded rows must not contribute to the loss
            row = (pl.program_id(0) * row_tile
                   + lax.broadcasted_iota(jnp.int32, (tn, 1), 0))
            ss_vec = jnp.where(row < n_valid_rows, ss_vec, jnp.float32(0.0))

        # fused proj_up for all groups -> (tn, Ht) slab
        # TODO(synk): when Ht < 128 (e.g. 64 here) this store is lane-masked; the
        # 128-wide-view reshape trick was skipped because an in-kernel (tn,64)->
        # (tn/2,128) relayout risks an unsupported Mosaic reshape for a single-digit-%
        # win on a compute-bound kernel.  For Ht a multiple of 128 it is already dense.
        zq_ref[...] = jnp.dot(zq_down, wu_ref[...], preferred_element_type=jnp.float32)
        # TODO(synk): codes could be emitted lane-dense as (P*S, N) via an in-kernel
        # transpose on the idle XLU; kept (N, P*S) (<10% of store traffic) to avoid
        # relying on small-shape int32 transpose lowering.
        codes_ref[...] = jnp.concatenate(code_parts, axis=1)                   # (tn, P*S)
        # ONE reduction of the squared-error accumulator per tile
        ss_ref[...] = jnp.broadcast_to(jnp.sum(ss_vec), ss_ref.shape)

    return kernel


def _product_rvq_pallas(z_rows, wd_bd, wu_bd, cbn_dk, *, num_pvqs, num_streams,
                        freeze_vq, row_tile, n_valid_rows, mxu_dtype,
                        vmem_limit_bytes, use_argmax):
    Np, Ht = z_rows.shape                       # padded row count
    P, S = num_pvqs, num_streams
    d, K = cbn_dk.shape[-2], cbn_dk.shape[-1]
    tn = row_tile
    assert Np % tn == 0 and tn % 8 == 0
    num_tiles = Np // tn

    kernel = _make_fused_kernel(P, S, K, d, freeze_vq, mxu_dtype,
                                use_argmax, tn, n_valid_rows)
    return pl.pallas_call(
        kernel,
        out_shape=(
            jax.ShapeDtypeStruct((Np, Ht), jnp.float32),             # z_q (proj_up'ed)
            jax.ShapeDtypeStruct((Np, P * S), jnp.int32),            # codes
            jax.ShapeDtypeStruct((num_tiles, 1, 128), jnp.float32),  # per-tile SS partials
        ),
        grid=(num_tiles,),
        in_specs=[
            pl.BlockSpec((tn, Ht), lambda i: (i, 0)),
            pl.BlockSpec((Ht, P * d), lambda i: (0, 0)),     # weights stay resident
            pl.BlockSpec((P * d, Ht), lambda i: (0, 0)),
            pl.BlockSpec((P * S, d, K), lambda i: (0, 0, 0)),  # lane-dense codebooks
        ],
        out_specs=(
            pl.BlockSpec((tn, Ht), lambda i: (i, 0)),
            pl.BlockSpec((tn, P * S), lambda i: (i, 0)),
            pl.BlockSpec((1, 1, 128), lambda i: (i, 0, 0)),
        ),
        compiler_params=pltpu.CompilerParams(
            dimension_semantics=("parallel",),               # disjoint tiles -> megacore OK
            vmem_limit_bytes=vmem_limit_bytes),
    )(z_rows, wd_bd, wu_bd, cbn_dk)


# --------------------------------------------------------------------------- #
# one-time parameter prep (hoisted off the hot path, per review)
# --------------------------------------------------------------------------- #
def precompute_fused_params(params, *, num_streams, mxu_dtype=jnp.bfloat16):
    """Build fused kernel params ONCE per parameter update (not per forward step):
    block-diagonal proj_down / proj_up weights and pre-L2-normalized codebooks,
    stored lane-dense as (P*S, d, K) and cast to the MXU dtype.

    NOTE: bf16 codebook/residual feeds mean z_q and losses are not bit-identical to
    the f32 torch reference (near-tie argmax picks can flip); use mxu_dtype=jnp.float32
    here if exact parity matters.
    """
    vq_dims = tuple(int(v) for v in params["vq_dims"])
    P = len(vq_dims)
    Ht = sum(vq_dims)
    d = params["codebooks"][0].shape[-1]
    K = params["codebooks"][0].shape[-2]
    S = num_streams
    assert S <= params["codebooks"][0].shape[0]

    wd_bd = jnp.zeros((Ht, P * d), jnp.float32)
    wu_bd = jnp.zeros((P * d, Ht), jnp.float32)
    off = 0
    for m, Hm in enumerate(vq_dims):
        wd_bd = wd_bd.at[off:off + Hm, m * d:(m + 1) * d].set(params["w_down"][m])
        wu_bd = wu_bd.at[m * d:(m + 1) * d, off:off + Hm].set(params["w_up"][m])
        off += Hm

    cbs = []
    for cb in params["codebooks"]:
        cbn = _l2_normalize(cb[:S].astype(jnp.float32))     # (S, K, d), unit rows
        cbs.append(jnp.transpose(cbn, (0, 2, 1)))           # (S, d, K) lane-dense
    cbn_dk = jnp.stack(cbs, axis=0).reshape(P * S, d, K).astype(mxu_dtype)

    return dict(wd_bd=wd_bd, wu_bd=wu_bd, cbn_dk=cbn_dk, vq_dims=vq_dims,
                num_pvqs=P, num_streams=S, codebook_dim=d, codebook_size=K,
                mxu_dtype=mxu_dtype)


# --------------------------------------------------------------------------- #
# Product Residual VQ forward (glue in plain JAX, hot path in one Pallas kernel)
# --------------------------------------------------------------------------- #
def product_rvq_forward(z_e, fused, *, in_freq, in_dim, overlap, freeze_vq=False):
    B, C, H, W = z_e.shape
    assert C == in_dim and H == in_freq
    fix_dim = in_freq * in_dim
    assert W % overlap == 0, "Time dimension must be multiple of overlap"
    T = W // overlap
    Ht = overlap * fix_dim
    N = B * T
    assert Ht == sum(fused["vq_dims"])

    P, S = fused["num_pvqs"], fused["num_streams"]
    d, K = fused["codebook_dim"], fused["codebook_size"]
    mxu_dtype = fused["mxu_dtype"]

    # pre_process (dims=4): 'b c h w -> b w (c h)' + overlap fold -> (N, Ht) rows.
    # TODO(synk): fold this transpose into the kernel (grid over (b, t), NCHW block
    # read + relayout on the idle XLU) to save one HBM round-trip of the activation;
    # proportionally biggest on v5e's slower HBM.
    z = jnp.transpose(z_e, (0, 3, 1, 2)).reshape(B, W, fix_dim)
    z_rows = z.reshape(N, Ht).astype(jnp.float32)

    row_tile, n_pad, vmem_limit = _choose_tiling(N, Ht, P, S, K, d, mxu_dtype)
    if n_pad != N:   # pad awkward N to a multiple of the tile; padded rows masked from loss
        z_rows = jnp.pad(z_rows, ((0, n_pad - N), (0, 0)))

    zq_rows, codes_rows, ss_parts = _product_rvq_pallas(
        z_rows, fused["wd_bd"], fused["wu_bd"], fused["cbn_dk"],
        num_pvqs=P, num_streams=S, freeze_vq=freeze_vq,
        row_tile=row_tile, n_valid_rows=(N if n_pad != N else None),
        mxu_dtype=mxu_dtype, vmem_limit_bytes=vmem_limit,
        use_argmax=_argmax_lowers())

    # losses: per-tile sums -> global mean (each stream's MSE over N*d elements,
    # summed over streams, averaged over the P product groups).
    ss_total = jnp.sum(ss_parts[:, 0, 0])
    loss = ss_total / jnp.float32(N * d * P)
    cb_loss = loss   # forward value of cb/cm losses is identical (detach affects grads only)
    cm_loss = loss

    # codes: (N, P*S) -> (B, T, P, S) -> (B, S, P, T)  (matches torch.stack dims)
    codes = codes_rows[:N].reshape(B, T, P, S).transpose(0, 3, 2, 1)

    # post_process (dims=4): unfold overlap, then 'b w (c h) -> b c h w'
    z_q = zq_rows[:N].reshape(B, W, fix_dim)
    z_q = z_q.reshape(B, W, in_dim, in_freq).transpose(0, 2, 3, 1)   # (B, C, H, W)

    return {"z_q": z_q, "codes": codes, "cb_loss": cb_loss, "cm_loss": cm_loss}


# --------------------------------------------------------------------------- #
# deterministic parameter construction (synthetic, no checkpoint)
# --------------------------------------------------------------------------- #
def init_params(key, *, in_dim, in_freq, overlap, num_pvqs, num_rvqs,
                codebook_dim, codebook_size):
    fix_dim = in_freq * in_dim
    vq_dims = split_dimension(fix_dim * overlap, num_pvqs)
    w_down, w_up, codebooks = [], [], []
    for Hm in vq_dims:
        key, k1, k2, k3 = jax.random.split(key, 4)
        # stored pre-transposed for (N,Hm)@(Hm,d) / (N,d)@(d,Hm)
        w_down.append(0.02 * jax.random.normal(k1, (Hm, codebook_dim), jnp.float32))
        w_up.append(0.02 * jax.random.normal(k2, (codebook_dim, Hm), jnp.float32))
        codebooks.append(
            jax.random.normal(k3, (num_rvqs, codebook_size, codebook_dim), jnp.float32))
    return {"vq_dims": vq_dims, "w_down": w_down, "w_up": w_up,
            "codebooks": codebooks}


# TODO(synk): training-mode zeroing of streams >= num_streams and the straight-through /
# detach gradient semantics are not representable in this forward-only kernel.

if __name__ == "__main__":
    # small config: C=4, H=4, W=32, overlap=4, 3 product VQs, 6 residual VQs, 4 streams
    B, in_dim, in_freq, W = 2, 4, 4, 32
    overlap, num_pvqs, num_rvqs = 4, 3, 6
    codebook_dim, codebook_size = 8, 1024
    num_streams = 4

    key = jax.random.PRNGKey(0)
    kp, kx = jax.random.split(key)
    params = init_params(kp, in_dim=in_dim, in_freq=in_freq, overlap=overlap,
                         num_pvqs=num_pvqs, num_rvqs=num_rvqs,
                         codebook_dim=codebook_dim, codebook_size=codebook_size)
    fused = precompute_fused_params(params, num_streams=num_streams)   # one-time prep

    z_e = jax.random.normal(kx, (B, in_dim, in_freq, W), jnp.float32)

    out = product_rvq_forward(z_e, fused, in_freq=in_freq, in_dim=in_dim,
                              overlap=overlap, freeze_vq=False)
    jax.block_until_ready(out)

    assert out["z_q"].shape == (B, in_dim, in_freq, W)
    assert out["codes"].shape == (B, num_streams, num_pvqs, W // overlap)
    assert out["codes"].dtype == jnp.int32
    assert out["cb_loss"].shape == () and out["cm_loss"].shape == ()
    assert bool(jnp.isfinite(out["cb_loss"]))
    print("KERNEL_OK")
</pallas_src>

<mosaic_0001>
module attributes {stable_mosaic.version = 11 : i64} {
  func.func @probe(%arg0: memref<8x128xf32, #tpu.memory_space<vmem>>, %arg1: memref<8x1xi32, #tpu.memory_space<vmem>>) attributes {dimension_semantics = [], scalar_prefetch = 0 : i64, scratch_operands = 0 : i64, tpu.core_type = #tpu.core_type<tc>} {
    %c0 = arith.constant 0 : index
    %c0_0 = arith.constant 0 : index
    %0 = vector.load %arg0[%c0, %c0_0] : memref<8x128xf32, #tpu.memory_space<vmem>>, vector<8x128xf32>
    %1 = tpu.reduce_index %0 {axis = 1 : i32, kind = #tpu.reduction_kind<arg_max>} : vector<8x128xf32> -> vector<8xi32>
    %2 = vector.shape_cast %1 : vector<8xi32> to vector<8x1xi32>
    %c0_1 = arith.constant 0 : index
    %c0_2 = arith.constant 0 : index
    %3 = vector.load %arg1[%c0_1, %c0_2] : memref<8x1xi32, #tpu.memory_space<vmem>>, vector<8x1xi32>
    tpu.vector_store %arg1[%c0_1, %c0_2], %2 {strides = array<i32>} : memref<8x1xi32, #tpu.memory_space<vmem>>, vector<8x1xi32>,
    return
  }
}

module attributes {stable_mosaic.version = 11 : i64} {
  func.func @kernel(%arg0: i32, %arg1: memref<8x64xf32, #tpu.memory_space<vmem>>, %arg2: memref<64x24xf32, #tpu.memory_space<vmem>>, %arg3: memref<24x64xf32, #tpu.memory_space<vmem>>, %arg4: memref<12x8x1024xbf16, #tpu.memory_space<vmem>>, %arg5: memref<8x64xf32, #tpu.memory_space<vmem>>, %arg6: memref<8x12xi32, #tpu.memory_space<vmem>>, %arg7: memref<1x1x128xf32, #tpu.memory_space<vmem>>) attributes {dimension_semantics = [#tpu.dimension_semantics<parallel>], iteration_bounds = array<i64: 2>, scalar_prefetch = 0 : i64, scratch_operands = 0 : i64, tpu.core_type = #tpu.core_type<tc>, window_params = [{transform_indices = @transform_0, window_bounds = array<i64: 8, 64>}, {pipeline_mode = #tpu.pipeline_mode<synchronous>, transform_indices = @transform_1, window_bounds = array<i64: 64, 24>}, {pipeline_mode = #tpu.pipeline_mode<synchronous>, transform_indices = @transform_2, window_bounds = array<i64: 24, 64>}, {pipeline_mode = #tpu.pipeline_mode<synchronous>, transform_indices = @transform_3, window_bounds = array<i64: 12, 8, 1024>}, {transform_indices = @transform_4, window_bounds = array<i64: 8, 64>}, {transform_indices = @transform_5, window_bounds = array<i64: 8, 12>}, {transform_indices = @transform_6, window_bounds = array<i64: 1, 1, 128>}]} {
    %c0 = arith.constant 0 : index
    %c0_0 = arith.constant 0 : index
    %0 = vector.load %arg1[%c0, %c0_0] : memref<8x64xf32, #tpu.memory_space<vmem>>, vector<8x64xf32>
    %c0_1 = arith.constant 0 : index
    %c0_2 = arith.constant 0 : index
    %1 = vector.load %arg2[%c0_1, %c0_2] : memref<64x24xf32, #tpu.memory_space<vmem>>, vector<64x24xf32>
    %cst = arith.constant dense<0.000000e+00> : vector<8x24xf32>
    %2 = tpu.matmul %0, %1, %cst {dimension_numbers = #tpu.dot_dimension_numbers<[1], [0], [0], [1], [0, 0, 1, 1], [], []>} : vector<8x64xf32>, vector<64x24xf32>, vector<8x24xf32> -> vector<8x24xf32>
    %3 = tpu.iota {dimensions = array<i32: 1>} : vector<8x1024xi32>
    %4 = tpu.iota {dimensions = array<i32: 1>} : vector<8x4xi32>
    %cst_3 = arith.constant 0.000000e+00 : f32
    %5 = vector.broadcast %cst_3 : f32 to vector<8x8xf32>
    %6 = vector.extract_strided_slice %2 {offsets = [0, 0], sizes = [8, 8], strides = [1, 1]} : vector<8x24xf32> to vector<8x8xf32>
    %cst_4 = arith.constant 0.000000e+00 : f32
    %7 = vector.broadcast %cst_4 : f32 to vector<8x8xf32>
    %c0_i32 = arith.constant 0 : i32
    %8 = vector.broadcast %c0_i32 : i32 to vector<8x4xi32>
    %c0_i32_5 = arith.constant 0 : i32
    %c0_i32_6 = arith.constant 0 : i32
    %9 = arith.addi %c0_i32_6, %c0_i32_5 : i32
    %10 = arith.index_cast %9 : i32 to index
    %c0_7 = arith.constant 0 : index
    %c0_8 = arith.constant 0 : index
    %11 = vector.load %arg4[%10, %c0_7, %c0_8] : memref<12x8x1024xbf16, #tpu.memory_space<vmem>>, vector<1x8x1024xbf16>
    %12 = vector.shape_cast %11 : vector<1x8x1024xbf16> to vector<8x1024xbf16>
    %13 = arith.truncf %6 : vector<8x8xf32> to vector<8x8xbf16>
    %cst_9 = arith.constant dense<0.000000e+00> : vector<8x1024xf32>
    %14 = tpu.matmul %13, %12, %cst_9 {dimension_numbers = #tpu.dot_dimension_numbers<[1], [0], [0], [1], [0, 0, 1, 1], [], []>} : vector<8x8xbf16>, vector<8x1024xbf16>, vector<8x1024xf32> -> vector<8x1024xf32>
    %cst_10 = arith.constant dense<0xFF800000> : vector<8xf32>
    %15 = vector.multi_reduction <maximumf>, %14, %cst_10 [1] : vector<8x1024xf32> to vector<8xf32>
    %16 = vector.shape_cast %15 : vector<8xf32> to vector<8x1xf32>
    %17 = vector.broadcast %16 : vector<8x1xf32> to vector<8x1024xf32>
    %18 = arith.cmpf oge, %14, %17 : vector<8x1024xf32>
    %c1024_i32 = arith.constant 1024 : i32
    %19 = vector.broadcast %c1024_i32 : i32 to vector<8x1024xi32>
    %20 = arith.select %18, %3, %19 : vector<8x1024xi1>, vector<8x1024xi32>
    %cst_11 = arith.constant dense<2147483647> : vector<8xi32>
    %21 = vector.multi_reduction <minsi>, %20, %cst_11 [1] : vector<8x1024xi32> to vector<8xi32>
    %22 = vector.shape_cast %21 : vector<8xi32> to vector<8x1xi32>
    %23 = vector.broadcast %22 : vector<8x1xi32> to vector<8x1024xi32>
    %24 = arith.cmpi eq, %3, %23 : vector<8x1024xi32>
    %25 = arith.extui %24 : vector<8x1024xi1> to vector<8x1024xi32>
    %26 = arith.sitofp %25 : vector<8x1024xi32> to vector<8x1024xf32>
    %27 = arith.truncf %26 : vector<8x1024xf32> to vector<8x1024xbf16>
    %cst_12 = arith.constant dense<0.000000e+00> : vector<8x8xf32>
    %28 = tpu.matmul %27, %12, %cst_12 {dimension_numbers = #tpu.dot_dimension_numbers<[1], [1], [0], [0], [0, 0, 1, 0], [], []>} : vector<8x1024xbf16>, vector<8x1024xbf16>, vector<8x8xf32> -> vector<8x8xf32>
    %29 = arith.subf %6, %28 : vector<8x8xf32>
    %30 = vector.broadcast %c0_i32_5 : i32 to vector<8x4xi32>
    %31 = arith.cmpi eq, %4, %30 : vector<8x4xi32>
    %32 = vector.shape_cast %22 : vector<8x1xi32> to vector<8x1xi32>
    %33 = vector.broadcast %32 : vector<8x1xi32> to vector<8x4xi32>
    %34 = arith.select %31, %33, %8 : vector<8x4xi1>, vector<8x4xi32>
    %35 = arith.addf %7, %28 : vector<8x8xf32>
    %36 = arith.mulf %29, %29 : vector<8x8xf32>
    %37 = arith.addf %5, %36 : vector<8x8xf32>
    %c1_i32 = arith.constant 1 : i32
    %c0_i32_13 = arith.constant 0 : i32
    %38 = arith.addi %c0_i32_13, %c1_i32 : i32
    %39 = arith.index_cast %38 : i32 to index
    %c0_14 = arith.constant 0 : index
    %c0_15 = arith.constant 0 : index
    %40 = vector.load %arg4[%39, %c0_14, %c0_15] : memref<12x8x1024xbf16, #tpu.memory_space<vmem>>, vector<1x8x1024xbf16>
    %41 = vector.shape_cast %40 : vector<1x8x1024xbf16> to vector<8x1024xbf16>
    %42 = arith.truncf %29 : vector<8x8xf32> to vector<8x8xbf16>
    %cst_16 = arith.constant dense<0.000000e+00> : vector<8x1024xf32>
    %43 = tpu.matmul %42, %41, %cst_16 {dimension_numbers = #tpu.dot_dimension_numbers<[1], [0], [0], [1], [0, 0, 1, 1], [], []>} : vector<8x8xbf16>, vector<8x1024xbf16>, vector<8x1024xf32> -> vector<8x1024xf32>
    %cst_17 = arith.constant dense<0xFF800000> : vector<8xf32>
    %44 = vector.multi_reduction <maximumf>, %43, %cst_17 [1] : vector<8x1024xf32> to vector<8xf32>
    %45 = vector.shape_cast %44 : vector<8xf32> to vector<8x1xf32>
    %46 = vector.broadcast %45 : vector<8x1xf32> to vector<8x1024xf32>
    %47 = arith.cmpf oge, %43, %46 : vector<8x1024xf32>
    %c1024_i32_18 = arith.constant 1024 : i32
    %48 = vector.broadcast %c1024_i32_18 : i32 to vector<8x1024xi32>
    %49 = arith.select %47, %3, %48 : vector<8x1024xi1>, vector<8x1024xi32>
    %cst_19 = arith.constant dense<2147483647> : vector<8xi32>
    %50 = vector.multi_reduction <minsi>, %49, %cst_19 [1] : vector<8x1024xi32> to vector<8xi32>
    %51 = vector.shape_cast %50 : vector<8xi32> to vector<8x1xi32>
    %52 = vector.broadcast %51 : vector<8x1xi32> to vector<8x1024xi32>
    %53 = arith.cmpi eq, %3, %52 : vector<8x1024xi32>
    %54 = arith.extui %53 : vector<8x1024xi1> to vector<8x1024xi32>
    %55 = arith.sitofp %54 : vector<8x1024xi32> to vector<8x1024xf32>
    %56 = arith.truncf %55 : vector<8x1024xf32> to vector<8x1024xbf16>
    %cst_20 = arith.constant dense<0.000000e+00> : vector<8x8xf32>
    %57 = tpu.matmul %56, %41, %cst_20 {dimension_numbers = #tpu.dot_dimension_numbers<[1], [1], [0], [0], [0, 0, 1, 0], [], []>} : vector<8x1024xbf16>, vector<8x1024xbf16>, vector<8x8xf32> -> vector<8x8xf32>
    %58 = arith.subf %29, %57 : vector<8x8xf32>
    %59 = vector.broadcast %c1_i32 : i32 to vector<8x4xi32>
    %60 = arith.cmpi eq, %4, %59 : vector<8x4xi32>
    %61 = vector.shape_cast %51 : vector<8x1xi32> to vector<8x1xi32>
    %62 = vector.broadcast %61 : vector<8x1xi32> to vector<8x4xi32>
    %63 = arith.select %60, %62, %34 : vector<8x4xi1>, vector<8x4xi32>
    %64 = arith.addf %35, %57 : vector<8x8xf32>
    %65 = arith.mulf %58, %58 : vector<8x8xf32>
    %66 = arith.addf %37, %65 : vector<8x8xf32>
    %c2_i32 = arith.constant 2 : i32
    %c0_i32_21 = arith.constant 0 : i32
    %67 = arith.addi %c0_i32_21, %c2_i32 : i32
    %68 = arith.index_cast %67 : i32 to index
    %c0_22 = arith.constant 0 : index
    %c0_23 = arith.constant 0 : index
    %69 = vector.load %arg4[%68, %c0_22, %c0_23] : memref<12x8x1024xbf16, #tpu.memory_space<vmem>>, vector<1x8x1024xbf16>
    %70 = vector.shape_cast %69 : vector<1x8x1024xbf16> to vector<8x1024xbf16>
    %71 = arith.truncf %58 : vector<8x8xf32> to vector<8x8xbf16>
    %cst_24 = arith.constant dense<0.000000e+00> : vector<8x1024xf32>
    %72 = tpu.matmul %71, %70, %cst_24 {dimension_numbers = #tpu.dot_dimension_numbers<[1], [0], [0], [1], [0, 0, 1, 1], [], []>} : vector<8x8xbf16>, vector<8x1024xbf16>, vector<8x1024xf32> -> vector<8x1024xf32>
    %cst_25 = arith.constant dense<0xFF800000> : vector<8xf32>
    %73 = vector.multi_reduction <maximumf>, %72, %cst_25 [1] : vector<8x1024xf32> to vector<8xf32>
    %74 = vector.shape_cast %73 : vector<8xf32> to vector<8x1xf32>
    %75 = vector.broadcast %74 : vector<8x1xf32> to vector<8x1024xf32>
    %76 = arith.cmpf oge, %72, %75 : vector<8x1024xf32>
    %c1024_i32_26 = arith.constant 1024 : i32
    %77 = vector.broadcast %c1024_i32_26 : i32 to vector<8x1024xi32>
    %78 = arith.select %76, %3, %77 : vector<8x1024xi1>, vector<8x1024xi32>
    %cst_27 = arith.constant dense<2147483647> : vector<8xi32>
    %79 = vector.multi_reduction <minsi>, %78, %cst_27 [1] : vector<8x1024xi32> to vector<8xi32>
    %80 = vector.shape_cast %79 : vector<8xi32> to vector<8x1xi32>
    %81 = vector.broadcast %80 : vector<8x1xi32> to vector<8x1024xi32>
    %82 = arith.cmpi eq, %3, %81 : vector<8x1024xi32>
    %83 = arith.extui %82 : vector<8x1024xi1> to vector<8x1024xi32>
    %84 = arith.sitofp %83 : vector<8x1024xi32> to vector<8x1024xf32>
    %85 = arith.truncf %84 : vector<8x1024xf32> to vector<8x1024xbf16>
    %cst_28 = arith.constant dense<0.000000e+00> : vector<8x8xf32>
    %86 = tpu.matmul %85, %70, %cst_28 {dimension_numbers = #tpu.dot_dimension_numbers<[1], [1], [0], [0], [0, 0, 1, 0], [], []>} : vector<8x1024xbf16>, vector<8x1024xbf16>, vector<8x8xf32> -> vector<8x8xf32>
    %87 = arith.subf %58, %86 : vector<8x8xf32>
    %88 = vector.broadcast %c2_i32 : i32 to vector<8x4xi32>
    %89 = arith.cmpi eq, %4, %88 : vector<8x4xi32>
    %90 = vector.shape_cast %80 : vector<8x1xi32> to vector<8x1xi32>
    %91 = vector.broadcast %90 : vector<8x1xi32> to vector<8x4xi32>
    %92 = arith.select %89, %91, %63 : vector<8x4xi1>, vector<8x4xi32>
    %93 = arith.addf %64, %86 : vector<8x8xf32>
    %94 = arith.mulf %87, %87 : vector<8x8xf32>
    %95 = arith.addf %66, %94 : vector<8x8xf32>
    %c3_i32 = arith.constant 3 : i32
    %c0_i32_29 = arith.constant 0 : i32
    %96 = arith.addi %c0_i32_29, %c3_i32 : i32
    %97 = arith.index_cast %96 : i32 to index
    %c0_30 = arith.constant 0 : index
    %c0_31 = arith.constant 0 : index
    %98 = vector.load %arg4[%97, %c0_30, %c0_31] : memref<12x8x1024xbf16, #tpu.memory_space<vmem>>, vector<1x8x1024xbf16>
    %99 = vector.shape_cast %98 : vector<1x8x1024xbf16> to vector<8x1024xbf16>
    %100 = arith.truncf %87 : vector<8x8xf32> to vector<8x8xbf16>
    %cst_32 = arith.constant dense<0.000000e+00> : vector<8x1024xf32>
    %101 = tpu.matmul %100, %99, %cst_32 {dimension_numbers = #tpu.dot_dimension_numbers<[1], [0], [0], [1], [0, 0, 1, 1], [], []>} : vector<8x8xbf16>, vector<8x1024xbf16>, vector<8x1024xf32> -> vector<8x1024xf32>
    %cst_33 = arith.constant dense<0xFF800000> : vector<8xf32>
    %102 = vector.multi_reduction <maximumf>, %101, %cst_33 [1] : vector<8x1024xf32> to vector<8xf32>
    %103 = vector.shape_cast %102 : vector<8xf32> to vector<8x1xf32>
    %104 = vector.broadcast %103 : vector<8x1xf32> to vector<8x1024xf32>
    %105 = arith.cmpf oge, %101, %104 : vector<8x1024xf32>
    %c1024_i32_34 = arith.constant 1024 : i32
    %106 = vector.broadcast %c1024_i32_34 : i32 to vector<8x1024xi32>
    %107 = arith.select %105, %3, %106 : vector<8x1024xi1>, vector<8x1024xi32>
    %cst_35 = arith.constant dense<2147483647> : vector<8xi32>
    %108 = vector.multi_reduction <minsi>, %107, %cst_35 [1] : vector<8x1024xi32> to vector<8xi32>
    %109 = vector.shape_cast %108 : vector<8xi32> to vector<8x1xi32>
    %110 = vector.broadcast %109 : vector<8x1xi32> to vector<8x1024xi32>
    %111 = arith.cmpi eq, %3, %110 : vector<8x1024xi32>
    %112 = arith.extui %111 : vector<8x1024xi1> to vector<8x1024xi32>
    %113 = arith.sitofp %112 : vector<8x1024xi32> to vector<8x1024xf32>
    %114 = arith.truncf %113 : vector<8x1024xf32> to vector<8x1024xbf16>
    %cst_36 = arith.constant dense<0.000000e+00> : vector<8x8xf32>
    %115 = tpu.matmul %114, %99, %cst_36 {dimension_numbers = #tpu.dot_dimension_numbers<[1], [1], [0], [0], [0, 0, 1, 0], [], []>} : vector<8x1024xbf16>, vector<8x1024xbf16>, vector<8x8xf32> -> vector<8x8xf32>
    %116 = arith.subf %87, %115 : vector<8x8xf32>
    %117 = vector.broadcast %c3_i32 : i32 to vector<8x4xi32>
    %118 = arith.cmpi eq, %4, %117 : vector<8x4xi32>
    %119 = vector.shape_cast %109 : vector<8x1xi32> to vector<8x1xi32>
    %120 = vector.broadcast %119 : vector<8x1xi32> to vector<8x4xi32>
    %121 = arith.select %118, %120, %92 : vector<8x4xi1>, vector<8x4xi32>
    %122 = arith.addf %93, %115 : vector<8x8xf32>
    %123 = arith.mulf %116, %116 : vector<8x8xf32>
    %124 = arith.addf %95, %123 : vector<8x8xf32>
    %c4_i32 = arith.constant 4 : i32
    %125 = vector.extract_strided_slice %2 {offsets = [0, 8], sizes = [8, 8], strides = [1, 1]} : vector<8x24xf32> to vector<8x8xf32>
    %cst_37 = arith.constant 0.000000e+00 : f32
    %126 = vector.broadcast %cst_37 : f32 to vector<8x8xf32>
    %c0_i32_38 = arith.constant 0 : i32
    %127 = vector.broadcast %c0_i32_38 : i32 to vector<8x4xi32>
    %c0_i32_39 = arith.constant 0 : i32
    %c4_i32_40 = arith.constant 4 : i32
    %128 = arith.addi %c4_i32_40, %c0_i32_39 : i32
    %129 = arith.index_cast %128 : i32 to index
    %c0_41 = arith.constant 0 : index
    %c0_42 = arith.constant 0 : index
    %130 = vector.load %arg4[%129, %c0_41, %c0_42] : memref<12x8x1024xbf16, #tpu.memory_space<vmem>>, vector<1x8x1024xbf16>
    %131 = vector.shape_cast %130 : vector<1x8x1024xbf16> to vector<8x1024xbf16>
    %132 = arith.truncf %125 : vector<8x8xf32> to vector<8x8xbf16>
    %cst_43 = arith.constant dense<0.000000e+00> : vector<8x1024xf32>
    %133 = tpu.matmul %132, %131, %cst_43 {dimension_numbers = #tpu.dot_dimension_numbers<[1], [0], [0], [1], [0, 0, 1, 1], [], []>} : vector<8x8xbf16>, vector<8x1024xbf16>, vector<8x1024xf32> -> vector<8x1024xf32>
    %cst_44 = arith.constant dense<0xFF800000> : vector<8xf32>
    %134 = vector.multi_reduction <maximumf>, %133, %cst_44 [1] : vector<8x1024xf32> to vector<8xf32>
    %135 = vector.shape_cast %134 : vector<8xf32> to vector<8x1xf32>
    %136 = vector.broadcast %135 : vector<8x1xf32> to vector<8x1024xf32>
    %137 = arith.cmpf oge, %133, %136 : vector<8x1024xf32>
    %c1024_i32_45 = arith.constant 1024 : i32
    %138 = vector.broadcast %c1024_i32_45 : i32 to vector<8x1024xi32>
    %139 = arith.select %137, %3, %138 : vector<8x1024xi1>, vector<8x1024xi32>
    %cst_46 = arith.constant dense<2147483647> : vector<8xi32>
    %140 = vector.multi_reduction <minsi>, %139, %cst_46 [1] : vector<8x1024xi32> to vector<8xi32>
    %141 = vector.shape_cast %140 : vector<8xi32> to vector<8x1xi32>
    %142 = vector.broadcast %141 : vector<8x1xi32> to vector<8x1024xi32>
    %143 = arith.cmpi eq, %3, %142 : vector<8x1024xi32>
    %144 = arith.extui %143 : vector<8x1024xi1> to vector<8x1024xi32>
    %145 = arith.sitofp %144 : vector<8x1024xi32> to vector<8x1024xf32>
    %146 = arith.truncf %145 : vector<8x1024xf32> to vector<8x1024xbf16>
    %cst_47 = arith.constant dense<0.000000e+00> : vector<8x8xf32>
    %147 = tpu.matmul %146, %131, %cst_47 {dimension_numbers = #tpu.dot_dimension_numbers<[1], [1], [0], [0], [0, 0, 1, 0], [], []>} : vector<8x1024xbf16>, vector<8x1024xbf16>, vector<8x8xf32> -> vector<8x8xf32>
    %148 = arith.subf %125, %147 : vector<8x8xf32>
    %149 = vector.broadcast %c0_i32_39 : i32 to vector<8x4xi32>
    %150 = arith.cmpi eq, %4, %149 : vector<8x4xi32>
    %151 = vector.shape_cast %141 : vector<8x1xi32> to vector<8x1xi32>
    %152 = vector.broadcast %151 : vector<8x1xi32> to vector<8x4xi32>
    %153 = arith.select %150, %152, %127 : vector<8x4xi1>, vector<8x4xi32>
    %154 = arith.addf %126, %147 : vector<8x8xf32>
    %155 = arith.mulf %148, %148 : vector<8x8xf32>
    %156 = arith.addf %124, %155 : vector<8x8xf32>
    %c1_i32_48 = arith.constant 1 : i32
    %c4_i32_49 = arith.constant 4 : i32
    %157 = arith.addi %c4_i32_49, %c1_i32_48 : i32
    %158 = arith.index_cast %157 : i32 to index
    %c0_50 = arith.constant 0 : index
    %c0_51 = arith.constant 0 : index
    %159 = vector.load %arg4[%158, %c0_50, %c0_51] : memref<12x8x1024xbf16, #tpu.memory_space<vmem>>, vector<1x8x1024xbf16>
    %160 = vector.shape_cast %159 : vector<1x8x1024xbf16> to vector<8x1024xbf16>
    %161 = arith.truncf %148 : vector<8x8xf32> to vector<8x8xbf16>
    %cst_52 = arith.constant dense<0.000000e+00> : vector<8x1024xf32>
    %162 = tpu.matmul %161, %160, %cst_52 {dimension_numbers = #tpu.dot_dimension_numbers<[1], [0], [0], [1], [0, 0, 1, 1], [], []>} : vector<8x8xbf16>, vector<8x1024xbf16>, vector<8x1024xf32> -> vector<8x1024xf32>
    %cst_53 = arith.constant dense<0xFF800000> : vector<8xf32>
    %163 = vector.multi_reduction <maximumf>, %162, %cst_53 [1] : vector<8x1024xf32> to vector<8xf32>
    %164 = vector.shape_cast %163 : vector<8xf32> to vector<8x1xf32>
    %165 = vector.broadcast %164 : vector<8x1xf32> to vector<8x1024xf32>
    %166 = arith.cmpf oge, %162, %165 : vector<8x1024xf32>
    %c1024_i32_54 = arith.constant 1024 : i32
    %167 = vector.broadcast %c1024_i32_54 : i32 to vector<8x1024xi32>
    %168 = arith.select %166, %3, %167 : vector<8x1024xi1>, vector<8x1024xi32>
    %cst_55 = arith.constant dense<2147483647> : vector<8xi32>
    %169 = vector.multi_reduction <minsi>, %168, %cst_55 [1] : vector<8x1024xi32> to vector<8xi32>
    %170 = vector.shape_cast %169 : vector<8xi32> to vector<8x1xi32>
    %171 = vector.broadcast %170 : vector<8x1xi32> to vector<8x1024xi32>
    %172 = arith.cmpi eq, %3, %171 : vector<8x1024xi32>
    %173 = arith.extui %172 : vector<8x1024xi1> to vector<8x1024xi32>
    %174 = arith.sitofp %173 : vector<8x1024xi32> to vector<8x1024xf32>
    %175 = arith.truncf %174 : vector<8x1024xf32> to vector<8x1024xbf16>
    %cst_56 = arith.constant dense<0.000000e+00> : vector<8x8xf32>
    %176 = tpu.matmul %175, %160, %cst_56 {dimension_numbers = #tpu.dot_dimension_numbers<[1], [1], [0], [0], [0, 0, 1, 0], [], []>} : vector<8x1024xbf16>, vector<8x1024xbf16>, vector<8x8xf32> -> vector<8x8xf32>
    %177 = arith.subf %148, %176 : vector<8x8xf32>
    %178 = vector.broadcast %c1_i32_48 : i32 to vector<8x4xi32>
    %179 = arith.cmpi eq, %4, %178 : vector<8x4xi32>
    %180 = vector.shape_cast %170 : vector<8x1xi32> to vector<8x1xi32>
    %181 = vector.broadcast %180 : vector<8x1xi32> to vector<8x4xi32>
    %182 = arith.select %179, %181, %153 : vector<8x4xi1>, vector<8x4xi32>
    %183 = arith.addf %154, %176 : vector<8x8xf32>
    %184 = arith.mulf %177, %177 : vector<8x8xf32>
    %185 = arith.addf %156, %184 : vector<8x8xf32>
    %c2_i32_57 = arith.constant 2 : i32
    %c4_i32_58 = arith.constant 4 : i32
    %186 = arith.addi %c4_i32_58, %c2_i32_57 : i32
    %187 = arith.index_cast %186 : i32 to index
    %c0_59 = arith.constant 0 : index
    %c0_60 = arith.constant 0 : index
    %188 = vector.load %arg4[%187, %c0_59, %c0_60] : memref<12x8x1024xbf16, #tpu.memory_space<vmem>>, vector<1x8x1024xbf16>
    %189 = vector.shape_cast %188 : vector<1x8x1024xbf16> to vector<8x1024xbf16>
    %190 = arith.truncf %177 : vector<8x8xf32> to vector<8x8xbf16>
    %cst_61 = arith.constant dense<0.000000e+00> : vector<8x1024xf32>
    %191 = tpu.matmul %190, %189, %cst_61 {dimension_numbers = #tpu.dot_dimension_numbers<[1], [0], [0], [1], [0, 0, 1, 1], [], []>} : vector<8x8xbf16>, vector<8x1024xbf16>, vector<8x1024xf32> -> vector<8x1024xf32>
    %cst_62 = arith.constant dense<0xFF800000> : vector<8xf32>
    %192 = vector.multi_reduction <maximumf>, %191, %cst_62 [1] : vector<8x1024xf32> to vector<8xf32>
    %193 = vector.shape_cast %192 : vector<8xf32> to vector<8x1xf32>
    %194 = vector.broadcast %193 : vector<8x1xf32> to vector<8x1024xf32>
    %195 = arith.cmpf oge, %191, %194 : vector<8x1024xf32>
    %c1024_i32_63 = arith.constant 1024 : i32
    %196 = vector.broadcast %c1024_i32_63 : i32 to vector<8x1024xi32>
    %197 = arith.select %195, %3, %196 : vector<8x1024xi1>, vector<8x1024xi32>
    %cst_64 = arith.constant dense<2147483647> : vector<8xi32>
    %198 = vector.multi_reduction <minsi>, %197, %cst_64 [1] : vector<8x1024xi32> to vector<8xi32>
    %199 = vector.shape_cast %198 : vector<8xi32> to vector<8x1xi32>
    %200 = vector.broadcast %199 : vector<8x1xi32> to vector<8x1024xi32>
    %201 = arith.cmpi eq, %3, %200 : vector<8x1024xi32>
    %202 = arith.extui %201 : vector<8x1024xi1> to vector<8x1024xi32>
    %203 = arith.sitofp %202 : vector<8x1024xi32> to vector<8x1024xf32>
    %204 = arith.truncf %203 : vector<8x1024xf32> to vector<8x1024xbf16>
    %cst_65 = arith.constant dense<0.000000e+00> : vector<8x8xf32>
    %205 = tpu.matmul %204, %189, %cst_65 {dimension_numbers = #tpu.dot_dimension_numbers<[1], [1], [0], [0], [0, 0, 1, 0], [], []>} : vector<8x1024xbf16>, vector<8x1024xbf16>, vector<8x8xf32> -> vector<8x8xf32>
    %206 = arith.subf %177, %205 : vector<8x8xf32>
    %207 = vector.broadcast %c2_i32_57 : i32 to vector<8x4xi32>
    %208 = arith.cmpi eq, %4, %207 : vector<8x4xi32>
    %209 = vector.shape_cast %199 : vector<8x1xi32> to vector<8x1xi32>
    %210 = vector.broadcast %209 : vector<8x1xi32> to vector<8x4xi32>
    %211 = arith.select %208, %210, %182 : vector<8x4xi1>, vector<8x4xi32>
    %212 = arith.addf %183, %205 : vector<8x8xf32>
    %213 = arith.mulf %206, %206 : vector<8x8xf32>
    %214 = arith.addf %185, %213 : vector<8x8xf32>
    %c3_i32_66 = arith.constant 3 : i32
    %c4_i32_67 = arith.constant 4 : i32
    %215 = arith.addi %c4_i32_67, %c3_i32_66 : i32
    %216 = arith.index_cast %215 : i32 to index
    %c0_68 = arith.constant 0 : index
    %c0_69 = arith.constant 0 : index
    %217 = vector.load %arg4[%216, %c0_68, %c0_69] : memref<12x8x1024xbf16, #tpu.memory_space<vmem>>, vector<1x8x1024xbf16>
    %218 = vector.shape_cast %217 : vector<1x8x1024xbf16> to vector<8x1024xbf16>
    %219 = arith.truncf %206 : vector<8x8xf32> to vector<8x8xbf16>
    %cst_70 = arith.constant dense<0.000000e+00> : vector<8x1024xf32>
    %220 = tpu.matmul %219, %218, %cst_70 {dimension_numbers = #tpu.dot_dimension_numbers<[1], [0], [0], [1], [0, 0, 1, 1], [], []>} : vector<8x8xbf16>, vector<8x1024xbf16>, vector<8x1024xf32> -> vector<8x1024xf32>
    %cst_71 = arith.constant dense<0xFF800000> : vector<8xf32>
    %221 = vector.multi_reduction <maximumf>, %220, %cst_71 [1] : vector<8x1024xf32> to vector<8xf32>
    %222 = vector.shape_cast %221 : vector<8xf32> to vector<8x1xf32>
    %223 = vector.broadcast %222 : vector<8x1xf32> to vector<8x1024xf32>
    %224 = arith.cmpf oge, %220, %223 : vector<8x1024xf32>
    %c1024_i32_72 = arith.constant 1024 : i32
    %225 = vector.broadcast %c1024_i32_72 : i32 to vector<8x1024xi32>
    %226 = arith.select %224, %3, %225 : vector<8x1024xi1>, vector<8x1024xi32>
    %cst_73 = arith.constant dense<2147483647> : vector<8xi32>
    %227 = vector.multi_reduction <minsi>, %226, %cst_73 [1] : vector<8x1024xi32> to vector<8xi32>
    %228 = vector.shape_cast %227 : vector<8xi32> to vector<8x1xi32>
    %229 = vector.broadcast %228 : vector<8x1xi32> to vector<8x1024xi32>
    %230 = arith.cmpi eq, %3, %229 : vector<8x1024xi32>
    %231 = arith.extui %230 : vector<8x1024xi1> to vector<8x1024xi32>
    %232 = arith.sitofp %231 : vector<8x1024xi32> to vector<8x1024xf32>
    %233 = arith.truncf %232 : vector<8x1024xf32> to vector<8x1024xbf16>
    %cst_74 = arith.constant dense<0.000000e+00> : vector<8x8xf32>
    %234 = tpu.matmul %233, %218, %cst_74 {dimension_numbers = #tpu.dot_dimension_numbers<[1], [1], [0], [0], [0, 0, 1, 0], [], []>} : vector<8x1024xbf16>, vector<8x1024xbf16>, vector<8x8xf32> -> vector<8x8xf32>
    %235 = arith.subf %206, %234 : vector<8x8xf32>
    %236 = vector.broadcast %c3_i32_66 : i32 to vector<8x4xi32>
    %237 = arith.cmpi eq, %4, %236 : vector<8x4xi32>
    %238 = vector.shape_cast %228 : vector<8x1xi32> to vector<8x1xi32>
    %239 = vector.broadcast %238 : vector<8x1xi32> to vector<8x4xi32>
    %240 = arith.select %237, %239, %211 : vector<8x4xi1>, vector<8x4xi32>
    %241 = arith.addf %212, %234 : vector<8x8xf32>
    %242 = arith.mulf %235, %235 : vector<8x8xf32>
    %243 = arith.addf %214, %242 : vector<8x8xf32>
    %c4_i32_75 = arith.constant 4 : i32
    %244 = vector.extract_strided_slice %2 {offsets = [0, 16], sizes = [8, 8], strides = [1, 1]} : vector<8x24xf32> to vector<8x8xf32>
    %cst_76 = arith.constant 0.000000e+00 : f32
    %245 = vector.broadcast %cst_76 : f32 to vector<8x8xf32>
    %c0_i32_77 = arith.constant 0 : i32
    %246 = vector.broadcast %c0_i32_77 : i32 to vector<8x4xi32>
    %c0_i32_78 = arith.constant 0 : i32
    %c8_i32 = arith.constant 8 : i32
    %247 = arith.addi %c8_i32, %c0_i32_78 : i32
    %248 = arith.index_cast %247 : i32 to index
    %c0_79 = arith.constant 0 : index
    %c0_80 = arith.constant 0 : index
    %249 = vector.load %arg4[%248, %c0_79, %c0_80] : memref<12x8x1024xbf16, #tpu.memory_space<vmem>>, vector<1x8x1024xbf16>
    %250 = vector.shape_cast %249 : vector<1x8x1024xbf16> to vector<8x1024xbf16>
    %251 = arith.truncf %244 : vector<8x8xf32> to vector<8x8xbf16>
    %cst_81 = arith.constant dense<0.000000e+00> : vector<8x1024xf32>
    %252 = tpu.matmul %251, %250, %cst_81 {dimension_numbers = #tpu.dot_dimension_numbers<[1], [0], [0], [1], [0, 0, 1, 1], [], []>} : vector<8x8xbf16>, vector<8x1024xbf16>, vector<8x1024xf32> -> vector<8x1024xf32>
    %cst_82 = arith.constant dense<0xFF800000> : vector<8xf32>
    %253 = vector.multi_reduction <maximumf>, %252, %cst_82 [1] : vector<8x1024xf32> to vector<8xf32>
    %254 = vector.shape_cast %253 : vector<8xf32> to vector<8x1xf32>
    %255 = vector.broadcast %254 : vector<8x1xf32> to vector<8x1024xf32>
    %256 = arith.cmpf oge, %252, %255 : vector<8x1024xf32>
    %c1024_i32_83 = arith.constant 1024 : i32
    %257 = vector.broadcast %c1024_i32_83 : i32 to vector<8x1024xi32>
    %258 = arith.select %256, %3, %257 : vector<8x1024xi1>, vector<8x1024xi32>
    %cst_84 = arith.constant dense<2147483647> : vector<8xi32>
    %259 = vector.multi_reduction <minsi>, %258, %cst_84 [1] : vector<8x1024xi32> to vector<8xi32>
    %260 = vector.shape_cast %259 : vector<8xi32> to vector<8x1xi32>
    %261 = vector.broadcast %260 : vector<8x1xi32> to vector<8x1024xi32>
    %262 = arith.cmpi eq, %3, %261 : vector<8x1024xi32>
    %263 = arith.extui %262 : vector<8x1024xi1> to vector<8x1024xi32>
    %264 = arith.sitofp %263 : vector<8x1024xi32> to vector<8x1024xf32>
    %265 = arith.truncf %264 : vector<8x1024xf32> to vector<8x1024xbf16>
    %cst_85 = arith.constant dense<0.000000e+00> : vector<8x8xf32>
    %266 = tpu.matmul %265, %250, %cst_85 {dimension_numbers = #tpu.dot_dimension_numbers<[1], [1], [0], [0], [0, 0, 1, 0], [], []>} : vector<8x1024xbf16>, vector<8x1024xbf16>, vector<8x8xf32> -> vector<8x8xf32>
    %267 = arith.subf %244, %266 : vector<8x8xf32>
    %268 = vector.broadcast %c0_i32_78 : i32 to vector<8x4xi32>
    %269 = arith.cmpi eq, %4, %268 : vector<8x4xi32>
    %270 = vector.shape_cast %260 : vector<8x1xi32> to vector<8x1xi32>
    %271 = vector.broadcast %270 : vector<8x1xi32> to vector<8x4xi32>
    %272 = arith.select %269, %271, %246 : vector<8x4xi1>, vector<8x4xi32>
    %273 = arith.addf %245, %266 : vector<8x8xf32>
    %274 = arith.mulf %267, %267 : vector<8x8xf32>
    %275 = arith.addf %243, %274 : vector<8x8xf32>
    %c1_i32_86 = arith.constant 1 : i32
    %c8_i32_87 = arith.constant 8 : i32
    %276 = arith.addi %c8_i32_87, %c1_i32_86 : i32
    %277 = arith.index_cast %276 : i32 to index
    %c0_88 = arith.constant 0 : index
    %c0_89 = arith.constant 0 : index
    %278 = vector.load %arg4[%277, %c0_88, %c0_89] : memref<12x8x1024xbf16, #tpu.memory_space<vmem>>, vector<1x8x1024xbf16>
    %279 = vector.shape_cast %278 : vector<1x8x1024xbf16> to vector<8x1024xbf16>
    %280 = arith.truncf %267 : vector<8x8xf32> to vector<8x8xbf16>
    %cst_90 = arith.constant dense<0.000000e+00> : vector<8x1024xf32>
    %281 = tpu.matmul %280, %279, %cst_90 {dimension_numbers = #tpu.dot_dimension_numbers<[1], [0], [0], [1], [0, 0, 1, 1], [], []>} : vector<8x8xbf16>, vector<8x1024xbf16>, vector<8x1024xf32> -> vector<8x1024xf32>
    %cst_91 = arith.constant dense<0xFF800000> : vector<8xf32>
    %282 = vector.multi_reduction <maximumf>, %281, %cst_91 [1] : vector<8x1024xf32> to vector<8xf32>
    %283 = vector.shape_cast %282 : vector<8xf32> to vector<8x1xf32>
    %284 = vector.broadcast %283 : vector<8x1xf32> to vector<8x1024xf32>
    %285 = arith.cmpf oge, %281, %284 : vector<8x1024xf32>
    %c1024_i32_92 = arith.constant 1024 : i32
    %286 = vector.broadcast %c1024_i32_92 : i32 to vector<8x1024xi32>
    %287 = arith.select %285, %3, %286 : vector<8x1024xi1>, vector<8x1024xi32>
    %cst_93 = arith.constant dense<2147483647> : vector<8xi32>
    %288 = vector.multi_reduction <minsi>, %287, %cst_93 [1] : vector<8x1024xi32> to vector<8xi32>
    %289 = vector.shape_cast %288 : vector<8xi32> to vector<8x1xi32>
    %290 = vector.broadcast %289 : vector<8x1xi32> to vector<8x1024xi32>
    %291 = arith.cmpi eq, %3, %290 : vector<8x1024xi32>
    %292 = arith.extui %291 : vector<8x1024xi1> to vector<8x1024xi32>
    %293 = arith.sitofp %292 : vector<8x1024xi32> to vector<8x1024xf32>
    %294 = arith.truncf %293 : vector<8x1024xf32> to vector<8x1024xbf16>
    %cst_94 = arith.constant dense<0.000000e+00> : vector<8x8xf32>
    %295 = tpu.matmul %294, %279, %cst_94 {dimension_numbers = #tpu.dot_dimension_numbers<[1], [1], [0], [0], [0, 0, 1, 0], [], []>} : vector<8x1024xbf16>, vector<8x1024xbf16>, vector<8x8xf32> -> vector<8x8xf32>
    %296 = arith.subf %267, %295 : vector<8x8xf32>
    %297 = vector.broadcast %c1_i32_86 : i32 to vector<8x4xi32>
    %298 = arith.cmpi eq, %4, %297 : vector<8x4xi32>
    %299 = vector.shape_cast %289 : vector<8x1xi32> to vector<8x1xi32>
    %300 = vector.broadcast %299 : vector<8x1xi32> to vector<8x4xi32>
    %301 = arith.select %298, %300, %272 : vector<8x4xi1>, vector<8x4xi32>
    %302 = arith.addf %273, %295 : vector<8x8xf32>
    %303 = arith.mulf %296, %296 : vector<8x8xf32>
    %304 = arith.addf %275, %303 : vector<8x8xf32>
    %c2_i32_95 = arith.constant 2 : i32
    %c8_i32_96 = arith.constant 8 : i32
    %305 = arith.addi %c8_i32_96, %c2_i32_95 : i32
    %306 = arith.index_cast %305 : i32 to index
    %c0_97 = arith.constant 0 : index
    %c0_98 = arith.constant 0 : index
    %307 = vector.load %arg4[%306, %c0_97, %c0_98] : memref<12x8x1024xbf16, #tpu.memory_space<vmem>>, vector<1x8x1024xbf16>
    %308 = vector.shape_cast %307 : vector<1x8x1024xbf16> to vector<8x1024xbf16>
    %309 = arith.truncf %296 : vector<8x8xf32> to vector<8x8xbf16>
    %cst_99 = arith.constant dense<0.000000e+00> : vector<8x1024xf32>
    %310 = tpu.matmul %309, %308, %cst_99 {dimension_numbers = #tpu.dot_dimension_numbers<[1], [0], [0], [1], [0, 0, 1, 1], [], []>} : vector<8x8xbf16>, vector<8x1024xbf16>, vector<8x1024xf32> -> vector<8x1024xf32>
    %cst_100 = arith.constant dense<0xFF800000> : vector<8xf32>
    %311 = vector.multi_reduction <maximumf>, %310, %cst_100 [1] : vector<8x1024xf32> to vector<8xf32>
    %312 = vector.shape_cast %311 : vector<8xf32> to vector<8x1xf32>
    %313 = vector.broadcast %312 : vector<8x1xf32> to vector<8x1024xf32>
    %314 = arith.cmpf oge, %310, %313 : vector<8x1024xf32>
    %c1024_i32_101 = arith.constant 1024 : i32
    %315 = vector.broadcast %c1024_i32_101 : i32 to vector<8x1024xi32>
    %316 = arith.select %314, %3, %315 : vector<8x1024xi1>, vector<8x1024xi32>
    %cst_102 = arith.constant dense<2147483647> : vector<8xi32>
    %317 = vector.multi_reduction <minsi>, %316, %cst_102 [1] : vector<8x1024xi32> to vector<8xi32>
    %318 = vector.shape_cast %317 : vector<8xi32> to vector<8x1xi32>
    %319 = vector.broadcast %318 : vector<8x1xi32> to vector<8x1024xi32>
    %320 = arith.cmpi eq, %3, %319 : vector<8x1024xi32>
    %321 = arith.extui %320 : vector<8x1024xi1> to vector<8x1024xi32>
    %322 = arith.sitofp %321 : vector<8x1024xi32> to vector<8x1024xf32>
    %323 = arith.truncf %322 : vector<8x1024xf32> to vector<8x1024xbf16>
    %cst_103 = arith.constant dense<0.000000e+00> : vector<8x8xf32>
    %324 = tpu.matmul %323, %308, %cst_103 {dimension_numbers = #tpu.dot_dimension_numbers<[1], [1], [0], [0], [0, 0, 1, 0], [], []>} : vector<8x1024xbf16>, vector<8x1024xbf16>, vector<8x8xf32> -> vector<8x8xf32>
    %325 = arith.subf %296, %324 : vector<8x8xf32>
    %326 = vector.broadcast %c2_i32_95 : i32 to vector<8x4xi32>
    %327 = arith.cmpi eq, %4, %326 : vector<8x4xi32>
    %328 = vector.shape_cast %318 : vector<8x1xi32> to vector<8x1xi32>
    %329 = vector.broadcast %328 : vector<8x1xi32> to vector<8x4xi32>
    %330 = arith.select %327, %329, %301 : vector<8x4xi1>, vector<8x4xi32>
    %331 = arith.addf %302, %324 : vector<8x8xf32>
    %332 = arith.mulf %325, %325 : vector<8x8xf32>
    %333 = arith.addf %304, %332 : vector<8x8xf32>
    %c3_i32_104 = arith.constant 3 : i32
    %c8_i32_105 = arith.constant 8 : i32
    %334 = arith.addi %c8_i32_105, %c3_i32_104 : i32
    %335 = arith.index_cast %334 : i32 to index
    %c0_106 = arith.constant 0 : index
    %c0_107 = arith.constant 0 : index
    %336 = vector.load %arg4[%335, %c0_106, %c0_107] : memref<12x8x1024xbf16, #tpu.memory_space<vmem>>, vector<1x8x1024xbf16>
    %337 = vector.shape_cast %336 : vector<1x8x1024xbf16> to vector<8x1024xbf16>
    %338 = arith.truncf %325 : vector<8x8xf32> to vector<8x8xbf16>
    %cst_108 = arith.constant dense<0.000000e+00> : vector<8x1024xf32>
    %339 = tpu.matmul %338, %337, %cst_108 {dimension_numbers = #tpu.dot_dimension_numbers<[1], [0], [0], [1], [0, 0, 1, 1], [], []>} : vector<8x8xbf16>, vector<8x1024xbf16>, vector<8x1024xf32> -> vector<8x1024xf32>
    %cst_109 = arith.constant dense<0xFF800000> : vector<8xf32>
    %340 = vector.multi_reduction <maximumf>, %339, %cst_109 [1] : vector<8x1024xf32> to vector<8xf32>
    %341 = vector.shape_cast %340 : vector<8xf32> to vector<8x1xf32>
    %342 = vector.broadcast %341 : vector<8x1xf32> to vector<8x1024xf32>
    %343 = arith.cmpf oge, %339, %342 : vector<8x1024xf32>
    %c1024_i32_110 = arith.constant 1024 : i32
    %344 = vector.broadcast %c1024_i32_110 : i32 to vector<8x1024xi32>
    %345 = arith.select %343, %3, %344 : vector<8x1024xi1>, vector<8x1024xi32>
    %cst_111 = arith.constant dense<2147483647> : vector<8xi32>
    %346 = vector.multi_reduction <minsi>, %345, %cst_111 [1] : vector<8x1024xi32> to vector<8xi32>
    %347 = vector.shape_cast %346 : vector<8xi32> to vector<8x1xi32>
    %348 = vector.broadcast %347 : vector<8x1xi32> to vector<8x1024xi32>
    %349 = arith.cmpi eq, %3, %348 : vector<8x1024xi32>
    %350 = arith.extui %349 : vector<8x1024xi1> to vector<8x1024xi32>
    %351 = arith.sitofp %350 : vector<8x1024xi32> to vector<8x1024xf32>
    %352 = arith.truncf %351 : vector<8x1024xf32> to vector<8x1024xbf16>
    %cst_112 = arith.constant dense<0.000000e+00> : vector<8x8xf32>
    %353 = tpu.matmul %352, %337, %cst_112 {dimension_numbers = #tpu.dot_dimension_numbers<[1], [1], [0], [0], [0, 0, 1, 0], [], []>} : vector<8x1024xbf16>, vector<8x1024xbf16>, vector<8x8xf32> -> vector<8x8xf32>
    %354 = arith.subf %325, %353 : vector<8x8xf32>
    %355 = vector.broadcast %c3_i32_104 : i32 to vector<8x4xi32>
    %356 = arith.cmpi eq, %4, %355 : vector<8x4xi32>
    %357 = vector.shape_cast %347 : vector<8x1xi32> to vector<8x1xi32>
    %358 = vector.broadcast %357 : vector<8x1xi32> to vector<8x4xi32>
    %359 = arith.select %356, %358, %330 : vector<8x4xi1>, vector<8x4xi32>
    %360 = arith.addf %331, %353 : vector<8x8xf32>
    %361 = arith.mulf %354, %354 : vector<8x8xf32>
    %362 = arith.addf %333, %361 : vector<8x8xf32>
    %c4_i32_113 = arith.constant 4 : i32
    %363 = tpu.concatenate %122, %241, %360 in 1 : vector<8x8xf32>, vector<8x8xf32>, vector<8x8xf32> -> vector<8x24xf32>
    %c0_114 = arith.constant 0 : index
    %c0_115 = arith.constant 0 : index
    %364 = vector.load %arg3[%c0_114, %c0_115] : memref<24x64xf32, #tpu.memory_space<vmem>>, vector<24x64xf32>
    %cst_116 = arith.constant dense<0.000000e+00> : vector<8x64xf32>
    %365 = tpu.matmul %363, %364, %cst_116 {dimension_numbers = #tpu.dot_dimension_numbers<[1], [0], [0], [1], [0, 0, 1, 1], [], []>} : vector<8x24xf32>, vector<24x64xf32>, vector<8x64xf32> -> vector<8x64xf32>
    %c0_117 = arith.constant 0 : index
    %c0_118 = arith.constant 0 : index
    %366 = vector.load %arg5[%c0_117, %c0_118] : memref<8x64xf32, #tpu.memory_space<vmem>>, vector<8x64xf32>
    tpu.vector_store %arg5[%c0_117, %c0_118], %365 {strides = array<i32>} : memref<8x64xf32, #tpu.memory_space<vmem>>, vector<8x64xf32>,
    %367 = tpu.concatenate %121, %240, %359 in 1 : vector<8x4xi32>, vector<8x4xi32>, vector<8x4xi32> -> vector<8x12xi32>
    %c0_119 = arith.constant 0 : index
    %c0_120 = arith.constant 0 : index
    %368 = vector.load %arg6[%c0_119, %c0_120] : memref<8x12xi32, #tpu.memory_space<vmem>>, vector<8x12xi32>
    tpu.vector_store %arg6[%c0_119, %c0_120], %367 {strides = array<i32>} : memref<8x12xi32, #tpu.memory_space<vmem>>, vector<8x12xi32>,
    %369 = vector.shape_cast %362 : vector<8x8xf32> to vector<1x8x8xf32>
    %cst_121 = arith.constant dense<0.000000e+00> : vector<1xf32>
    %370 = vector.multi_reduction <add>, %369, %cst_121 [1, 2] : vector<1x8x8xf32> to vector<1xf32>
    %371 = vector.shape_cast %370 : vector<1xf32> to vector<1x1x1xf32>
    %372 = vector.extract %371[0, 0, 0] : f32 from vector<1x1x1xf32>
    %373 = vector.broadcast %372 : f32 to vector<1x1x128xf32>
    %c0_122 = arith.constant 0 : index
    %c0_123 = arith.constant 0 : index
    %c0_124 = arith.constant 0 : index
    %374 = vector.load %arg7[%c0_122, %c0_123, %c0_124] : memref<1x1x128xf32, #tpu.memory_space<vmem>>, vector<1x1x128xf32>
    tpu.vector_store %arg7[%c0_122, %c0_123, %c0_124], %373 {strides = array<i32>} : memref<1x1x128xf32, #tpu.memory_space<vmem>>, vector<1x1x128xf32>,
    return
  }
  func.func @transform_0(%arg0: i32) -> (i32, i32) {
    %c0_i32 = arith.constant 0 : i32
    %c0_i32_0 = arith.constant 0 : i32
    return %arg0, %c0_i32 : i32, i32
  }
  func.func @transform_1(%arg0: i32) -> (i32, i32) {
    %c0_i32 = arith.constant 0 : i32
    %c0_i32_0 = arith.constant 0 : i32
    %c0_i32_1 = arith.constant 0 : i32
    return %c0_i32, %c0_i32_0 : i32, i32
  }
  func.func @transform_2(%arg0: i32) -> (i32, i32) {
    %c0_i32 = arith.constant 0 : i32
    %c0_i32_0 = arith.constant 0 : i32
    %c0_i32_1 = arith.constant 0 : i32
    return %c0_i32, %c0_i32_0 : i32, i32
  }
  func.func @transform_3(%arg0: i32) -> (i32, i32, i32) {
    %c0_i32 = arith.constant 0 : i32
    %c0_i32_0 = arith.constant 0 : i32
    %c0_i32_1 = arith.constant 0 : i32
    %c0_i32_2 = arith.constant 0 : i32
    return %c0_i32, %c0_i32_0, %c0_i32_1 : i32, i32, i32
  }
  func.func @transform_4(%arg0: i32) -> (i32, i32) {
    %c0_i32 = arith.constant 0 : i32
    %c0_i32_0 = arith.constant 0 : i32
    return %arg0, %c0_i32 : i32, i32
  }
  func.func @transform_5(%arg0: i32) -> (i32, i32) {
    %c0_i32 = arith.constant 0 : i32
    %c0_i32_0 = arith.constant 0 : i32
    return %arg0, %c0_i32 : i32, i32
  }
  func.func @transform_6(%arg0: i32) -> (i32, i32, i32) {
    %c0_i32 = arith.constant 0 : i32
    %c0_i32_0 = arith.constant 0 : i32
    %c0_i32_1 = arith.constant 0 : i32
    return %arg0, %c0_i32, %c0_i32_0 : i32, i32, i32
  }
}

</mosaic_0001>

<llo_original>
// kernel: tpu_custom_call.1
$region0: #{tpu_custom_call.1}
  #allocation0 [shape = 'u32[]', space=smem, size = 0x4, offset = 0x4, fixed_abs, tag = 'smem constant byte address 0x4 - core index']
  #allocation1 [shape = 'u32[144,128]{1,0:T(1,128)}', space=vmem, size = 0x12000, scoped, tag = 'internal scratch']
  %s0 = inlined_call_operand.hbm [shape: f32[8,128], index: 0, kind: input, shape index: {}]
  %s1 = inlined_call_operand.vmem [shape: s32[8,1], index: 1, kind: output, shape index: {}]
  %s2 = sld [smem:[#allocation0]]
  $region18: #{tpu_custom_call.1} parent=0
    _
  %s4 = ssub.s32 1, %s2
  %s5 = scalar_select 0, %s4, %s2
  $region1: #{tpu_custom_call.1} parent=0
    #allocation2 [shape = 'u8[4096]{0}', space=vmem, size = 0x1000, scoped, tag = 'input window, operand 0, single buffered']
    #allocation3 [shape = 's32[1]{0}', space=sflag, size = 0x4, scoped, tag = 'scoped memory for tpu_custom_call.1']
    %6 = vsyncpa [#allocation3], 0
    // Predicated region
    $region2: #{tpu_custom_call.1} parent=1 // pred_check
      _
    $region3: #{tpu_custom_call.1} parent=1 // pred_check_branch
      %8 = sbr.rel (0) target = $region5
    $region4: #{tpu_custom_call.1} parent=1 // pred_region
      %s10 = ssub.s32 128, 128
      %11 = vsyncadd [#allocation3], %s10
      %s13 = sshll.u32 [#allocation2], 4
      %s14 = int_to_ptr.vmem [resolvable:$true] %s13
      %16 = dma.hbm_to_vmem [thread:$0]  %s0, 128, %s14, [#allocation3]
    $region5: #{tpu_custom_call.1} parent=1 // pred_fallthru
      _
    // Predicated region
    $region6: #{tpu_custom_call.1} parent=1 // pred_check
      _
    $region7: #{tpu_custom_call.1} parent=1 // pred_check_branch
      %18 = sbr.rel (0) target = $region9
    $region8: #{tpu_custom_call.1} parent=1 // pred_region
      %19 = dma.done [#allocation3], 128
    $region9: #{tpu_custom_call.1} parent=1 // pred_fallthru
      _
    %v20 = vld [vmem:[#allocation2] sm:$0xff]
    %21 = vmax.index.xlane.f32.xlu0 %v20
    %v22 = vpop.xlane.xlu0 %21
    %vm23 = vcmask 7168
    %24 = vst.msk [vmem:[%s1] sm:$0xff] %vm23, %v22
    // Predicated region
    $region10: #{tpu_custom_call.1} parent=1 // pred_check
      _
    $region11: #{tpu_custom_call.1} parent=1 // pred_check_branch
      %26 = sbr.rel (0) target = $region13
    $region12: #{tpu_custom_call.1} parent=1 // pred_region
      _
    $region13: #{tpu_custom_call.1} parent=1 // pred_fallthru
      _
    // Predicated region
    $region14: #{tpu_custom_call.1} parent=1 // pred_check
      _
    $region15: #{tpu_custom_call.1} parent=1 // pred_check_branch
      %28 = sbr.rel (0) target = $region17
    $region16: #{tpu_custom_call.1} parent=1 // pred_region
      _
    $region17: #{tpu_custom_call.1} parent=1 // pred_fallthru
      _
    %29 = vsyncpa [#allocation3], 1

// kernel: tpu_custom_call.1
$region0: #{tpu_custom_call.1}
  #allocation0 [shape = 'u32[]', space=smem, size = 0x4, offset = 0x4, fixed_abs, tag = 'smem constant byte address 0x4 - core index']
  #allocation1 [shape = 'u32[144,128]{1,0:T(1,128)}', space=vmem, size = 0x12000, scoped, tag = 'internal scratch']
  %s0 = inlined_call_operand.vmem [shape: f32[16,64], index: 0, kind: input, shape index: {}]
  %s1 = inlined_call_operand.vmem [shape: f32[64,24], index: 1, kind: input, shape index: {}]
  %s2 = inlined_call_operand.vmem [shape: f32[24,64], index: 2, kind: input, shape index: {}]
  %s3 = inlined_call_operand.hbm [shape: bf16[12,8,1024], index: 3, kind: input, shape index: {}]
  %s4 = inlined_call_operand.hbm [shape: f32[16,64], index: 4, kind: output, shape index: {0}]
  %s5 = inlined_call_operand.hbm [shape: s32[16,12], index: 5, kind: output, shape index: {1}]
  %s6 = inlined_call_operand.hbm [shape: f32[2,1,128], index: 6, kind: output, shape index: {2}]
  %7 = xla_tuple %s4, %s5, %s6
  %s8 = sld [smem:[#allocation0]]
  $region69: #{tpu_custom_call.1} parent=0
    _
  %s10 = ssub.s32 1, %s8
  %s11 = scalar_select 0, %s10, %s8
  $region1: #{tpu_custom_call.1} parent=0
    #allocation2 [shape = 'u8[196608]{0}', space=vmem, size = 0x30000, scoped, tag = 'input window, operand 3, single buffered']
    #allocation3 [shape = 's32[2]{0}', space=sflag, size = 0x8, scoped, tag = 'scoped memory for tpu_custom_call.1']
    #allocation4 [shape = 's32[2]{0}', space=sflag, size = 0x8, scoped, tag = 'scoped memory for tpu_custom_call.1']
    #allocation5 [shape = 'u8[8192]{0}', space=vmem, size = 0x2000, scoped, tag = 'output window, operand 0']
    #allocation6 [shape = 'u8[8192]{0}', space=vmem, size = 0x2000, scoped, tag = 'output window, operand 1']
    #allocation7 [shape = 's32[2]{0}', space=sflag, size = 0x8, scoped, tag = 'scoped memory for tpu_custom_call.1']
    #allocation8 [shape = 'u8[1024]{0}', space=vmem, size = 0x400, scoped, tag = 'output window, operand 2']
    %12 = vsyncpa [#allocation3], 0
    %13 = vsyncpa [#allocation4], 0
    %s14 = scalar_lea.sflag [#allocation4], 1
    %15 = vsyncpa %s14, 0
    %16 = vsyncpa [#allocation7], 0
    %s17 = scalar_lea.sflag [#allocation7], 1
    %18 = vsyncpa %s17, 0
    loop: start=0, step=1, limit=4
    $region2: #{tpu_custom_call.1} parent=1 // loop_pre_header
      _
    $region3: #{tpu_custom_call.1} parent=1 // loop_header
      %s20 = sphi 0, %s24
      %p21 = scmp.ge.s32.totalorder %s20, 4
      %s30 = sphi 0, %s32
      %s33 = sphi 0, %s30
      %s34 = sphi 0, %s33
      %s50 = sphi 0, %s34
      %s54 = sphi 0, %s54
      %s56 = sphi 0, %s54
      %s57 = sphi 0, %s56
      %s71 = sphi 0, %s57
      %s75 = sphi 0, %s75
      %s77 = sphi 0, %s75
      %s78 = sphi 0, %s77
      %s92 = sphi 0, %s78
      %s96 = sphi 0, %s96
      %s98 = sphi 0, %s96
      %s99 = sphi 0, %s98
      %s113 = sphi 0, %s99
      %s119 = sphi 0, %s121
      %s122 = sphi 0, %s119
      %s123 = sphi 0, %s122
      %s139 = sphi 0, %s123
      %s145 = sphi 0, %s147
      %s148 = sphi 0, %s145
      %s149 = sphi 0, %s148
      %s165 = sphi 0, %s149
      %s171 = sphi 0, %s173
      %s174 = sphi 0, %s171
      %s175 = sphi 0, %s174
      %s191 = sphi 0, %s175
    $region4: #{tpu_custom_call.1} parent=1 // loop_header_branch
      %23 = sbr.rel (%p21) target = $region8
    $region5: #{tpu_custom_call.1} parent=1 // loop_body
      %s25 = ssub.s32 %s20, 1
      %s26 = ssub.s32 %s20, 2
      %s27 = sadd.s32 %s20, 1
      %s28 = ssub.s32 %s20, %s27
      %p29 = scmp.eq.s32.totalorder %s28, 0
      %s31 = sadd.s32 %s30, 1
      %s32 = scalar_select %p29, %s30, %s31
      %p35 = pneg %p29
      %p36 = scmp.eq.s32.totalorder %s20, 1
      %p37 = por %p35, %p36
      %p38 = scmp.ne.s32.totalorder %s30, %s33
      %p39 = scmp.eq.s32.totalorder %s20, 0
      %p40 = por %p38, %p39
      %p41 = scmp.ne.s32.totalorder %s30, %s33
      %p42 = scmp.eq.s32.totalorder %s25, 1
      %p43 = por %p41, %p42
      %p44 = scmp.ne.s32.totalorder %s33, %s34
      %p45 = scmp.eq.s32.totalorder %s25, 0
      %p46 = por %p44, %p45
      %p47 = scmp.ne.s32.totalorder %s33, %s34
      %p48 = scmp.eq.s32.totalorder %s26, 1
      %p49 = por %p47, %p48
      %p51 = scmp.ne.s32.totalorder %s34, %s50
      %p52 = scmp.eq.s32.totalorder %s26, 0
      %p53 = por %p51, %p52
      %s55 = sadd.s32 %s54, 1
      %p58 = scmp.eq.s32.totalorder %s20, 1
      %p59 = scmp.ne.s32.totalorder %s54, %s56
      %p60 = scmp.eq.s32.totalorder %s20, 0
      %p61 = por %p59, %p60
      %p62 = scmp.ne.s32.totalorder %s54, %s56
      %p63 = scmp.eq.s32.totalorder %s25, 1
      %p64 = por %p62, %p63
      %p65 = scmp.ne.s32.totalorder %s56, %s57
      %p66 = scmp.eq.s32.totalorder %s25, 0
      %p67 = por %p65, %p66
      %p68 = scmp.ne.s32.totalorder %s56, %s57
      %p69 = scmp.eq.s32.totalorder %s26, 1
      %p70 = por %p68, %p69
      %p72 = scmp.ne.s32.totalorder %s57, %s71
      %p73 = scmp.eq.s32.totalorder %s26, 0
      %p74 = por %p72, %p73
      %s76 = sadd.s32 %s75, 1
      %p79 = scmp.eq.s32.totalorder %s20, 1
      %p80 = scmp.ne.s32.totalorder %s75, %s77
      %p81 = scmp.eq.s32.totalorder %s20, 0
      %p82 = por %p80, %p81
      %p83 = scmp.ne.s32.totalorder %s75, %s77
      %p84 = scmp.eq.s32.totalorder %s25, 1
      %p85 = por %p83, %p84
      %p86 = scmp.ne.s32.totalorder %s77, %s78
      %p87 = scmp.eq.s32.totalorder %s25, 0
      %p88 = por %p86, %p87
      %p89 = scmp.ne.s32.totalorder %s77, %s78
      %p90 = scmp.eq.s32.totalorder %s26, 1
      %p91 = por %p89, %p90
      %p93 = scmp.ne.s32.totalorder %s78, %s92
      %p94 = scmp.eq.s32.totalorder %s26, 0
      %p95 = por %p93, %p94
      %s97 = sadd.s32 %s96, 1
      %p100 = scmp.eq.s32.totalorder %s20, 1
      %p101 = scmp.ne.s32.totalorder %s96, %s98
      %p102 = scmp.eq.s32.totalorder %s20, 0
      %p103 = por %p101, %p102
      %p104 = scmp.ne.s32.totalorder %s96, %s98
      %p105 = scmp.eq.s32.totalorder %s25, 1
      %p106 = por %p104, %p105
      %p107 = scmp.ne.s32.totalorder %s98, %s99
      %p108 = scmp.eq.s32.totalorder %s25, 0
      %p109 = por %p107, %p108
      %p110 = scmp.ne.s32.totalorder %s98, %s99
      %p111 = scmp.eq.s32.totalorder %s26, 1
      %p112 = por %p110, %p111
      %p114 = scmp.ne.s32.totalorder %s99, %s113
      %p115 = scmp.eq.s32.totalorder %s26, 0
      %p116 = por %p114, %p115
      %s117 = ssub.s32 %s20, %s27
      %p118 = scmp.eq.s32.totalorder %s117, 0
      %s120 = sadd.s32 %s119, 1
      %s121 = scalar_select %p118, %s119, %s120
      %p124 = pneg %p118
      %p125 = scmp.eq.s32.totalorder %s20, 1
      %p126 = por %p124, %p125
      %p127 = scmp.ne.s32.totalorder %s119, %s122
      %p128 = scmp.eq.s32.totalorder %s20, 0
      %p129 = por %p127, %p128
      %p130 = scmp.ne.s32.totalorder %s119, %s122
      %p131 = scmp.eq.s32.totalorder %s25, 1
      %p132 = por %p130, %p131
      %p133 = scmp.ne.s32.totalorder %s122, %s123
      %p134 = scmp.eq.s32.totalorder %s25, 0
      %p135 = por %p133, %p134
      %p136 = scmp.ne.s32.totalorder %s122, %s123
      %p137 = scmp.eq.s32.totalorder %s26, 1
      %p138 = por %p136, %p137
      %p140 = scmp.ne.s32.totalorder %s123, %s139
      %p141 = scmp.eq.s32.totalorder %s26, 0
      %p142 = por %p140, %p141
      %s143 = ssub.s32 %s20, %s27
      %p144 = scmp.eq.s32.totalorder %s143, 0
      %s146 = sadd.s32 %s145, 1
      %s147 = scalar_select %p144, %s145, %s146
      %p150 = pneg %p144
      %p151 = scmp.eq.s32.totalorder %s20, 1
      %p152 = por %p150, %p151
      %p153 = scmp.ne.s32.totalorder %s145, %s148
      %p154 = scmp.eq.s32.totalorder %s20, 0
      %p155 = por %p153, %p154
      %p156 = scmp.ne.s32.totalorder %s145, %s148
      %p157 = scmp.eq.s32.totalorder %s25, 1
      %p158 = por %p156, %p157
      %p159 = scmp.ne.s32.totalorder %s148, %s149
      %p160 = scmp.eq.s32.totalorder %s25, 0
      %p161 = por %p159, %p160
      %p162 = scmp.ne.s32.totalorder %s148, %s149
      %p163 = scmp.eq.s32.totalorder %s26, 1
      %p164 = por %p162, %p163
      %p166 = scmp.ne.s32.totalorder %s149, %s165
      %p167 = scmp.eq.s32.totalorder %s26, 0
      %p168 = por %p166, %p167
      %s169 = ssub.s32 %s20, %s27
      %p170 = scmp.eq.s32.totalorder %s169, 0
      %s172 = sadd.s32 %s171, 1
      %s173 = scalar_select %p170, %s171, %s172
      %p176 = pneg %p170
      %p177 = scmp.eq.s32.totalorder %s20, 1
      %p178 = por %p176, %p177
      %p179 = scmp.ne.s32.totalorder %s171, %s174
      %p180 = scmp.eq.s32.totalorder %s20, 0
      %p181 = por %p179, %p180
      %p182 = scmp.ne.s32.totalorder %s171, %s174
      %p183 = scmp.eq.s32.totalorder %s25, 1
      %p184 = por %p182, %p183
      %p185 = scmp.ne.s32.totalorder %s174, %s175
      %p186 = scmp.eq.s32.totalorder %s25, 0
      %p187 = por %p185, %p186
      %p188 = scmp.ne.s32.totalorder %s174, %s175
      %p189 = scmp.eq.s32.totalorder %s26, 1
      %p190 = por %p188, %p189
      %p192 = scmp.ne.s32.totalorder %s175, %s191
      %p193 = scmp.eq.s32.totalorder %s26, 0
      %p194 = por %p192, %p193
      %p195 = scmp.le.s32.totalorder 1, %s20
      %p196 = scmp.lt.s32.totalorder %s20, 3
      %p197 = pnand %p195, %p196
      %p198 = pneg %p197
      // Predicated region
      $region9: #{tpu_custom_call.1} parent=5 // pred_check
        _
      $region10: #{tpu_custom_call.1} parent=5 // pred_check_branch
        %200 = sbr.rel (%p197) target = $region12
      $region11: #{tpu_custom_call.1} parent=5 // pred_region
        %s201 = ssub.s32 %s20, 1
        // Predicated region
        $region13: #{tpu_custom_call.1} parent=11 // pred_check
          %p202 = pneg %p67
        $region14: #{tpu_custom_call.1} parent=11 // pred_check_branch
          %204 = sbr.rel (%p202) target = $region16
        $region15: #{tpu_custom_call.1} parent=11 // pred_region
          _
        $region16: #{tpu_custom_call.1} parent=11 // pred_fallthru
          _
        // Predicated region
        $region17: #{tpu_custom_call.1} parent=11 // pred_check
          %p205 = pneg %p88
        $region18: #{tpu_custom_call.1} parent=11 // pred_check_branch
          %207 = sbr.rel (%p205) target = $region20
        $region19: #{tpu_custom_call.1} parent=11 // pred_region
          _
        $region20: #{tpu_custom_call.1} parent=11 // pred_fallthru
          _
        // Predicated region
        $region21: #{tpu_custom_call.1} parent=11 // pred_check
          %p208 = pneg %p109
        $region22: #{tpu_custom_call.1} parent=11 // pred_check_branch
          %210 = sbr.rel (%p208) target = $region24
        $region23: #{tpu_custom_call.1} parent=11 // pred_region
          %s212 = ssub.s32 6144, 6144
          %213 = vsyncadd [#allocation3], %s212
          %s214 = sshll.u32 [#allocation2], 4
          %s215 = int_to_ptr.vmem [resolvable:$true] %s214
          %220 = dma.hbm_to_vmem [thread:$0]  %s3, 6144, %s215, [#allocation3], 512, 512, 32
        $region24: #{tpu_custom_call.1} parent=11 // pred_fallthru
          _
      $region12: #{tpu_custom_call.1} parent=5 // pred_fallthru
        _
      %p221 = scmp.lt.s32.totalorder %s20, 2
      // Predicated region
      $region25: #{tpu_custom_call.1} parent=5 // pred_check
        %p222 = pneg %p221
      $region26: #{tpu_custom_call.1} parent=5 // pred_check_branch
        %224 = sbr.rel (%p222) target = $region28
      $region27: #{tpu_custom_call.1} parent=5 // pred_region
        // Predicated region
        $region29: #{tpu_custom_call.1} parent=27 // pred_check
          %p225 = pneg %p40
        $region30: #{tpu_custom_call.1} parent=27 // pred_check_branch
          %227 = sbr.rel (%p225) target = $region32
        $region31: #{tpu_custom_call.1} parent=27 // pred_region
          %p228 = scmp.lt.s32.totalorder %s20, 1
          %s229 = scalar_select %p228, %s20, 1
          %s230 = smul.addr %s229, 8
          %s231 = scalar_lea.vmem %s0, %s230
        $region32: #{tpu_custom_call.1} parent=27 // pred_fallthru
          _
      $region28: #{tpu_custom_call.1} parent=5 // pred_fallthru
        _
      %p232 = scmp.le.s32.totalorder 1, %s20
      %p233 = scmp.lt.s32.totalorder %s20, 3
      %p234 = pnand %p232, %p233
      %p235 = pneg %p234
      // Predicated region
      $region33: #{tpu_custom_call.1} parent=5 // pred_check
        _
      $region34: #{tpu_custom_call.1} parent=5 // pred_check_branch
        %237 = sbr.rel (%p234) target = $region36
      $region35: #{tpu_custom_call.1} parent=5 // pred_region
        %s238 = ssub.s32 %s20, 1
        // Predicated region
        $region37: #{tpu_custom_call.1} parent=35 // pred_check
          %p239 = pneg %p109
        $region38: #{tpu_custom_call.1} parent=35 // pred_check_branch
          %241 = sbr.rel (%p239) target = $region40
        $region39: #{tpu_custom_call.1} parent=35 // pred_region
          %242 = dma.done [#allocation3], 6144
        $region40: #{tpu_custom_call.1} parent=35 // pred_fallthru
          _
        %p243 = scmp.lt.s32.totalorder %s25, 1
        %s244 = scalar_select %p243, %s25, 1
        %s245 = smul.addr %s244, 8
        %s246 = scalar_lea.vmem %s0, %s245
        %p247 = pneg %p46
        %p248 = pneg %p43
        %p249 = pneg %p67
        %p250 = pneg %p64
        %p251 = pneg %p88
        %p252 = pneg %p85
        %p253 = pneg %p109
        %p254 = pneg %p106
        %p255 = pneg %p135
        %p256 = pneg %p132
        %s257 = sand.u32 %s122, 1
        %s258 = scalar_lea.sflag [#allocation4], %s257
        %s259 = sand.u32 %s122, 1
        %s260 = smul.addr %s259, 8
        %s261 = scalar_lea.vmem [#allocation5], %s260
        %p262 = pneg %p161
        %p263 = pneg %p158
        %s264 = sand.u32 %s25, 1
        %s265 = scalar_lea.sflag [#allocation7], %s264
        %s266 = sand.u32 %s148, 1
        %s267 = smul.addr %s266, 8
        %s268 = scalar_lea.vmem [#allocation6], %s267
        %p269 = pneg %p187
        %p270 = pneg %p184
        %s271 = sand.u32 %s25, 1
        %s272 = scalar_lea.sflag [#allocation7], %s271
        %s273 = sand.u32 %s174, 1
        %s274 = scalar_lea.vmem [#allocation8], %s273
        %p275 = scmp.lt.s32.totalorder %s25, 1
        %s276 = scalar_select %p275, %s25, 1
        %s277 = smul.addr %s276, 8
        %s278 = scalar_lea.vmem %s0, %s277
        %v280 = vld [vmem:[%s278] sm:$0xff]
        %v281 = vld [vmem:[%s1] sm:$0xff]
        %v282 = vld [vmem:[%s1 + $0x8] sm:$0xff]
        %v283 = vld [vmem:[%s1 + $0x10] sm:$0xff]
        %v284 = vld [vmem:[%s1 + $0x18] sm:$0xff]
        %v285 = vld [vmem:[%s1 + $0x20] sm:$0xff]
        %v286 = vld [vmem:[%s1 + $0x28] sm:$0xff]
        %v287 = vld [vmem:[%s1 + $0x30] sm:$0xff]
        %v288 = vld [vmem:[%s1 + $0x38] sm:$0xff]
        %vm289 = vcmask 523264
        %v291 = vsel %vm289, %v280, 0
        %293 = vmatprep.subr.mxu0 0.0
        %294 = vmatpush1.msra.mxu0 0.0
        %295 = vmatprep.subr.mxu0 0.0
        %296 = vmatpush1.msra.mxu0 0.0
        %297 = vmatprep.subr.mxu0 0.0
        %298 = vmatpush1.msra.mxu0 0.0
        %299 = vmatprep.subr.mxu0 0.0
        %300 = vmatpush1.msra.mxu0 0.0
        %301 = vmatprep.subr.mxu0 0.0
        %302 = vmatpush1.msra.mxu0 0.0
        %303 = vmatprep.subr.mxu0 0.0
        %304 = vmatpush1.msra.mxu0 0.0
        %305 = vmatprep.subr.mxu0 0.0
        %306 = vmatpush1.msra.mxu0 0.0
        %307 = vmatprep.subr.mxu0 0.0
        %308 = vmatpush1.msra.mxu0 0.0
        %309 = vmatprep.subr.mxu0 0.0
        %310 = vmatpush1.msra.mxu0 %v288
        %311 = vmatprep.subr.mxu0 0.0
        %312 = vmatpush1.msra.mxu0 %v287
        %313 = vmatprep.subr.mxu0 0.0
        %314 = vmatpush1.msra.mxu0 %v286
        %315 = vmatprep.subr.mxu0 0.0
        %316 = vmatpush1.msra.mxu0 %v285
        %317 = vmatprep.subr.mxu0 0.0
        %318 = vmatpush1.msra.mxu0 %v284
        %319 = vmatprep.subr.mxu0 0.0
        %320 = vmatpush1.msra.mxu0 %v283
        %321 = vmatprep.subr.mxu0 0.0
        %322 = vmatpush1.msra.mxu0 %v282
        %323 = vmatprep.subr.mxu0 0.0
        %324 = vmatpush1.msra.mxu0 %v281
        %325 = vmatprep.subr.mxu0 0.0
        %326 = vmatpush2.msra.mxu0 0.0
        %327 = vmatprep.subr.mxu0 0.0
        %328 = vmatpush2.msra.mxu0 0.0
        %329 = vmatprep.subr.mxu0 0.0
        %330 = vmatpush2.msra.mxu0 0.0
        %331 = vmatprep.subr.mxu0 0.0
        %332 = vmatpush2.msra.mxu0 0.0
        %333 = vmatprep.subr.mxu0 0.0
        %334 = vmatpush2.msra.mxu0 0.0
        %335 = vmatprep.subr.mxu0 0.0
        %336 = vmatpush2.msra.mxu0 0.0
        %337 = vmatprep.subr.mxu0 0.0
        %338 = vmatpush2.msra.mxu0 0.0
        %339 = vmatprep.subr.mxu0 0.0
        %340 = vmatpush2.msra.mxu0 0.0
        %341 = vmatprep.subr.mxu0 0.0
        %342 = vmatpush2.msra.mxu0 0.0
        %343 = vmatprep.subr.mxu0 0.0
        %344 = vmatpush2.msra.mxu0 0.0
        %345 = vmatprep.subr.mxu0 0.0
        %346 = vmatpush2.msra.mxu0 0.0
        %347 = vmatprep.subr.mxu0 0.0
        %348 = vmatpush2.msra.mxu0 0.0
        %349 = vmatprep.subr.mxu0 0.0
        %350 = vmatpush2.msra.mxu0 0.0
        %351 = vmatprep.subr.mxu0 0.0
        %352 = vmatpush2.msra.mxu0 0.0
        %353 = vmatprep.subr.mxu0 0.0
        %354 = vmatpush2.msra.mxu0 0.0
        %355 = vmatprep.subr.mxu0 0.0
        %356 = vmatpush2.msra.mxu0 0.0
        %357 = vmatprep.mubr.f32.mxu0 0.0
        %358 = vmatmul.mubr.f32.gmra.mxu0 %v291
        %v359 = vpop.f32.mrf.mxu0
        %v360 = vadd.f32 0.0, %v359
        %v361 = vpop.f32.mrf.mxu0
        %362 = vdwg.mxu0
        %v363 = vlaneseq
        %v364 = vand.u32 %v363, 127
        %v365 = vadd.s32 %v364, 128
        %v366 = vadd.s32 %v364, 256
        %v367 = vadd.s32 %v364, 384
        %v368 = vadd.s32 %v364, 512
        %v369 = vadd.s32 %v364, 640
        %v370 = vadd.s32 %v364, 768
        %v371 = vadd.s32 %v364, 896
        %v372 = vld [vmem:[#allocation2] sm:$0xff]
        %v373 = vld [vmem:[#allocation2 + $0x8] sm:$0xff]
        %v374 = vld [vmem:[#allocation2 + $0x10] sm:$0xff]
        %v375 = vld [vmem:[#allocation2 + $0x18] sm:$0xff]
        %v376 = vpack.c.bf16 %v360, %v360
        %v381 = vunpack.c.l.b16 %v372
        %v382 = vunpack.c.h.b16 %v372
        %v383 = vunpack.c.l.b16 %v373
        %v384 = vunpack.c.h.b16 %v373
        %v385 = vunpack.c.l.b16 %v374
        %v386 = vunpack.c.h.b16 %v374
        %v387 = vunpack.c.l.b16 %v375
        %v388 = vunpack.c.h.b16 %v375
        %v389 = vpack.c.b16 %v381, %v381
        %v390 = vpack.c.b16 %v382, %v382
        %v391 = vpack.c.b16 %v383, %v383
        %v392 = vpack.c.b16 %v384, %v384
        %v393 = vpack.c.b16 %v385, %v385
        %v394 = vpack.c.b16 %v386, %v386
        %v395 = vpack.c.b16 %v387, %v387
        %v396 = vpack.c.b16 %v388, %v388
        %vm397 = vcmask 64512
        %v399 = vsel %vm397, %v376, 0
        %vm401 = vcmask 1043456
        %v403 = vsel %vm401, %v389, 0
        %v406 = vsel %vm401, %v390, 0
        %v409 = vsel %vm401, %v391, 0
        %v412 = vsel %vm401, %v392, 0
        %v415 = vsel %vm401, %v393, 0
        %v418 = vsel %vm401, %v394, 0
        %v421 = vsel %vm401, %v395, 0
        %v424 = vsel %vm401, %v396, 0
        %426 = vmatprep.subr.bf16.mxu0 0
        %427 = vmatpush1.bf16.msra.mxu0 0
        %428 = vmatprep.subr.bf16.mxu0 0
        %429 = vmatpush1.bf16.msra.mxu0 0
        %430 = vmatprep.subr.bf16.mxu0 0
        %431 = vmatpush1.bf16.msra.mxu0 0
        %432 = vmatprep.subr.bf16.mxu0 0
        %433 = vmatpush1.bf16.msra.mxu0 0
        %434 = vmatprep.subr.bf16.mxu0 0
        %435 = vmatpush1.bf16.msra.mxu0 0
        %436 = vmatprep.subr.bf16.mxu0 0
        %437 = vmatpush1.bf16.msra.mxu0 0
        %438 = vmatprep.subr.bf16.mxu0 0
        %439 = vmatpush1.bf16.msra.mxu0 0
        %440 = vmatprep.subr.bf16.mxu0 %v406
        %441 = vmatpush1.bf16.msra.mxu0 %v403
        %442 = vmatprep.subr.bf16.mxu0 0
        %443 = vmatpush2.bf16.msra.mxu0 0
        %444 = vmatprep.subr.bf16.mxu0 0
        %445 = vmatpush2.bf16.msra.mxu0 0
        %446 = vmatprep.subr.bf16.mxu0 0
        %447 = vmatpush2.bf16.msra.mxu0 0
        %448 = vmatprep.subr.bf16.mxu0 0
        %449 = vmatpush2.bf16.msra.mxu0 0
        %450 = vmatprep.subr.bf16.mxu0 0
        %451 = vmatpush2.bf16.msra.mxu0 0
        %452 = vmatprep.subr.bf16.mxu0 0
        %453 = vmatpush2.bf16.msra.mxu0 0
        %454 = vmatprep.subr.bf16.mxu0 0
        %455 = vmatpush2.bf16.msra.mxu0 0
        %456 = vmatprep.subr.bf16.mxu0 0
        %457 = vmatpush2.bf16.msra.mxu0 0
        %458 = vmatprep.mubr.bf16.mxu0 0
        %459 = vmatmul.mubr.bf16.gmra.mxu0 %v399
        %v460 = vpop.f32.mrf.mxu0
        %v461 = vadd.f32 0.0, %v460
        %v462 = vpop.f32.mrf.mxu0
        %v463 = vadd.f32 0.0, %v462
        %v464 = vpop.f32.mrf.mxu0
        %v465 = vpop.f32.mrf.mxu0
        %466 = vdwg.mxu0
        %467 = vmatprep.subr.bf16.mxu0 0
        %468 = vmatpush1.bf16.msra.mxu0 0
        %469 = vmatprep.subr.bf16.mxu0 0
        %470 = vmatpush1.bf16.msra.mxu0 0
        %471 = vmatprep.subr.bf16.mxu0 0
        %472 = vmatpush1.bf16.msra.mxu0 0
        %473 = vmatprep.subr.bf16.mxu0 0
        %474 = vmatpush1.bf16.msra.mxu0 0
        %475 = vmatprep.subr.bf16.mxu0 0
        %476 = vmatpush1.bf16.msra.mxu0 0
        %477 = vmatprep.subr.bf16.mxu0 0
        %478 = vmatpush1.bf16.msra.mxu0 0
        %479 = vmatprep.subr.bf16.mxu0 0
        %480 = vmatpush1.bf16.msra.mxu0 0
        %481 = vmatprep.subr.bf16.mxu0 %v412
        %482 = vmatpush1.bf16.msra.mxu0 %v409
        %483 = vmatprep.subr.bf16.mxu0 0
        %484 = vmatpush2.bf16.msra.mxu0 0
        %485 = vmatprep.subr.bf16.mxu0 0
        %486 = vmatpush2.bf16.msra.mxu0 0
        %487 = vmatprep.subr.bf16.mxu0 0
        %488 = vmatpush2.bf16.msra.mxu0 0
        %489 = vmatprep.subr.bf16.mxu0 0
        %490 = vmatpush2.bf16.msra.mxu0 0
        %491 = vmatprep.subr.bf16.mxu0 0
        %492 = vmatpush2.bf16.msra.mxu0 0
        %493 = vmatprep.subr.bf16.mxu0 0
        %494 = vmatpush2.bf16.msra.mxu0 0
        %495 = vmatprep.subr.bf16.mxu0 0
        %496 = vmatpush2.bf16.msra.mxu0 0
        %497 = vmatprep.subr.bf16.mxu0 0
        %498 = vmatpush2.bf16.msra.mxu0 0
        %499 = vmatprep.mubr.bf16.mxu0 0
        %500 = vmatmul.mubr.bf16.gmra.mxu0 %v399
        %v501 = vpop.f32.mrf.mxu0
        %v502 = vadd.f32 0.0, %v501
        %v503 = vpop.f32.mrf.mxu0
        %v504 = vadd.f32 0.0, %v503
        %v505 = vpop.f32.mrf.mxu0
        %v506 = vpop.f32.mrf.mxu0
        %507 = vdwg.mxu0
        %508 = vmatprep.subr.bf16.mxu0 0
        %509 = vmatpush1.bf16.msra.mxu0 0
        %510 = vmatprep.subr.bf16.mxu0 0
        %511 = vmatpush1.bf16.msra.mxu0 0
        %512 = vmatprep.subr.bf16.mxu0 0
        %513 = vmatpush1.bf16.msra.mxu0 0
        %514 = vmatprep.subr.bf16.mxu0 0
        %515 = vmatpush1.bf16.msra.mxu0 0
        %516 = vmatprep.subr.bf16.mxu0 0
        %517 = vmatpush1.bf16.msra.mxu0 0
        %518 = vmatprep.subr.bf16.mxu0 0
        %519 = vmatpush1.bf16.msra.mxu0 0
        %520 = vmatprep.subr.bf16.mxu0 0
        %521 = vmatpush1.bf16.msra.mxu0 0
        %522 = vmatprep.subr.bf16.mxu0 %v418
        %523 = vmatpush1.bf16.msra.mxu0 %v415
        %524 = vmatprep.subr.bf16.mxu0 0
        %525 = vmatpush2.bf16.msra.mxu0 0
        %526 = vmatprep.subr.bf16.mxu0 0
        %527 = vmatpush2.bf16.msra.mxu0 0
        %528 = vmatprep.subr.bf16.mxu0 0
        %529 = vmatpush2.bf16.msra.mxu0 0
        %530 = vmatprep.subr.bf16.mxu0 0
        %531 = vmatpush2.bf16.msra.mxu0 0
        %532 = vmatprep.subr.bf16.mxu0 0
        %533 = vmatpush2.bf16.msra.mxu0 0
        %534 = vmatprep.subr.bf16.mxu0 0
        %535 = vmatpush2.bf16.msra.mxu0 0
        %536 = vmatprep.subr.bf16.mxu0 0
        %537 = vmatpush2.bf16.msra.mxu0 0
        %538 = vmatprep.subr.bf16.mxu0 0
        %539 = vmatpush2.bf16.msra.mxu0 0
        %540 = vmatprep.mubr.bf16.mxu0 0
        %541 = vmatmul.mubr.bf16.gmra.mxu0 %v399
        %v542 = vpop.f32.mrf.mxu0
        %v543 = vadd.f32 0.0, %v542
        %v544 = vpop.f32.mrf.mxu0
        %v545 = vadd.f32 0.0, %v544
        %v546 = vpop.f32.mrf.mxu0
        %v547 = vpop.f32.mrf.mxu0
        %548 = vdwg.mxu0
        %549 = vmatprep.subr.bf16.mxu0 0
        %550 = vmatpush1.bf16.msra.mxu0 0
        %551 = vmatprep.subr.bf16.mxu0 0
        %552 = vmatpush1.bf16.msra.mxu0 0
        %553 = vmatprep.subr.bf16.mxu0 0
        %554 = vmatpush1.bf16.msra.mxu0 0
        %555 = vmatprep.subr.bf16.mxu0 0
        %556 = vmatpush1.bf16.msra.mxu0 0
        %557 = vmatprep.subr.bf16.mxu0 0
        %558 = vmatpush1.bf16.msra.mxu0 0
        %559 = vmatprep.subr.bf16.mxu0 0
        %560 = vmatpush1.bf16.msra.mxu0 0
        %561 = vmatprep.subr.bf16.mxu0 0
        %562 = vmatpush1.bf16.msra.mxu0 0
        %563 = vmatprep.subr.bf16.mxu0 %v424
        %564 = vmatpush1.bf16.msra.mxu0 %v421
        %565 = vmatprep.subr.bf16.mxu0 0
        %566 = vmatpush2.bf16.msra.mxu0 0
        %567 = vmatprep.subr.bf16.mxu0 0
        %568 = vmatpush2.bf16.msra.mxu0 0
        %569 = vmatprep.subr.bf16.mxu0 0
        %570 = vmatpush2.bf16.msra.mxu0 0
        %571 = vmatprep.subr.bf16.mxu0 0
        %572 = vmatpush2.bf16.msra.mxu0 0
        %573 = vmatprep.subr.bf16.mxu0 0
        %574 = vmatpush2.bf16.msra.mxu0 0
        %575 = vmatprep.subr.bf16.mxu0 0
        %576 = vmatpush2.bf16.msra.mxu0 0
        %577 = vmatprep.subr.bf16.mxu0 0
        %578 = vmatpush2.bf16.msra.mxu0 0
        %579 = vmatprep.subr.bf16.mxu0 0
        %580 = vmatpush2.bf16.msra.mxu0 0
        %581 = vmatprep.mubr.bf16.mxu0 0
        %582 = vmatmul.mubr.bf16.gmra.mxu0 %v399
        %v583 = vpop.f32.mrf.mxu0
        %v584 = vadd.f32 0.0, %v583
        %v585 = vpop.f32.mrf.mxu0
        %v586 = vadd.f32 0.0, %v585
        %v587 = vpop.f32.mrf.mxu0
        %v588 = vpop.f32.mrf.mxu0
        %589 = vdwg.mxu0
        %v590 = vmax.f32 %v461, %v543
        %v591 = vmax.f32 %v463, %v545
        %v592 = vmax.f32 %v502, %v584
        %v593 = vmax.f32 %v504, %v586
        %v594 = vmax.f32 %v590, %v591
        %v595 = vmax.f32 %v592, %v593
        %v596 = vmax.f32 %v594, %v595
        %597 = vmax.xlane.f32.xlu0 %v596
        %v598 = vpop.xlane.xlu0 %597
        %vm599 = vcmp.ge.f32.partialorder %v461, %v598
        %vm600 = vcmp.ge.f32.partialorder %v463, %v598
        %vm601 = vcmp.ge.f32.partialorder %v502, %v598
        %vm602 = vcmp.ge.f32.partialorder %v504, %v598
        %vm603 = vcmp.ge.f32.partialorder %v543, %v598
        %vm604 = vcmp.ge.f32.partialorder %v545, %v598
        %vm605 = vcmp.ge.f32.partialorder %v584, %v598
        %vm606 = vcmp.ge.f32.partialorder %v586, %v598
        %v607 = vsel %vm599, %v364, 1024
        %v608 = vsel %vm600, %v365, 1024
        %v609 = vsel %vm601, %v366, 1024
        %v610 = vsel %vm602, %v367, 1024
        %v611 = vsel %vm603, %v368, 1024
        %v612 = vsel %vm604, %v369, 1024
        %v613 = vsel %vm605, %v370, 1024
        %v614 = vsel %vm606, %v371, 1024
        %vm615 = vcmp.lt.s32.totalorder %v607, %v611
        %v616 = vsel %vm615, %v607, %v611
        %vm617 = vcmp.lt.s32.totalorder %v608, %v612
        %v618 = vsel %vm617, %v608, %v612
        %vm619 = vcmp.lt.s32.totalorder %v609, %v613
        %v620 = vsel %vm619, %v609, %v613
        %vm621 = vcmp.lt.s32.totalorder %v610, %v614
        %v622 = vsel %vm621, %v610, %v614
        %vm623 = vcmp.lt.s32.totalorder %v616, %v618
        %v624 = vsel %vm623, %v616, %v618
        %vm625 = vcmp.lt.s32.totalorder %v620, %v622
        %v626 = vsel %vm625, %v620, %v622
        %vm627 = vcmp.lt.s32.totalorder %v624, %v626
        %v628 = vsel %vm627, %v624, %v626
        %v629 = vand.u32 %v628, 65535
        %v630 = vshra.s32 %v628, 16
        %v631 = vcvt.s32.f32 %v629
        %v632 = vcvt.s32.f32 %v630
        %633 = vmin.xlane.f32.xlu0 %v632
        %v634 = vpop.xlane.xlu0 %633
        %vm635 = vcmp.eq.f32.partialorder %v632, %v634
        %v636 = vsel %vm635, %v631, inf
        %637 = vmin.xlane.f32.xlu0 %v636
        %v638 = vpop.xlane.xlu0 %637
        %v639 = vcvt.f32.s32 %v638
        %v640 = vcvt.f32.s32 %v634
        %v641 = vshll.u32 %v640, 16
        %v642 = vadd.s32 %v641, %v639
        %vm643 = vcmp.eq.s32.totalorder %v364, %v642
        %vm644 = vcmp.eq.s32.totalorder %v365, %v642
        %vm645 = vcmp.eq.s32.totalorder %v366, %v642
        %vm646 = vcmp.eq.s32.totalorder %v367, %v642
        %vm647 = vcmp.eq.s32.totalorder %v368, %v642
        %vm648 = vcmp.eq.s32.totalorder %v369, %v642
        %vm649 = vcmp.eq.s32.totalorder %v370, %v642
        %vm650 = vcmp.eq.s32.totalorder %v371, %v642
        %v651 = vsel %vm643, 1, 0
        %v652 = vsel %vm644, 1, 0
        %v653 = vsel %vm645, 1, 0
        %v654 = vsel %vm646, 1, 0
        %v655 = vsel %vm647, 1, 0
        %v656 = vsel %vm648, 1, 0
        %v657 = vsel %vm649, 1, 0
        %v658 = vsel %vm650, 1, 0
        %v659 = vcvt.s32.f32 %v651
        %v660 = vcvt.s32.f32 %v652
        %v661 = vcvt.s32.f32 %v653
        %v662 = vcvt.s32.f32 %v654
        %v663 = vcvt.s32.f32 %v655
        %v664 = vcvt.s32.f32 %v656
        %v665 = vcvt.s32.f32 %v657
        %v666 = vcvt.s32.f32 %v658
        %v667 = vpack.c.bf16 %v659, %v659
        %v668 = vpack.c.bf16 %v660, %v660
        %v669 = vpack.c.bf16 %v661, %v661
        %v670 = vpack.c.bf16 %v662, %v662
        %v671 = vpack.c.bf16 %v663, %v663
        %v672 = vpack.c.bf16 %v664, %v664
        %v673 = vpack.c.bf16 %v665, %v665
        %v674 = vpack.c.bf16 %v666, %v666
        %683 = vmatprep.subr.bf16.mxu0 0
        %684 = vmatpush1.bf16.xpose.msra.mxu0 0
        %685 = vmatprep.subr.bf16.mxu0 0
        %686 = vmatpush1.bf16.xpose.msra.mxu0 0
        %687 = vmatprep.subr.bf16.mxu0 0
        %688 = vmatpush1.bf16.xpose.msra.mxu0 0
        %689 = vmatprep.subr.bf16.mxu0 0
        %690 = vmatpush1.bf16.xpose.msra.mxu0 0
        %691 = vmatprep.subr.bf16.mxu0 0
        %692 = vmatpush1.bf16.xpose.msra.mxu0 0
        %693 = vmatprep.subr.bf16.mxu0 0
        %694 = vmatpush1.bf16.xpose.msra.mxu0 0
        %695 = vmatprep.subr.bf16.mxu0 0
        %696 = vmatpush1.bf16.xpose.msra.mxu0 0
        %697 = vmatprep.subr.bf16.mxu0 %v390
        %698 = vmatpush1.bf16.xpose.msra.mxu0 %v389
        %699 = vmatprep.subr.bf16.mxu0 0
        %700 = vmatpush2.bf16.xpose.msra.mxu0 0
        %701 = vmatprep.subr.bf16.mxu0 0
        %702 = vmatpush2.bf16.xpose.msra.mxu0 0
        %703 = vmatprep.subr.bf16.mxu0 0
        %704 = vmatpush2.bf16.xpose.msra.mxu0 0
        %705 = vmatprep.subr.bf16.mxu0 0
        %706 = vmatpush2.bf16.xpose.msra.mxu0 0
        %707 = vmatprep.subr.bf16.mxu0 0
        %708 = vmatpush2.bf16.xpose.msra.mxu0 0
        %709 = vmatprep.subr.bf16.mxu0 0
        %710 = vmatpush2.bf16.xpose.msra.mxu0 0
        %711 = vmatprep.subr.bf16.mxu0 0
        %712 = vmatpush2.bf16.xpose.msra.mxu0 0
        %713 = vmatprep.subr.bf16.mxu0 0
        %714 = vmatpush2.bf16.xpose.msra.mxu0 0
        %715 = vmatprep.mubr.bf16.mxu0 %v668
        %716 = vmatmul.mubr.bf16.gmra.mxu0 %v667
        %v717 = vpop.f32.mrf.mxu0
        %v718 = vadd.f32 0.0, %v717
        %v719 = vpop.f32.mrf.mxu0
        %v720 = vpop.f32.mrf.mxu0
        %v721 = vpop.f32.mrf.mxu0
        %722 = vdwg.mxu0
        %723 = vmatprep.subr.bf16.mxu0 0
        %724 = vmatpush1.bf16.xpose.msra.mxu0 0
        %725 = vmatprep.subr.bf16.mxu0 0
        %726 = vmatpush1.bf16.xpose.msra.mxu0 0
        %727 = vmatprep.subr.bf16.mxu0 0
        %728 = vmatpush1.bf16.xpose.msra.mxu0 0
        %729 = vmatprep.subr.bf16.mxu0 0
        %730 = vmatpush1.bf16.xpose.msra.mxu0 0
        %731 = vmatprep.subr.bf16.mxu0 0
        %732 = vmatpush1.bf16.xpose.msra.mxu0 0
        %733 = vmatprep.subr.bf16.mxu0 0
        %734 = vmatpush1.bf16.xpose.msra.mxu0 0
        %735 = vmatprep.subr.bf16.mxu0 0
        %736 = vmatpush1.bf16.xpose.msra.mxu0 0
        %737 = vmatprep.subr.bf16.mxu0 %v392
        %738 = vmatpush1.bf16.xpose.msra.mxu0 %v391
        %739 = vmatprep.subr.bf16.mxu0 0
        %740 = vmatpush2.bf16.xpose.msra.mxu0 0
        %741 = vmatprep.subr.bf16.mxu0 0
        %742 = vmatpush2.bf16.xpose.msra.mxu0 0
        %743 = vmatprep.subr.bf16.mxu0 0
        %744 = vmatpush2.bf16.xpose.msra.mxu0 0
        %745 = vmatprep.subr.bf16.mxu0 0
        %746 = vmatpush2.bf16.xpose.msra.mxu0 0
        %747 = vmatprep.subr.bf16.mxu0 0
        %748 = vmatpush2.bf16.xpose.msra.mxu0 0
        %749 = vmatprep.subr.bf16.mxu0 0
        %750 = vmatpush2.bf16.xpose.msra.mxu0 0
        %751 = vmatprep.subr.bf16.mxu0 0
        %752 = vmatpush2.bf16.xpose.msra.mxu0 0
        %753 = vmatprep.subr.bf16.mxu0 0
        %754 = vmatpush2.bf16.xpose.msra.mxu0 0
        %755 = vmatprep.mubr.bf16.mxu0 %v670
        %756 = vmatmul.mubr.bf16.gmra.mxu0 %v669
        %v757 = vpop.f32.mrf.mxu0
        %v758 = vadd.f32 %v718, %v757
        %v759 = vpop.f32.mrf.mxu0
        %v760 = vpop.f32.mrf.mxu0
        %v761 = vpop.f32.mrf.mxu0
        %762 = vdwg.mxu0
        %763 = vmatprep.subr.bf16.mxu0 0
        %764 = vmatpush1.bf16.xpose.msra.mxu0 0
        %765 = vmatprep.subr.bf16.mxu0 0
        %766 = vmatpush1.bf16.xpose.msra.mxu0 0
        %767 = vmatprep.subr.bf16.mxu0 0
        %768 = vmatpush1.bf16.xpose.msra.mxu0 0
        %769 = vmatprep.subr.bf16.mxu0 0
        %770 = vmatpush1.bf16.xpose.msra.mxu0 0
        %771 = vmatprep.subr.bf16.mxu0 0
        %772 = vmatpush1.bf16.xpose.msra.mxu0 0
        %773 = vmatprep.subr.bf16.mxu0 0
        %774 = vmatpush1.bf16.xpose.msra.mxu0 0
        %775 = vmatprep.subr.bf16.mxu0 0
        %776 = vmatpush1.bf16.xpose.msra.mxu0 0
        %777 = vmatprep.subr.bf16.mxu0 %v394
        %778 = vmatpush1.bf16.xpose.msra.mxu0 %v393
        %779 = vmatprep.subr.bf16.mxu0 0
        %780 = vmatpush2.bf16.xpose.msra.mxu0 0
        %781 = vmatprep.subr.bf16.mxu0 0
        %782 = vmatpush2.bf16.xpose.msra.mxu0 0
        %783 = vmatprep.subr.bf16.mxu0 0
        %784 = vmatpush2.bf16.xpose.msra.mxu0 0
        %785 = vmatprep.subr.bf16.mxu0 0
        %786 = vmatpush2.bf16.xpose.msra.mxu0 0
        %787 = vmatprep.subr.bf16.mxu0 0
        %788 = vmatpush2.bf16.xpose.msra.mxu0 0
        %789 = vmatprep.subr.bf16.mxu0 0
        %790 = vmatpush2.bf16.xpose.msra.mxu0 0
        %791 = vmatprep.subr.bf16.mxu0 0
        %792 = vmatpush2.bf16.xpose.msra.mxu0 0
        %793 = vmatprep.subr.bf16.mxu0 0
        %794 = vmatpush2.bf16.xpose.msra.mxu0 0
        %795 = vmatprep.mubr.bf16.mxu0 %v672
        %796 = vmatmul.mubr.bf16.gmra.mxu0 %v671
        %v797 = vpop.f32.mrf.mxu0
        %v798 = vadd.f32 %v758, %v797
        %v799 = vpop.f32.mrf.mxu0
        %v800 = vpop.f32.mrf.mxu0
        %v801 = vpop.f32.mrf.mxu0
        %802 = vdwg.mxu0
        %803 = vmatprep.subr.bf16.mxu0 0
        %804 = vmatpush1.bf16.xpose.msra.mxu0 0
        %805 = vmatprep.subr.bf16.mxu0 0
        %806 = vmatpush1.bf16.xpose.msra.mxu0 0
        %807 = vmatprep.subr.bf16.mxu0 0
        %808 = vmatpush1.bf16.xpose.msra.mxu0 0
        %809 = vmatprep.subr.bf16.mxu0 0
        %810 = vmatpush1.bf16.xpose.msra.mxu0 0
        %811 = vmatprep.subr.bf16.mxu0 0
        %812 = vmatpush1.bf16.xpose.msra.mxu0 0
        %813 = vmatprep.subr.bf16.mxu0 0
        %814 = vmatpush1.bf16.xpose.msra.mxu0 0
        %815 = vmatprep.subr.bf16.mxu0 0
        %816 = vmatpush1.bf16.xpose.msra.mxu0 0
        %817 = vmatprep.subr.bf16.mxu0 %v396
        %818 = vmatpush1.bf16.xpose.msra.mxu0 %v395
        %819 = vmatprep.subr.bf16.mxu0 0
        %820 = vmatpush2.bf16.xpose.msra.mxu0 0
        %821 = vmatprep.subr.bf16.mxu0 0
        %822 = vmatpush2.bf16.xpose.msra.mxu0 0
        %823 = vmatprep.subr.bf16.mxu0 0
        %824 = vmatpush2.bf16.xpose.msra.mxu0 0
        %825 = vmatprep.subr.bf16.mxu0 0
        %826 = vmatpush2.bf16.xpose.msra.mxu0 0
        %827 = vmatprep.subr.bf16.mxu0 0
        %828 = vmatpush2.bf16.xpose.msra.mxu0 0
        %829 = vmatprep.subr.bf16.mxu0 0
        %830 = vmatpush2.bf16.xpose.msra.mxu0 0
        %831 = vmatprep.subr.bf16.mxu0 0
        %832 = vmatpush2.bf16.xpose.msra.mxu0 0
        %833 = vmatprep.subr.bf16.mxu0 0
        %834 = vmatpush2.bf16.xpose.msra.mxu0 0
        %835 = vmatprep.mubr.bf16.mxu0 %v674
        %836 = vmatmul.mubr.bf16.gmra.mxu0 %v673
        %v837 = vpop.f32.mrf.mxu0
        %v838 = vadd.f32 %v798, %v837
        %v839 = vpop.f32.mrf.mxu0
        %v840 = vpop.f32.mrf.mxu0
        %v841 = vpop.f32.mrf.mxu0
        %842 = vdwg.mxu0
        %v843 = vsub.f32 %v360, %v838
        %vm844 = vcmp.eq.s32.totalorder %v364, 0
        %v845 = vsel %vm844, %v642, 0
        %v846 = vadd.f32 %v838, 0.0
        %v847 = vmul.f32 %v843, %v843
        %v848 = vadd.f32 %v847, 0.0
        %s849 = scalar_lea.vmem [#allocation2], 32
        %v850 = vld [vmem:[%s849] sm:$0xff]
        %v851 = vld [vmem:[%s849 + $0x8] sm:$0xff]
        %v852 = vld [vmem:[%s849 + $0x10] sm:$0xff]
        %v853 = vld [vmem:[%s849 + $0x18] sm:$0xff]
        %v854 = vpack.c.bf16 %v843, %v843
        %v859 = vunpack.c.l.b16 %v850
        %v860 = vunpack.c.h.b16 %v850
        %v861 = vunpack.c.l.b16 %v851
        %v862 = vunpack.c.h.b16 %v851
        %v863 = vunpack.c.l.b16 %v852
        %v864 = vunpack.c.h.b16 %v852
        %v865 = vunpack.c.l.b16 %v853
        %v866 = vunpack.c.h.b16 %v853
        %v867 = vpack.c.b16 %v859, %v859
        %v868 = vpack.c.b16 %v860, %v860
        %v869 = vpack.c.b16 %v861, %v861
        %v870 = vpack.c.b16 %v862, %v862
        %v871 = vpack.c.b16 %v863, %v863
        %v872 = vpack.c.b16 %v864, %v864
        %v873 = vpack.c.b16 %v865, %v865
        %v874 = vpack.c.b16 %v866, %v866
        %v876 = vsel %vm397, %v854, 0
        %v879 = vsel %vm401, %v867, 0
        %v882 = vsel %vm401, %v868, 0
        %v885 = vsel %vm401, %v869, 0
        %v888 = vsel %vm401, %v870, 0
        %v891 = vsel %vm401, %v871, 0
        %v894 = vsel %vm401, %v872, 0
        %v897 = vsel %vm401, %v873, 0
        %v900 = vsel %vm401, %v874, 0
        %902 = vmatprep.subr.bf16.mxu0 0
        %903 = vmatpush1.bf16.msra.mxu0 0
        %904 = vmatprep.subr.bf16.mxu0 0
        %905 = vmatpush1.bf16.msra.mxu0 0
        %906 = vmatprep.subr.bf16.mxu0 0
        %907 = vmatpush1.bf16.msra.mxu0 0
        %908 = vmatprep.subr.bf16.mxu0 0
        %909 = vmatpush1.bf16.msra.mxu0 0
        %910 = vmatprep.subr.bf16.mxu0 0
        %911 = vmatpush1.bf16.msra.mxu0 0
        %912 = vmatprep.subr.bf16.mxu0 0
        %913 = vmatpush1.bf16.msra.mxu0 0
        %914 = vmatprep.subr.bf16.mxu0 0
        %915 = vmatpush1.bf16.msra.mxu0 0
        %916 = vmatprep.subr.bf16.mxu0 %v882
        %917 = vmatpush1.bf16.msra.mxu0 %v879
        %918 = vmatprep.subr.bf16.mxu0 0
        %919 = vmatpush2.bf16.msra.mxu0 0
        %920 = vmatprep.subr.bf16.mxu0 0
        %921 = vmatpush2.bf16.msra.mxu0 0
        %922 = vmatprep.subr.bf16.mxu0 0
        %923 = vmatpush2.bf16.msra.mxu0 0
        %924 = vmatprep.subr.bf16.mxu0 0
        %925 = vmatpush2.bf16.msra.mxu0 0
        %926 = vmatprep.subr.bf16.mxu0 0
        %927 = vmatpush2.bf16.msra.mxu0 0
        %928 = vmatprep.subr.bf16.mxu0 0
        %929 = vmatpush2.bf16.msra.mxu0 0
        %930 = vmatprep.subr.bf16.mxu0 0
        %931 = vmatpush2.bf16.msra.mxu0 0
        %932 = vmatprep.subr.bf16.mxu0 0
        %933 = vmatpush2.bf16.msra.mxu0 0
        %934 = vmatprep.mubr.bf16.mxu0 0
        %935 = vmatmul.mubr.bf16.gmra.mxu0 %v876
        %v936 = vpop.f32.mrf.mxu0
        %v937 = vadd.f32 0.0, %v936
        %v938 = vpop.f32.mrf.mxu0
        %v939 = vadd.f32 0.0, %v938
        %v940 = vpop.f32.mrf.mxu0
        %v941 = vpop.f32.mrf.mxu0
        %942 = vdwg.mxu0
        %943 = vmatprep.subr.bf16.mxu0 0
        %944 = vmatpush1.bf16.msra.mxu0 0
        %945 = vmatprep.subr.bf16.mxu0 0
        %946 = vmatpush1.bf16.msra.mxu0 0
        %947 = vmatprep.subr.bf16.mxu0 0
        %948 = vmatpush1.bf16.msra.mxu0 0
        %949 = vmatprep.subr.bf16.mxu0 0
        %950 = vmatpush1.bf16.msra.mxu0 0
        %951 = vmatprep.subr.bf16.mxu0 0
        %952 = vmatpush1.bf16.msra.mxu0 0
        %953 = vmatprep.subr.bf16.mxu0 0
        %954 = vmatpush1.bf16.msra.mxu0 0
        %955 = vmatprep.subr.bf16.mxu0 0
        %956 = vmatpush1.bf16.msra.mxu0 0
        %957 = vmatprep.subr.bf16.mxu0 %v888
        %958 = vmatpush1.bf16.msra.mxu0 %v885
        %959 = vmatprep.subr.bf16.mxu0 0
        %960 = vmatpush2.bf16.msra.mxu0 0
        %961 = vmatprep.subr.bf16.mxu0 0
        %962 = vmatpush2.bf16.msra.mxu0 0
        %963 = vmatprep.subr.bf16.mxu0 0
        %964 = vmatpush2.bf16.msra.mxu0 0
        %965 = vmatprep.subr.bf16.mxu0 0
        %966 = vmatpush2.bf16.msra.mxu0 0
        %967 = vmatprep.subr.bf16.mxu0 0
        %968 = vmatpush2.bf16.msra.mxu0 0
        %969 = vmatprep.subr.bf16.mxu0 0
        %970 = vmatpush2.bf16.msra.mxu0 0
        %971 = vmatprep.subr.bf16.mxu0 0
        %972 = vmatpush2.bf16.msra.mxu0 0
        %973 = vmatprep.subr.bf16.mxu0 0
        %974 = vmatpush2.bf16.msra.mxu0 0
        %975 = vmatprep.mubr.bf16.mxu0 0
        %976 = vmatmul.mubr.bf16.gmra.mxu0 %v876
        %v977 = vpop.f32.mrf.mxu0
        %v978 = vadd.f32 0.0, %v977
        %v979 = vpop.f32.mrf.mxu0
        %v980 = vadd.f32 0.0, %v979
        %v981 = vpop.f32.mrf.mxu0
        %v982 = vpop.f32.mrf.mxu0
        %983 = vdwg.mxu0
        %984 = vmatprep.subr.bf16.mxu0 0
        %985 = vmatpush1.bf16.msra.mxu0 0
        %986 = vmatprep.subr.bf16.mxu0 0
        %987 = vmatpush1.bf16.msra.mxu0 0
        %988 = vmatprep.subr.bf16.mxu0 0
        %989 = vmatpush1.bf16.msra.mxu0 0
        %990 = vmatprep.subr.bf16.mxu0 0
        %991 = vmatpush1.bf16.msra.mxu0 0
        %992 = vmatprep.subr.bf16.mxu0 0
        %993 = vmatpush1.bf16.msra.mxu0 0
        %994 = vmatprep.subr.bf16.mxu0 0
        %995 = vmatpush1.bf16.msra.mxu0 0
        %996 = vmatprep.subr.bf16.mxu0 0
        %997 = vmatpush1.bf16.msra.mxu0 0
        %998 = vmatprep.subr.bf16.mxu0 %v894
        %999 = vmatpush1.bf16.msra.mxu0 %v891
        %1000 = vmatprep.subr.bf16.mxu0 0
        %1001 = vmatpush2.bf16.msra.mxu0 0
        %1002 = vmatprep.subr.bf16.mxu0 0
        %1003 = vmatpush2.bf16.msra.mxu0 0
        %1004 = vmatprep.subr.bf16.mxu0 0
        %1005 = vmatpush2.bf16.msra.mxu0 0
        %1006 = vmatprep.subr.bf16.mxu0 0
        %1007 = vmatpush2.bf16.msra.mxu0 0
        %1008 = vmatprep.subr.bf16.mxu0 0
        %1009 = vmatpush2.bf16.msra.mxu0 0
        %1010 = vmatprep.subr.bf16.mxu0 0
        %1011 = vmatpush2.bf16.msra.mxu0 0
        %1012 = vmatprep.subr.bf16.mxu0 0
        %1013 = vmatpush2.bf16.msra.mxu0 0
        %1014 = vmatprep.subr.bf16.mxu0 0
        %1015 = vmatpush2.bf16.msra.mxu0 0
        %1016 = vmatprep.mubr.bf16.mxu0 0
        %1017 = vmatmul.mubr.bf16.gmra.mxu0 %v876
        %v1018 = vpop.f32.mrf.mxu0
        %v1019 = vadd.f32 0.0, %v1018
        %v1020 = vpop.f32.mrf.mxu0
        %v1021 = vadd.f32 0.0, %v1020
        %v1022 = vpop.f32.mrf.mxu0
        %v1023 = vpop.f32.mrf.mxu0
        %1024 = vdwg.mxu0
        %1025 = vmatprep.subr.bf16.mxu0 0
        %1026 = vmatpush1.bf16.msra.mxu0 0
        %1027 = vmatprep.subr.bf16.mxu0 0
        %1028 = vmatpush1.bf16.msra.mxu0 0
        %1029 = vmatprep.subr.bf16.mxu0 0
        %1030 = vmatpush1.bf16.msra.mxu0 0
        %1031 = vmatprep.subr.bf16.mxu0 0
        %1032 = vmatpush1.bf16.msra.mxu0 0
        %1033 = vmatprep.subr.bf16.mxu0 0
        %1034 = vmatpush1.bf16.msra.mxu0 0
        %1035 = vmatprep.subr.bf16.mxu0 0
        %1036 = vmatpush1.bf16.msra.mxu0 0
        %1037 = vmatprep.subr.bf16.mxu0 0
        %1038 = vmatpush1.bf16.msra.mxu0 0
        %1039 = vmatprep.subr.bf16.mxu0 %v900
        %1040 = vmatpush1.bf16.msra.mxu0 %v897
        %1041 = vmatprep.subr.bf16.mxu0 0
        %1042 = vmatpush2.bf16.msra.mxu0 0
        %1043 = vmatprep.subr.bf16.mxu0 0
        %1044 = vmatpush2.bf16.msra.mxu0 0
        %1045 = vmatprep.subr.bf16.mxu0 0
        %1046 = vmatpush2.bf16.msra.mxu0 0
        %1047 = vmatprep.subr.bf16.mxu0 0
        %1048 = vmatpush2.bf16.msra.mxu0 0
        %1049 = vmatprep.subr.bf16.mxu0 0
        %1050 = vmatpush2.bf16.msra.mxu0 0
        %1051 = vmatprep.subr.bf16.mxu0 0
        %1052 = vmatpush2.bf16.msra.mxu0 0
        %1053 = vmatprep.subr.bf16.mxu0 0
        %1054 = vmatpush2.bf16.msra.mxu0 0
        %1055 = vmatprep.subr.bf16.mxu0 0
        %1056 = vmatpush2.bf16.msra.mxu0 0
        %1057 = vmatprep.mubr.bf16.mxu0 0
        %1058 = vmatmul.mubr.bf16.gmra.mxu0 %v876
        %v1059 = vpop.f32.mrf.mxu0
        %v1060 = vadd.f32 0.0, %v1059
        %v1061 = vpop.f32.mrf.mxu0
        %v1062 = vadd.f32 0.0, %v1061
        %v1063 = vpop.f32.mrf.mxu0
        %v1064 = vpop.f32.mrf.mxu0
        %1065 = vdwg.mxu0
        %v1066 = vmax.f32 %v937, %v1019
        %v1067 = vmax.f32 %v939, %v1021
        %v1068 = vmax.f32 %v978, %v1060
        %v1069 = vmax.f32 %v980, %v1062
        %v1070 = vmax.f32 %v1066, %v1067
        %v1071 = vmax.f32 %v1068, %v1069
        %v1072 = vmax.f32 %v1070, %v1071
        %1073 = vmax.xlane.f32.xlu0 %v1072
        %v1074 = vpop.xlane.xlu0 %1073
        %vm1075 = vcmp.ge.f32.partialorder %v937, %v1074
        %vm1076 = vcmp.ge.f32.partialorder %v939, %v1074
        %vm1077 = vcmp.ge.f32.partialorder %v978, %v1074
        %vm1078 = vcmp.ge.f32.partialorder %v980, %v1074
        %vm1079 = vcmp.ge.f32.partialorder %v1019, %v1074
        %vm1080 = vcmp.ge.f32.partialorder %v1021, %v1074
        %vm1081 = vcmp.ge.f32.partialorder %v1060, %v1074
        %vm1082 = vcmp.ge.f32.partialorder %v1062, %v1074
        %v1083 = vsel %vm1075, %v364, 1024
        %v1084 = vsel %vm1076, %v365, 1024
        %v1085 = vsel %vm1077, %v366, 1024
        %v1086 = vsel %vm1078, %v367, 1024
        %v1087 = vsel %vm1079, %v368, 1024
        %v1088 = vsel %vm1080, %v369, 1024
        %v1089 = vsel %vm1081, %v370, 1024
        %v1090 = vsel %vm1082, %v371, 1024
        %vm1091 = vcmp.lt.s32.totalorder %v1083, %v1087
        %v1092 = vsel %vm1091, %v1083, %v1087
        %vm1093 = vcmp.lt.s32.totalorder %v1084, %v1088
        %v1094 = vsel %vm1093, %v1084, %v1088
        %vm1095 = vcmp.lt.s32.totalorder %v1085, %v1089
        %v1096 = vsel %vm1095, %v1085, %v1089
        %vm1097 = vcmp.lt.s32.totalorder %v1086, %v1090
        %v1098 = vsel %vm1097, %v1086, %v1090
        %vm1099 = vcmp.lt.s32.totalorder %v1092, %v1094
        %v1100 = vsel %vm1099, %v1092, %v1094
        %vm1101 = vcmp.lt.s32.totalorder %v1096, %v1098
        %v1102 = vsel %vm1101, %v1096, %v1098
        %vm1103 = vcmp.lt.s32.totalorder %v1100, %v1102
        %v1104 = vsel %vm1103, %v1100, %v1102
        %v1105 = vand.u32 %v1104, 65535
        %v1106 = vshra.s32 %v1104, 16
        %v1107 = vcvt.s32.f32 %v1105
        %v1108 = vcvt.s32.f32 %v1106
        %1109 = vmin.xlane.f32.xlu0 %v1108
        %v1110 = vpop.xlane.xlu0 %1109
        %vm1111 = vcmp.eq.f32.partialorder %v1108, %v1110
        %v1112 = vsel %vm1111, %v1107, inf
        %1113 = vmin.xlane.f32.xlu0 %v1112
        %v1114 = vpop.xlane.xlu0 %1113
        %v1115 = vcvt.f32.s32 %v1114
        %v1116 = vcvt.f32.s32 %v1110
        %v1117 = vshll.u32 %v1116, 16
        %v1118 = vadd.s32 %v1117, %v1115
        %vm1119 = vcmp.eq.s32.totalorder %v364, %v1118
        %vm1120 = vcmp.eq.s32.totalorder %v365, %v1118
        %vm1121 = vcmp.eq.s32.totalorder %v366, %v1118
        %vm1122 = vcmp.eq.s32.totalorder %v367, %v1118
        %vm1123 = vcmp.eq.s32.totalorder %v368, %v1118
        %vm1124 = vcmp.eq.s32.totalorder %v369, %v1118
        %vm1125 = vcmp.eq.s32.totalorder %v370, %v1118
        %vm1126 = vcmp.eq.s32.totalorder %v371, %v1118
        %v1127 = vsel %vm1119, 1, 0
        %v1128 = vsel %vm1120, 1, 0
        %v1129 = vsel %vm1121, 1, 0
        %v1130 = vsel %vm1122, 1, 0
        %v1131 = vsel %vm1123, 1, 0
        %v1132 = vsel %vm1124, 1, 0
        %v1133 = vsel %vm1125, 1, 0
        %v1134 = vsel %vm1126, 1, 0
        %v1135 = vcvt.s32.f32 %v1127
        %v1136 = vcvt.s32.f32 %v1128
        %v1137 = vcvt.s32.f32 %v1129
        %v1138 = vcvt.s32.f32 %v1130
        %v1139 = vcvt.s32.f32 %v1131
        %v1140 = vcvt.s32.f32 %v1132
        %v1141 = vcvt.s32.f32 %v1133
        %v1142 = vcvt.s32.f32 %v1134
        %v1143 = vpack.c.bf16 %v1135, %v1135
        %v1144 = vpack.c.bf16 %v1136, %v1136
        %v1145 = vpack.c.bf16 %v1137, %v1137
        %v1146 = vpack.c.bf16 %v1138, %v1138
        %v1147 = vpack.c.bf16 %v1139, %v1139
        %v1148 = vpack.c.bf16 %v1140, %v1140
        %v1149 = vpack.c.bf16 %v1141, %v1141
        %v1150 = vpack.c.bf16 %v1142, %v1142
        %1159 = vmatprep.subr.bf16.mxu0 0
        %1160 = vmatpush1.bf16.xpose.msra.mxu0 0
        %1161 = vmatprep.subr.bf16.mxu0 0
        %1162 = vmatpush1.bf16.xpose.msra.mxu0 0
        %1163 = vmatprep.subr.bf16.mxu0 0
        %1164 = vmatpush1.bf16.xpose.msra.mxu0 0
        %1165 = vmatprep.subr.bf16.mxu0 0
        %1166 = vmatpush1.bf16.xpose.msra.mxu0 0
        %1167 = vmatprep.subr.bf16.mxu0 0
        %1168 = vmatpush1.bf16.xpose.msra.mxu0 0
        %1169 = vmatprep.subr.bf16.mxu0 0
        %1170 = vmatpush1.bf16.xpose.msra.mxu0 0
        %1171 = vmatprep.subr.bf16.mxu0 0
        %1172 = vmatpush1.bf16.xpose.msra.mxu0 0
        %1173 = vmatprep.subr.bf16.mxu0 %v868
        %1174 = vmatpush1.bf16.xpose.msra.mxu0 %v867
        %1175 = vmatprep.subr.bf16.mxu0 0
        %1176 = vmatpush2.bf16.xpose.msra.mxu0 0
        %1177 = vmatprep.subr.bf16.mxu0 0
        %1178 = vmatpush2.bf16.xpose.msra.mxu0 0
        %1179 = vmatprep.subr.bf16.mxu0 0
        %1180 = vmatpush2.bf16.xpose.msra.mxu0 0
        %1181 = vmatprep.subr.bf16.mxu0 0
        %1182 = vmatpush2.bf16.xpose.msra.mxu0 0
        %1183 = vmatprep.subr.bf16.mxu0 0
        %1184 = vmatpush2.bf16.xpose.msra.mxu0 0
        %1185 = vmatprep.subr.bf16.mxu0 0
        %1186 = vmatpush2.bf16.xpose.msra.mxu0 0
        %1187 = vmatprep.subr.bf16.mxu0 0
        %1188 = vmatpush2.bf16.xpose.msra.mxu0 0
        %1189 = vmatprep.subr.bf16.mxu0 0
        %1190 = vmatpush2.bf16.xpose.msra.mxu0 0
        %1191 = vmatprep.mubr.bf16.mxu0 %v1144
        %1192 = vmatmul.mubr.bf16.gmra.mxu0 %v1143
        %v1193 = vpop.f32.mrf.mxu0
        %v1194 = vadd.f32 0.0, %v1193
        %v1195 = vpop.f32.mrf.mxu0
        %v1196 = vpop.f32.mrf.mxu0
        %v1197 = vpop.f32.mrf.mxu0
        %1198 = vdwg.mxu0
        %1199 = vmatprep.subr.bf16.mxu0 0
        %1200 = vmatpush1.bf16.xpose.msra.mxu0 0
        %1201 = vmatprep.subr.bf16.mxu0 0
        %1202 = vmatpush1.bf16.xpose.msra.mxu0 0
        %1203 = vmatprep.subr.bf16.mxu0 0
        %1204 = vmatpush1.bf16.xpose.msra.mxu0 0
        %1205 = vmatprep.subr.bf16.mxu0 0
        %1206 = vmatpush1.bf16.xpose.msra.mxu0 0
        %1207 = vmatprep.subr.bf16.mxu0 0
        %1208 = vmatpush1.bf16.xpose.msra.mxu0 0
        %1209 = vmatprep.subr.bf16.mxu0 0
        %1210 = vmatpush1.bf16.xpose.msra.mxu0 0
        %1211 = vmatprep.subr.bf16.mxu0 0
        %1212 = vmatpush1.bf16.xpose.msra.mxu0 0
        %1213 = vmatprep.subr.bf16.mxu0 %v870
        %1214 = vmatpush1.bf16.xpose.msra.mxu0 %v869
        %1215 = vmatprep.subr.bf16.mxu0 0
        %1216 = vmatpush2.bf16.xpose.msra.mxu0 0
        %1217 = vmatprep.subr.bf16.mxu0 0
        %1218 = vmatpush2.bf16.xpose.msra.mxu0 0
        %1219 = vmatprep.subr.bf16.mxu0 0
        %1220 = vmatpush2.bf16.xpose.msra.mxu0 0
        %1221 = vmatprep.subr.bf16.mxu0 0
        %1222 = vmatpush2.bf16.xpose.msra.mxu0 0
        %1223 = vmatprep.subr.bf16.mxu0 0
        %1224 = vmatpush2.bf16.xpose.msra.mxu0 0
        %1225 = vmatprep.subr.bf16.mxu0 0
        %1226 = vmatpush2.bf16.xpose.msra.mxu0 0
        %1227 = vmatprep.subr.bf16.mxu0 0
        %1228 = vmatpush2.bf16.xpose.msra.mxu0 0
        %1229 = vmatprep.subr.bf16.mxu0 0
        %1230 = vmatpush2.bf16.xpose.msra.mxu0 0
        %1231 = vmatprep.mubr.bf16.mxu0 %v1146
        %1232 = vmatmul.mubr.bf16.gmra.mxu0 %v1145
        %v1233 = vpop.f32.mrf.mxu0
        %v1234 = vadd.f32 %v1194, %v1233
        %v1235 = vpop.f32.mrf.mxu0
        %v1236 = vpop.f32.mrf.mxu0
        %v1237 = vpop.f32.mrf.mxu0
        %1238 = vdwg.mxu0
        %1239 = vmatprep.subr.bf16.mxu0 0
        %1240 = vmatpush1.bf16.xpose.msra.mxu0 0
        %1241 = vmatprep.subr.bf16.mxu0 0
        %1242 = vmatpush1.bf16.xpose.msra.mxu0 0
        %1243 = vmatprep.subr.bf16.mxu0 0
        %1244 = vmatpush1.bf16.xpose.msra.mxu0 0
        %1245 = vmatprep.subr.bf16.mxu0 0
        %1246 = vmatpush1.bf16.xpose.msra.mxu0 0
        %1247 = vmatprep.subr.bf16.mxu0 0
        %1248 = vmatpush1.bf16.xpose.msra.mxu0 0
        %1249 = vmatprep.subr.bf16.mxu0 0
        %1250 = vmatpush1.bf16.xpose.msra.mxu0 0
        %1251 = vmatprep.subr.bf16.mxu0 0
        %1252 = vmatpush1.bf16.xpose.msra.mxu0 0
        %1253 = vmatprep.subr.bf16.mxu0 %v872
        %1254 = vmatpush1.bf16.xpose.msra.mxu0 %v871
        %1255 = vmatprep.subr.bf16.mxu0 0
        %1256 = vmatpush2.bf16.xpose.msra.mxu0 0
        %1257 = vmatprep.subr.bf16.mxu0 0
        %1258 = vmatpush2.bf16.xpose.msra.mxu0 0
        %1259 = vmatprep.subr.bf16.mxu0 0
        %1260 = vmatpush2.bf16.xpose.msra.mxu0 0
        %1261 = vmatprep.subr.bf16.mxu0 0
        %1262 = vmatpush2.bf16.xpose.msra.mxu0 0
        %1263 = vmatprep.subr.bf16.mxu0 0
        %1264 = vmatpush2.bf16.xpose.msra.mxu0 0
        %1265 = vmatprep.subr.bf16.mxu0 0
        %1266 = vmatpush2.bf16.xpose.msra.mxu0 0
        %1267 = vmatprep.subr.bf16.mxu0 0
        %1268 = vmatpush2.bf16.xpose.msra.mxu0 0
        %1269 = vmatprep.subr.bf16.mxu0 0
        %1270 = vmatpush2.bf16.xpose.msra.mxu0 0
        %1271 = vmatprep.mubr.bf16.mxu0 %v1148
        %1272 = vmatmul.mubr.bf16.gmra.mxu0 %v1147
        %v1273 = vpop.f32.mrf.mxu0
        %v1274 = vadd.f32 %v1234, %v1273
        %v1275 = vpop.f32.mrf.mxu0
        %v1276 = vpop.f32.mrf.mxu0
        %v1277 = vpop.f32.mrf.mxu0
        %1278 = vdwg.mxu0
        %1279 = vmatprep.subr.bf16.mxu0 0
        %1280 = vmatpush1.bf16.xpose.msra.mxu0 0
        %1281 = vmatprep.subr.bf16.mxu0 0
        %1282 = vmatpush1.bf16.xpose.msra.mxu0 0
        %1283 = vmatprep.subr.bf16.mxu0 0
        %1284 = vmatpush1.bf16.xpose.msra.mxu0 0
        %1285 = vmatprep.subr.bf16.mxu0 0
        %1286 = vmatpush1.bf16.xpose.msra.mxu0 0
        %1287 = vmatprep.subr.bf16.mxu0 0
        %1288 = vmatpush1.bf16.xpose.msra.mxu0 0
        %1289 = vmatprep.subr.bf16.mxu0 0
        %1290 = vmatpush1.bf16.xpose.msra.mxu0 0
        %1291 = vmatprep.subr.bf16.mxu0 0
        %1292 = vmatpush1.bf16.xpose.msra.mxu0 0
        %1293 = vmatprep.subr.bf16.mxu0 %v874
        %1294 = vmatpush1.bf16.xpose.msra.mxu0 %v873
        %1295 = vmatprep.subr.bf16.mxu0 0
        %1296 = vmatpush2.bf16.xpose.msra.mxu0 0
        %1297 = vmatprep.subr.bf16.mxu0 0
        %1298 = vmatpush2.bf16.xpose.msra.mxu0 0
        %1299 = vmatprep.subr.bf16.mxu0 0
        %1300 = vmatpush2.bf16.xpose.msra.mxu0 0
        %1301 = vmatprep.subr.bf16.mxu0 0
        %1302 = vmatpush2.bf16.xpose.msra.mxu0 0
        %1303 = vmatprep.subr.bf16.mxu0 0
        %1304 = vmatpush2.bf16.xpose.msra.mxu0 0
        %1305 = vmatprep.subr.bf16.mxu0 0
        %1306 = vmatpush2.bf16.xpose.msra.mxu0 0
        %1307 = vmatprep.subr.bf16.mxu0 0
        %1308 = vmatpush2.bf16.xpose.msra.mxu0 0
        %1309 = vmatprep.subr.bf16.mxu0 0
        %1310 = vmatpush2.bf16.xpose.msra.mxu0 0
        %1311 = vmatprep.mubr.bf16.mxu0 %v1150
        %1312 = vmatmul.mubr.bf16.gmra.mxu0 %v1149
        %v1313 = vpop.f32.mrf.mxu0
        %v1314 = vadd.f32 %v1274, %v1313
        %v1315 = vpop.f32.mrf.mxu0
        %v1316 = vpop.f32.mrf.mxu0
        %v1317 = vpop.f32.mrf.mxu0
        %1318 = vdwg.mxu0
        %v1319 = vsub.f32 %v843, %v1314
        %vm1320 = vcmp.eq.s32.totalorder %v364, 1
        %v1321 = vsel %vm1320, %v1118, %v845
        %v1322 = vadd.f32 %v846, %v1314
        %v1323 = vmul.f32 %v1319, %v1319
        %v1324 = vadd.f32 %v848, %v1323
        %s1325 = scalar_lea.vmem [#allocation2], 64
        %v1326 = vld [vmem:[%s1325] sm:$0xff]
        %v1327 = vld [vmem:[%s1325 + $0x8] sm:$0xff]
        %v1328 = vld [vmem:[%s1325 + $0x10] sm:$0xff]
        %v1329 = vld [vmem:[%s1325 + $0x18] sm:$0xff]
        %v1330 = vpack.c.bf16 %v1319, %v1319
        %v1335 = vunpack.c.l.b16 %v1326
        %v1336 = vunpack.c.h.b16 %v1326
        %v1337 = vunpack.c.l.b16 %v1327
        %v1338 = vunpack.c.h.b16 %v1327
        %v1339 = vunpack.c.l.b16 %v1328
        %v1340 = vunpack.c.h.b16 %v1328
        %v1341 = vunpack.c.l.b16 %v1329
        %v1342 = vunpack.c.h.b16 %v1329
        %v1343 = vpack.c.b16 %v1335, %v1335
        %v1344 = vpack.c.b16 %v1336, %v1336
        %v1345 = vpack.c.b16 %v1337, %v1337
        %v1346 = vpack.c.b16 %v1338, %v1338
        %v1347 = vpack.c.b16 %v1339, %v1339
        %v1348 = vpack.c.b16 %v1340, %v1340
        %v1349 = vpack.c.b16 %v1341, %v1341
        %v1350 = vpack.c.b16 %v1342, %v1342
        %v1352 = vsel %vm397, %v1330, 0
        %v1355 = vsel %vm401, %v1343, 0
        %v1358 = vsel %vm401, %v1344, 0
        %v1361 = vsel %vm401, %v1345, 0
        %v1364 = vsel %vm401, %v1346, 0
        %v1367 = vsel %vm401, %v1347, 0
        %v1370 = vsel %vm401, %v1348, 0
        %v1373 = vsel %vm401, %v1349, 0
        %v1376 = vsel %vm401, %v1350, 0
        %1378 = vmatprep.subr.bf16.mxu0 0
        %1379 = vmatpush1.bf16.msra.mxu0 0
        %1380 = vmatprep.subr.bf16.mxu0 0
        %1381 = vmatpush1.bf16.msra.mxu0 0
        %1382 = vmatprep.subr.bf16.mxu0 0
        %1383 = vmatpush1.bf16.msra.mxu0 0
        %1384 = vmatprep.subr.bf16.mxu0 0
        %1385 = vmatpush1.bf16.msra.mxu0 0
        %1386 = vmatprep.subr.bf16.mxu0 0
        %1387 = vmatpush1.bf16.msra.mxu0 0
        %1388 = vmatprep.subr.bf16.mxu0 0
        %1389 = vmatpush1.bf16.msra.mxu0 0
        %1390 = vmatprep.subr.bf16.mxu0 0
        %1391 = vmatpush1.bf16.msra.mxu0 0
        %1392 = vmatprep.subr.bf16.mxu0 %v1358
        %1393 = vmatpush1.bf16.msra.mxu0 %v1355
        %1394 = vmatprep.subr.bf16.mxu0 0
        %1395 = vmatpush2.bf16.msra.mxu0 0
        %1396 = vmatprep.subr.bf16.mxu0 0
        %1397 = vmatpush2.bf16.msra.mxu0 0
        %1398 = vmatprep.subr.bf16.mxu0 0
        %1399 = vmatpush2.bf16.msra.mxu0 0
        %1400 = vmatprep.subr.bf16.mxu0 0
        %1401 = vmatpush2.bf16.msra.mxu0 0
        %1402 = vmatprep.subr.bf16.mxu0 0
        %1403 = vmatpush2.bf16.msra.mxu0 0
        %1404 = vmatprep.subr.bf16.mxu0 0
        %1405 = vmatpush2.bf16.msra.mxu0 0
        %1406 = vmatprep.subr.bf16.mxu0 0
        %1407 = vmatpush2.bf16.msra.mxu0 0
        %1408 = vmatprep.subr.bf16.mxu0 0
        %1409 = vmatpush2.bf16.msra.mxu0 0
        %1410 = vmatprep.mubr.bf16.mxu0 0
        %1411 = vmatmul.mubr.bf16.gmra.mxu0 %v1352
        %v1412 = vpop.f32.mrf.mxu0
        %v1413 = vadd.f32 0.0, %v1412
        %v1414 = vpop.f32.mrf.mxu0
        %v1415 = vadd.f32 0.0, %v1414
        %v1416 = vpop.f32.mrf.mxu0
        %v1417 = vpop.f32.mrf.mxu0
        %1418 = vdwg.mxu0
        %1419 = vmatprep.subr.bf16.mxu0 0
        %1420 = vmatpush1.bf16.msra.mxu0 0
        %1421 = vmatprep.subr.bf16.mxu0 0
        %1422 = vmatpush1.bf16.msra.mxu0 0
        %1423 = vmatprep.subr.bf16.mxu0 0
        %1424 = vmatpush1.bf16.msra.mxu0 0
        %1425 = vmatprep.subr.bf16.mxu0 0
        %1426 = vmatpush1.bf16.msra.mxu0 0
        %1427 = vmatprep.subr.bf16.mxu0 0
        %1428 = vmatpush1.bf16.msra.mxu0 0
        %1429 = vmatprep.subr.bf16.mxu0 0
        %1430 = vmatpush1.bf16.msra.mxu0 0
        %1431 = vmatprep.subr.bf16.mxu0 0
        %1432 = vmatpush1.bf16.msra.mxu0 0
        %1433 = vmatprep.subr.bf16.mxu0 %v1364
        %1434 = vmatpush1.bf16.msra.mxu0 %v1361
        %1435 = vmatprep.subr.bf16.mxu0 0
        %1436 = vmatpush2.bf16.msra.mxu0 0
        %1437 = vmatprep.subr.bf16.mxu0 0
        %1438 = vmatpush2.bf16.msra.mxu0 0
        %1439 = vmatprep.subr.bf16.mxu0 0
        %1440 = vmatpush2.bf16.msra.mxu0 0
        %1441 = vmatprep.subr.bf16.mxu0 0
        %1442 = vmatpush2.bf16.msra.mxu0 0
        %1443 = vmatprep.subr.bf16.mxu0 0
        %1444 = vmatpush2.bf16.msra.mxu0 0
        %1445 = vmatprep.subr.bf16.mxu0 0
        %1446 = vmatpush2.bf16.msra.mxu0 0
        %1447 = vmatprep.subr.bf16.mxu0 0
        %1448 = vmatpush2.bf16.msra.mxu0 0
        %1449 = vmatprep.subr.bf16.mxu0 0
        %1450 = vmatpush2.bf16.msra.mxu0 0
        %1451 = vmatprep.mubr.bf16.mxu0 0
        %1452 = vmatmul.mubr.bf16.gmra.mxu0 %v1352
        %v1453 = vpop.f32.mrf.mxu0
        %v1454 = vadd.f32 0.0, %v1453
        %v1455 = vpop.f32.mrf.mxu0
        %v1456 = vadd.f32 0.0, %v1455
        %v1457 = vpop.f32.mrf.mxu0
        %v1458 = vpop.f32.mrf.mxu0
        %1459 = vdwg.mxu0
        %1460 = vmatprep.subr.bf16.mxu0 0
        %1461 = vmatpush1.bf16.msra.mxu0 0
        %1462 = vmatprep.subr.bf16.mxu0 0
        %1463 = vmatpush1.bf16.msra.mxu0 0
        %1464 = vmatprep.subr.bf16.mxu0 0
        %1465 = vmatpush1.bf16.msra.mxu0 0
        %1466 = vmatprep.subr.bf16.mxu0 0
        %1467 = vmatpush1.bf16.msra.mxu0 0
        %1468 = vmatprep.subr.bf16.mxu0 0
        %1469 = vmatpush1.bf16.msra.mxu0 0
        %1470 = vmatprep.subr.bf16.mxu0 0
        %1471 = vmatpush1.bf16.msra.mxu0 0
        %1472 = vmatprep.subr.bf16.mxu0 0
        %1473 = vmatpush1.bf16.msra.mxu0 0
        %1474 = vmatprep.subr.bf16.mxu0 %v1370
        %1475 = vmatpush1.bf16.msra.mxu0 %v1367
        %1476 = vmatprep.subr.bf16.mxu0 0
        %1477 = vmatpush2.bf16.msra.mxu0 0
        %1478 = vmatprep.subr.bf16.mxu0 0
        %1479 = vmatpush2.bf16.msra.mxu0 0
        %1480 = vmatprep.subr.bf16.mxu0 0
        %1481 = vmatpush2.bf16.msra.mxu0 0
        %1482 = vmatprep.subr.bf16.mxu0 0
        %1483 = vmatpush2.bf16.msra.mxu0 0
        %1484 = vmatprep.subr.bf16.mxu0 0
        %1485 = vmatpush2.bf16.msra.mxu0 0
        %1486 = vmatprep.subr.bf16.mxu0 0
        %1487 = vmatpush2.bf16.msra.mxu0 0
        %1488 = vmatprep.subr.bf16.mxu0 0
        %1489 = vmatpush2.bf16.msra.mxu0 0
        %1490 = vmatprep.subr.bf16.mxu0 0
        %1491 = vmatpush2.bf16.msra.mxu0 0
        %1492 = vmatprep.mubr.bf16.mxu0 0
        %1493 = vmatmul.mubr.bf16.gmra.mxu0 %v1352
        %v1494 = vpop.f32.mrf.mxu0
        %v1495 = vadd.f32 0.0, %v1494
        %v1496 = vpop.f32.mrf.mxu0
        %v1497 = vadd.f32 0.0, %v1496
        %v1498 = vpop.f32.mrf.mxu0
        %v1499 = vpop.f32.mrf.mxu0
        %1500 = vdwg.mxu0
        %1501 = vmatprep.subr.bf16.mxu0 0
        %1502 = vmatpush1.bf16.msra.mxu0 0
        %1503 = vmatprep.subr.bf16.mxu0 0
        %1504 = vmatpush1.bf16.msra.mxu0 0
        %1505 = vmatprep.subr.bf16.mxu0 0
        %1506 = vmatpush1.bf16.msra.mxu0 0
        %1507 = vmatprep.subr.bf16.mxu0 0
        %1508 = vmatpush1.bf16.msra.mxu0 0
        %1509 = vmatprep.subr.bf16.mxu0 0
        %1510 = vmatpush1.bf16.msra.mxu0 0
        %1511 = vmatprep.subr.bf16.mxu0 0
        %1512 = vmatpush1.bf16.msra.mxu0 0
        %1513 = vmatprep.subr.bf16.mxu0 0
        %1514 = vmatpush1.bf16.msra.mxu0 0
        %1515 = vmatprep.subr.bf16.mxu0 %v1376
        %1516 = vmatpush1.bf16.msra.mxu0 %v1373
        %1517 = vmatprep.subr.bf16.mxu0 0
        %1518 = vmatpush2.bf16.msra.mxu0 0
        %1519 = vmatprep.subr.bf16.mxu0 0
        %1520 = vmatpush2.bf16.msra.mxu0 0
        %1521 = vmatprep.subr.bf16.mxu0 0
        %1522 = vmatpush2.bf16.msra.mxu0 0
        %1523 = vmatprep.subr.bf16.mxu0 0
        %1524 = vmatpush2.bf16.msra.mxu0 0
        %1525 = vmatprep.subr.bf16.mxu0 0
        %1526 = vmatpush2.bf16.msra.mxu0 0
        %1527 = vmatprep.subr.bf16.mxu0 0
        %1528 = vmatpush2.bf16.msra.mxu0 0
        %1529 = vmatprep.subr.bf16.mxu0 0
        %1530 = vmatpush2.bf16.msra.mxu0 0
        %1531 = vmatprep.subr.bf16.mxu0 0
        %1532 = vmatpush2.bf16.msra.mxu0 0
        %1533 = vmatprep.mubr.bf16.mxu0 0
        %1534 = vmatmul.mubr.bf16.gmra.mxu0 %v1352
        %v1535 = vpop.f32.mrf.mxu0
        %v1536 = vadd.f32 0.0, %v1535
        %v1537 = vpop.f32.mrf.mxu0
        %v1538 = vadd.f32 0.0, %v1537
        %v1539 = vpop.f32.mrf.mxu0
        %v1540 = vpop.f32.mrf.mxu0
        %1541 = vdwg.mxu0
        %v1542 = vmax.f32 %v1413, %v1495
        %v1543 = vmax.f32 %v1415, %v1497
        %v1544 = vmax.f32 %v1454, %v1536
        %v1545 = vmax.f32 %v1456, %v1538
        %v1546 = vmax.f32 %v1542, %v1543
        %v1547 = vmax.f32 %v1544, %v1545
        %v1548 = vmax.f32 %v1546, %v1547
        %1549 = vmax.xlane.f32.xlu0 %v1548
        %v1550 = vpop.xlane.xlu0 %1549
        %vm1551 = vcmp.ge.f32.partialorder %v1413, %v1550
        %vm1552 = vcmp.ge.f32.partialorder %v1415, %v1550
        %vm1553 = vcmp.ge.f32.partialorder %v1454, %v1550
        %vm1554 = vcmp.ge.f32.partialorder %v1456, %v1550
        %vm1555 = vcmp.ge.f32.partialorder %v1495, %v1550
        %vm1556 = vcmp.ge.f32.partialorder %v1497, %v1550
        %vm1557 = vcmp.ge.f32.partialorder %v1536, %v1550
        %vm1558 = vcmp.ge.f32.partialorder %v1538, %v1550
        %v1559 = vsel %vm1551, %v364, 1024
        %v1560 = vsel %vm1552, %v365, 1024
        %v1561 = vsel %vm1553, %v366, 1024
        %v1562 = vsel %vm1554, %v367, 1024
        %v1563 = vsel %vm1555, %v368, 1024
        %v1564 = vsel %vm1556, %v369, 1024
        %v1565 = vsel %vm1557, %v370, 1024
        %v1566 = vsel %vm1558, %v371, 1024
        %vm1567 = vcmp.lt.s32.totalorder %v1559, %v1563
        %v1568 = vsel %vm1567, %v1559, %v1563
        %vm1569 = vcmp.lt.s32.totalorder %v1560, %v1564
        %v1570 = vsel %vm1569, %v1560, %v1564
        %vm1571 = vcmp.lt.s32.totalorder %v1561, %v1565
        %v1572 = vsel %vm1571, %v1561, %v1565
        %vm1573 = vcmp.lt.s32.totalorder %v1562, %v1566
        %v1574 = vsel %vm1573, %v1562, %v1566
        %vm1575 = vcmp.lt.s32.totalorder %v1568, %v1570
        %v1576 = vsel %vm1575, %v1568, %v1570
        %vm1577 = vcmp.lt.s32.totalorder %v1572, %v1574
        %v1578 = vsel %vm1577, %v1572, %v1574
        %vm1579 = vcmp.lt.s32.totalorder %v1576, %v1578
        %v1580 = vsel %vm1579, %v1576, %v1578
        %v1581 = vand.u32 %v1580, 65535
        %v1582 = vshra.s32 %v1580, 16
        %v1583 = vcvt.s32.f32 %v1581
        %v1584 = vcvt.s32.f32 %v1582
        %1585 = vmin.xlane.f32.xlu0 %v1584
        %v1586 = vpop.xlane.xlu0 %1585
        %vm1587 = vcmp.eq.f32.partialorder %v1584, %v1586
        %v1588 = vsel %vm1587, %v1583, inf
        %1589 = vmin.xlane.f32.xlu0 %v1588
        %v1590 = vpop.xlane.xlu0 %1589
        %v1591 = vcvt.f32.s32 %v1590
        %v1592 = vcvt.f32.s32 %v1586
        %v1593 = vshll.u32 %v1592, 16
        %v1594 = vadd.s32 %v1593, %v1591
        %vm1595 = vcmp.eq.s32.totalorder %v364, %v1594
        %vm1596 = vcmp.eq.s32.totalorder %v365, %v1594
        %vm1597 = vcmp.eq.s32.totalorder %v366, %v1594
        %vm1598 = vcmp.eq.s32.totalorder %v367, %v1594
        %vm1599 = vcmp.eq.s32.totalorder %v368, %v1594
        %vm1600 = vcmp.eq.s32.totalorder %v369, %v1594
        %vm1601 = vcmp.eq.s32.totalorder %v370, %v1594
        %vm1602 = vcmp.eq.s32.totalorder %v371, %v1594
        %v1603 = vsel %vm1595, 1, 0
        %v1604 = vsel %vm1596, 1, 0
        %v1605 = vsel %vm1597, 1, 0
        %v1606 = vsel %vm1598, 1, 0
        %v1607 = vsel %vm1599, 1, 0
        %v1608 = vsel %vm1600, 1, 0
        %v1609 = vsel %vm1601, 1, 0
        %v1610 = vsel %vm1602, 1, 0
        %v1611 = vcvt.s32.f32 %v1603
        %v1612 = vcvt.s32.f32 %v1604
        %v1613 = vcvt.s32.f32 %v1605
        %v1614 = vcvt.s32.f32 %v1606
        %v1615 = vcvt.s32.f32 %v1607
        %v1616 = vcvt.s32.f32 %v1608
        %v1617 = vcvt.s32.f32 %v1609
        %v1618 = vcvt.s32.f32 %v1610
        %v1619 = vpack.c.bf16 %v1611, %v1611
        %v1620 = vpack.c.bf16 %v1612, %v1612
        %v1621 = vpack.c.bf16 %v1613, %v1613
        %v1622 = vpack.c.bf16 %v1614, %v1614
        %v1623 = vpack.c.bf16 %v1615, %v1615
        %v1624 = vpack.c.bf16 %v1616, %v1616
        %v1625 = vpack.c.bf16 %v1617, %v1617
        %v1626 = vpack.c.bf16 %v1618, %v1618
        %1635 = vmatprep.subr.bf16.mxu0 0
        %1636 = vmatpush1.bf16.xpose.msra.mxu0 0
        %1637 = vmatprep.subr.bf16.mxu0 0
        %1638 = vmatpush1.bf16.xpose.msra.mxu0 0
        %1639 = vmatprep.subr.bf16.mxu0 0
        %1640 = vmatpush1.bf16.xpose.msra.mxu0 0
        %1641 = vmatprep.subr.bf16.mxu0 0
        %1642 = vmatpush1.bf16.xpose.msra.mxu0 0
        %1643 = vmatprep.subr.bf16.mxu0 0
        %1644 = vmatpush1.bf16.xpose.msra.mxu0 0
        %1645 = vmatprep.subr.bf16.mxu0 0
        %1646 = vmatpush1.bf16.xpose.msra.mxu0 0
        %1647 = vmatprep.subr.bf16.mxu0 0
        %1648 = vmatpush1.bf16.xpose.msra.mxu0 0
        %1649 = vmatprep.subr.bf16.mxu0 %v1344
        %1650 = vmatpush1.bf16.xpose.msra.mxu0 %v1343
        %1651 = vmatprep.subr.bf16.mxu0 0
        %1652 = vmatpush2.bf16.xpose.msra.mxu0 0
        %1653 = vmatprep.subr.bf16.mxu0 0
        %1654 = vmatpush2.bf16.xpose.msra.mxu0 0
        %1655 = vmatprep.subr.bf16.mxu0 0
        %1656 = vmatpush2.bf16.xpose.msra.mxu0 0
        %1657 = vmatprep.subr.bf16.mxu0 0
        %1658 = vmatpush2.bf16.xpose.msra.mxu0 0
        %1659 = vmatprep.subr.bf16.mxu0 0
        %1660 = vmatpush2.bf16.xpose.msra.mxu0 0
        %1661 = vmatprep.subr.bf16.mxu0 0
        %1662 = vmatpush2.bf16.xpose.msra.mxu0 0
        %1663 = vmatprep.subr.bf16.mxu0 0
        %1664 = vmatpush2.bf16.xpose.msra.mxu0 0
        %1665 = vmatprep.subr.bf16.mxu0 0
        %1666 = vmatpush2.bf16.xpose.msra.mxu0 0
        %1667 = vmatprep.mubr.bf16.mxu0 %v1620
        %1668 = vmatmul.mubr.bf16.gmra.mxu0 %v1619
        %v1669 = vpop.f32.mrf.mxu0
        %v1670 = vadd.f32 0.0, %v1669
        %v1671 = vpop.f32.mrf.mxu0
        %v1672 = vpop.f32.mrf.mxu0
        %v1673 = vpop.f32.mrf.mxu0
        %1674 = vdwg.mxu0
        %1675 = vmatprep.subr.bf16.mxu0 0
        %1676 = vmatpush1.bf16.xpose.msra.mxu0 0
        %1677 = vmatprep.subr.bf16.mxu0 0
        %1678 = vmatpush1.bf16.xpose.msra.mxu0 0
        %1679 = vmatprep.subr.bf16.mxu0 0
        %1680 = vmatpush1.bf16.xpose.msra.mxu0 0
        %1681 = vmatprep.subr.bf16.mxu0 0
        %1682 = vmatpush1.bf16.xpose.msra.mxu0 0
        %1683 = vmatprep.subr.bf16.mxu0 0
        %1684 = vmatpush1.bf16.xpose.msra.mxu0 0
        %1685 = vmatprep.subr.bf16.mxu0 0
        %1686 = vmatpush1.bf16.xpose.msra.mxu0 0
        %1687 = vmatprep.subr.bf16.mxu0 0
        %1688 = vmatpush1.bf16.xpose.msra.mxu0 0
        %1689 = vmatprep.subr.bf16.mxu0 %v1346
        %1690 = vmatpush1.bf16.xpose.msra.mxu0 %v1345
        %1691 = vmatprep.subr.bf16.mxu0 0
        %1692 = vmatpush2.bf16.xpose.msra.mxu0 0
        %1693 = vmatprep.subr.bf16.mxu0 0
        %1694 = vmatpush2.bf16.xpose.msra.mxu0 0
        %1695 = vmatprep.subr.bf16.mxu0 0
        %1696 = vmatpush2.bf16.xpose.msra.mxu0 0
        %1697 = vmatprep.subr.bf16.mxu0 0
        %1698 = vmatpush2.bf16.xpose.msra.mxu0 0
        %1699 = vmatprep.subr.bf16.mxu0 0
        %1700 = vmatpush2.bf16.xpose.msra.mxu0 0
        %1701 = vmatprep.subr.bf16.mxu0 0
        %1702 = vmatpush2.bf16.xpose.msra.mxu0 0
        %1703 = vmatprep.subr.bf16.mxu0 0
        %1704 = vmatpush2.bf16.xpose.msra.mxu0 0
        %1705 = vmatprep.subr.bf16.mxu0 0
        %1706 = vmatpush2.bf16.xpose.msra.mxu0 0
        %1707 = vmatprep.mubr.bf16.mxu0 %v1622
        %1708 = vmatmul.mubr.bf16.gmra.mxu0 %v1621
        %v1709 = vpop.f32.mrf.mxu0
        %v1710 = vadd.f32 %v1670, %v1709
        %v1711 = vpop.f32.mrf.mxu0
        %v1712 = vpop.f32.mrf.mxu0
        %v1713 = vpop.f32.mrf.mxu0
        %1714 = vdwg.mxu0
        %1715 = vmatprep.subr.bf16.mxu0 0
        %1716 = vmatpush1.bf16.xpose.msra.mxu0 0
        %1717 = vmatprep.subr.bf16.mxu0 0
        %1718 = vmatpush1.bf16.xpose.msra.mxu0 0
        %1719 = vmatprep.subr.bf16.mxu0 0
        %1720 = vmatpush1.bf16.xpose.msra.mxu0 0
        %1721 = vmatprep.subr.bf16.mxu0 0
        %1722 = vmatpush1.bf16.xpose.msra.mxu0 0
        %1723 = vmatprep.subr.bf16.mxu0 0
        %1724 = vmatpush1.bf16.xpose.msra.mxu0 0
        %1725 = vmatprep.subr.bf16.mxu0 0
        %1726 = vmatpush1.bf16.xpose.msra.mxu0 0
        %1727 = vmatprep.subr.bf16.mxu0 0
        %1728 = vmatpush1.bf16.xpose.msra.mxu0 0
        %1729 = vmatprep.subr.bf16.mxu0 %v1348
        %1730 = vmatpush1.bf16.xpose.msra.mxu0 %v1347
        %1731 = vmatprep.subr.bf16.mxu0 0
        %1732 = vmatpush2.bf16.xpose.msra.mxu0 0
        %1733 = vmatprep.subr.bf16.mxu0 0
        %1734 = vmatpush2.bf16.xpose.msra.mxu0 0
        %1735 = vmatprep.subr.bf16.mxu0 0
        %1736 = vmatpush2.bf16.xpose.msra.mxu0 0
        %1737 = vmatprep.subr.bf16.mxu0 0
        %1738 = vmatpush2.bf16.xpose.msra.mxu0 0
        %1739 = vmatprep.subr.bf16.mxu0 0
        %1740 = vmatpush2.bf16.xpose.msra.mxu0 0
        %1741 = vmatprep.subr.bf16.mxu0 0
        %1742 = vmatpush2.bf16.xpose.msra.mxu0 0
        %1743 = vmatprep.subr.bf16.mxu0 0
        %1744 = vmatpush2.bf16.xpose.msra.mxu0 0
        %1745 = vmatprep.subr.bf16.mxu0 0
        %1746 = vmatpush2.bf16.xpose.msra.mxu0 0
        %1747 = vmatprep.mubr.bf16.mxu0 %v1624
        %1748 = vmatmul.mubr.bf16.gmra.mxu0 %v1623
        %v1749 = vpop.f32.mrf.mxu0
        %v1750 = vadd.f32 %v1710, %v1749
        %v1751 = vpop.f32.mrf.mxu0
        %v1752 = vpop.f32.mrf.mxu0
        %v1753 = vpop.f32.mrf.mxu0
        %1754 = vdwg.mxu0
        %1755 = vmatprep.subr.bf16.mxu0 0
        %1756 = vmatpush1.bf16.xpose.msra.mxu0 0
        %1757 = vmatprep.subr.bf16.mxu0 0
        %1758 = vmatpush1.bf16.xpose.msra.mxu0 0
        %1759 = vmatprep.subr.bf16.mxu0 0
        %1760 = vmatpush1.bf16.xpose.msra.mxu0 0
        %1761 = vmatprep.subr.bf16.mxu0 0
        %1762 = vmatpush1.bf16.xpose.msra.mxu0 0
        %1763 = vmatprep.subr.bf16.mxu0 0
        %1764 = vmatpush1.bf16.xpose.msra.mxu0 0
        %1765 = vmatprep.subr.bf16.mxu0 0
        %1766 = vmatpush1.bf16.xpose.msra.mxu0 0
        %1767 = vmatprep.subr.bf16.mxu0 0
        %1768 = vmatpush1.bf16.xpose.msra.mxu0 0
        %1769 = vmatprep.subr.bf16.mxu0 %v1350
        %1770 = vmatpush1.bf16.xpose.msra.mxu0 %v1349
        %1771 = vmatprep.subr.bf16.mxu0 0
        %1772 = vmatpush2.bf16.xpose.msra.mxu0 0
        %1773 = vmatprep.subr.bf16.mxu0 0
        %1774 = vmatpush2.bf16.xpose.msra.mxu0 0
        %1775 = vmatprep.subr.bf16.mxu0 0
        %1776 = vmatpush2.bf16.xpose.msra.mxu0 0
        %1777 = vmatprep.subr.bf16.mxu0 0
        %1778 = vmatpush2.bf16.xpose.msra.mxu0 0
        %1779 = vmatprep.subr.bf16.mxu0 0
        %1780 = vmatpush2.bf16.xpose.msra.mxu0 0
        %1781 = vmatprep.subr.bf16.mxu0 0
        %1782 = vmatpush2.bf16.xpose.msra.mxu0 0
        %1783 = vmatprep.subr.bf16.mxu0 0
        %1784 = vmatpush2.bf16.xpose.msra.mxu0 0
        %1785 = vmatprep.subr.bf16.mxu0 0
        %1786 = vmatpush2.bf16.xpose.msra.mxu0 0
        %1787 = vmatprep.mubr.bf16.mxu0 %v1626
        %1788 = vmatmul.mubr.bf16.gmra.mxu0 %v1625
        %v1789 = vpop.f32.mrf.mxu0
        %v1790 = vadd.f32 %v1750, %v1789
        %v1791 = vpop.f32.mrf.mxu0
        %v1792 = vpop.f32.mrf.mxu0
        %v1793 = vpop.f32.mrf.mxu0
        %1794 = vdwg.mxu0
        %v1795 = vsub.f32 %v1319, %v1790
        %vm1796 = vcmp.eq.s32.totalorder %v364, 2
        %v1797 = vsel %vm1796, %v1594, %v1321
        %v1798 = vadd.f32 %v1322, %v1790
        %v1799 = vmul.f32 %v1795, %v1795
        %v1800 = vadd.f32 %v1324, %v1799
        %s1801 = scalar_lea.vmem [#allocation2], 96
        %v1802 = vld [vmem:[%s1801] sm:$0xff]
        %v1803 = vld [vmem:[%s1801 + $0x8] sm:$0xff]
        %v1804 = vld [vmem:[%s1801 + $0x10] sm:$0xff]
        %v1805 = vld [vmem:[%s1801 + $0x18] sm:$0xff]
        %v1806 = vpack.c.bf16 %v1795, %v1795
        %v1811 = vunpack.c.l.b16 %v1802
        %v1812 = vunpack.c.h.b16 %v1802
        %v1813 = vunpack.c.l.b16 %v1803
        %v1814 = vunpack.c.h.b16 %v1803
        %v1815 = vunpack.c.l.b16 %v1804
        %v1816 = vunpack.c.h.b16 %v1804
        %v1817 = vunpack.c.l.b16 %v1805
        %v1818 = vunpack.c.h.b16 %v1805
        %v1819 = vpack.c.b16 %v1811, %v1811
        %v1820 = vpack.c.b16 %v1812, %v1812
        %v1821 = vpack.c.b16 %v1813, %v1813
        %v1822 = vpack.c.b16 %v1814, %v1814
        %v1823 = vpack.c.b16 %v1815, %v1815
        %v1824 = vpack.c.b16 %v1816, %v1816
        %v1825 = vpack.c.b16 %v1817, %v1817
        %v1826 = vpack.c.b16 %v1818, %v1818
        %v1828 = vsel %vm397, %v1806, 0
        %v1831 = vsel %vm401, %v1819, 0
        %v1834 = vsel %vm401, %v1820, 0
        %v1837 = vsel %vm401, %v1821, 0
        %v1840 = vsel %vm401, %v1822, 0
        %v1843 = vsel %vm401, %v1823, 0
        %v1846 = vsel %vm401, %v1824, 0
        %v1849 = vsel %vm401, %v1825, 0
        %v1852 = vsel %vm401, %v1826, 0
        %1854 = vmatprep.subr.bf16.mxu0 0
        %1855 = vmatpush1.bf16.msra.mxu0 0
        %1856 = vmatprep.subr.bf16.mxu0 0
        %1857 = vmatpush1.bf16.msra.mxu0 0
        %1858 = vmatprep.subr.bf16.mxu0 0
        %1859 = vmatpush1.bf16.msra.mxu0 0
        %1860 = vmatprep.subr.bf16.mxu0 0
        %1861 = vmatpush1.bf16.msra.mxu0 0
        %1862 = vmatprep.subr.bf16.mxu0 0
        %1863 = vmatpush1.bf16.msra.mxu0 0
        %1864 = vmatprep.subr.bf16.mxu0 0
        %1865 = vmatpush1.bf16.msra.mxu0 0
        %1866 = vmatprep.subr.bf16.mxu0 0
        %1867 = vmatpush1.bf16.msra.mxu0 0
        %1868 = vmatprep.subr.bf16.mxu0 %v1834
        %1869 = vmatpush1.bf16.msra.mxu0 %v1831
        %1870 = vmatprep.subr.bf16.mxu0 0
        %1871 = vmatpush2.bf16.msra.mxu0 0
        %1872 = vmatprep.subr.bf16.mxu0 0
        %1873 = vmatpush2.bf16.msra.mxu0 0
        %1874 = vmatprep.subr.bf16.mxu0 0
        %1875 = vmatpush2.bf16.msra.mxu0 0
        %1876 = vmatprep.subr.bf16.mxu0 0
        %1877 = vmatpush2.bf16.msra.mxu0 0
        %1878 = vmatprep.subr.bf16.mxu0 0
        %1879 = vmatpush2.bf16.msra.mxu0 0
        %1880 = vmatprep.subr.bf16.mxu0 0
        %1881 = vmatpush2.bf16.msra.mxu0 0
        %1882 = vmatprep.subr.bf16.mxu0 0
        %1883 = vmatpush2.bf16.msra.mxu0 0
        %1884 = vmatprep.subr.bf16.mxu0 0
        %1885 = vmatpush2.bf16.msra.mxu0 0
        %1886 = vmatprep.mubr.bf16.mxu0 0
        %1887 = vmatmul.mubr.bf16.gmra.mxu0 %v1828
        %v1888 = vpop.f32.mrf.mxu0
        %v1889 = vadd.f32 0.0, %v1888
        %v1890 = vpop.f32.mrf.mxu0
        %v1891 = vadd.f32 0.0, %v1890
        %v1892 = vpop.f32.mrf.mxu0
        %v1893 = vpop.f32.mrf.mxu0
        %1894 = vdwg.mxu0
        %1895 = vmatprep.subr.bf16.mxu0 0
        %1896 = vmatpush1.bf16.msra.mxu0 0
        %1897 = vmatprep.subr.bf16.mxu0 0
        %1898 = vmatpush1.bf16.msra.mxu0 0
        %1899 = vmatprep.subr.bf16.mxu0 0
        %1900 = vmatpush1.bf16.msra.mxu0 0
        %1901 = vmatprep.subr.bf16.mxu0 0
        %1902 = vmatpush1.bf16.msra.mxu0 0
        %1903 = vmatprep.subr.bf16.mxu0 0
        %1904 = vmatpush1.bf16.msra.mxu0 0
        %1905 = vmatprep.subr.bf16.mxu0 0
        %1906 = vmatpush1.bf16.msra.mxu0 0
        %1907 = vmatprep.subr.bf16.mxu0 0
        %1908 = vmatpush1.bf16.msra.mxu0 0
        %1909 = vmatprep.subr.bf16.mxu0 %v1840
        %1910 = vmatpush1.bf16.msra.mxu0 %v1837
        %1911 = vmatprep.subr.bf16.mxu0 0
        %1912 = vmatpush2.bf16.msra.mxu0 0
        %1913 = vmatprep.subr.bf16.mxu0 0
        %1914 = vmatpush2.bf16.msra.mxu0 0
        %1915 = vmatprep.subr.bf16.mxu0 0
        %1916 = vmatpush2.bf16.msra.mxu0 0
        %1917 = vmatprep.subr.bf16.mxu0 0
        %1918 = vmatpush2.bf16.msra.mxu0 0
        %1919 = vmatprep.subr.bf16.mxu0 0
        %1920 = vmatpush2.bf16.msra.mxu0 0
        %1921 = vmatprep.subr.bf16.mxu0 0
        %1922 = vmatpush2.bf16.msra.mxu0 0
        %1923 = vmatprep.subr.bf16.mxu0 0
        %1924 = vmatpush2.bf16.msra.mxu0 0
        %1925 = vmatprep.subr.bf16.mxu0 0
        %1926 = vmatpush2.bf16.msra.mxu0 0
        %1927 = vmatprep.mubr.bf16.mxu0 0
        %1928 = vmatmul.mubr.bf16.gmra.mxu0 %v1828
        %v1929 = vpop.f32.mrf.mxu0
        %v1930 = vadd.f32 0.0, %v1929
        %v1931 = vpop.f32.mrf.mxu0
        %v1932 = vadd.f32 0.0, %v1931
        %v1933 = vpop.f32.mrf.mxu0
        %v1934 = vpop.f32.mrf.mxu0
        %1935 = vdwg.mxu0
        %1936 = vmatprep.subr.bf16.mxu0 0
        %1937 = vmatpush1.bf16.msra.mxu0 0
        %1938 = vmatprep.subr.bf16.mxu0 0
        %1939 = vmatpush1.bf16.msra.mxu0 0
        %1940 = vmatprep.subr.bf16.mxu0 0
        %1941 = vmatpush1.bf16.msra.mxu0 0
        %1942 = vmatprep.subr.bf16.mxu0 0
        %1943 = vmatpush1.bf16.msra.mxu0 0
        %1944 = vmatprep.subr.bf16.mxu0 0
        %1945 = vmatpush1.bf16.msra.mxu0 0
        %1946 = vmatprep.subr.bf16.mxu0 0
        %1947 = vmatpush1.bf16.msra.mxu0 0
        %1948 = vmatprep.subr.bf16.mxu0 0
        %1949 = vmatpush1.bf16.msra.mxu0 0
        %1950 = vmatprep.subr.bf16.mxu0 %v1846
        %1951 = vmatpush1.bf16.msra.mxu0 %v1843
        %1952 = vmatprep.subr.bf16.mxu0 0
        %1953 = vmatpush2.bf16.msra.mxu0 0
        %1954 = vmatprep.subr.bf16.mxu0 0
        %1955 = vmatpush2.bf16.msra.mxu0 0
        %1956 = vmatprep.subr.bf16.mxu0 0
        %1957 = vmatpush2.bf16.msra.mxu0 0
        %1958 = vmatprep.subr.bf16.mxu0 0
        %1959 = vmatpush2.bf16.msra.mxu0 0
        %1960 = vmatprep.subr.bf16.mxu0 0
        %1961 = vmatpush2.bf16.msra.mxu0 0
        %1962 = vmatprep.subr.bf16.mxu0 0
        %1963 = vmatpush2.bf16.msra.mxu0 0
        %1964 = vmatprep.subr.bf16.mxu0 0
        %1965 = vmatpush2.bf16.msra.mxu0 0
        %1966 = vmatprep.subr.bf16.mxu0 0
        %1967 = vmatpush2.bf16.msra.mxu0 0
        %1968 = vmatprep.mubr.bf16.mxu0 0
        %1969 = vmatmul.mubr.bf16.gmra.mxu0 %v1828
        %v1970 = vpop.f32.mrf.mxu0
        %v1971 = vadd.f32 0.0, %v1970
        %v1972 = vpop.f32.mrf.mxu0
        %v1973 = vadd.f32 0.0, %v1972
        %v1974 = vpop.f32.mrf.mxu0
        %v1975 = vpop.f32.mrf.mxu0
        %1976 = vdwg.mxu0
        %1977 = vmatprep.subr.bf16.mxu0 0
        %1978 = vmatpush1.bf16.msra.mxu0 0
        %1979 = vmatprep.subr.bf16.mxu0 0
        %1980 = vmatpush1.bf16.msra.mxu0 0
        %1981 = vmatprep.subr.bf16.mxu0 0
        %1982 = vmatpush1.bf16.msra.mxu0 0
        %1983 = vmatprep.subr.bf16.mxu0 0
        %1984 = vmatpush1.bf16.msra.mxu0 0
        %1985 = vmatprep.subr.bf16.mxu0 0
        %1986 = vmatpush1.bf16.msra.mxu0 0
        %1987 = vmatprep.subr.bf16.mxu0 0
        %1988 = vmatpush1.bf16.msra.mxu0 0
        %1989 = vmatprep.subr.bf16.mxu0 0
        %1990 = vmatpush1.bf16.msra.mxu0 0
        %1991 = vmatprep.subr.bf16.mxu0 %v1852
        %1992 = vmatpush1.bf16.msra.mxu0 %v1849
        %1993 = vmatprep.subr.bf16.mxu0 0
        %1994 = vmatpush2.bf16.msra.mxu0 0
        %1995 = vmatprep.subr.bf16.mxu0 0
        %1996 = vmatpush2.bf16.msra.mxu0 0
        %1997 = vmatprep.subr.bf16.mxu0 0
        %1998 = vmatpush2.bf16.msra.mxu0 0
        %1999 = vmatprep.subr.bf16.mxu0 0
        %2000 = vmatpush2.bf16.msra.mxu0 0
        %2001 = vmatprep.subr.bf16.mxu0 0
        %2002 = vmatpush2.bf16.msra.mxu0 0
        %2003 = vmatprep.subr.bf16.mxu0 0
        %2004 = vmatpush2.bf16.msra.mxu0 0
        %2005 = vmatprep.subr.bf16.mxu0 0
        %2006 = vmatpush2.bf16.msra.mxu0 0
        %2007 = vmatprep.subr.bf16.mxu0 0
        %2008 = vmatpush2.bf16.msra.mxu0 0
        %2009 = vmatprep.mubr.bf16.mxu0 0
        %2010 = vmatmul.mubr.bf16.gmra.mxu0 %v1828
        %v2011 = vpop.f32.mrf.mxu0
        %v2012 = vadd.f32 0.0, %v2011
        %v2013 = vpop.f32.mrf.mxu0
        %v2014 = vadd.f32 0.0, %v2013
        %v2015 = vpop.f32.mrf.mxu0
        %v2016 = vpop.f32.mrf.mxu0
        %2017 = vdwg.mxu0
        %v2018 = vmax.f32 %v1889, %v1971
        %v2019 = vmax.f32 %v1891, %v1973
        %v2020 = vmax.f32 %v1930, %v2012
        %v2021 = vmax.f32 %v1932, %v2014
        %v2022 = vmax.f32 %v2018, %v2019
        %v2023 = vmax.f32 %v2020, %v2021
        %v2024 = vmax.f32 %v2022, %v2023
        %2025 = vmax.xlane.f32.xlu0 %v2024
        %v2026 = vpop.xlane.xlu0 %2025
        %vm2027 = vcmp.ge.f32.partialorder %v1889, %v2026
        %vm2028 = vcmp.ge.f32.partialorder %v1891, %v2026
        %vm2029 = vcmp.ge.f32.partialorder %v1930, %v2026
        %vm2030 = vcmp.ge.f32.partialorder %v1932, %v2026
        %vm2031 = vcmp.ge.f32.partialorder %v1971, %v2026
        %vm2032 = vcmp.ge.f32.partialorder %v1973, %v2026
        %vm2033 = vcmp.ge.f32.partialorder %v2012, %v2026
        %vm2034 = vcmp.ge.f32.partialorder %v2014, %v2026
        %v2035 = vsel %vm2027, %v364, 1024
        %v2036 = vsel %vm2028, %v365, 1024
        %v2037 = vsel %vm2029, %v366, 1024
        %v2038 = vsel %vm2030, %v367, 1024
        %v2039 = vsel %vm2031, %v368, 1024
        %v2040 = vsel %vm2032, %v369, 1024
        %v2041 = vsel %vm2033, %v370, 1024
        %v2042 = vsel %vm2034, %v371, 1024
        %vm2043 = vcmp.lt.s32.totalorder %v2035, %v2039
        %v2044 = vsel %vm2043, %v2035, %v2039
        %vm2045 = vcmp.lt.s32.totalorder %v2036, %v2040
        %v2046 = vsel %vm2045, %v2036, %v2040
        %vm2047 = vcmp.lt.s32.totalorder %v2037, %v2041
        %v2048 = vsel %vm2047, %v2037, %v2041
        %vm2049 = vcmp.lt.s32.totalorder %v2038, %v2042
        %v2050 = vsel %vm2049, %v2038, %v2042
        %vm2051 = vcmp.lt.s32.totalorder %v2044, %v2046
        %v2052 = vsel %vm2051, %v2044, %v2046
        %vm2053 = vcmp.lt.s32.totalorder %v2048, %v2050
        %v2054 = vsel %vm2053, %v2048, %v2050
        %vm2055 = vcmp.lt.s32.totalorder %v2052, %v2054
        %v2056 = vsel %vm2055, %v2052, %v2054
        %v2057 = vand.u32 %v2056, 65535
        %v2058 = vshra.s32 %v2056, 16
        %v2059 = vcvt.s32.f32 %v2057
        %v2060 = vcvt.s32.f32 %v2058
        %2061 = vmin.xlane.f32.xlu0 %v2060
        %v2062 = vpop.xlane.xlu0 %2061
        %vm2063 = vcmp.eq.f32.partialorder %v2060, %v2062
        %v2064 = vsel %vm2063, %v2059, inf
        %2065 = vmin.xlane.f32.xlu0 %v2064
        %v2066 = vpop.xlane.xlu0 %2065
        %v2067 = vcvt.f32.s32 %v2066
        %v2068 = vcvt.f32.s32 %v2062
        %v2069 = vshll.u32 %v2068, 16
        %v2070 = vadd.s32 %v2069, %v2067
        %vm2071 = vcmp.eq.s32.totalorder %v364, %v2070
        %vm2072 = vcmp.eq.s32.totalorder %v365, %v2070
        %vm2073 = vcmp.eq.s32.totalorder %v366, %v2070
        %vm2074 = vcmp.eq.s32.totalorder %v367, %v2070
        %vm2075 = vcmp.eq.s32.totalorder %v368, %v2070
        %vm2076 = vcmp.eq.s32.totalorder %v369, %v2070
        %vm2077 = vcmp.eq.s32.totalorder %v370, %v2070
        %vm2078 = vcmp.eq.s32.totalorder %v371, %v2070
        %v2079 = vsel %vm2071, 1, 0
        %v2080 = vsel %vm2072, 1, 0
        %v2081 = vsel %vm2073, 1, 0
        %v2082 = vsel %vm2074, 1, 0
        %v2083 = vsel %vm2075, 1, 0
        %v2084 = vsel %vm2076, 1, 0
        %v2085 = vsel %vm2077, 1, 0
        %v2086 = vsel %vm2078, 1, 0
        %v2087 = vcvt.s32.f32 %v2079
        %v2088 = vcvt.s32.f32 %v2080
        %v2089 = vcvt.s32.f32 %v2081
        %v2090 = vcvt.s32.f32 %v2082
        %v2091 = vcvt.s32.f32 %v2083
        %v2092 = vcvt.s32.f32 %v2084
        %v2093 = vcvt.s32.f32 %v2085
        %v2094 = vcvt.s32.f32 %v2086
        %v2095 = vpack.c.bf16 %v2087, %v2087
        %v2096 = vpack.c.bf16 %v2088, %v2088
        %v2097 = vpack.c.bf16 %v2089, %v2089
        %v2098 = vpack.c.bf16 %v2090, %v2090
        %v2099 = vpack.c.bf16 %v2091, %v2091
        %v2100 = vpack.c.bf16 %v2092, %v2092
        %v2101 = vpack.c.bf16 %v2093, %v2093
        %v2102 = vpack.c.bf16 %v2094, %v2094
        %2111 = vmatprep.subr.bf16.mxu0 0
        %2112 = vmatpush1.bf16.xpose.msra.mxu0 0
        %2113 = vmatprep.subr.bf16.mxu0 0
        %2114 = vmatpush1.bf16.xpose.msra.mxu0 0
        %2115 = vmatprep.subr.bf16.mxu0 0
        %2116 = vmatpush1.bf16.xpose.msra.mxu0 0
        %2117 = vmatprep.subr.bf16.mxu0 0
        %2118 = vmatpush1.bf16.xpose.msra.mxu0 0
        %2119 = vmatprep.subr.bf16.mxu0 0
        %2120 = vmatpush1.bf16.xpose.msra.mxu0 0
        %2121 = vmatprep.subr.bf16.mxu0 0
        %2122 = vmatpush1.bf16.xpose.msra.mxu0 0
        %2123 = vmatprep.subr.bf16.mxu0 0
        %2124 = vmatpush1.bf16.xpose.msra.mxu0 0
        %2125 = vmatprep.subr.bf16.mxu0 %v1820
        %2126 = vmatpush1.bf16.xpose.msra.mxu0 %v1819
        %2127 = vmatprep.subr.bf16.mxu0 0
        %2128 = vmatpush2.bf16.xpose.msra.mxu0 0
        %2129 = vmatprep.subr.bf16.mxu0 0
        %2130 = vmatpush2.bf16.xpose.msra.mxu0 0
        %2131 = vmatprep.subr.bf16.mxu0 0
        %2132 = vmatpush2.bf16.xpose.msra.mxu0 0
        %2133 = vmatprep.subr.bf16.mxu0 0
        %2134 = vmatpush2.bf16.xpose.msra.mxu0 0
        %2135 = vmatprep.subr.bf16.mxu0 0
        %2136 = vmatpush2.bf16.xpose.msra.mxu0 0
        %2137 = vmatprep.subr.bf16.mxu0 0
        %2138 = vmatpush2.bf16.xpose.msra.mxu0 0
        %2139 = vmatprep.subr.bf16.mxu0 0
        %2140 = vmatpush2.bf16.xpose.msra.mxu0 0
        %2141 = vmatprep.subr.bf16.mxu0 0
        %2142 = vmatpush2.bf16.xpose.msra.mxu0 0
        %2143 = vmatprep.mubr.bf16.mxu0 %v2096
        %2144 = vmatmul.mubr.bf16.gmra.mxu0 %v2095
        %v2145 = vpop.f32.mrf.mxu0
        %v2146 = vadd.f32 0.0, %v2145
        %v2147 = vpop.f32.mrf.mxu0
        %v2148 = vpop.f32.mrf.mxu0
        %v2149 = vpop.f32.mrf.mxu0
        %2150 = vdwg.mxu0
        %2151 = vmatprep.subr.bf16.mxu0 0
        %2152 = vmatpush1.bf16.xpose.msra.mxu0 0
        %2153 = vmatprep.subr.bf16.mxu0 0
        %2154 = vmatpush1.bf16.xpose.msra.mxu0 0
        %2155 = vmatprep.subr.bf16.mxu0 0
        %2156 = vmatpush1.bf16.xpose.msra.mxu0 0
        %2157 = vmatprep.subr.bf16.mxu0 0
        %2158 = vmatpush1.bf16.xpose.msra.mxu0 0
        %2159 = vmatprep.subr.bf16.mxu0 0
        %2160 = vmatpush1.bf16.xpose.msra.mxu0 0
        %2161 = vmatprep.subr.bf16.mxu0 0
        %2162 = vmatpush1.bf16.xpose.msra.mxu0 0
        %2163 = vmatprep.subr.bf16.mxu0 0
        %2164 = vmatpush1.bf16.xpose.msra.mxu0 0
        %2165 = vmatprep.subr.bf16.mxu0 %v1822
        %2166 = vmatpush1.bf16.xpose.msra.mxu0 %v1821
        %2167 = vmatprep.subr.bf16.mxu0 0
        %2168 = vmatpush2.bf16.xpose.msra.mxu0 0
        %2169 = vmatprep.subr.bf16.mxu0 0
        %2170 = vmatpush2.bf16.xpose.msra.mxu0 0
        %2171 = vmatprep.subr.bf16.mxu0 0
        %2172 = vmatpush2.bf16.xpose.msra.mxu0 0
        %2173 = vmatprep.subr.bf16.mxu0 0
        %2174 = vmatpush2.bf16.xpose.msra.mxu0 0
        %2175 = vmatprep.subr.bf16.mxu0 0
        %2176 = vmatpush2.bf16.xpose.msra.mxu0 0
        %2177 = vmatprep.subr.bf16.mxu0 0
        %2178 = vmatpush2.bf16.xpose.msra.mxu0 0
        %2179 = vmatprep.subr.bf16.mxu0 0
        %2180 = vmatpush2.bf16.xpose.msra.mxu0 0
        %2181 = vmatprep.subr.bf16.mxu0 0
        %2182 = vmatpush2.bf16.xpose.msra.mxu0 0
        %2183 = vmatprep.mubr.bf16.mxu0 %v2098
        %2184 = vmatmul.mubr.bf16.gmra.mxu0 %v2097
        %v2185 = vpop.f32.mrf.mxu0
        %v2186 = vadd.f32 %v2146, %v2185
        %v2187 = vpop.f32.mrf.mxu0
        %v2188 = vpop.f32.mrf.mxu0
        %v2189 = vpop.f32.mrf.mxu0
        %2190 = vdwg.mxu0
        %2191 = vmatprep.subr.bf16.mxu0 0
        %2192 = vmatpush1.bf16.xpose.msra.mxu0 0
        %2193 = vmatprep.subr.bf16.mxu0 0
        %2194 = vmatpush1.bf16.xpose.msra.mxu0 0
        %2195 = vmatprep.subr.bf16.mxu0 0
        %2196 = vmatpush1.bf16.xpose.msra.mxu0 0
        %2197 = vmatprep.subr.bf16.mxu0 0
        %2198 = vmatpush1.bf16.xpose.msra.mxu0 0
        %2199 = vmatprep.subr.bf16.mxu0 0
        %2200 = vmatpush1.bf16.xpose.msra.mxu0 0
        %2201 = vmatprep.subr.bf16.mxu0 0
        %2202 = vmatpush1.bf16.xpose.msra.mxu0 0
        %2203 = vmatprep.subr.bf16.mxu0 0
        %2204 = vmatpush1.bf16.xpose.msra.mxu0 0
        %2205 = vmatprep.subr.bf16.mxu0 %v1824
        %2206 = vmatpush1.bf16.xpose.msra.mxu0 %v1823
        %2207 = vmatprep.subr.bf16.mxu0 0
        %2208 = vmatpush2.bf16.xpose.msra.mxu0 0
        %2209 = vmatprep.subr.bf16.mxu0 0
        %2210 = vmatpush2.bf16.xpose.msra.mxu0 0
        %2211 = vmatprep.subr.bf16.mxu0 0
        %2212 = vmatpush2.bf16.xpose.msra.mxu0 0
        %2213 = vmatprep.subr.bf16.mxu0 0
        %2214 = vmatpush2.bf16.xpose.msra.mxu0 0
        %2215 = vmatprep.subr.bf16.mxu0 0
        %2216 = vmatpush2.bf16.xpose.msra.mxu0 0
        %2217 = vmatprep.subr.bf16.mxu0 0
        %2218 = vmatpush2.bf16.xpose.msra.mxu0 0
        %2219 = vmatprep.subr.bf16.mxu0 0
        %2220 = vmatpush2.bf16.xpose.msra.mxu0 0
        %2221 = vmatprep.subr.bf16.mxu0 0
        %2222 = vmatpush2.bf16.xpose.msra.mxu0 0
        %2223 = vmatprep.mubr.bf16.mxu0 %v2100
        %2224 = vmatmul.mubr.bf16.gmra.mxu0 %v2099
        %v2225 = vpop.f32.mrf.mxu0
        %v2226 = vadd.f32 %v2186, %v2225
        %v2227 = vpop.f32.mrf.mxu0
        %v2228 = vpop.f32.mrf.mxu0
        %v2229 = vpop.f32.mrf.mxu0
        %2230 = vdwg.mxu0
        %2231 = vmatprep.subr.bf16.mxu0 0
        %2232 = vmatpush1.bf16.xpose.msra.mxu0 0
        %2233 = vmatprep.subr.bf16.mxu0 0
        %2234 = vmatpush1.bf16.xpose.msra.mxu0 0
        %2235 = vmatprep.subr.bf16.mxu0 0
        %2236 = vmatpush1.bf16.xpose.msra.mxu0 0
        %2237 = vmatprep.subr.bf16.mxu0 0
        %2238 = vmatpush1.bf16.xpose.msra.mxu0 0
        %2239 = vmatprep.subr.bf16.mxu0 0
        %2240 = vmatpush1.bf16.xpose.msra.mxu0 0
        %2241 = vmatprep.subr.bf16.mxu0 0
        %2242 = vmatpush1.bf16.xpose.msra.mxu0 0
        %2243 = vmatprep.subr.bf16.mxu0 0
        %2244 = vmatpush1.bf16.xpose.msra.mxu0 0
        %2245 = vmatprep.subr.bf16.mxu0 %v1826
        %2246 = vmatpush1.bf16.xpose.msra.mxu0 %v1825
        %2247 = vmatprep.subr.bf16.mxu0 0
        %2248 = vmatpush2.bf16.xpose.msra.mxu0 0
        %2249 = vmatprep.subr.bf16.mxu0 0
        %2250 = vmatpush2.bf16.xpose.msra.mxu0 0
        %2251 = vmatprep.subr.bf16.mxu0 0
        %2252 = vmatpush2.bf16.xpose.msra.mxu0 0
        %2253 = vmatprep.subr.bf16.mxu0 0
        %2254 = vmatpush2.bf16.xpose.msra.mxu0 0
        %2255 = vmatprep.subr.bf16.mxu0 0
        %2256 = vmatpush2.bf16.xpose.msra.mxu0 0
        %2257 = vmatprep.subr.bf16.mxu0 0
        %2258 = vmatpush2.bf16.xpose.msra.mxu0 0
        %2259 = vmatprep.subr.bf16.mxu0 0
        %2260 = vmatpush2.bf16.xpose.msra.mxu0 0
        %2261 = vmatprep.subr.bf16.mxu0 0
        %2262 = vmatpush2.bf16.xpose.msra.mxu0 0
        %2263 = vmatprep.mubr.bf16.mxu0 %v2102
        %2264 = vmatmul.mubr.bf16.gmra.mxu0 %v2101
        %v2265 = vpop.f32.mrf.mxu0
        %v2266 = vadd.f32 %v2226, %v2265
        %v2267 = vpop.f32.mrf.mxu0
        %v2268 = vpop.f32.mrf.mxu0
        %v2269 = vpop.f32.mrf.mxu0
        %2270 = vdwg.mxu0
        %v2271 = vsub.f32 %v1795, %v2266
        %vm2272 = vcmp.eq.s32.totalorder %v364, 3
        %v2273 = vsel %vm2272, %v2070, %v1797
        %v2274 = vadd.f32 %v1798, %v2266
        %v2275 = vmul.f32 %v2271, %v2271
        %v2276 = vadd.f32 %v1800, %v2275
        %s2277 = scalar_lea.vmem [#allocation2], 128
        %v2278 = vld [vmem:[%s2277] sm:$0xff]
        %v2279 = vld [vmem:[%s2277 + $0x8] sm:$0xff]
        %v2280 = vld [vmem:[%s2277 + $0x10] sm:$0xff]
        %v2281 = vld [vmem:[%s2277 + $0x18] sm:$0xff]
        %2283 = vrot.lane.b32.xlu0 %v376, 120
        %v2284 = vpop.permute.xlu0 %2283
        %v2289 = vunpack.c.l.b16 %v2278
        %v2290 = vunpack.c.h.b16 %v2278
        %v2291 = vunpack.c.l.b16 %v2279
        %v2292 = vunpack.c.h.b16 %v2279
        %v2293 = vunpack.c.l.b16 %v2280
        %v2294 = vunpack.c.h.b16 %v2280
        %v2295 = vunpack.c.l.b16 %v2281
        %v2296 = vunpack.c.h.b16 %v2281
        %v2297 = vpack.c.b16 %v2289, %v2289
        %v2298 = vpack.c.b16 %v2290, %v2290
        %v2299 = vpack.c.b16 %v2291, %v2291
        %v2300 = vpack.c.b16 %v2292, %v2292
        %v2301 = vpack.c.b16 %v2293, %v2293
        %v2302 = vpack.c.b16 %v2294, %v2294
        %v2303 = vpack.c.b16 %v2295, %v2295
        %v2304 = vpack.c.b16 %v2296, %v2296
        %v2306 = vsel %vm397, %v2284, 0
        %v2309 = vsel %vm401, %v2297, 0
        %v2312 = vsel %vm401, %v2298, 0
        %v2315 = vsel %vm401, %v2299, 0
        %v2318 = vsel %vm401, %v2300, 0
        %v2321 = vsel %vm401, %v2301, 0
        %v2324 = vsel %vm401, %v2302, 0
        %v2327 = vsel %vm401, %v2303, 0
        %v2330 = vsel %vm401, %v2304, 0
        %2332 = vmatprep.subr.bf16.mxu0 0
        %2333 = vmatpush1.bf16.msra.mxu0 0
        %2334 = vmatprep.subr.bf16.mxu0 0
        %2335 = vmatpush1.bf16.msra.mxu0 0
        %2336 = vmatprep.subr.bf16.mxu0 0
        %2337 = vmatpush1.bf16.msra.mxu0 0
        %2338 = vmatprep.subr.bf16.mxu0 0
        %2339 = vmatpush1.bf16.msra.mxu0 0
        %2340 = vmatprep.subr.bf16.mxu0 0
        %2341 = vmatpush1.bf16.msra.mxu0 0
        %2342 = vmatprep.subr.bf16.mxu0 0
        %2343 = vmatpush1.bf16.msra.mxu0 0
        %2344 = vmatprep.subr.bf16.mxu0 0
        %2345 = vmatpush1.bf16.msra.mxu0 0
        %2346 = vmatprep.subr.bf16.mxu0 %v2312
        %2347 = vmatpush1.bf16.msra.mxu0 %v2309
        %2348 = vmatprep.subr.bf16.mxu0 0
        %2349 = vmatpush2.bf16.msra.mxu0 0
        %2350 = vmatprep.subr.bf16.mxu0 0
        %2351 = vmatpush2.bf16.msra.mxu0 0
        %2352 = vmatprep.subr.bf16.mxu0 0
        %2353 = vmatpush2.bf16.msra.mxu0 0
        %2354 = vmatprep.subr.bf16.mxu0 0
        %2355 = vmatpush2.bf16.msra.mxu0 0
        %2356 = vmatprep.subr.bf16.mxu0 0
        %2357 = vmatpush2.bf16.msra.mxu0 0
        %2358 = vmatprep.subr.bf16.mxu0 0
        %2359 = vmatpush2.bf16.msra.mxu0 0
        %2360 = vmatprep.subr.bf16.mxu0 0
        %2361 = vmatpush2.bf16.msra.mxu0 0
        %2362 = vmatprep.subr.bf16.mxu0 0
        %2363 = vmatpush2.bf16.msra.mxu0 0
        %2364 = vmatprep.mubr.bf16.mxu0 0
        %2365 = vmatmul.mubr.bf16.gmra.mxu0 %v2306
        %v2366 = vpop.f32.mrf.mxu0
        %v2367 = vadd.f32 0.0, %v2366
        %v2368 = vpop.f32.mrf.mxu0
        %v2369 = vadd.f32 0.0, %v2368
        %v2370 = vpop.f32.mrf.mxu0
        %v2371 = vpop.f32.mrf.mxu0
        %2372 = vdwg.mxu0
        %2373 = vmatprep.subr.bf16.mxu0 0
        %2374 = vmatpush1.bf16.msra.mxu0 0
        %2375 = vmatprep.subr.bf16.mxu0 0
        %2376 = vmatpush1.bf16.msra.mxu0 0
        %2377 = vmatprep.subr.bf16.mxu0 0
        %2378 = vmatpush1.bf16.msra.mxu0 0
        %2379 = vmatprep.subr.bf16.mxu0 0
        %2380 = vmatpush1.bf16.msra.mxu0 0
        %2381 = vmatprep.subr.bf16.mxu0 0
        %2382 = vmatpush1.bf16.msra.mxu0 0
        %2383 = vmatprep.subr.bf16.mxu0 0
        %2384 = vmatpush1.bf16.msra.mxu0 0
        %2385 = vmatprep.subr.bf16.mxu0 0
        %2386 = vmatpush1.bf16.msra.mxu0 0
        %2387 = vmatprep.subr.bf16.mxu0 %v2318
        %2388 = vmatpush1.bf16.msra.mxu0 %v2315
        %2389 = vmatprep.subr.bf16.mxu0 0
        %2390 = vmatpush2.bf16.msra.mxu0 0
        %2391 = vmatprep.subr.bf16.mxu0 0
        %2392 = vmatpush2.bf16.msra.mxu0 0
        %2393 = vmatprep.subr.bf16.mxu0 0
        %2394 = vmatpush2.bf16.msra.mxu0 0
        %2395 = vmatprep.subr.bf16.mxu0 0
        %2396 = vmatpush2.bf16.msra.mxu0 0
        %2397 = vmatprep.subr.bf16.mxu0 0
        %2398 = vmatpush2.bf16.msra.mxu0 0
        %2399 = vmatprep.subr.bf16.mxu0 0
        %2400 = vmatpush2.bf16.msra.mxu0 0
        %2401 = vmatprep.subr.bf16.mxu0 0
        %2402 = vmatpush2.bf16.msra.mxu0 0
        %2403 = vmatprep.subr.bf16.mxu0 0
        %2404 = vmatpush2.bf16.msra.mxu0 0
        %2405 = vmatprep.mubr.bf16.mxu0 0
        %2406 = vmatmul.mubr.bf16.gmra.mxu0 %v2306
        %v2407 = vpop.f32.mrf.mxu0
        %v2408 = vadd.f32 0.0, %v2407
        %v2409 = vpop.f32.mrf.mxu0
        %v2410 = vadd.f32 0.0, %v2409
        %v2411 = vpop.f32.mrf.mxu0
        %v2412 = vpop.f32.mrf.mxu0
        %2413 = vdwg.mxu0
        %2414 = vmatprep.subr.bf16.mxu0 0
        %2415 = vmatpush1.bf16.msra.mxu0 0
        %2416 = vmatprep.subr.bf16.mxu0 0
        %2417 = vmatpush1.bf16.msra.mxu0 0
        %2418 = vmatprep.subr.bf16.mxu0 0
        %2419 = vmatpush1.bf16.msra.mxu0 0
        %2420 = vmatprep.subr.bf16.mxu0 0
        %2421 = vmatpush1.bf16.msra.mxu0 0
        %2422 = vmatprep.subr.bf16.mxu0 0
        %2423 = vmatpush1.bf16.msra.mxu0 0
        %2424 = vmatprep.subr.bf16.mxu0 0
        %2425 = vmatpush1.bf16.msra.mxu0 0
        %2426 = vmatprep.subr.bf16.mxu0 0
        %2427 = vmatpush1.bf16.msra.mxu0 0
        %2428 = vmatprep.subr.bf16.mxu0 %v2324
        %2429 = vmatpush1.bf16.msra.mxu0 %v2321
        %2430 = vmatprep.subr.bf16.mxu0 0
        %2431 = vmatpush2.bf16.msra.mxu0 0
        %2432 = vmatprep.subr.bf16.mxu0 0
        %2433 = vmatpush2.bf16.msra.mxu0 0
        %2434 = vmatprep.subr.bf16.mxu0 0
        %2435 = vmatpush2.bf16.msra.mxu0 0
        %2436 = vmatprep.subr.bf16.mxu0 0
        %2437 = vmatpush2.bf16.msra.mxu0 0
        %2438 = vmatprep.subr.bf16.mxu0 0
        %2439 = vmatpush2.bf16.msra.mxu0 0
        %2440 = vmatprep.subr.bf16.mxu0 0
        %2441 = vmatpush2.bf16.msra.mxu0 0
        %2442 = vmatprep.subr.bf16.mxu0 0
        %2443 = vmatpush2.bf16.msra.mxu0 0
        %2444 = vmatprep.subr.bf16.mxu0 0
        %2445 = vmatpush2.bf16.msra.mxu0 0
        %2446 = vmatprep.mubr.bf16.mxu0 0
        %2447 = vmatmul.mubr.bf16.gmra.mxu0 %v2306
        %v2448 = vpop.f32.mrf.mxu0
        %v2449 = vadd.f32 0.0, %v2448
        %v2450 = vpop.f32.mrf.mxu0
        %v2451 = vadd.f32 0.0, %v2450
        %v2452 = vpop.f32.mrf.mxu0
        %v2453 = vpop.f32.mrf.mxu0
        %2454 = vdwg.mxu0
        %2455 = vmatprep.subr.bf16.mxu0 0
        %2456 = vmatpush1.bf16.msra.mxu0 0
        %2457 = vmatprep.subr.bf16.mxu0 0
        %2458 = vmatpush1.bf16.msra.mxu0 0
        %2459 = vmatprep.subr.bf16.mxu0 0
        %2460 = vmatpush1.bf16.msra.mxu0 0
        %2461 = vmatprep.subr.bf16.mxu0 0
        %2462 = vmatpush1.bf16.msra.mxu0 0
        %2463 = vmatprep.subr.bf16.mxu0 0
        %2464 = vmatpush1.bf16.msra.mxu0 0
        %2465 = vmatprep.subr.bf16.mxu0 0
        %2466 = vmatpush1.bf16.msra.mxu0 0
        %2467 = vmatprep.subr.bf16.mxu0 0
        %2468 = vmatpush1.bf16.msra.mxu0 0
        %2469 = vmatprep.subr.bf16.mxu0 %v2330
        %2470 = vmatpush1.bf16.msra.mxu0 %v2327
        %2471 = vmatprep.subr.bf16.mxu0 0
        %2472 = vmatpush2.bf16.msra.mxu0 0
        %2473 = vmatprep.subr.bf16.mxu0 0
        %2474 = vmatpush2.bf16.msra.mxu0 0
        %2475 = vmatprep.subr.bf16.mxu0 0
        %2476 = vmatpush2.bf16.msra.mxu0 0
        %2477 = vmatprep.subr.bf16.mxu0 0
        %2478 = vmatpush2.bf16.msra.mxu0 0
        %2479 = vmatprep.subr.bf16.mxu0 0
        %2480 = vmatpush2.bf16.msra.mxu0 0
        %2481 = vmatprep.subr.bf16.mxu0 0
        %2482 = vmatpush2.bf16.msra.mxu0 0
        %2483 = vmatprep.subr.bf16.mxu0 0
        %2484 = vmatpush2.bf16.msra.mxu0 0
        %2485 = vmatprep.subr.bf16.mxu0 0
        %2486 = vmatpush2.bf16.msra.mxu0 0
        %2487 = vmatprep.mubr.bf16.mxu0 0
        %2488 = vmatmul.mubr.bf16.gmra.mxu0 %v2306
        %v2489 = vpop.f32.mrf.mxu0
        %v2490 = vadd.f32 0.0, %v2489
        %v2491 = vpop.f32.mrf.mxu0
        %v2492 = vadd.f32 0.0, %v2491
        %v2493 = vpop.f32.mrf.mxu0
        %v2494 = vpop.f32.mrf.mxu0
        %2495 = vdwg.mxu0
        %v2496 = vmax.f32 %v2367, %v2449
        %v2497 = vmax.f32 %v2369, %v2451
        %v2498 = vmax.f32 %v2408, %v2490
        %v2499 = vmax.f32 %v2410, %v2492
        %v2500 = vmax.f32 %v2496, %v2497
        %v2501 = vmax.f32 %v2498, %v2499
        %v2502 = vmax.f32 %v2500, %v2501
        %2503 = vmax.xlane.f32.xlu0 %v2502
        %v2504 = vpop.xlane.xlu0 %2503
        %vm2505 = vcmp.ge.f32.partialorder %v2367, %v2504
        %vm2506 = vcmp.ge.f32.partialorder %v2369, %v2504
        %vm2507 = vcmp.ge.f32.partialorder %v2408, %v2504
        %vm2508 = vcmp.ge.f32.partialorder %v2410, %v2504
        %vm2509 = vcmp.ge.f32.partialorder %v2449, %v2504
        %vm2510 = vcmp.ge.f32.partialorder %v2451, %v2504
        %vm2511 = vcmp.ge.f32.partialorder %v2490, %v2504
        %vm2512 = vcmp.ge.f32.partialorder %v2492, %v2504
        %v2513 = vsel %vm2505, %v364, 1024
        %v2514 = vsel %vm2506, %v365, 1024
        %v2515 = vsel %vm2507, %v366, 1024
        %v2516 = vsel %vm2508, %v367, 1024
        %v2517 = vsel %vm2509, %v368, 1024
        %v2518 = vsel %vm2510, %v369, 1024
        %v2519 = vsel %vm2511, %v370, 1024
        %v2520 = vsel %vm2512, %v371, 1024
        %vm2521 = vcmp.lt.s32.totalorder %v2513, %v2517
        %v2522 = vsel %vm2521, %v2513, %v2517
        %vm2523 = vcmp.lt.s32.totalorder %v2514, %v2518
        %v2524 = vsel %vm2523, %v2514, %v2518
        %vm2525 = vcmp.lt.s32.totalorder %v2515, %v2519
        %v2526 = vsel %vm2525, %v2515, %v2519
        %vm2527 = vcmp.lt.s32.totalorder %v2516, %v2520
        %v2528 = vsel %vm2527, %v2516, %v2520
        %vm2529 = vcmp.lt.s32.totalorder %v2522, %v2524
        %v2530 = vsel %vm2529, %v2522, %v2524
        %vm2531 = vcmp.lt.s32.totalorder %v2526, %v2528
        %v2532 = vsel %vm2531, %v2526, %v2528
        %vm2533 = vcmp.lt.s32.totalorder %v2530, %v2532
        %v2534 = vsel %vm2533, %v2530, %v2532
        %v2535 = vand.u32 %v2534, 65535
        %v2536 = vshra.s32 %v2534, 16
        %v2537 = vcvt.s32.f32 %v2535
        %v2538 = vcvt.s32.f32 %v2536
        %2539 = vmin.xlane.f32.xlu0 %v2538
        %v2540 = vpop.xlane.xlu0 %2539
        %vm2541 = vcmp.eq.f32.partialorder %v2538, %v2540
        %v2542 = vsel %vm2541, %v2537, inf
        %2543 = vmin.xlane.f32.xlu0 %v2542
        %v2544 = vpop.xlane.xlu0 %2543
        %v2545 = vcvt.f32.s32 %v2544
        %v2546 = vcvt.f32.s32 %v2540
        %v2547 = vshll.u32 %v2546, 16
        %v2548 = vadd.s32 %v2547, %v2545
        %vm2549 = vcmp.eq.s32.totalorder %v364, %v2548
        %vm2550 = vcmp.eq.s32.totalorder %v365, %v2548
        %vm2551 = vcmp.eq.s32.totalorder %v366, %v2548
        %vm2552 = vcmp.eq.s32.totalorder %v367, %v2548
        %vm2553 = vcmp.eq.s32.totalorder %v368, %v2548
        %vm2554 = vcmp.eq.s32.totalorder %v369, %v2548
        %vm2555 = vcmp.eq.s32.totalorder %v370, %v2548
        %vm2556 = vcmp.eq.s32.totalorder %v371, %v2548
        %v2557 = vsel %vm2549, 1, 0
        %v2558 = vsel %vm2550, 1, 0
        %v2559 = vsel %vm2551, 1, 0
        %v2560 = vsel %vm2552, 1, 0
        %v2561 = vsel %vm2553, 1, 0
        %v2562 = vsel %vm2554, 1, 0
        %v2563 = vsel %vm2555, 1, 0
        %v2564 = vsel %vm2556, 1, 0
        %v2565 = vcvt.s32.f32 %v2557
        %v2566 = vcvt.s32.f32 %v2558
        %v2567 = vcvt.s32.f32 %v2559
        %v2568 = vcvt.s32.f32 %v2560
        %v2569 = vcvt.s32.f32 %v2561
        %v2570 = vcvt.s32.f32 %v2562
        %v2571 = vcvt.s32.f32 %v2563
        %v2572 = vcvt.s32.f32 %v2564
        %v2573 = vpack.c.bf16 %v2565, %v2565
        %v2574 = vpack.c.bf16 %v2566, %v2566
        %v2575 = vpack.c.bf16 %v2567, %v2567
        %v2576 = vpack.c.bf16 %v2568, %v2568
        %v2577 = vpack.c.bf16 %v2569, %v2569
        %v2578 = vpack.c.bf16 %v2570, %v2570
        %v2579 = vpack.c.bf16 %v2571, %v2571
        %v2580 = vpack.c.bf16 %v2572, %v2572
        %2589 = vmatprep.subr.bf16.mxu0 0
        %2590 = vmatpush1.bf16.xpose.msra.mxu0 0
        %2591 = vmatprep.subr.bf16.mxu0 0
        %2592 = vmatpush1.bf16.xpose.msra.mxu0 0
        %2593 = vmatprep.subr.bf16.mxu0 0
        %2594 = vmatpush1.bf16.xpose.msra.mxu0 0
        %2595 = vmatprep.subr.bf16.mxu0 0
        %2596 = vmatpush1.bf16.xpose.msra.mxu0 0
        %2597 = vmatprep.subr.bf16.mxu0 0
        %2598 = vmatpush1.bf16.xpose.msra.mxu0 0
        %2599 = vmatprep.subr.bf16.mxu0 0
        %2600 = vmatpush1.bf16.xpose.msra.mxu0 0
        %2601 = vmatprep.subr.bf16.mxu0 0
        %2602 = vmatpush1.bf16.xpose.msra.mxu0 0
        %2603 = vmatprep.subr.bf16.mxu0 %v2298
        %2604 = vmatpush1.bf16.xpose.msra.mxu0 %v2297
        %2605 = vmatprep.subr.bf16.mxu0 0
        %2606 = vmatpush2.bf16.xpose.msra.mxu0 0
        %2607 = vmatprep.subr.bf16.mxu0 0
        %2608 = vmatpush2.bf16.xpose.msra.mxu0 0
        %2609 = vmatprep.subr.bf16.mxu0 0
        %2610 = vmatpush2.bf16.xpose.msra.mxu0 0
        %2611 = vmatprep.subr.bf16.mxu0 0
        %2612 = vmatpush2.bf16.xpose.msra.mxu0 0
        %2613 = vmatprep.subr.bf16.mxu0 0
        %2614 = vmatpush2.bf16.xpose.msra.mxu0 0
        %2615 = vmatprep.subr.bf16.mxu0 0
        %2616 = vmatpush2.bf16.xpose.msra.mxu0 0
        %2617 = vmatprep.subr.bf16.mxu0 0
        %2618 = vmatpush2.bf16.xpose.msra.mxu0 0
        %2619 = vmatprep.subr.bf16.mxu0 0
        %2620 = vmatpush2.bf16.xpose.msra.mxu0 0
        %2621 = vmatprep.mubr.bf16.mxu0 %v2574
        %2622 = vmatmul.mubr.bf16.gmra.mxu0 %v2573
        %v2623 = vpop.f32.mrf.mxu0
        %v2624 = vadd.f32 0.0, %v2623
        %v2625 = vpop.f32.mrf.mxu0
        %v2626 = vpop.f32.mrf.mxu0
        %v2627 = vpop.f32.mrf.mxu0
        %2628 = vdwg.mxu0
        %2629 = vmatprep.subr.bf16.mxu0 0
        %2630 = vmatpush1.bf16.xpose.msra.mxu0 0
        %2631 = vmatprep.subr.bf16.mxu0 0
        %2632 = vmatpush1.bf16.xpose.msra.mxu0 0
        %2633 = vmatprep.subr.bf16.mxu0 0
        %2634 = vmatpush1.bf16.xpose.msra.mxu0 0
        %2635 = vmatprep.subr.bf16.mxu0 0
        %2636 = vmatpush1.bf16.xpose.msra.mxu0 0
        %2637 = vmatprep.subr.bf16.mxu0 0
        %2638 = vmatpush1.bf16.xpose.msra.mxu0 0
        %2639 = vmatprep.subr.bf16.mxu0 0
        %2640 = vmatpush1.bf16.xpose.msra.mxu0 0
        %2641 = vmatprep.subr.bf16.mxu0 0
        %2642 = vmatpush1.bf16.xpose.msra.mxu0 0
        %2643 = vmatprep.subr.bf16.mxu0 %v2300
        %2644 = vmatpush1.bf16.xpose.msra.mxu0 %v2299
        %2645 = vmatprep.subr.bf16.mxu0 0
        %2646 = vmatpush2.bf16.xpose.msra.mxu0 0
        %2647 = vmatprep.subr.bf16.mxu0 0
        %2648 = vmatpush2.bf16.xpose.msra.mxu0 0
        %2649 = vmatprep.subr.bf16.mxu0 0
        %2650 = vmatpush2.bf16.xpose.msra.mxu0 0
        %2651 = vmatprep.subr.bf16.mxu0 0
        %2652 = vmatpush2.bf16.xpose.msra.mxu0 0
        %2653 = vmatprep.subr.bf16.mxu0 0
        %2654 = vmatpush2.bf16.xpose.msra.mxu0 0
        %2655 = vmatprep.subr.bf16.mxu0 0
        %2656 = vmatpush2.bf16.xpose.msra.mxu0 0
        %2657 = vmatprep.subr.bf16.mxu0 0
        %2658 = vmatpush2.bf16.xpose.msra.mxu0 0
        %2659 = vmatprep.subr.bf16.mxu0 0
        %2660 = vmatpush2.bf16.xpose.msra.mxu0 0
        %2661 = vmatprep.mubr.bf16.mxu0 %v2576
        %2662 = vmatmul.mubr.bf16.gmra.mxu0 %v2575
        %v2663 = vpop.f32.mrf.mxu0
        %v2664 = vadd.f32 %v2624, %v2663
        %v2665 = vpop.f32.mrf.mxu0
        %v2666 = vpop.f32.mrf.mxu0
        %v2667 = vpop.f32.mrf.mxu0
        %2668 = vdwg.mxu0
        %2669 = vmatprep.subr.bf16.mxu0 0
        %2670 = vmatpush1.bf16.xpose.msra.mxu0 0
        %2671 = vmatprep.subr.bf16.mxu0 0
        %2672 = vmatpush1.bf16.xpose.msra.mxu0 0
        %2673 = vmatprep.subr.bf16.mxu0 0
        %2674 = vmatpush1.bf16.xpose.msra.mxu0 0
        %2675 = vmatprep.subr.bf16.mxu0 0
        %2676 = vmatpush1.bf16.xpose.msra.mxu0 0
        %2677 = vmatprep.subr.bf16.mxu0 0
        %2678 = vmatpush1.bf16.xpose.msra.mxu0 0
        %2679 = vmatprep.subr.bf16.mxu0 0
        %2680 = vmatpush1.bf16.xpose.msra.mxu0 0
        %2681 = vmatprep.subr.bf16.mxu0 0
        %2682 = vmatpush1.bf16.xpose.msra.mxu0 0
        %2683 = vmatprep.subr.bf16.mxu0 %v2302
        %2684 = vmatpush1.bf16.xpose.msra.mxu0 %v2301
        %2685 = vmatprep.subr.bf16.mxu0 0
        %2686 = vmatpush2.bf16.xpose.msra.mxu0 0
        %2687 = vmatprep.subr.bf16.mxu0 0
        %2688 = vmatpush2.bf16.xpose.msra.mxu0 0
        %2689 = vmatprep.subr.bf16.mxu0 0
        %2690 = vmatpush2.bf16.xpose.msra.mxu0 0
        %2691 = vmatprep.subr.bf16.mxu0 0
        %2692 = vmatpush2.bf16.xpose.msra.mxu0 0
        %2693 = vmatprep.subr.bf16.mxu0 0
        %2694 = vmatpush2.bf16.xpose.msra.mxu0 0
        %2695 = vmatprep.subr.bf16.mxu0 0
        %2696 = vmatpush2.bf16.xpose.msra.mxu0 0
        %2697 = vmatprep.subr.bf16.mxu0 0
        %2698 = vmatpush2.bf16.xpose.msra.mxu0 0
        %2699 = vmatprep.subr.bf16.mxu0 0
        %2700 = vmatpush2.bf16.xpose.msra.mxu0 0
        %2701 = vmatprep.mubr.bf16.mxu0 %v2578
        %2702 = vmatmul.mubr.bf16.gmra.mxu0 %v2577
        %v2703 = vpop.f32.mrf.mxu0
        %v2704 = vadd.f32 %v2664, %v2703
        %v2705 = vpop.f32.mrf.mxu0
        %v2706 = vpop.f32.mrf.mxu0
        %v2707 = vpop.f32.mrf.mxu0
        %2708 = vdwg.mxu0
        %2709 = vmatprep.subr.bf16.mxu0 0
        %2710 = vmatpush1.bf16.xpose.msra.mxu0 0
        %2711 = vmatprep.subr.bf16.mxu0 0
        %2712 = vmatpush1.bf16.xpose.msra.mxu0 0
        %2713 = vmatprep.subr.bf16.mxu0 0
        %2714 = vmatpush1.bf16.xpose.msra.mxu0 0
        %2715 = vmatprep.subr.bf16.mxu0 0
        %2716 = vmatpush1.bf16.xpose.msra.mxu0 0
        %2717 = vmatprep.subr.bf16.mxu0 0
        %2718 = vmatpush1.bf16.xpose.msra.mxu0 0
        %2719 = vmatprep.subr.bf16.mxu0 0
        %2720 = vmatpush1.bf16.xpose.msra.mxu0 0
        %2721 = vmatprep.subr.bf16.mxu0 0
        %2722 = vmatpush1.bf16.xpose.msra.mxu0 0
        %2723 = vmatprep.subr.bf16.mxu0 %v2304
        %2724 = vmatpush1.bf16.xpose.msra.mxu0 %v2303
        %2725 = vmatprep.subr.bf16.mxu0 0
        %2726 = vmatpush2.bf16.xpose.msra.mxu0 0
        %2727 = vmatprep.subr.bf16.mxu0 0
        %2728 = vmatpush2.bf16.xpose.msra.mxu0 0
        %2729 = vmatprep.subr.bf16.mxu0 0
        %2730 = vmatpush2.bf16.xpose.msra.mxu0 0
        %2731 = vmatprep.subr.bf16.mxu0 0
        %2732 = vmatpush2.bf16.xpose.msra.mxu0 0
        %2733 = vmatprep.subr.bf16.mxu0 0
        %2734 = vmatpush2.bf16.xpose.msra.mxu0 0
        %2735 = vmatprep.subr.bf16.mxu0 0
        %2736 = vmatpush2.bf16.xpose.msra.mxu0 0
        %2737 = vmatprep.subr.bf16.mxu0 0
        %2738 = vmatpush2.bf16.xpose.msra.mxu0 0
        %2739 = vmatprep.subr.bf16.mxu0 0
        %2740 = vmatpush2.bf16.xpose.msra.mxu0 0
        %2741 = vmatprep.mubr.bf16.mxu0 %v2580
        %2742 = vmatmul.mubr.bf16.gmra.mxu0 %v2579
        %v2743 = vpop.f32.mrf.mxu0
        %v2744 = vadd.f32 %v2704, %v2743
        %v2745 = vpop.f32.mrf.mxu0
        %v2746 = vpop.f32.mrf.mxu0
        %v2747 = vpop.f32.mrf.mxu0
        %2748 = vdwg.mxu0
        %2750 = vrot.lane.b32.xlu0 %v2744, 8
        %v2751 = vpop.permute.xlu0 %2750
        %v2753 = vsub.f32 %v360, %v2751
        %v2754 = vsel %vm844, %v2548, 0
        %v2755 = vadd.f32 %v2744, 0.0
        %v2756 = vmul.f32 %v2753, %v2753
        %2758 = vrot.lane.b32.xlu0 %v2756, 120
        %v2759 = vpop.permute.xlu0 %2758
        %v2761 = vadd.f32 %v2276, %v2759
        %s2762 = scalar_lea.vmem [#allocation2], 160
        %v2763 = vld [vmem:[%s2762] sm:$0xff]
        %v2764 = vld [vmem:[%s2762 + $0x8] sm:$0xff]
        %v2765 = vld [vmem:[%s2762 + $0x10] sm:$0xff]
        %v2766 = vld [vmem:[%s2762 + $0x18] sm:$0xff]
        %v2767 = vpack.c.bf16 %v2753, %v2753
        %2769 = vrot.lane.b32.xlu0 %v2767, 120
        %v2770 = vpop.permute.xlu0 %2769
        %v2775 = vunpack.c.l.b16 %v2763
        %v2776 = vunpack.c.h.b16 %v2763
        %v2777 = vunpack.c.l.b16 %v2764
        %v2778 = vunpack.c.h.b16 %v2764
        %v2779 = vunpack.c.l.b16 %v2765
        %v2780 = vunpack.c.h.b16 %v2765
        %v2781 = vunpack.c.l.b16 %v2766
        %v2782 = vunpack.c.h.b16 %v2766
        %v2783 = vpack.c.b16 %v2775, %v2775
        %v2784 = vpack.c.b16 %v2776, %v2776
        %v2785 = vpack.c.b16 %v2777, %v2777
        %v2786 = vpack.c.b16 %v2778, %v2778
        %v2787 = vpack.c.b16 %v2779, %v2779
        %v2788 = vpack.c.b16 %v2780, %v2780
        %v2789 = vpack.c.b16 %v2781, %v2781
        %v2790 = vpack.c.b16 %v2782, %v2782
        %v2792 = vsel %vm397, %v2770, 0
        %v2795 = vsel %vm401, %v2783, 0
        %v2798 = vsel %vm401, %v2784, 0
        %v2801 = vsel %vm401, %v2785, 0
        %v2804 = vsel %vm401, %v2786, 0
        %v2807 = vsel %vm401, %v2787, 0
        %v2810 = vsel %vm401, %v2788, 0
        %v2813 = vsel %vm401, %v2789, 0
        %v2816 = vsel %vm401, %v2790, 0
        %2818 = vmatprep.subr.bf16.mxu0 0
        %2819 = vmatpush1.bf16.msra.mxu0 0
        %2820 = vmatprep.subr.bf16.mxu0 0
        %2821 = vmatpush1.bf16.msra.mxu0 0
        %2822 = vmatprep.subr.bf16.mxu0 0
        %2823 = vmatpush1.bf16.msra.mxu0 0
        %2824 = vmatprep.subr.bf16.mxu0 0
        %2825 = vmatpush1.bf16.msra.mxu0 0
        %2826 = vmatprep.subr.bf16.mxu0 0
        %2827 = vmatpush1.bf16.msra.mxu0 0
        %2828 = vmatprep.subr.bf16.mxu0 0
        %2829 = vmatpush1.bf16.msra.mxu0 0
        %2830 = vmatprep.subr.bf16.mxu0 0
        %2831 = vmatpush1.bf16.msra.mxu0 0
        %2832 = vmatprep.subr.bf16.mxu0 %v2798
        %2833 = vmatpush1.bf16.msra.mxu0 %v2795
        %2834 = vmatprep.subr.bf16.mxu0 0
        %2835 = vmatpush2.bf16.msra.mxu0 0
        %2836 = vmatprep.subr.bf16.mxu0 0
        %2837 = vmatpush2.bf16.msra.mxu0 0
        %2838 = vmatprep.subr.bf16.mxu0 0
        %2839 = vmatpush2.bf16.msra.mxu0 0
        %2840 = vmatprep.subr.bf16.mxu0 0
        %2841 = vmatpush2.bf16.msra.mxu0 0
        %2842 = vmatprep.subr.bf16.mxu0 0
        %2843 = vmatpush2.bf16.msra.mxu0 0
        %2844 = vmatprep.subr.bf16.mxu0 0
        %2845 = vmatpush2.bf16.msra.mxu0 0
        %2846 = vmatprep.subr.bf16.mxu0 0
        %2847 = vmatpush2.bf16.msra.mxu0 0
        %2848 = vmatprep.subr.bf16.mxu0 0
        %2849 = vmatpush2.bf16.msra.mxu0 0
        %2850 = vmatprep.mubr.bf16.mxu0 0
        %2851 = vmatmul.mubr.bf16.gmra.mxu0 %v2792
        %v2852 = vpop.f32.mrf.mxu0
        %v2853 = vadd.f32 0.0, %v2852
        %v2854 = vpop.f32.mrf.mxu0
        %v2855 = vadd.f32 0.0, %v2854
        %v2856 = vpop.f32.mrf.mxu0
        %v2857 = vpop.f32.mrf.mxu0
        %2858 = vdwg.mxu0
        %2859 = vmatprep.subr.bf16.mxu0 0
        %2860 = vmatpush1.bf16.msra.mxu0 0
        %2861 = vmatprep.subr.bf16.mxu0 0
        %2862 = vmatpush1.bf16.msra.mxu0 0
        %2863 = vmatprep.subr.bf16.mxu0 0
        %2864 = vmatpush1.bf16.msra.mxu0 0
        %2865 = vmatprep.subr.bf16.mxu0 0
        %2866 = vmatpush1.bf16.msra.mxu0 0
        %2867 = vmatprep.subr.bf16.mxu0 0
        %2868 = vmatpush1.bf16.msra.mxu0 0
        %2869 = vmatprep.subr.bf16.mxu0 0
        %2870 = vmatpush1.bf16.msra.mxu0 0
        %2871 = vmatprep.subr.bf16.mxu0 0
        %2872 = vmatpush1.bf16.msra.mxu0 0
        %2873 = vmatprep.subr.bf16.mxu0 %v2804
        %2874 = vmatpush1.bf16.msra.mxu0 %v2801
        %2875 = vmatprep.subr.bf16.mxu0 0
        %2876 = vmatpush2.bf16.msra.mxu0 0
        %2877 = vmatprep.subr.bf16.mxu0 0
        %2878 = vmatpush2.bf16.msra.mxu0 0
        %2879 = vmatprep.subr.bf16.mxu0 0
        %2880 = vmatpush2.bf16.msra.mxu0 0
        %2881 = vmatprep.subr.bf16.mxu0 0
        %2882 = vmatpush2.bf16.msra.mxu0 0
        %2883 = vmatprep.subr.bf16.mxu0 0
        %2884 = vmatpush2.bf16.msra.mxu0 0
        %2885 = vmatprep.subr.bf16.mxu0 0
        %2886 = vmatpush2.bf16.msra.mxu0 0
        %2887 = vmatprep.subr.bf16.mxu0 0
        %2888 = vmatpush2.bf16.msra.mxu0 0
        %2889 = vmatprep.subr.bf16.mxu0 0
        %2890 = vmatpush2.bf16.msra.mxu0 0
        %2891 = vmatprep.mubr.bf16.mxu0 0
        %2892 = vmatmul.mubr.bf16.gmra.mxu0 %v2792
        %v2893 = vpop.f32.mrf.mxu0
        %v2894 = vadd.f32 0.0, %v2893
        %v2895 = vpop.f32.mrf.mxu0
        %v2896 = vadd.f32 0.0, %v2895
        %v2897 = vpop.f32.mrf.mxu0
        %v2898 = vpop.f32.mrf.mxu0
        %2899 = vdwg.mxu0
        %2900 = vmatprep.subr.bf16.mxu0 0
        %2901 = vmatpush1.bf16.msra.mxu0 0
        %2902 = vmatprep.subr.bf16.mxu0 0
        %2903 = vmatpush1.bf16.msra.mxu0 0
        %2904 = vmatprep.subr.bf16.mxu0 0
        %2905 = vmatpush1.bf16.msra.mxu0 0
        %2906 = vmatprep.subr.bf16.mxu0 0
        %2907 = vmatpush1.bf16.msra.mxu0 0
        %2908 = vmatprep.subr.bf16.mxu0 0
        %2909 = vmatpush1.bf16.msra.mxu0 0
        %2910 = vmatprep.subr.bf16.mxu0 0
        %2911 = vmatpush1.bf16.msra.mxu0 0
        %2912 = vmatprep.subr.bf16.mxu0 0
        %2913 = vmatpush1.bf16.msra.mxu0 0
        %2914 = vmatprep.subr.bf16.mxu0 %v2810
        %2915 = vmatpush1.bf16.msra.mxu0 %v2807
        %2916 = vmatprep.subr.bf16.mxu0 0
        %2917 = vmatpush2.bf16.msra.mxu0 0
        %2918 = vmatprep.subr.bf16.mxu0 0
        %2919 = vmatpush2.bf16.msra.mxu0 0
        %2920 = vmatprep.subr.bf16.mxu0 0
        %2921 = vmatpush2.bf16.msra.mxu0 0
        %2922 = vmatprep.subr.bf16.mxu0 0
        %2923 = vmatpush2.bf16.msra.mxu0 0
        %2924 = vmatprep.subr.bf16.mxu0 0
        %2925 = vmatpush2.bf16.msra.mxu0 0
        %2926 = vmatprep.subr.bf16.mxu0 0
        %2927 = vmatpush2.bf16.msra.mxu0 0
        %2928 = vmatprep.subr.bf16.mxu0 0
        %2929 = vmatpush2.bf16.msra.mxu0 0
        %2930 = vmatprep.subr.bf16.mxu0 0
        %2931 = vmatpush2.bf16.msra.mxu0 0
        %2932 = vmatprep.mubr.bf16.mxu0 0
        %2933 = vmatmul.mubr.bf16.gmra.mxu0 %v2792
        %v2934 = vpop.f32.mrf.mxu0
        %v2935 = vadd.f32 0.0, %v2934
        %v2936 = vpop.f32.mrf.mxu0
        %v2937 = vadd.f32 0.0, %v2936
        %v2938 = vpop.f32.mrf.mxu0
        %v2939 = vpop.f32.mrf.mxu0
        %2940 = vdwg.mxu0
        %2941 = vmatprep.subr.bf16.mxu0 0
        %2942 = vmatpush1.bf16.msra.mxu0 0
        %2943 = vmatprep.subr.bf16.mxu0 0
        %2944 = vmatpush1.bf16.msra.mxu0 0
        %2945 = vmatprep.subr.bf16.mxu0 0
        %2946 = vmatpush1.bf16.msra.mxu0 0
        %2947 = vmatprep.subr.bf16.mxu0 0
        %2948 = vmatpush1.bf16.msra.mxu0 0
        %2949 = vmatprep.subr.bf16.mxu0 0
        %2950 = vmatpush1.bf16.msra.mxu0 0
        %2951 = vmatprep.subr.bf16.mxu0 0
        %2952 = vmatpush1.bf16.msra.mxu0 0
        %2953 = vmatprep.subr.bf16.mxu0 0
        %2954 = vmatpush1.bf16.msra.mxu0 0
        %2955 = vmatprep.subr.bf16.mxu0 %v2816
        %2956 = vmatpush1.bf16.msra.mxu0 %v2813
        %2957 = vmatprep.subr.bf16.mxu0 0
        %2958 = vmatpush2.bf16.msra.mxu0 0
        %2959 = vmatprep.subr.bf16.mxu0 0
        %2960 = vmatpush2.bf16.msra.mxu0 0
        %2961 = vmatprep.subr.bf16.mxu0 0
        %2962 = vmatpush2.bf16.msra.mxu0 0
        %2963 = vmatprep.subr.bf16.mxu0 0
        %2964 = vmatpush2.bf16.msra.mxu0 0
        %2965 = vmatprep.subr.bf16.mxu0 0
        %2966 = vmatpush2.bf16.msra.mxu0 0
        %2967 = vmatprep.subr.bf16.mxu0 0
        %2968 = vmatpush2.bf16.msra.mxu0 0
        %2969 = vmatprep.subr.bf16.mxu0 0
        %2970 = vmatpush2.bf16.msra.mxu0 0
        %2971 = vmatprep.subr.bf16.mxu0 0
        %2972 = vmatpush2.bf16.msra.mxu0 0
        %2973 = vmatprep.mubr.bf16.mxu0 0
        %2974 = vmatmul.mubr.bf16.gmra.mxu0 %v2792
        %v2975 = vpop.f32.mrf.mxu0
        %v2976 = vadd.f32 0.0, %v2975
        %v2977 = vpop.f32.mrf.mxu0
        %v2978 = vadd.f32 0.0, %v2977
        %v2979 = vpop.f32.mrf.mxu0
        %v2980 = vpop.f32.mrf.mxu0
        %2981 = vdwg.mxu0
        %v2982 = vmax.f32 %v2853, %v2935
        %v2983 = vmax.f32 %v2855, %v2937
        %v2984 = vmax.f32 %v2894, %v2976
        %v2985 = vmax.f32 %v2896, %v2978
        %v2986 = vmax.f32 %v2982, %v2983
        %v2987 = vmax.f32 %v2984, %v2985
        %v2988 = vmax.f32 %v2986, %v2987
        %2989 = vmax.xlane.f32.xlu0 %v2988
        %v2990 = vpop.xlane.xlu0 %2989
        %vm2991 = vcmp.ge.f32.partialorder %v2853, %v2990
        %vm2992 = vcmp.ge.f32.partialorder %v2855, %v2990
        %vm2993 = vcmp.ge.f32.partialorder %v2894, %v2990
        %vm2994 = vcmp.ge.f32.partialorder %v2896, %v2990
        %vm2995 = vcmp.ge.f32.partialorder %v2935, %v2990
        %vm2996 = vcmp.ge.f32.partialorder %v2937, %v2990
        %vm2997 = vcmp.ge.f32.partialorder %v2976, %v2990
        %vm2998 = vcmp.ge.f32.partialorder %v2978, %v2990
        %v2999 = vsel %vm2991, %v364, 1024
        %v3000 = vsel %vm2992, %v365, 1024
        %v3001 = vsel %vm2993, %v366, 1024
        %v3002 = vsel %vm2994, %v367, 1024
        %v3003 = vsel %vm2995, %v368, 1024
        %v3004 = vsel %vm2996, %v369, 1024
        %v3005 = vsel %vm2997, %v370, 1024
        %v3006 = vsel %vm2998, %v371, 1024
        %vm3007 = vcmp.lt.s32.totalorder %v2999, %v3003
        %v3008 = vsel %vm3007, %v2999, %v3003
        %vm3009 = vcmp.lt.s32.totalorder %v3000, %v3004
        %v3010 = vsel %vm3009, %v3000, %v3004
        %vm3011 = vcmp.lt.s32.totalorder %v3001, %v3005
        %v3012 = vsel %vm3011, %v3001, %v3005
        %vm3013 = vcmp.lt.s32.totalorder %v3002, %v3006
        %v3014 = vsel %vm3013, %v3002, %v3006
        %vm3015 = vcmp.lt.s32.totalorder %v3008, %v3010
        %v3016 = vsel %vm3015, %v3008, %v3010
        %vm3017 = vcmp.lt.s32.totalorder %v3012, %v3014
        %v3018 = vsel %vm3017, %v3012, %v3014
        %vm3019 = vcmp.lt.s32.totalorder %v3016, %v3018
        %v3020 = vsel %vm3019, %v3016, %v3018
        %v3021 = vand.u32 %v3020, 65535
        %v3022 = vshra.s32 %v3020, 16
        %v3023 = vcvt.s32.f32 %v3021
        %v3024 = vcvt.s32.f32 %v3022
        %3025 = vmin.xlane.f32.xlu0 %v3024
        %v3026 = vpop.xlane.xlu0 %3025
        %vm3027 = vcmp.eq.f32.partialorder %v3024, %v3026
        %v3028 = vsel %vm3027, %v3023, inf
        %3029 = vmin.xlane.f32.xlu0 %v3028
        %v3030 = vpop.xlane.xlu0 %3029
        %v3031 = vcvt.f32.s32 %v3030
        %v3032 = vcvt.f32.s32 %v3026
        %v3033 = vshll.u32 %v3032, 16
        %v3034 = vadd.s32 %v3033, %v3031
        %vm3035 = vcmp.eq.s32.totalorder %v364, %v3034
        %vm3036 = vcmp.eq.s32.totalorder %v365, %v3034
        %vm3037 = vcmp.eq.s32.totalorder %v366, %v3034
        %vm3038 = vcmp.eq.s32.totalorder %v367, %v3034
        %vm3039 = vcmp.eq.s32.totalorder %v368, %v3034
        %vm3040 = vcmp.eq.s32.totalorder %v369, %v3034
        %vm3041 = vcmp.eq.s32.totalorder %v370, %v3034
        %vm3042 = vcmp.eq.s32.totalorder %v371, %v3034
        %v3043 = vsel %vm3035, 1, 0
        %v3044 = vsel %vm3036, 1, 0
        %v3045 = vsel %vm3037, 1, 0
        %v3046 = vsel %vm3038, 1, 0
        %v3047 = vsel %vm3039, 1, 0
        %v3048 = vsel %vm3040, 1, 0
        %v3049 = vsel %vm3041, 1, 0
        %v3050 = vsel %vm3042, 1, 0
        %v3051 = vcvt.s32.f32 %v3043
        %v3052 = vcvt.s32.f32 %v3044
        %v3053 = vcvt.s32.f32 %v3045
        %v3054 = vcvt.s32.f32 %v3046
        %v3055 = vcvt.s32.f32 %v3047
        %v3056 = vcvt.s32.f32 %v3048
        %v3057 = vcvt.s32.f32 %v3049
        %v3058 = vcvt.s32.f32 %v3050
        %v3059 = vpack.c.bf16 %v3051, %v3051
        %v3060 = vpack.c.bf16 %v3052, %v3052
        %v3061 = vpack.c.bf16 %v3053, %v3053
        %v3062 = vpack.c.bf16 %v3054, %v3054
        %v3063 = vpack.c.bf16 %v3055, %v3055
        %v3064 = vpack.c.bf16 %v3056, %v3056
        %v3065 = vpack.c.bf16 %v3057, %v3057
        %v3066 = vpack.c.bf16 %v3058, %v3058
        %3075 = vmatprep.subr.bf16.mxu0 0
        %3076 = vmatpush1.bf16.xpose.msra.mxu0 0
        %3077 = vmatprep.subr.bf16.mxu0 0
        %3078 = vmatpush1.bf16.xpose.msra.mxu0 0
        %3079 = vmatprep.subr.bf16.mxu0 0
        %3080 = vmatpush1.bf16.xpose.msra.mxu0 0
        %3081 = vmatprep.subr.bf16.mxu0 0
        %3082 = vmatpush1.bf16.xpose.msra.mxu0 0
        %3083 = vmatprep.subr.bf16.mxu0 0
        %3084 = vmatpush1.bf16.xpose.msra.mxu0 0
        %3085 = vmatprep.subr.bf16.mxu0 0
        %3086 = vmatpush1.bf16.xpose.msra.mxu0 0
        %3087 = vmatprep.subr.bf16.mxu0 0
        %3088 = vmatpush1.bf16.xpose.msra.mxu0 0
        %3089 = vmatprep.subr.bf16.mxu0 %v2784
        %3090 = vmatpush1.bf16.xpose.msra.mxu0 %v2783
        %3091 = vmatprep.subr.bf16.mxu0 0
        %3092 = vmatpush2.bf16.xpose.msra.mxu0 0
        %3093 = vmatprep.subr.bf16.mxu0 0
        %3094 = vmatpush2.bf16.xpose.msra.mxu0 0
        %3095 = vmatprep.subr.bf16.mxu0 0
        %3096 = vmatpush2.bf16.xpose.msra.mxu0 0
        %3097 = vmatprep.subr.bf16.mxu0 0
        %3098 = vmatpush2.bf16.xpose.msra.mxu0 0
        %3099 = vmatprep.subr.bf16.mxu0 0
        %3100 = vmatpush2.bf16.xpose.msra.mxu0 0
        %3101 = vmatprep.subr.bf16.mxu0 0
        %3102 = vmatpush2.bf16.xpose.msra.mxu0 0
        %3103 = vmatprep.subr.bf16.mxu0 0
        %3104 = vmatpush2.bf16.xpose.msra.mxu0 0
        %3105 = vmatprep.subr.bf16.mxu0 0
        %3106 = vmatpush2.bf16.xpose.msra.mxu0 0
        %3107 = vmatprep.mubr.bf16.mxu0 %v3060
        %3108 = vmatmul.mubr.bf16.gmra.mxu0 %v3059
        %v3109 = vpop.f32.mrf.mxu0
        %v3110 = vadd.f32 0.0, %v3109
        %v3111 = vpop.f32.mrf.mxu0
        %v3112 = vpop.f32.mrf.mxu0
        %v3113 = vpop.f32.mrf.mxu0
        %3114 = vdwg.mxu0
        %3115 = vmatprep.subr.bf16.mxu0 0
        %3116 = vmatpush1.bf16.xpose.msra.mxu0 0
        %3117 = vmatprep.subr.bf16.mxu0 0
        %3118 = vmatpush1.bf16.xpose.msra.mxu0 0
        %3119 = vmatprep.subr.bf16.mxu0 0
        %3120 = vmatpush1.bf16.xpose.msra.mxu0 0
        %3121 = vmatprep.subr.bf16.mxu0 0
        %3122 = vmatpush1.bf16.xpose.msra.mxu0 0
        %3123 = vmatprep.subr.bf16.mxu0 0
        %3124 = vmatpush1.bf16.xpose.msra.mxu0 0
        %3125 = vmatprep.subr.bf16.mxu0 0
        %3126 = vmatpush1.bf16.xpose.msra.mxu0 0
        %3127 = vmatprep.subr.bf16.mxu0 0
        %3128 = vmatpush1.bf16.xpose.msra.mxu0 0
        %3129 = vmatprep.subr.bf16.mxu0 %v2786
        %3130 = vmatpush1.bf16.xpose.msra.mxu0 %v2785
        %3131 = vmatprep.subr.bf16.mxu0 0
        %3132 = vmatpush2.bf16.xpose.msra.mxu0 0
        %3133 = vmatprep.subr.bf16.mxu0 0
        %3134 = vmatpush2.bf16.xpose.msra.mxu0 0
        %3135 = vmatprep.subr.bf16.mxu0 0
        %3136 = vmatpush2.bf16.xpose.msra.mxu0 0
        %3137 = vmatprep.subr.bf16.mxu0 0
        %3138 = vmatpush2.bf16.xpose.msra.mxu0 0
        %3139 = vmatprep.subr.bf16.mxu0 0
        %3140 = vmatpush2.bf16.xpose.msra.mxu0 0
        %3141 = vmatprep.subr.bf16.mxu0 0
        %3142 = vmatpush2.bf16.xpose.msra.mxu0 0
        %3143 = vmatprep.subr.bf16.mxu0 0
        %3144 = vmatpush2.bf16.xpose.msra.mxu0 0
        %3145 = vmatprep.subr.bf16.mxu0 0
        %3146 = vmatpush2.bf16.xpose.msra.mxu0 0
        %3147 = vmatprep.mubr.bf16.mxu0 %v3062
        %3148 = vmatmul.mubr.bf16.gmra.mxu0 %v3061
        %v3149 = vpop.f32.mrf.mxu0
        %v3150 = vadd.f32 %v3110, %v3149
        %v3151 = vpop.f32.mrf.mxu0
        %v3152 = vpop.f32.mrf.mxu0
        %v3153 = vpop.f32.mrf.mxu0
        %3154 = vdwg.mxu0
        %3155 = vmatprep.subr.bf16.mxu0 0
        %3156 = vmatpush1.bf16.xpose.msra.mxu0 0
        %3157 = vmatprep.subr.bf16.mxu0 0
        %3158 = vmatpush1.bf16.xpose.msra.mxu0 0
        %3159 = vmatprep.subr.bf16.mxu0 0
        %3160 = vmatpush1.bf16.xpose.msra.mxu0 0
        %3161 = vmatprep.subr.bf16.mxu0 0
        %3162 = vmatpush1.bf16.xpose.msra.mxu0 0
        %3163 = vmatprep.subr.bf16.mxu0 0
        %3164 = vmatpush1.bf16.xpose.msra.mxu0 0
        %3165 = vmatprep.subr.bf16.mxu0 0
        %3166 = vmatpush1.bf16.xpose.msra.mxu0 0
        %3167 = vmatprep.subr.bf16.mxu0 0
        %3168 = vmatpush1.bf16.xpose.msra.mxu0 0
        %3169 = vmatprep.subr.bf16.mxu0 %v2788
        %3170 = vmatpush1.bf16.xpose.msra.mxu0 %v2787
        %3171 = vmatprep.subr.bf16.mxu0 0
        %3172 = vmatpush2.bf16.xpose.msra.mxu0 0
        %3173 = vmatprep.subr.bf16.mxu0 0
        %3174 = vmatpush2.bf16.xpose.msra.mxu0 0
        %3175 = vmatprep.subr.bf16.mxu0 0
        %3176 = vmatpush2.bf16.xpose.msra.mxu0 0
        %3177 = vmatprep.subr.bf16.mxu0 0
        %3178 = vmatpush2.bf16.xpose.msra.mxu0 0
        %3179 = vmatprep.subr.bf16.mxu0 0
        %3180 = vmatpush2.bf16.xpose.msra.mxu0 0
        %3181 = vmatprep.subr.bf16.mxu0 0
        %3182 = vmatpush2.bf16.xpose.msra.mxu0 0
        %3183 = vmatprep.subr.bf16.mxu0 0
        %3184 = vmatpush2.bf16.xpose.msra.mxu0 0
        %3185 = vmatprep.subr.bf16.mxu0 0
        %3186 = vmatpush2.bf16.xpose.msra.mxu0 0
        %3187 = vmatprep.mubr.bf16.mxu0 %v3064
        %3188 = vmatmul.mubr.bf16.gmra.mxu0 %v3063
        %v3189 = vpop.f32.mrf.mxu0
        %v3190 = vadd.f32 %v3150, %v3189
        %v3191 = vpop.f32.mrf.mxu0
        %v3192 = vpop.f32.mrf.mxu0
        %v3193 = vpop.f32.mrf.mxu0
        %3194 = vdwg.mxu0
        %3195 = vmatprep.subr.bf16.mxu0 0
        %3196 = vmatpush1.bf16.xpose.msra.mxu0 0
        %3197 = vmatprep.subr.bf16.mxu0 0
        %3198 = vmatpush1.bf16.xpose.msra.mxu0 0
        %3199 = vmatprep.subr.bf16.mxu0 0
        %3200 = vmatpush1.bf16.xpose.msra.mxu0 0
        %3201 = vmatprep.subr.bf16.mxu0 0
        %3202 = vmatpush1.bf16.xpose.msra.mxu0 0
        %3203 = vmatprep.subr.bf16.mxu0 0
        %3204 = vmatpush1.bf16.xpose.msra.mxu0 0
        %3205 = vmatprep.subr.bf16.mxu0 0
        %3206 = vmatpush1.bf16.xpose.msra.mxu0 0
        %3207 = vmatprep.subr.bf16.mxu0 0
        %3208 = vmatpush1.bf16.xpose.msra.mxu0 0
        %3209 = vmatprep.subr.bf16.mxu0 %v2790
        %3210 = vmatpush1.bf16.xpose.msra.mxu0 %v2789
        %3211 = vmatprep.subr.bf16.mxu0 0
        %3212 = vmatpush2.bf16.xpose.msra.mxu0 0
        %3213 = vmatprep.subr.bf16.mxu0 0
        %3214 = vmatpush2.bf16.xpose.msra.mxu0 0
        %3215 = vmatprep.subr.bf16.mxu0 0
        %3216 = vmatpush2.bf16.xpose.msra.mxu0 0
        %3217 = vmatprep.subr.bf16.mxu0 0
        %3218 = vmatpush2.bf16.xpose.msra.mxu0 0
        %3219 = vmatprep.subr.bf16.mxu0 0
        %3220 = vmatpush2.bf16.xpose.msra.mxu0 0
        %3221 = vmatprep.subr.bf16.mxu0 0
        %3222 = vmatpush2.bf16.xpose.msra.mxu0 0
        %3223 = vmatprep.subr.bf16.mxu0 0
        %3224 = vmatpush2.bf16.xpose.msra.mxu0 0
        %3225 = vmatprep.subr.bf16.mxu0 0
        %3226 = vmatpush2.bf16.xpose.msra.mxu0 0
        %3227 = vmatprep.mubr.bf16.mxu0 %v3066
        %3228 = vmatmul.mubr.bf16.gmra.mxu0 %v3065
        %v3229 = vpop.f32.mrf.mxu0
        %v3230 = vadd.f32 %v3190, %v3229
        %v3231 = vpop.f32.mrf.mxu0
        %v3232 = vpop.f32.mrf.mxu0
        %v3233 = vpop.f32.mrf.mxu0
        %3234 = vdwg.mxu0
        %3236 = vrot.lane.b32.xlu0 %v3230, 8
        %v3237 = vpop.permute.xlu0 %3236
        %v3239 = vsub.f32 %v2753, %v3237
        %v3240 = vsel %vm1320, %v3034, %v2754
        %v3241 = vadd.f32 %v2755, %v3230
        %v3242 = vmul.f32 %v3239, %v3239
        %3244 = vrot.lane.b32.xlu0 %v3242, 120
        %v3245 = vpop.permute.xlu0 %3244
        %v3247 = vadd.f32 %v2761, %v3245
        %s3248 = scalar_lea.vmem [#allocation2], 192
        %v3249 = vld [vmem:[%s3248] sm:$0xff]
        %v3250 = vld [vmem:[%s3248 + $0x8] sm:$0xff]
        %v3251 = vld [vmem:[%s3248 + $0x10] sm:$0xff]
        %v3252 = vld [vmem:[%s3248 + $0x18] sm:$0xff]
        %v3253 = vpack.c.bf16 %v3239, %v3239
        %3255 = vrot.lane.b32.xlu0 %v3253, 120
        %v3256 = vpop.permute.xlu0 %3255
        %v3261 = vunpack.c.l.b16 %v3249
        %v3262 = vunpack.c.h.b16 %v3249
        %v3263 = vunpack.c.l.b16 %v3250
        %v3264 = vunpack.c.h.b16 %v3250
        %v3265 = vunpack.c.l.b16 %v3251
        %v3266 = vunpack.c.h.b16 %v3251
        %v3267 = vunpack.c.l.b16 %v3252
        %v3268 = vunpack.c.h.b16 %v3252
        %v3269 = vpack.c.b16 %v3261, %v3261
        %v3270 = vpack.c.b16 %v3262, %v3262
        %v3271 = vpack.c.b16 %v3263, %v3263
        %v3272 = vpack.c.b16 %v3264, %v3264
        %v3273 = vpack.c.b16 %v3265, %v3265
        %v3274 = vpack.c.b16 %v3266, %v3266
        %v3275 = vpack.c.b16 %v3267, %v3267
        %v3276 = vpack.c.b16 %v3268, %v3268
        %v3278 = vsel %vm397, %v3256, 0
        %v3281 = vsel %vm401, %v3269, 0
        %v3284 = vsel %vm401, %v3270, 0
        %v3287 = vsel %vm401, %v3271, 0
        %v3290 = vsel %vm401, %v3272, 0
        %v3293 = vsel %vm401, %v3273, 0
        %v3296 = vsel %vm401, %v3274, 0
        %v3299 = vsel %vm401, %v3275, 0
        %v3302 = vsel %vm401, %v3276, 0
        %3304 = vmatprep.subr.bf16.mxu0 0
        %3305 = vmatpush1.bf16.msra.mxu0 0
        %3306 = vmatprep.subr.bf16.mxu0 0
        %3307 = vmatpush1.bf16.msra.mxu0 0
        %3308 = vmatprep.subr.bf16.mxu0 0
        %3309 = vmatpush1.bf16.msra.mxu0 0
        %3310 = vmatprep.subr.bf16.mxu0 0
        %3311 = vmatpush1.bf16.msra.mxu0 0
        %3312 = vmatprep.subr.bf16.mxu0 0
        %3313 = vmatpush1.bf16.msra.mxu0 0
        %3314 = vmatprep.subr.bf16.mxu0 0
        %3315 = vmatpush1.bf16.msra.mxu0 0
        %3316 = vmatprep.subr.bf16.mxu0 0
        %3317 = vmatpush1.bf16.msra.mxu0 0
        %3318 = vmatprep.subr.bf16.mxu0 %v3284
        %3319 = vmatpush1.bf16.msra.mxu0 %v3281
        %3320 = vmatprep.subr.bf16.mxu0 0
        %3321 = vmatpush2.bf16.msra.mxu0 0
        %3322 = vmatprep.subr.bf16.mxu0 0
        %3323 = vmatpush2.bf16.msra.mxu0 0
        %3324 = vmatprep.subr.bf16.mxu0 0
        %3325 = vmatpush2.bf16.msra.mxu0 0
        %3326 = vmatprep.subr.bf16.mxu0 0
        %3327 = vmatpush2.bf16.msra.mxu0 0
        %3328 = vmatprep.subr.bf16.mxu0 0
        %3329 = vmatpush2.bf16.msra.mxu0 0
        %3330 = vmatprep.subr.bf16.mxu0 0
        %3331 = vmatpush2.bf16.msra.mxu0 0
        %3332 = vmatprep.subr.bf16.mxu0 0
        %3333 = vmatpush2.bf16.msra.mxu0 0
        %3334 = vmatprep.subr.bf16.mxu0 0
        %3335 = vmatpush2.bf16.msra.mxu0 0
        %3336 = vmatprep.mubr.bf16.mxu0 0
        %3337 = vmatmul.mubr.bf16.gmra.mxu0 %v3278
        %v3338 = vpop.f32.mrf.mxu0
        %v3339 = vadd.f32 0.0, %v3338
        %v3340 = vpop.f32.mrf.mxu0
        %v3341 = vadd.f32 0.0, %v3340
        %v3342 = vpop.f32.mrf.mxu0
        %v3343 = vpop.f32.mrf.mxu0
        %3344 = vdwg.mxu0
        %3345 = vmatprep.subr.bf16.mxu0 0
        %3346 = vmatpush1.bf16.msra.mxu0 0
        %3347 = vmatprep.subr.bf16.mxu0 0
        %3348 = vmatpush1.bf16.msra.mxu0 0
        %3349 = vmatprep.subr.bf16.mxu0 0
        %3350 = vmatpush1.bf16.msra.mxu0 0
        %3351 = vmatprep.subr.bf16.mxu0 0
        %3352 = vmatpush1.bf16.msra.mxu0 0
        %3353 = vmatprep.subr.bf16.mxu0 0
        %3354 = vmatpush1.bf16.msra.mxu0 0
        %3355 = vmatprep.subr.bf16.mxu0 0
        %3356 = vmatpush1.bf16.msra.mxu0 0
        %3357 = vmatprep.subr.bf16.mxu0 0
        %3358 = vmatpush1.bf16.msra.mxu0 0
        %3359 = vmatprep.subr.bf16.mxu0 %v3290
        %3360 = vmatpush1.bf16.msra.mxu0 %v3287
        %3361 = vmatprep.subr.bf16.mxu0 0
        %3362 = vmatpush2.bf16.msra.mxu0 0
        %3363 = vmatprep.subr.bf16.mxu0 0
        %3364 = vmatpush2.bf16.msra.mxu0 0
        %3365 = vmatprep.subr.bf16.mxu0 0
        %3366 = vmatpush2.bf16.msra.mxu0 0
        %3367 = vmatprep.subr.bf16.mxu0 0
        %3368 = vmatpush2.bf16.msra.mxu0 0
        %3369 = vmatprep.subr.bf16.mxu0 0
        %3370 = vmatpush2.bf16.msra.mxu0 0
        %3371 = vmatprep.subr.bf16.mxu0 0
        %3372 = vmatpush2.bf16.msra.mxu0 0
        %3373 = vmatprep.subr.bf16.mxu0 0
        %3374 = vmatpush2.bf16.msra.mxu0 0
        %3375 = vmatprep.subr.bf16.mxu0 0
        %3376 = vmatpush2.bf16.msra.mxu0 0
        %3377 = vmatprep.mubr.bf16.mxu0 0
        %3378 = vmatmul.mubr.bf16.gmra.mxu0 %v3278
        %v3379 = vpop.f32.mrf.mxu0
        %v3380 = vadd.f32 0.0, %v3379
        %v3381 = vpop.f32.mrf.mxu0
        %v3382 = vadd.f32 0.0, %v3381
        %v3383 = vpop.f32.mrf.mxu0
        %v3384 = vpop.f32.mrf.mxu0
        %3385 = vdwg.mxu0
        %3386 = vmatprep.subr.bf16.mxu0 0
        %3387 = vmatpush1.bf16.msra.mxu0 0
        %3388 = vmatprep.subr.bf16.mxu0 0
        %3389 = vmatpush1.bf16.msra.mxu0 0
        %3390 = vmatprep.subr.bf16.mxu0 0
        %3391 = vmatpush1.bf16.msra.mxu0 0
        %3392 = vmatprep.subr.bf16.mxu0 0
        %3393 = vmatpush1.bf16.msra.mxu0 0
        %3394 = vmatprep.subr.bf16.mxu0 0
        %3395 = vmatpush1.bf16.msra.mxu0 0
        %3396 = vmatprep.subr.bf16.mxu0 0
        %3397 = vmatpush1.bf16.msra.mxu0 0
        %3398 = vmatprep.subr.bf16.mxu0 0
        %3399 = vmatpush1.bf16.msra.mxu0 0
        %3400 = vmatprep.subr.bf16.mxu0 %v3296
        %3401 = vmatpush1.bf16.msra.mxu0 %v3293
        %3402 = vmatprep.subr.bf16.mxu0 0
        %3403 = vmatpush2.bf16.msra.mxu0 0
        %3404 = vmatprep.subr.bf16.mxu0 0
        %3405 = vmatpush2.bf16.msra.mxu0 0
        %3406 = vmatprep.subr.bf16.mxu0 0
        %3407 = vmatpush2.bf16.msra.mxu0 0
        %3408 = vmatprep.subr.bf16.mxu0 0
        %3409 = vmatpush2.bf16.msra.mxu0 0
        %3410 = vmatprep.subr.bf16.mxu0 0
        %3411 = vmatpush2.bf16.msra.mxu0 0
        %3412 = vmatprep.subr.bf16.mxu0 0
        %3413 = vmatpush2.bf16.msra.mxu0 0
        %3414 = vmatprep.subr.bf16.mxu0 0
        %3415 = vmatpush2.bf16.msra.mxu0 0
        %3416 = vmatprep.subr.bf16.mxu0 0
        %3417 = vmatpush2.bf16.msra.mxu0 0
        %3418 = vmatprep.mubr.bf16.mxu0 0
        %3419 = vmatmul.mubr.bf16.gmra.mxu0 %v3278
        %v3420 = vpop.f32.mrf.mxu0
        %v3421 = vadd.f32 0.0, %v3420
        %v3422 = vpop.f32.mrf.mxu0
        %v3423 = vadd.f32 0.0, %v3422
        %v3424 = vpop.f32.mrf.mxu0
        %v3425 = vpop.f32.mrf.mxu0
        %3426 = vdwg.mxu0
        %3427 = vmatprep.subr.bf16.mxu0 0
        %3428 = vmatpush1.bf16.msra.mxu0 0
        %3429 = vmatprep.subr.bf16.mxu0 0
        %3430 = vmatpush1.bf16.msra.mxu0 0
        %3431 = vmatprep.subr.bf16.mxu0 0
        %3432 = vmatpush1.bf16.msra.mxu0 0
        %3433 = vmatprep.subr.bf16.mxu0 0
        %3434 = vmatpush1.bf16.msra.mxu0 0
        %3435 = vmatprep.subr.bf16.mxu0 0
        %3436 = vmatpush1.bf16.msra.mxu0 0
        %3437 = vmatprep.subr.bf16.mxu0 0
        %3438 = vmatpush1.bf16.msra.mxu0 0
        %3439 = vmatprep.subr.bf16.mxu0 0
        %3440 = vmatpush1.bf16.msra.mxu0 0
        %3441 = vmatprep.subr.bf16.mxu0 %v3302
        %3442 = vmatpush1.bf16.msra.mxu0 %v3299
        %3443 = vmatprep.subr.bf16.mxu0 0
        %3444 = vmatpush2.bf16.msra.mxu0 0
        %3445 = vmatprep.subr.bf16.mxu0 0
        %3446 = vmatpush2.bf16.msra.mxu0 0
        %3447 = vmatprep.subr.bf16.mxu0 0
        %3448 = vmatpush2.bf16.msra.mxu0 0
        %3449 = vmatprep.subr.bf16.mxu0 0
        %3450 = vmatpush2.bf16.msra.mxu0 0
        %3451 = vmatprep.subr.bf16.mxu0 0
        %3452 = vmatpush2.bf16.msra.mxu0 0
        %3453 = vmatprep.subr.bf16.mxu0 0
        %3454 = vmatpush2.bf16.msra.mxu0 0
        %3455 = vmatprep.subr.bf16.mxu0 0
        %3456 = vmatpush2.bf16.msra.mxu0 0
        %3457 = vmatprep.subr.bf16.mxu0 0
        %3458 = vmatpush2.bf16.msra.mxu0 0
        %3459 = vmatprep.mubr.bf16.mxu0 0
        %3460 = vmatmul.mubr.bf16.gmra.mxu0 %v3278
        %v3461 = vpop.f32.mrf.mxu0
        %v3462 = vadd.f32 0.0, %v3461
        %v3463 = vpop.f32.mrf.mxu0
        %v3464 = vadd.f32 0.0, %v3463
        %v3465 = vpop.f32.mrf.mxu0
        %v3466 = vpop.f32.mrf.mxu0
        %3467 = vdwg.mxu0
        %v3468 = vmax.f32 %v3339, %v3421
        %v3469 = vmax.f32 %v3341, %v3423
        %v3470 = vmax.f32 %v3380, %v3462
        %v3471 = vmax.f32 %v3382, %v3464
        %v3472 = vmax.f32 %v3468, %v3469
        %v3473 = vmax.f32 %v3470, %v3471
        %v3474 = vmax.f32 %v3472, %v3473
        %3475 = vmax.xlane.f32.xlu0 %v3474
        %v3476 = vpop.xlane.xlu0 %3475
        %vm3477 = vcmp.ge.f32.partialorder %v3339, %v3476
        %vm3478 = vcmp.ge.f32.partialorder %v3341, %v3476
        %vm3479 = vcmp.ge.f32.partialorder %v3380, %v3476
        %vm3480 = vcmp.ge.f32.partialorder %v3382, %v3476
        %vm3481 = vcmp.ge.f32.partialorder %v3421, %v3476
        %vm3482 = vcmp.ge.f32.partialorder %v3423, %v3476
        %vm3483 = vcmp.ge.f32.partialorder %v3462, %v3476
        %vm3484 = vcmp.ge.f32.partialorder %v3464, %v3476
        %v3485 = vsel %vm3477, %v364, 1024
        %v3486 = vsel %vm3478, %v365, 1024
        %v3487 = vsel %vm3479, %v366, 1024
        %v3488 = vsel %vm3480, %v367, 1024
        %v3489 = vsel %vm3481, %v368, 1024
        %v3490 = vsel %vm3482, %v369, 1024
        %v3491 = vsel %vm3483, %v370, 1024
        %v3492 = vsel %vm3484, %v371, 1024
        %vm3493 = vcmp.lt.s32.totalorder %v3485, %v3489
        %v3494 = vsel %vm3493, %v3485, %v3489
        %vm3495 = vcmp.lt.s32.totalorder %v3486, %v3490
        %v3496 = vsel %vm3495, %v3486, %v3490
        %vm3497 = vcmp.lt.s32.totalorder %v3487, %v3491
        %v3498 = vsel %vm3497, %v3487, %v3491
        %vm3499 = vcmp.lt.s32.totalorder %v3488, %v3492
        %v3500 = vsel %vm3499, %v3488, %v3492
        %vm3501 = vcmp.lt.s32.totalorder %v3494, %v3496
        %v3502 = vsel %vm3501, %v3494, %v3496
        %vm3503 = vcmp.lt.s32.totalorder %v3498, %v3500
        %v3504 = vsel %vm3503, %v3498, %v3500
        %vm3505 = vcmp.lt.s32.totalorder %v3502, %v3504
        %v3506 = vsel %vm3505, %v3502, %v3504
        %v3507 = vand.u32 %v3506, 65535
        %v3508 = vshra.s32 %v3506, 16
        %v3509 = vcvt.s32.f32 %v3507
        %v3510 = vcvt.s32.f32 %v3508
        %3511 = vmin.xlane.f32.xlu0 %v3510
        %v3512 = vpop.xlane.xlu0 %3511
        %vm3513 = vcmp.eq.f32.partialorder %v3510, %v3512
        %v3514 = vsel %vm3513, %v3509, inf
        %3515 = vmin.xlane.f32.xlu0 %v3514
        %v3516 = vpop.xlane.xlu0 %3515
        %v3517 = vcvt.f32.s32 %v3516
        %v3518 = vcvt.f32.s32 %v3512
        %v3519 = vshll.u32 %v3518, 16
        %v3520 = vadd.s32 %v3519, %v3517
        %vm3521 = vcmp.eq.s32.totalorder %v364, %v3520
        %vm3522 = vcmp.eq.s32.totalorder %v365, %v3520
        %vm3523 = vcmp.eq.s32.totalorder %v366, %v3520
        %vm3524 = vcmp.eq.s32.totalorder %v367, %v3520
        %vm3525 = vcmp.eq.s32.totalorder %v368, %v3520
        %vm3526 = vcmp.eq.s32.totalorder %v369, %v3520
        %vm3527 = vcmp.eq.s32.totalorder %v370, %v3520
        %vm3528 = vcmp.eq.s32.totalorder %v371, %v3520
        %v3529 = vsel %vm3521, 1, 0
        %v3530 = vsel %vm3522, 1, 0
        %v3531 = vsel %vm3523, 1, 0
        %v3532 = vsel %vm3524, 1, 0
        %v3533 = vsel %vm3525, 1, 0
        %v3534 = vsel %vm3526, 1, 0
        %v3535 = vsel %vm3527, 1, 0
        %v3536 = vsel %vm3528, 1, 0
        %v3537 = vcvt.s32.f32 %v3529
        %v3538 = vcvt.s32.f32 %v3530
        %v3539 = vcvt.s32.f32 %v3531
        %v3540 = vcvt.s32.f32 %v3532
        %v3541 = vcvt.s32.f32 %v3533
        %v3542 = vcvt.s32.f32 %v3534
        %v3543 = vcvt.s32.f32 %v3535
        %v3544 = vcvt.s32.f32 %v3536
        %v3545 = vpack.c.bf16 %v3537, %v3537
        %v3546 = vpack.c.bf16 %v3538, %v3538
        %v3547 = vpack.c.bf16 %v3539, %v3539
        %v3548 = vpack.c.bf16 %v3540, %v3540
        %v3549 = vpack.c.bf16 %v3541, %v3541
        %v3550 = vpack.c.bf16 %v3542, %v3542
        %v3551 = vpack.c.bf16 %v3543, %v3543
        %v3552 = vpack.c.bf16 %v3544, %v3544
        %3561 = vmatprep.subr.bf16.mxu0 0
        %3562 = vmatpush1.bf16.xpose.msra.mxu0 0
        %3563 = vmatprep.subr.bf16.mxu0 0
        %3564 = vmatpush1.bf16.xpose.msra.mxu0 0
        %3565 = vmatprep.subr.bf16.mxu0 0
        %3566 = vmatpush1.bf16.xpose.msra.mxu0 0
        %3567 = vmatprep.subr.bf16.mxu0 0
        %3568 = vmatpush1.bf16.xpose.msra.mxu0 0
        %3569 = vmatprep.subr.bf16.mxu0 0
        %3570 = vmatpush1.bf16.xpose.msra.mxu0 0
        %3571 = vmatprep.subr.bf16.mxu0 0
        %3572 = vmatpush1.bf16.xpose.msra.mxu0 0
        %3573 = vmatprep.subr.bf16.mxu0 0
        %3574 = vmatpush1.bf16.xpose.msra.mxu0 0
        %3575 = vmatprep.subr.bf16.mxu0 %v3270
        %3576 = vmatpush1.bf16.xpose.msra.mxu0 %v3269
        %3577 = vmatprep.subr.bf16.mxu0 0
        %3578 = vmatpush2.bf16.xpose.msra.mxu0 0
        %3579 = vmatprep.subr.bf16.mxu0 0
        %3580 = vmatpush2.bf16.xpose.msra.mxu0 0
        %3581 = vmatprep.subr.bf16.mxu0 0
        %3582 = vmatpush2.bf16.xpose.msra.mxu0 0
        %3583 = vmatprep.subr.bf16.mxu0 0
        %3584 = vmatpush2.bf16.xpose.msra.mxu0 0
        %3585 = vmatprep.subr.bf16.mxu0 0
        %3586 = vmatpush2.bf16.xpose.msra.mxu0 0
        %3587 = vmatprep.subr.bf16.mxu0 0
        %3588 = vmatpush2.bf16.xpose.msra.mxu0 0
        %3589 = vmatprep.subr.bf16.mxu0 0
        %3590 = vmatpush2.bf16.xpose.msra.mxu0 0
        %3591 = vmatprep.subr.bf16.mxu0 0
        %3592 = vmatpush2.bf16.xpose.msra.mxu0 0
        %3593 = vmatprep.mubr.bf16.mxu0 %v3546
        %3594 = vmatmul.mubr.bf16.gmra.mxu0 %v3545
        %v3595 = vpop.f32.mrf.mxu0
        %v3596 = vadd.f32 0.0, %v3595
        %v3597 = vpop.f32.mrf.mxu0
        %v3598 = vpop.f32.mrf.mxu0
        %v3599 = vpop.f32.mrf.mxu0
        %3600 = vdwg.mxu0
        %3601 = vmatprep.subr.bf16.mxu0 0
        %3602 = vmatpush1.bf16.xpose.msra.mxu0 0
        %3603 = vmatprep.subr.bf16.mxu0 0
        %3604 = vmatpush1.bf16.xpose.msra.mxu0 0
        %3605 = vmatprep.subr.bf16.mxu0 0
        %3606 = vmatpush1.bf16.xpose.msra.mxu0 0
        %3607 = vmatprep.subr.bf16.mxu0 0
        %3608 = vmatpush1.bf16.xpose.msra.mxu0 0
        %3609 = vmatprep.subr.bf16.mxu0 0
        %3610 = vmatpush1.bf16.xpose.msra.mxu0 0
        %3611 = vmatprep.subr.bf16.mxu0 0
        %3612 = vmatpush1.bf16.xpose.msra.mxu0 0
        %3613 = vmatprep.subr.bf16.mxu0 0
        %3614 = vmatpush1.bf16.xpose.msra.mxu0 0
        %3615 = vmatprep.subr.bf16.mxu0 %v3272
        %3616 = vmatpush1.bf16.xpose.msra.mxu0 %v3271
        %3617 = vmatprep.subr.bf16.mxu0 0
        %3618 = vmatpush2.bf16.xpose.msra.mxu0 0
        %3619 = vmatprep.subr.bf16.mxu0 0
        %3620 = vmatpush2.bf16.xpose.msra.mxu0 0
        %3621 = vmatprep.subr.bf16.mxu0 0
        %3622 = vmatpush2.bf16.xpose.msra.mxu0 0
        %3623 = vmatprep.subr.bf16.mxu0 0
        %3624 = vmatpush2.bf16.xpose.msra.mxu0 0
        %3625 = vmatprep.subr.bf16.mxu0 0
        %3626 = vmatpush2.bf16.xpose.msra.mxu0 0
        %3627 = vmatprep.subr.bf16.mxu0 0
        %3628 = vmatpush2.bf16.xpose.msra.mxu0 0
        %3629 = vmatprep.subr.bf16.mxu0 0
        %3630 = vmatpush2.bf16.xpose.msra.mxu0 0
        %3631 = vmatprep.subr.bf16.mxu0 0
        %3632 = vmatpush2.bf16.xpose.msra.mxu0 0
        %3633 = vmatprep.mubr.bf16.mxu0 %v3548
        %3634 = vmatmul.mubr.bf16.gmra.mxu0 %v3547
        %v3635 = vpop.f32.mrf.mxu0
        %v3636 = vadd.f32 %v3596, %v3635
        %v3637 = vpop.f32.mrf.mxu0
        %v3638 = vpop.f32.mrf.mxu0
        %v3639 = vpop.f32.mrf.mxu0
        %3640 = vdwg.mxu0
        %3641 = vmatprep.subr.bf16.mxu0 0
        %3642 = vmatpush1.bf16.xpose.msra.mxu0 0
        %3643 = vmatprep.subr.bf16.mxu0 0
        %3644 = vmatpush1.bf16.xpose.msra.mxu0 0
        %3645 = vmatprep.subr.bf16.mxu0 0
        %3646 = vmatpush1.bf16.xpose.msra.mxu0 0
        %3647 = vmatprep.subr.bf16.mxu0 0
        %3648 = vmatpush1.bf16.xpose.msra.mxu0 0
        %3649 = vmatprep.subr.bf16.mxu0 0
        %3650 = vmatpush1.bf16.xpose.msra.mxu0 0
        %3651 = vmatprep.subr.bf16.mxu0 0
        %3652 = vmatpush1.bf16.xpose.msra.mxu0 0
        %3653 = vmatprep.subr.bf16.mxu0 0
        %3654 = vmatpush1.bf16.xpose.msra.mxu0 0
        %3655 = vmatprep.subr.bf16.mxu0 %v3274
        %3656 = vmatpush1.bf16.xpose.msra.mxu0 %v3273
        %3657 = vmatprep.subr.bf16.mxu0 0
        %3658 = vmatpush2.bf16.xpose.msra.mxu0 0
        %3659 = vmatprep.subr.bf16.mxu0 0
        %3660 = vmatpush2.bf16.xpose.msra.mxu0 0
        %3661 = vmatprep.subr.bf16.mxu0 0
        %3662 = vmatpush2.bf16.xpose.msra.mxu0 0
        %3663 = vmatprep.subr.bf16.mxu0 0
        %3664 = vmatpush2.bf16.xpose.msra.mxu0 0
        %3665 = vmatprep.subr.bf16.mxu0 0
        %3666 = vmatpush2.bf16.xpose.msra.mxu0 0
        %3667 = vmatprep.subr.bf16.mxu0 0
        %3668 = vmatpush2.bf16.xpose.msra.mxu0 0
        %3669 = vmatprep.subr.bf16.mxu0 0
        %3670 = vmatpush2.bf16.xpose.msra.mxu0 0
        %3671 = vmatprep.subr.bf16.mxu0 0
        %3672 = vmatpush2.bf16.xpose.msra.mxu0 0
        %3673 = vmatprep.mubr.bf16.mxu0 %v3550
        %3674 = vmatmul.mubr.bf16.gmra.mxu0 %v3549
        %v3675 = vpop.f32.mrf.mxu0
        %v3676 = vadd.f32 %v3636, %v3675
        %v3677 = vpop.f32.mrf.mxu0
        %v3678 = vpop.f32.mrf.mxu0
        %v3679 = vpop.f32.mrf.mxu0
        %3680 = vdwg.mxu0
        %3681 = vmatprep.subr.bf16.mxu0 0
        %3682 = vmatpush1.bf16.xpose.msra.mxu0 0
        %3683 = vmatprep.subr.bf16.mxu0 0
        %3684 = vmatpush1.bf16.xpose.msra.mxu0 0
        %3685 = vmatprep.subr.bf16.mxu0 0
        %3686 = vmatpush1.bf16.xpose.msra.mxu0 0
        %3687 = vmatprep.subr.bf16.mxu0 0
        %3688 = vmatpush1.bf16.xpose.msra.mxu0 0
        %3689 = vmatprep.subr.bf16.mxu0 0
        %3690 = vmatpush1.bf16.xpose.msra.mxu0 0
        %3691 = vmatprep.subr.bf16.mxu0 0
        %3692 = vmatpush1.bf16.xpose.msra.mxu0 0
        %3693 = vmatprep.subr.bf16.mxu0 0
        %3694 = vmatpush1.bf16.xpose.msra.mxu0 0
        %3695 = vmatprep.subr.bf16.mxu0 %v3276
        %3696 = vmatpush1.bf16.xpose.msra.mxu0 %v3275
        %3697 = vmatprep.subr.bf16.mxu0 0
        %3698 = vmatpush2.bf16.xpose.msra.mxu0 0
        %3699 = vmatprep.subr.bf16.mxu0 0
        %3700 = vmatpush2.bf16.xpose.msra.mxu0 0
        %3701 = vmatprep.subr.bf16.mxu0 0
        %3702 = vmatpush2.bf16.xpose.msra.mxu0 0
        %3703 = vmatprep.subr.bf16.mxu0 0
        %3704 = vmatpush2.bf16.xpose.msra.mxu0 0
        %3705 = vmatprep.subr.bf16.mxu0 0
        %3706 = vmatpush2.bf16.xpose.msra.mxu0 0
        %3707 = vmatprep.subr.bf16.mxu0 0
        %3708 = vmatpush2.bf16.xpose.msra.mxu0 0
        %3709 = vmatprep.subr.bf16.mxu0 0
        %3710 = vmatpush2.bf16.xpose.msra.mxu0 0
        %3711 = vmatprep.subr.bf16.mxu0 0
        %3712 = vmatpush2.bf16.xpose.msra.mxu0 0
        %3713 = vmatprep.mubr.bf16.mxu0 %v3552
        %3714 = vmatmul.mubr.bf16.gmra.mxu0 %v3551
        %v3715 = vpop.f32.mrf.mxu0
        %v3716 = vadd.f32 %v3676, %v3715
        %v3717 = vpop.f32.mrf.mxu0
        %v3718 = vpop.f32.mrf.mxu0
        %v3719 = vpop.f32.mrf.mxu0
        %3720 = vdwg.mxu0
        %3722 = vrot.lane.b32.xlu0 %v3716, 8
        %v3723 = vpop.permute.xlu0 %3722
        %v3725 = vsub.f32 %v3239, %v3723
        %v3726 = vsel %vm1796, %v3520, %v3240
        %v3727 = vadd.f32 %v3241, %v3716
        %v3728 = vmul.f32 %v3725, %v3725
        %3730 = vrot.lane.b32.xlu0 %v3728, 120
        %v3731 = vpop.permute.xlu0 %3730
        %v3733 = vadd.f32 %v3247, %v3731
        %s3734 = scalar_lea.vmem [#allocation2], 224
        %v3735 = vld [vmem:[%s3734] sm:$0xff]
        %v3736 = vld [vmem:[%s3734 + $0x8] sm:$0xff]
        %v3737 = vld [vmem:[%s3734 + $0x10] sm:$0xff]
        %v3738 = vld [vmem:[%s3734 + $0x18] sm:$0xff]
        %v3739 = vpack.c.bf16 %v3725, %v3725
        %3741 = vrot.lane.b32.xlu0 %v3739, 120
        %v3742 = vpop.permute.xlu0 %3741
        %v3747 = vunpack.c.l.b16 %v3735
        %v3748 = vunpack.c.h.b16 %v3735
        %v3749 = vunpack.c.l.b16 %v3736
        %v3750 = vunpack.c.h.b16 %v3736
        %v3751 = vunpack.c.l.b16 %v3737
        %v3752 = vunpack.c.h.b16 %v3737
        %v3753 = vunpack.c.l.b16 %v3738
        %v3754 = vunpack.c.h.b16 %v3738
        %v3755 = vpack.c.b16 %v3747, %v3747
        %v3756 = vpack.c.b16 %v3748, %v3748
        %v3757 = vpack.c.b16 %v3749, %v3749
        %v3758 = vpack.c.b16 %v3750, %v3750
        %v3759 = vpack.c.b16 %v3751, %v3751
        %v3760 = vpack.c.b16 %v3752, %v3752
        %v3761 = vpack.c.b16 %v3753, %v3753
        %v3762 = vpack.c.b16 %v3754, %v3754
        %v3764 = vsel %vm397, %v3742, 0
        %v3767 = vsel %vm401, %v3755, 0
        %v3770 = vsel %vm401, %v3756, 0
        %v3773 = vsel %vm401, %v3757, 0
        %v3776 = vsel %vm401, %v3758, 0
        %v3779 = vsel %vm401, %v3759, 0
        %v3782 = vsel %vm401, %v3760, 0
        %v3785 = vsel %vm401, %v3761, 0
        %v3788 = vsel %vm401, %v3762, 0
        %3790 = vmatprep.subr.bf16.mxu0 0
        %3791 = vmatpush1.bf16.msra.mxu0 0
        %3792 = vmatprep.subr.bf16.mxu0 0
        %3793 = vmatpush1.bf16.msra.mxu0 0
        %3794 = vmatprep.subr.bf16.mxu0 0
        %3795 = vmatpush1.bf16.msra.mxu0 0
        %3796 = vmatprep.subr.bf16.mxu0 0
        %3797 = vmatpush1.bf16.msra.mxu0 0
        %3798 = vmatprep.subr.bf16.mxu0 0
        %3799 = vmatpush1.bf16.msra.mxu0 0
        %3800 = vmatprep.subr.bf16.mxu0 0
        %3801 = vmatpush1.bf16.msra.mxu0 0
        %3802 = vmatprep.subr.bf16.mxu0 0
        %3803 = vmatpush1.bf16.msra.mxu0 0
        %3804 = vmatprep.subr.bf16.mxu0 %v3770
        %3805 = vmatpush1.bf16.msra.mxu0 %v3767
        %3806 = vmatprep.subr.bf16.mxu0 0
        %3807 = vmatpush2.bf16.msra.mxu0 0
        %3808 = vmatprep.subr.bf16.mxu0 0
        %3809 = vmatpush2.bf16.msra.mxu0 0
        %3810 = vmatprep.subr.bf16.mxu0 0
        %3811 = vmatpush2.bf16.msra.mxu0 0
        %3812 = vmatprep.subr.bf16.mxu0 0
        %3813 = vmatpush2.bf16.msra.mxu0 0
        %3814 = vmatprep.subr.bf16.mxu0 0
        %3815 = vmatpush2.bf16.msra.mxu0 0
        %3816 = vmatprep.subr.bf16.mxu0 0
        %3817 = vmatpush2.bf16.msra.mxu0 0
        %3818 = vmatprep.subr.bf16.mxu0 0
        %3819 = vmatpush2.bf16.msra.mxu0 0
        %3820 = vmatprep.subr.bf16.mxu0 0
        %3821 = vmatpush2.bf16.msra.mxu0 0
        %3822 = vmatprep.mubr.bf16.mxu0 0
        %3823 = vmatmul.mubr.bf16.gmra.mxu0 %v3764
        %v3824 = vpop.f32.mrf.mxu0
        %v3825 = vadd.f32 0.0, %v3824
        %v3826 = vpop.f32.mrf.mxu0
        %v3827 = vadd.f32 0.0, %v3826
        %v3828 = vpop.f32.mrf.mxu0
        %v3829 = vpop.f32.mrf.mxu0
        %3830 = vdwg.mxu0
        %3831 = vmatprep.subr.bf16.mxu0 0
        %3832 = vmatpush1.bf16.msra.mxu0 0
        %3833 = vmatprep.subr.bf16.mxu0 0
        %3834 = vmatpush1.bf16.msra.mxu0 0
        %3835 = vmatprep.subr.bf16.mxu0 0
        %3836 = vmatpush1.bf16.msra.mxu0 0
        %3837 = vmatprep.subr.bf16.mxu0 0
        %3838 = vmatpush1.bf16.msra.mxu0 0
        %3839 = vmatprep.subr.bf16.mxu0 0
        %3840 = vmatpush1.bf16.msra.mxu0 0
        %3841 = vmatprep.subr.bf16.mxu0 0
        %3842 = vmatpush1.bf16.msra.mxu0 0
        %3843 = vmatprep.subr.bf16.mxu0 0
        %3844 = vmatpush1.bf16.msra.mxu0 0
        %3845 = vmatprep.subr.bf16.mxu0 %v3776
        %3846 = vmatpush1.bf16.msra.mxu0 %v3773
        %3847 = vmatprep.subr.bf16.mxu0 0
        %3848 = vmatpush2.bf16.msra.mxu0 0
        %3849 = vmatprep.subr.bf16.mxu0 0
        %3850 = vmatpush2.bf16.msra.mxu0 0
        %3851 = vmatprep.subr.bf16.mxu0 0
        %3852 = vmatpush2.bf16.msra.mxu0 0
        %3853 = vmatprep.subr.bf16.mxu0 0
        %3854 = vmatpush2.bf16.msra.mxu0 0
        %3855 = vmatprep.subr.bf16.mxu0 0
        %3856 = vmatpush2.bf16.msra.mxu0 0
        %3857 = vmatprep.subr.bf16.mxu0 0
        %3858 = vmatpush2.bf16.msra.mxu0 0
        %3859 = vmatprep.subr.bf16.mxu0 0
        %3860 = vmatpush2.bf16.msra.mxu0 0
        %3861 = vmatprep.subr.bf16.mxu0 0
        %3862 = vmatpush2.bf16.msra.mxu0 0
        %3863 = vmatprep.mubr.bf16.mxu0 0
        %3864 = vmatmul.mubr.bf16.gmra.mxu0 %v3764
        %v3865 = vpop.f32.mrf.mxu0
        %v3866 = vadd.f32 0.0, %v3865
        %v3867 = vpop.f32.mrf.mxu0
        %v3868 = vadd.f32 0.0, %v3867
        %v3869 = vpop.f32.mrf.mxu0
        %v3870 = vpop.f32.mrf.mxu0
        %3871 = vdwg.mxu0
        %3872 = vmatprep.subr.bf16.mxu0 0
        %3873 = vmatpush1.bf16.msra.mxu0 0
        %3874 = vmatprep.subr.bf16.mxu0 0
        %3875 = vmatpush1.bf16.msra.mxu0 0
        %3876 = vmatprep.subr.bf16.mxu0 0
        %3877 = vmatpush1.bf16.msra.mxu0 0
        %3878 = vmatprep.subr.bf16.mxu0 0
        %3879 = vmatpush1.bf16.msra.mxu0 0
        %3880 = vmatprep.subr.bf16.mxu0 0
        %3881 = vmatpush1.bf16.msra.mxu0 0
        %3882 = vmatprep.subr.bf16.mxu0 0
        %3883 = vmatpush1.bf16.msra.mxu0 0
        %3884 = vmatprep.subr.bf16.mxu0 0
        %3885 = vmatpush1.bf16.msra.mxu0 0
        %3886 = vmatprep.subr.bf16.mxu0 %v3782
        %3887 = vmatpush1.bf16.msra.mxu0 %v3779
        %3888 = vmatprep.subr.bf16.mxu0 0
        %3889 = vmatpush2.bf16.msra.mxu0 0
        %3890 = vmatprep.subr.bf16.mxu0 0
        %3891 = vmatpush2.bf16.msra.mxu0 0
        %3892 = vmatprep.subr.bf16.mxu0 0
        %3893 = vmatpush2.bf16.msra.mxu0 0
        %3894 = vmatprep.subr.bf16.mxu0 0
        %3895 = vmatpush2.bf16.msra.mxu0 0
        %3896 = vmatprep.subr.bf16.mxu0 0
        %3897 = vmatpush2.bf16.msra.mxu0 0
        %3898 = vmatprep.subr.bf16.mxu0 0
        %3899 = vmatpush2.bf16.msra.mxu0 0
        %3900 = vmatprep.subr.bf16.mxu0 0
        %3901 = vmatpush2.bf16.msra.mxu0 0
        %3902 = vmatprep.subr.bf16.mxu0 0
        %3903 = vmatpush2.bf16.msra.mxu0 0
        %3904 = vmatprep.mubr.bf16.mxu0 0
        %3905 = vmatmul.mubr.bf16.gmra.mxu0 %v3764
        %v3906 = vpop.f32.mrf.mxu0
        %v3907 = vadd.f32 0.0, %v3906
        %v3908 = vpop.f32.mrf.mxu0
        %v3909 = vadd.f32 0.0, %v3908
        %v3910 = vpop.f32.mrf.mxu0
        %v3911 = vpop.f32.mrf.mxu0
        %3912 = vdwg.mxu0
        %3913 = vmatprep.subr.bf16.mxu0 0
        %3914 = vmatpush1.bf16.msra.mxu0 0
        %3915 = vmatprep.subr.bf16.mxu0 0
        %3916 = vmatpush1.bf16.msra.mxu0 0
        %3917 = vmatprep.subr.bf16.mxu0 0
        %3918 = vmatpush1.bf16.msra.mxu0 0
        %3919 = vmatprep.subr.bf16.mxu0 0
        %3920 = vmatpush1.bf16.msra.mxu0 0
        %3921 = vmatprep.subr.bf16.mxu0 0
        %3922 = vmatpush1.bf16.msra.mxu0 0
        %3923 = vmatprep.subr.bf16.mxu0 0
        %3924 = vmatpush1.bf16.msra.mxu0 0
        %3925 = vmatprep.subr.bf16.mxu0 0
        %3926 = vmatpush1.bf16.msra.mxu0 0
        %3927 = vmatprep.subr.bf16.mxu0 %v3788
        %3928 = vmatpush1.bf16.msra.mxu0 %v3785
        %3929 = vmatprep.subr.bf16.mxu0 0
        %3930 = vmatpush2.bf16.msra.mxu0 0
        %3931 = vmatprep.subr.bf16.mxu0 0
        %3932 = vmatpush2.bf16.msra.mxu0 0
        %3933 = vmatprep.subr.bf16.mxu0 0
        %3934 = vmatpush2.bf16.msra.mxu0 0
        %3935 = vmatprep.subr.bf16.mxu0 0
        %3936 = vmatpush2.bf16.msra.mxu0 0
        %3937 = vmatprep.subr.bf16.mxu0 0
        %3938 = vmatpush2.bf16.msra.mxu0 0
        %3939 = vmatprep.subr.bf16.mxu0 0
        %3940 = vmatpush2.bf16.msra.mxu0 0
        %3941 = vmatprep.subr.bf16.mxu0 0
        %3942 = vmatpush2.bf16.msra.mxu0 0
        %3943 = vmatprep.subr.bf16.mxu0 0
        %3944 = vmatpush2.bf16.msra.mxu0 0
        %3945 = vmatprep.mubr.bf16.mxu0 0
        %3946 = vmatmul.mubr.bf16.gmra.mxu0 %v3764
        %v3947 = vpop.f32.mrf.mxu0
        %v3948 = vadd.f32 0.0, %v3947
        %v3949 = vpop.f32.mrf.mxu0
        %v3950 = vadd.f32 0.0, %v3949
        %v3951 = vpop.f32.mrf.mxu0
        %v3952 = vpop.f32.mrf.mxu0
        %3953 = vdwg.mxu0
        %v3954 = vmax.f32 %v3825, %v3907
        %v3955 = vmax.f32 %v3827, %v3909
        %v3956 = vmax.f32 %v3866, %v3948
        %v3957 = vmax.f32 %v3868, %v3950
        %v3958 = vmax.f32 %v3954, %v3955
        %v3959 = vmax.f32 %v3956, %v3957
        %v3960 = vmax.f32 %v3958, %v3959
        %3961 = vmax.xlane.f32.xlu0 %v3960
        %v3962 = vpop.xlane.xlu0 %3961
        %vm3963 = vcmp.ge.f32.partialorder %v3825, %v3962
        %vm3964 = vcmp.ge.f32.partialorder %v3827, %v3962
        %vm3965 = vcmp.ge.f32.partialorder %v3866, %v3962
        %vm3966 = vcmp.ge.f32.partialorder %v3868, %v3962
        %vm3967 = vcmp.ge.f32.partialorder %v3907, %v3962
        %vm3968 = vcmp.ge.f32.partialorder %v3909, %v3962
        %vm3969 = vcmp.ge.f32.partialorder %v3948, %v3962
        %vm3970 = vcmp.ge.f32.partialorder %v3950, %v3962
        %v3971 = vsel %vm3963, %v364, 1024
        %v3972 = vsel %vm3964, %v365, 1024
        %v3973 = vsel %vm3965, %v366, 1024
        %v3974 = vsel %vm3966, %v367, 1024
        %v3975 = vsel %vm3967, %v368, 1024
        %v3976 = vsel %vm3968, %v369, 1024
        %v3977 = vsel %vm3969, %v370, 1024
        %v3978 = vsel %vm3970, %v371, 1024
        %vm3979 = vcmp.lt.s32.totalorder %v3971, %v3975
        %v3980 = vsel %vm3979, %v3971, %v3975
        %vm3981 = vcmp.lt.s32.totalorder %v3972, %v3976
        %v3982 = vsel %vm3981, %v3972, %v3976
        %vm3983 = vcmp.lt.s32.totalorder %v3973, %v3977
        %v3984 = vsel %vm3983, %v3973, %v3977
        %vm3985 = vcmp.lt.s32.totalorder %v3974, %v3978
        %v3986 = vsel %vm3985, %v3974, %v3978
        %vm3987 = vcmp.lt.s32.totalorder %v3980, %v3982
        %v3988 = vsel %vm3987, %v3980, %v3982
        %vm3989 = vcmp.lt.s32.totalorder %v3984, %v3986
        %v3990 = vsel %vm3989, %v3984, %v3986
        %vm3991 = vcmp.lt.s32.totalorder %v3988, %v3990
        %v3992 = vsel %vm3991, %v3988, %v3990
        %v3993 = vand.u32 %v3992, 65535
        %v3994 = vshra.s32 %v3992, 16
        %v3995 = vcvt.s32.f32 %v3993
        %v3996 = vcvt.s32.f32 %v3994
        %3997 = vmin.xlane.f32.xlu0 %v3996
        %v3998 = vpop.xlane.xlu0 %3997
        %vm3999 = vcmp.eq.f32.partialorder %v3996, %v3998
        %v4000 = vsel %vm3999, %v3995, inf
        %4001 = vmin.xlane.f32.xlu0 %v4000
        %v4002 = vpop.xlane.xlu0 %4001
        %v4003 = vcvt.f32.s32 %v4002
        %v4004 = vcvt.f32.s32 %v3998
        %v4005 = vshll.u32 %v4004, 16
        %v4006 = vadd.s32 %v4005, %v4003
        %vm4007 = vcmp.eq.s32.totalorder %v364, %v4006
        %vm4008 = vcmp.eq.s32.totalorder %v365, %v4006
        %vm4009 = vcmp.eq.s32.totalorder %v366, %v4006
        %vm4010 = vcmp.eq.s32.totalorder %v367, %v4006
        %vm4011 = vcmp.eq.s32.totalorder %v368, %v4006
        %vm4012 = vcmp.eq.s32.totalorder %v369, %v4006
        %vm4013 = vcmp.eq.s32.totalorder %v370, %v4006
        %vm4014 = vcmp.eq.s32.totalorder %v371, %v4006
        %v4015 = vsel %vm4007, 1, 0
        %v4016 = vsel %vm4008, 1, 0
        %v4017 = vsel %vm4009, 1, 0
        %v4018 = vsel %vm4010, 1, 0
        %v4019 = vsel %vm4011, 1, 0
        %v4020 = vsel %vm4012, 1, 0
        %v4021 = vsel %vm4013, 1, 0
        %v4022 = vsel %vm4014, 1, 0
        %v4023 = vcvt.s32.f32 %v4015
        %v4024 = vcvt.s32.f32 %v4016
        %v4025 = vcvt.s32.f32 %v4017
        %v4026 = vcvt.s32.f32 %v4018
        %v4027 = vcvt.s32.f32 %v4019
        %v4028 = vcvt.s32.f32 %v4020
        %v4029 = vcvt.s32.f32 %v4021
        %v4030 = vcvt.s32.f32 %v4022
        %v4031 = vpack.c.bf16 %v4023, %v4023
        %v4032 = vpack.c.bf16 %v4024, %v4024
        %v4033 = vpack.c.bf16 %v4025, %v4025
        %v4034 = vpack.c.bf16 %v4026, %v4026
        %v4035 = vpack.c.bf16 %v4027, %v4027
        %v4036 = vpack.c.bf16 %v4028, %v4028
        %v4037 = vpack.c.bf16 %v4029, %v4029
        %v4038 = vpack.c.bf16 %v4030, %v4030
        %4047 = vmatprep.subr.bf16.mxu0 0
        %4048 = vmatpush1.bf16.xpose.msra.mxu0 0
        %4049 = vmatprep.subr.bf16.mxu0 0
        %4050 = vmatpush1.bf16.xpose.msra.mxu0 0
        %4051 = vmatprep.subr.bf16.mxu0 0
        %4052 = vmatpush1.bf16.xpose.msra.mxu0 0
        %4053 = vmatprep.subr.bf16.mxu0 0
        %4054 = vmatpush1.bf16.xpose.msra.mxu0 0
        %4055 = vmatprep.subr.bf16.mxu0 0
        %4056 = vmatpush1.bf16.xpose.msra.mxu0 0
        %4057 = vmatprep.subr.bf16.mxu0 0
        %4058 = vmatpush1.bf16.xpose.msra.mxu0 0
        %4059 = vmatprep.subr.bf16.mxu0 0
        %4060 = vmatpush1.bf16.xpose.msra.mxu0 0
        %4061 = vmatprep.subr.bf16.mxu0 %v3756
        %4062 = vmatpush1.bf16.xpose.msra.mxu0 %v3755
        %4063 = vmatprep.subr.bf16.mxu0 0
        %4064 = vmatpush2.bf16.xpose.msra.mxu0 0
        %4065 = vmatprep.subr.bf16.mxu0 0
        %4066 = vmatpush2.bf16.xpose.msra.mxu0 0
        %4067 = vmatprep.subr.bf16.mxu0 0
        %4068 = vmatpush2.bf16.xpose.msra.mxu0 0
        %4069 = vmatprep.subr.bf16.mxu0 0
        %4070 = vmatpush2.bf16.xpose.msra.mxu0 0
        %4071 = vmatprep.subr.bf16.mxu0 0
        %4072 = vmatpush2.bf16.xpose.msra.mxu0 0
        %4073 = vmatprep.subr.bf16.mxu0 0
        %4074 = vmatpush2.bf16.xpose.msra.mxu0 0
        %4075 = vmatprep.subr.bf16.mxu0 0
        %4076 = vmatpush2.bf16.xpose.msra.mxu0 0
        %4077 = vmatprep.subr.bf16.mxu0 0
        %4078 = vmatpush2.bf16.xpose.msra.mxu0 0
        %4079 = vmatprep.mubr.bf16.mxu0 %v4032
        %4080 = vmatmul.mubr.bf16.gmra.mxu0 %v4031
        %v4081 = vpop.f32.mrf.mxu0
        %v4082 = vadd.f32 0.0, %v4081
        %v4083 = vpop.f32.mrf.mxu0
        %v4084 = vpop.f32.mrf.mxu0
        %v4085 = vpop.f32.mrf.mxu0
        %4086 = vdwg.mxu0
        %4087 = vmatprep.subr.bf16.mxu0 0
        %4088 = vmatpush1.bf16.xpose.msra.mxu0 0
        %4089 = vmatprep.subr.bf16.mxu0 0
        %4090 = vmatpush1.bf16.xpose.msra.mxu0 0
        %4091 = vmatprep.subr.bf16.mxu0 0
        %4092 = vmatpush1.bf16.xpose.msra.mxu0 0
        %4093 = vmatprep.subr.bf16.mxu0 0
        %4094 = vmatpush1.bf16.xpose.msra.mxu0 0
        %4095 = vmatprep.subr.bf16.mxu0 0
        %4096 = vmatpush1.bf16.xpose.msra.mxu0 0
        %4097 = vmatprep.subr.bf16.mxu0 0
        %4098 = vmatpush1.bf16.xpose.msra.mxu0 0
        %4099 = vmatprep.subr.bf16.mxu0 0
        %4100 = vmatpush1.bf16.xpose.msra.mxu0 0
        %4101 = vmatprep.subr.bf16.mxu0 %v3758
        %4102 = vmatpush1.bf16.xpose.msra.mxu0 %v3757
        %4103 = vmatprep.subr.bf16.mxu0 0
        %4104 = vmatpush2.bf16.xpose.msra.mxu0 0
        %4105 = vmatprep.subr.bf16.mxu0 0
        %4106 = vmatpush2.bf16.xpose.msra.mxu0 0
        %4107 = vmatprep.subr.bf16.mxu0 0
        %4108 = vmatpush2.bf16.xpose.msra.mxu0 0
        %4109 = vmatprep.subr.bf16.mxu0 0
        %4110 = vmatpush2.bf16.xpose.msra.mxu0 0
        %4111 = vmatprep.subr.bf16.mxu0 0
        %4112 = vmatpush2.bf16.xpose.msra.mxu0 0
        %4113 = vmatprep.subr.bf16.mxu0 0
        %4114 = vmatpush2.bf16.xpose.msra.mxu0 0
        %4115 = vmatprep.subr.bf16.mxu0 0
        %4116 = vmatpush2.bf16.xpose.msra.mxu0 0
        %4117 = vmatprep.subr.bf16.mxu0 0
        %4118 = vmatpush2.bf16.xpose.msra.mxu0 0
        %4119 = vmatprep.mubr.bf16.mxu0 %v4034
        %4120 = vmatmul.mubr.bf16.gmra.mxu0 %v4033
        %v4121 = vpop.f32.mrf.mxu0
        %v4122 = vadd.f32 %v4082, %v4121
        %v4123 = vpop.f32.mrf.mxu0
        %v4124 = vpop.f32.mrf.mxu0
        %v4125 = vpop.f32.mrf.mxu0
        %4126 = vdwg.mxu0
        %4127 = vmatprep.subr.bf16.mxu0 0
        %4128 = vmatpush1.bf16.xpose.msra.mxu0 0
        %4129 = vmatprep.subr.bf16.mxu0 0
        %4130 = vmatpush1.bf16.xpose.msra.mxu0 0
        %4131 = vmatprep.subr.bf16.mxu0 0
        %4132 = vmatpush1.bf16.xpose.msra.mxu0 0
        %4133 = vmatprep.subr.bf16.mxu0 0
        %4134 = vmatpush1.bf16.xpose.msra.mxu0 0
        %4135 = vmatprep.subr.bf16.mxu0 0
        %4136 = vmatpush1.bf16.xpose.msra.mxu0 0
        %4137 = vmatprep.subr.bf16.mxu0 0
        %4138 = vmatpush1.bf16.xpose.msra.mxu0 0
        %4139 = vmatprep.subr.bf16.mxu0 0
        %4140 = vmatpush1.bf16.xpose.msra.mxu0 0
        %4141 = vmatprep.subr.bf16.mxu0 %v3760
        %4142 = vmatpush1.bf16.xpose.msra.mxu0 %v3759
        %4143 = vmatprep.subr.bf16.mxu0 0
        %4144 = vmatpush2.bf16.xpose.msra.mxu0 0
        %4145 = vmatprep.subr.bf16.mxu0 0
        %4146 = vmatpush2.bf16.xpose.msra.mxu0 0
        %4147 = vmatprep.subr.bf16.mxu0 0
        %4148 = vmatpush2.bf16.xpose.msra.mxu0 0
        %4149 = vmatprep.subr.bf16.mxu0 0
        %4150 = vmatpush2.bf16.xpose.msra.mxu0 0
        %4151 = vmatprep.subr.bf16.mxu0 0
        %4152 = vmatpush2.bf16.xpose.msra.mxu0 0
        %4153 = vmatprep.subr.bf16.mxu0 0
        %4154 = vmatpush2.bf16.xpose.msra.mxu0 0
        %4155 = vmatprep.subr.bf16.mxu0 0
        %4156 = vmatpush2.bf16.xpose.msra.mxu0 0
        %4157 = vmatprep.subr.bf16.mxu0 0
        %4158 = vmatpush2.bf16.xpose.msra.mxu0 0
        %4159 = vmatprep.mubr.bf16.mxu0 %v4036
        %4160 = vmatmul.mubr.bf16.gmra.mxu0 %v4035
        %v4161 = vpop.f32.mrf.mxu0
        %v4162 = vadd.f32 %v4122, %v4161
        %v4163 = vpop.f32.mrf.mxu0
        %v4164 = vpop.f32.mrf.mxu0
        %v4165 = vpop.f32.mrf.mxu0
        %4166 = vdwg.mxu0
        %4167 = vmatprep.subr.bf16.mxu0 0
        %4168 = vmatpush1.bf16.xpose.msra.mxu0 0
        %4169 = vmatprep.subr.bf16.mxu0 0
        %4170 = vmatpush1.bf16.xpose.msra.mxu0 0
        %4171 = vmatprep.subr.bf16.mxu0 0
        %4172 = vmatpush1.bf16.xpose.msra.mxu0 0
        %4173 = vmatprep.subr.bf16.mxu0 0
        %4174 = vmatpush1.bf16.xpose.msra.mxu0 0
        %4175 = vmatprep.subr.bf16.mxu0 0
        %4176 = vmatpush1.bf16.xpose.msra.mxu0 0
        %4177 = vmatprep.subr.bf16.mxu0 0
        %4178 = vmatpush1.bf16.xpose.msra.mxu0 0
        %4179 = vmatprep.subr.bf16.mxu0 0
        %4180 = vmatpush1.bf16.xpose.msra.mxu0 0
        %4181 = vmatprep.subr.bf16.mxu0 %v3762
        %4182 = vmatpush1.bf16.xpose.msra.mxu0 %v3761
        %4183 = vmatprep.subr.bf16.mxu0 0
        %4184 = vmatpush2.bf16.xpose.msra.mxu0 0
        %4185 = vmatprep.subr.bf16.mxu0 0
        %4186 = vmatpush2.bf16.xpose.msra.mxu0 0
        %4187 = vmatprep.subr.bf16.mxu0 0
        %4188 = vmatpush2.bf16.xpose.msra.mxu0 0
        %4189 = vmatprep.subr.bf16.mxu0 0
        %4190 = vmatpush2.bf16.xpose.msra.mxu0 0
        %4191 = vmatprep.subr.bf16.mxu0 0
        %4192 = vmatpush2.bf16.xpose.msra.mxu0 0
        %4193 = vmatprep.subr.bf16.mxu0 0
        %4194 = vmatpush2.bf16.xpose.msra.mxu0 0
        %4195 = vmatprep.subr.bf16.mxu0 0
        %4196 = vmatpush2.bf16.xpose.msra.mxu0 0
        %4197 = vmatprep.subr.bf16.mxu0 0
        %4198 = vmatpush2.bf16.xpose.msra.mxu0 0
        %4199 = vmatprep.mubr.bf16.mxu0 %v4038
        %4200 = vmatmul.mubr.bf16.gmra.mxu0 %v4037
        %v4201 = vpop.f32.mrf.mxu0
        %v4202 = vadd.f32 %v4162, %v4201
        %v4203 = vpop.f32.mrf.mxu0
        %v4204 = vpop.f32.mrf.mxu0
        %v4205 = vpop.f32.mrf.mxu0
        %4206 = vdwg.mxu0
        %4208 = vrot.lane.b32.xlu0 %v4202, 8
        %v4209 = vpop.permute.xlu0 %4208
        %v4211 = vsub.f32 %v3725, %v4209
        %v4212 = vsel %vm2272, %v4006, %v3726
        %v4213 = vadd.f32 %v3727, %v4202
        %v4214 = vmul.f32 %v4211, %v4211
        %4216 = vrot.lane.b32.xlu0 %v4214, 120
        %v4217 = vpop.permute.xlu0 %4216
        %v4219 = vadd.f32 %v3733, %v4217
        %s4220 = scalar_lea.vmem [#allocation2], 256
        %v4221 = vld [vmem:[%s4220] sm:$0xff]
        %v4222 = vld [vmem:[%s4220 + $0x8] sm:$0xff]
        %v4223 = vld [vmem:[%s4220 + $0x10] sm:$0xff]
        %v4224 = vld [vmem:[%s4220 + $0x18] sm:$0xff]
        %4225 = vrot.lane.b32.xlu0 %v376, 112
        %v4226 = vpop.permute.xlu0 %4225
        %v4231 = vunpack.c.l.b16 %v4221
        %v4232 = vunpack.c.h.b16 %v4221
        %v4233 = vunpack.c.l.b16 %v4222
        %v4234 = vunpack.c.h.b16 %v4222
        %v4235 = vunpack.c.l.b16 %v4223
        %v4236 = vunpack.c.h.b16 %v4223
        %v4237 = vunpack.c.l.b16 %v4224
        %v4238 = vunpack.c.h.b16 %v4224
        %v4239 = vpack.c.b16 %v4231, %v4231
        %v4240 = vpack.c.b16 %v4232, %v4232
        %v4241 = vpack.c.b16 %v4233, %v4233
        %v4242 = vpack.c.b16 %v4234, %v4234
        %v4243 = vpack.c.b16 %v4235, %v4235
        %v4244 = vpack.c.b16 %v4236, %v4236
        %v4245 = vpack.c.b16 %v4237, %v4237
        %v4246 = vpack.c.b16 %v4238, %v4238
        %v4248 = vsel %vm397, %v4226, 0
        %v4251 = vsel %vm401, %v4239, 0
        %v4254 = vsel %vm401, %v4240, 0
        %v4257 = vsel %vm401, %v4241, 0
        %v4260 = vsel %vm401, %v4242, 0
        %v4263 = vsel %vm401, %v4243, 0
        %v4266 = vsel %vm401, %v4244, 0
        %v4269 = vsel %vm401, %v4245, 0
        %v4272 = vsel %vm401, %v4246, 0
        %4274 = vmatprep.subr.bf16.mxu0 0
        %4275 = vmatpush1.bf16.msra.mxu0 0
        %4276 = vmatprep.subr.bf16.mxu0 0
        %4277 = vmatpush1.bf16.msra.mxu0 0
        %4278 = vmatprep.subr.bf16.mxu0 0
        %4279 = vmatpush1.bf16.msra.mxu0 0
        %4280 = vmatprep.subr.bf16.mxu0 0
        %4281 = vmatpush1.bf16.msra.mxu0 0
        %4282 = vmatprep.subr.bf16.mxu0 0
        %4283 = vmatpush1.bf16.msra.mxu0 0
        %4284 = vmatprep.subr.bf16.mxu0 0
        %4285 = vmatpush1.bf16.msra.mxu0 0
        %4286 = vmatprep.subr.bf16.mxu0 0
        %4287 = vmatpush1.bf16.msra.mxu0 0
        %4288 = vmatprep.subr.bf16.mxu0 %v4254
        %4289 = vmatpush1.bf16.msra.mxu0 %v4251
        %4290 = vmatprep.subr.bf16.mxu0 0
        %4291 = vmatpush2.bf16.msra.mxu0 0
        %4292 = vmatprep.subr.bf16.mxu0 0
        %4293 = vmatpush2.bf16.msra.mxu0 0
        %4294 = vmatprep.subr.bf16.mxu0 0
        %4295 = vmatpush2.bf16.msra.mxu0 0
        %4296 = vmatprep.subr.bf16.mxu0 0
        %4297 = vmatpush2.bf16.msra.mxu0 0
        %4298 = vmatprep.subr.bf16.mxu0 0
        %4299 = vmatpush2.bf16.msra.mxu0 0
        %4300 = vmatprep.subr.bf16.mxu0 0
        %4301 = vmatpush2.bf16.msra.mxu0 0
        %4302 = vmatprep.subr.bf16.mxu0 0
        %4303 = vmatpush2.bf16.msra.mxu0 0
        %4304 = vmatprep.subr.bf16.mxu0 0
        %4305 = vmatpush2.bf16.msra.mxu0 0
        %4306 = vmatprep.mubr.bf16.mxu0 0
        %4307 = vmatmul.mubr.bf16.gmra.mxu0 %v4248
        %v4308 = vpop.f32.mrf.mxu0
        %v4309 = vadd.f32 0.0, %v4308
        %v4310 = vpop.f32.mrf.mxu0
        %v4311 = vadd.f32 0.0, %v4310
        %v4312 = vpop.f32.mrf.mxu0
        %v4313 = vpop.f32.mrf.mxu0
        %4314 = vdwg.mxu0
        %4315 = vmatprep.subr.bf16.mxu0 0
        %4316 = vmatpush1.bf16.msra.mxu0 0
        %4317 = vmatprep.subr.bf16.mxu0 0
        %4318 = vmatpush1.bf16.msra.mxu0 0
        %4319 = vmatprep.subr.bf16.mxu0 0
        %4320 = vmatpush1.bf16.msra.mxu0 0
        %4321 = vmatprep.subr.bf16.mxu0 0
        %4322 = vmatpush1.bf16.msra.mxu0 0
        %4323 = vmatprep.subr.bf16.mxu0 0
        %4324 = vmatpush1.bf16.msra.mxu0 0
        %4325 = vmatprep.subr.bf16.mxu0 0
        %4326 = vmatpush1.bf16.msra.mxu0 0
        %4327 = vmatprep.subr.bf16.mxu0 0
        %4328 = vmatpush1.bf16.msra.mxu0 0
        %4329 = vmatprep.subr.bf16.mxu0 %v4260
        %4330 = vmatpush1.bf16.msra.mxu0 %v4257
        %4331 = vmatprep.subr.bf16.mxu0 0
        %4332 = vmatpush2.bf16.msra.mxu0 0
        %4333 = vmatprep.subr.bf16.mxu0 0
        %4334 = vmatpush2.bf16.msra.mxu0 0
        %4335 = vmatprep.subr.bf16.mxu0 0
        %4336 = vmatpush2.bf16.msra.mxu0 0
        %4337 = vmatprep.subr.bf16.mxu0 0
        %4338 = vmatpush2.bf16.msra.mxu0 0
        %4339 = vmatprep.subr.bf16.mxu0 0
        %4340 = vmatpush2.bf16.msra.mxu0 0
        %4341 = vmatprep.subr.bf16.mxu0 0
        %4342 = vmatpush2.bf16.msra.mxu0 0
        %4343 = vmatprep.subr.bf16.mxu0 0
        %4344 = vmatpush2.bf16.msra.mxu0 0
        %4345 = vmatprep.subr.bf16.mxu0 0
        %4346 = vmatpush2.bf16.msra.mxu0 0
        %4347 = vmatprep.mubr.bf16.mxu0 0
        %4348 = vmatmul.mubr.bf16.gmra.mxu0 %v4248
        %v4349 = vpop.f32.mrf.mxu0
        %v4350 = vadd.f32 0.0, %v4349
        %v4351 = vpop.f32.mrf.mxu0
        %v4352 = vadd.f32 0.0, %v4351
        %v4353 = vpop.f32.mrf.mxu0
        %v4354 = vpop.f32.mrf.mxu0
        %4355 = vdwg.mxu0
        %4356 = vmatprep.subr.bf16.mxu0 0
        %4357 = vmatpush1.bf16.msra.mxu0 0
        %4358 = vmatprep.subr.bf16.mxu0 0
        %4359 = vmatpush1.bf16.msra.mxu0 0
        %4360 = vmatprep.subr.bf16.mxu0 0
        %4361 = vmatpush1.bf16.msra.mxu0 0
        %4362 = vmatprep.subr.bf16.mxu0 0
        %4363 = vmatpush1.bf16.msra.mxu0 0
        %4364 = vmatprep.subr.bf16.mxu0 0
        %4365 = vmatpush1.bf16.msra.mxu0 0
        %4366 = vmatprep.subr.bf16.mxu0 0
        %4367 = vmatpush1.bf16.msra.mxu0 0
        %4368 = vmatprep.subr.bf16.mxu0 0
        %4369 = vmatpush1.bf16.msra.mxu0 0
        %4370 = vmatprep.subr.bf16.mxu0 %v4266
        %4371 = vmatpush1.bf16.msra.mxu0 %v4263
        %4372 = vmatprep.subr.bf16.mxu0 0
        %4373 = vmatpush2.bf16.msra.mxu0 0
        %4374 = vmatprep.subr.bf16.mxu0 0
        %4375 = vmatpush2.bf16.msra.mxu0 0
        %4376 = vmatprep.subr.bf16.mxu0 0
        %4377 = vmatpush2.bf16.msra.mxu0 0
        %4378 = vmatprep.subr.bf16.mxu0 0
        %4379 = vmatpush2.bf16.msra.mxu0 0
        %4380 = vmatprep.subr.bf16.mxu0 0
        %4381 = vmatpush2.bf16.msra.mxu0 0
        %4382 = vmatprep.subr.bf16.mxu0 0
        %4383 = vmatpush2.bf16.msra.mxu0 0
        %4384 = vmatprep.subr.bf16.mxu0 0
        %4385 = vmatpush2.bf16.msra.mxu0 0
        %4386 = vmatprep.subr.bf16.mxu0 0
        %4387 = vmatpush2.bf16.msra.mxu0 0
        %4388 = vmatprep.mubr.bf16.mxu0 0
        %4389 = vmatmul.mubr.bf16.gmra.mxu0 %v4248
        %v4390 = vpop.f32.mrf.mxu0
        %v4391 = vadd.f32 0.0, %v4390
        %v4392 = vpop.f32.mrf.mxu0
        %v4393 = vadd.f32 0.0, %v4392
        %v4394 = vpop.f32.mrf.mxu0
        %v4395 = vpop.f32.mrf.mxu0
        %4396 = vdwg.mxu0
        %4397 = vmatprep.subr.bf16.mxu0 0
        %4398 = vmatpush1.bf16.msra.mxu0 0
        %4399 = vmatprep.subr.bf16.mxu0 0
        %4400 = vmatpush1.bf16.msra.mxu0 0
        %4401 = vmatprep.subr.bf16.mxu0 0
        %4402 = vmatpush1.bf16.msra.mxu0 0
        %4403 = vmatprep.subr.bf16.mxu0 0
        %4404 = vmatpush1.bf16.msra.mxu0 0
        %4405 = vmatprep.subr.bf16.mxu0 0
        %4406 = vmatpush1.bf16.msra.mxu0 0
        %4407 = vmatprep.subr.bf16.mxu0 0
        %4408 = vmatpush1.bf16.msra.mxu0 0
        %4409 = vmatprep.subr.bf16.mxu0 0
        %4410 = vmatpush1.bf16.msra.mxu0 0
        %4411 = vmatprep.subr.bf16.mxu0 %v4272
        %4412 = vmatpush1.bf16.msra.mxu0 %v4269
        %4413 = vmatprep.subr.bf16.mxu0 0
        %4414 = vmatpush2.bf16.msra.mxu0 0
        %4415 = vmatprep.subr.bf16.mxu0 0
        %4416 = vmatpush2.bf16.msra.mxu0 0
        %4417 = vmatprep.subr.bf16.mxu0 0
        %4418 = vmatpush2.bf16.msra.mxu0 0
        %4419 = vmatprep.subr.bf16.mxu0 0
        %4420 = vmatpush2.bf16.msra.mxu0 0
        %4421 = vmatprep.subr.bf16.mxu0 0
        %4422 = vmatpush2.bf16.msra.mxu0 0
        %4423 = vmatprep.subr.bf16.mxu0 0
        %4424 = vmatpush2.bf16.msra.mxu0 0
        %4425 = vmatprep.subr.bf16.mxu0 0
        %4426 = vmatpush2.bf16.msra.mxu0 0
        %4427 = vmatprep.subr.bf16.mxu0 0
        %4428 = vmatpush2.bf16.msra.mxu0 0
        %4429 = vmatprep.mubr.bf16.mxu0 0
        %4430 = vmatmul.mubr.bf16.gmra.mxu0 %v4248
        %v4431 = vpop.f32.mrf.mxu0
        %v4432 = vadd.f32 0.0, %v4431
        %v4433 = vpop.f32.mrf.mxu0
        %v4434 = vadd.f32 0.0, %v4433
        %v4435 = vpop.f32.mrf.mxu0
        %v4436 = vpop.f32.mrf.mxu0
        %4437 = vdwg.mxu0
        %v4438 = vmax.f32 %v4309, %v4391
        %v4439 = vmax.f32 %v4311, %v4393
        %v4440 = vmax.f32 %v4350, %v4432
        %v4441 = vmax.f32 %v4352, %v4434
        %v4442 = vmax.f32 %v4438, %v4439
        %v4443 = vmax.f32 %v4440, %v4441
        %v4444 = vmax.f32 %v4442, %v4443
        %4445 = vmax.xlane.f32.xlu0 %v4444
        %v4446 = vpop.xlane.xlu0 %4445
        %vm4447 = vcmp.ge.f32.partialorder %v4309, %v4446
        %vm4448 = vcmp.ge.f32.partialorder %v4311, %v4446
        %vm4449 = vcmp.ge.f32.partialorder %v4350, %v4446
        %vm4450 = vcmp.ge.f32.partialorder %v4352, %v4446
        %vm4451 = vcmp.ge.f32.partialorder %v4391, %v4446
        %vm4452 = vcmp.ge.f32.partialorder %v4393, %v4446
        %vm4453 = vcmp.ge.f32.partialorder %v4432, %v4446
        %vm4454 = vcmp.ge.f32.partialorder %v4434, %v4446
        %v4455 = vsel %vm4447, %v364, 1024
        %v4456 = vsel %vm4448, %v365, 1024
        %v4457 = vsel %vm4449, %v366, 1024
        %v4458 = vsel %vm4450, %v367, 1024
        %v4459 = vsel %vm4451, %v368, 1024
        %v4460 = vsel %vm4452, %v369, 1024
        %v4461 = vsel %vm4453, %v370, 1024
        %v4462 = vsel %vm4454, %v371, 1024
        %vm4463 = vcmp.lt.s32.totalorder %v4455, %v4459
        %v4464 = vsel %vm4463, %v4455, %v4459
        %vm4465 = vcmp.lt.s32.totalorder %v4456, %v4460
        %v4466 = vsel %vm4465, %v4456, %v4460
        %vm4467 = vcmp.lt.s32.totalorder %v4457, %v4461
        %v4468 = vsel %vm4467, %v4457, %v4461
        %vm4469 = vcmp.lt.s32.totalorder %v4458, %v4462
        %v4470 = vsel %vm4469, %v4458, %v4462
        %vm4471 = vcmp.lt.s32.totalorder %v4464, %v4466
        %v4472 = vsel %vm4471, %v4464, %v4466
        %vm4473 = vcmp.lt.s32.totalorder %v4468, %v4470
        %v4474 = vsel %vm4473, %v4468, %v4470
        %vm4475 = vcmp.lt.s32.totalorder %v4472, %v4474
        %v4476 = vsel %vm4475, %v4472, %v4474
        %v4477 = vand.u32 %v4476, 65535
        %v4478 = vshra.s32 %v4476, 16
        %v4479 = vcvt.s32.f32 %v4477
        %v4480 = vcvt.s32.f32 %v4478
        %4481 = vmin.xlane.f32.xlu0 %v4480
        %v4482 = vpop.xlane.xlu0 %4481
        %vm4483 = vcmp.eq.f32.partialorder %v4480, %v4482
        %v4484 = vsel %vm4483, %v4479, inf
        %4485 = vmin.xlane.f32.xlu0 %v4484
        %v4486 = vpop.xlane.xlu0 %4485
        %v4487 = vcvt.f32.s32 %v4486
        %v4488 = vcvt.f32.s32 %v4482
        %v4489 = vshll.u32 %v4488, 16
        %v4490 = vadd.s32 %v4489, %v4487
        %vm4491 = vcmp.eq.s32.totalorder %v364, %v4490
        %vm4492 = vcmp.eq.s32.totalorder %v365, %v4490
        %vm4493 = vcmp.eq.s32.totalorder %v366, %v4490
        %vm4494 = vcmp.eq.s32.totalorder %v367, %v4490
        %vm4495 = vcmp.eq.s32.totalorder %v368, %v4490
        %vm4496 = vcmp.eq.s32.totalorder %v369, %v4490
        %vm4497 = vcmp.eq.s32.totalorder %v370, %v4490
        %vm4498 = vcmp.eq.s32.totalorder %v371, %v4490
        %v4499 = vsel %vm4491, 1, 0
        %v4500 = vsel %vm4492, 1, 0
        %v4501 = vsel %vm4493, 1, 0
        %v4502 = vsel %vm4494, 1, 0
        %v4503 = vsel %vm4495, 1, 0
        %v4504 = vsel %vm4496, 1, 0
        %v4505 = vsel %vm4497, 1, 0
        %v4506 = vsel %vm4498, 1, 0
        %v4507 = vcvt.s32.f32 %v4499
        %v4508 = vcvt.s32.f32 %v4500
        %v4509 = vcvt.s32.f32 %v4501
        %v4510 = vcvt.s32.f32 %v4502
        %v4511 = vcvt.s32.f32 %v4503
        %v4512 = vcvt.s32.f32 %v4504
        %v4513 = vcvt.s32.f32 %v4505
        %v4514 = vcvt.s32.f32 %v4506
        %v4515 = vpack.c.bf16 %v4507, %v4507
        %v4516 = vpack.c.bf16 %v4508, %v4508
        %v4517 = vpack.c.bf16 %v4509, %v4509
        %v4518 = vpack.c.bf16 %v4510, %v4510
        %v4519 = vpack.c.bf16 %v4511, %v4511
        %v4520 = vpack.c.bf16 %v4512, %v4512
        %v4521 = vpack.c.bf16 %v4513, %v4513
        %v4522 = vpack.c.bf16 %v4514, %v4514
        %4531 = vmatprep.subr.bf16.mxu0 0
        %4532 = vmatpush1.bf16.xpose.msra.mxu0 0
        %4533 = vmatprep.subr.bf16.mxu0 0
        %4534 = vmatpush1.bf16.xpose.msra.mxu0 0
        %4535 = vmatprep.subr.bf16.mxu0 0
        %4536 = vmatpush1.bf16.xpose.msra.mxu0 0
        %4537 = vmatprep.subr.bf16.mxu0 0
        %4538 = vmatpush1.bf16.xpose.msra.mxu0 0
        %4539 = vmatprep.subr.bf16.mxu0 0
        %4540 = vmatpush1.bf16.xpose.msra.mxu0 0
        %4541 = vmatprep.subr.bf16.mxu0 0
        %4542 = vmatpush1.bf16.xpose.msra.mxu0 0
        %4543 = vmatprep.subr.bf16.mxu0 0
        %4544 = vmatpush1.bf16.xpose.msra.mxu0 0
        %4545 = vmatprep.subr.bf16.mxu0 %v4240
        %4546 = vmatpush1.bf16.xpose.msra.mxu0 %v4239
        %4547 = vmatprep.subr.bf16.mxu0 0
        %4548 = vmatpush2.bf16.xpose.msra.mxu0 0
        %4549 = vmatprep.subr.bf16.mxu0 0
        %4550 = vmatpush2.bf16.xpose.msra.mxu0 0
        %4551 = vmatprep.subr.bf16.mxu0 0
        %4552 = vmatpush2.bf16.xpose.msra.mxu0 0
        %4553 = vmatprep.subr.bf16.mxu0 0
        %4554 = vmatpush2.bf16.xpose.msra.mxu0 0
        %4555 = vmatprep.subr.bf16.mxu0 0
        %4556 = vmatpush2.bf16.xpose.msra.mxu0 0
        %4557 = vmatprep.subr.bf16.mxu0 0
        %4558 = vmatpush2.bf16.xpose.msra.mxu0 0
        %4559 = vmatprep.subr.bf16.mxu0 0
        %4560 = vmatpush2.bf16.xpose.msra.mxu0 0
        %4561 = vmatprep.subr.bf16.mxu0 0
        %4562 = vmatpush2.bf16.xpose.msra.mxu0 0
        %4563 = vmatprep.mubr.bf16.mxu0 %v4516
        %4564 = vmatmul.mubr.bf16.gmra.mxu0 %v4515
        %v4565 = vpop.f32.mrf.mxu0
        %v4566 = vadd.f32 0.0, %v4565
        %v4567 = vpop.f32.mrf.mxu0
        %v4568 = vpop.f32.mrf.mxu0
        %v4569 = vpop.f32.mrf.mxu0
        %4570 = vdwg.mxu0
        %4571 = vmatprep.subr.bf16.mxu0 0
        %4572 = vmatpush1.bf16.xpose.msra.mxu0 0
        %4573 = vmatprep.subr.bf16.mxu0 0
        %4574 = vmatpush1.bf16.xpose.msra.mxu0 0
        %4575 = vmatprep.subr.bf16.mxu0 0
        %4576 = vmatpush1.bf16.xpose.msra.mxu0 0
        %4577 = vmatprep.subr.bf16.mxu0 0
        %4578 = vmatpush1.bf16.xpose.msra.mxu0 0
        %4579 = vmatprep.subr.bf16.mxu0 0
        %4580 = vmatpush1.bf16.xpose.msra.mxu0 0
        %4581 = vmatprep.subr.bf16.mxu0 0
        %4582 = vmatpush1.bf16.xpose.msra.mxu0 0
        %4583 = vmatprep.subr.bf16.mxu0 0
        %4584 = vmatpush1.bf16.xpose.msra.mxu0 0
        %4585 = vmatprep.subr.bf16.mxu0 %v4242
        %4586 = vmatpush1.bf16.xpose.msra.mxu0 %v4241
        %4587 = vmatprep.subr.bf16.mxu0 0
        %4588 = vmatpush2.bf16.xpose.msra.mxu0 0
        %4589 = vmatprep.subr.bf16.mxu0 0
        %4590 = vmatpush2.bf16.xpose.msra.mxu0 0
        %4591 = vmatprep.subr.bf16.mxu0 0
        %4592 = vmatpush2.bf16.xpose.msra.mxu0 0
        %4593 = vmatprep.subr.bf16.mxu0 0
        %4594 = vmatpush2.bf16.xpose.msra.mxu0 0
        %4595 = vmatprep.subr.bf16.mxu0 0
        %4596 = vmatpush2.bf16.xpose.msra.mxu0 0
        %4597 = vmatprep.subr.bf16.mxu0 0
        %4598 = vmatpush2.bf16.xpose.msra.mxu0 0
        %4599 = vmatprep.subr.bf16.mxu0 0
        %4600 = vmatpush2.bf16.xpose.msra.mxu0 0
        %4601 = vmatprep.subr.bf16.mxu0 0
        %4602 = vmatpush2.bf16.xpose.msra.mxu0 0
        %4603 = vmatprep.mubr.bf16.mxu0 %v4518
        %4604 = vmatmul.mubr.bf16.gmra.mxu0 %v4517
        %v4605 = vpop.f32.mrf.mxu0
        %v4606 = vadd.f32 %v4566, %v4605
        %v4607 = vpop.f32.mrf.mxu0
        %v4608 = vpop.f32.mrf.mxu0
        %v4609 = vpop.f32.mrf.mxu0
        %4610 = vdwg.mxu0
        %4611 = vmatprep.subr.bf16.mxu0 0
        %4612 = vmatpush1.bf16.xpose.msra.mxu0 0
        %4613 = vmatprep.subr.bf16.mxu0 0
        %4614 = vmatpush1.bf16.xpose.msra.mxu0 0
        %4615 = vmatprep.subr.bf16.mxu0 0
        %4616 = vmatpush1.bf16.xpose.msra.mxu0 0
        %4617 = vmatprep.subr.bf16.mxu0 0
        %4618 = vmatpush1.bf16.xpose.msra.mxu0 0
        %4619 = vmatprep.subr.bf16.mxu0 0
        %4620 = vmatpush1.bf16.xpose.msra.mxu0 0
        %4621 = vmatprep.subr.bf16.mxu0 0
        %4622 = vmatpush1.bf16.xpose.msra.mxu0 0
        %4623 = vmatprep.subr.bf16.mxu0 0
        %4624 = vmatpush1.bf16.xpose.msra.mxu0 0
        %4625 = vmatprep.subr.bf16.mxu0 %v4244
        %4626 = vmatpush1.bf16.xpose.msra.mxu0 %v4243
        %4627 = vmatprep.subr.bf16.mxu0 0
        %4628 = vmatpush2.bf16.xpose.msra.mxu0 0
        %4629 = vmatprep.subr.bf16.mxu0 0
        %4630 = vmatpush2.bf16.xpose.msra.mxu0 0
        %4631 = vmatprep.subr.bf16.mxu0 0
        %4632 = vmatpush2.bf16.xpose.msra.mxu0 0
        %4633 = vmatprep.subr.bf16.mxu0 0
        %4634 = vmatpush2.bf16.xpose.msra.mxu0 0
        %4635 = vmatprep.subr.bf16.mxu0 0
        %4636 = vmatpush2.bf16.xpose.msra.mxu0 0
        %4637 = vmatprep.subr.bf16.mxu0 0
        %4638 = vmatpush2.bf16.xpose.msra.mxu0 0
        %4639 = vmatprep.subr.bf16.mxu0 0
        %4640 = vmatpush2.bf16.xpose.msra.mxu0 0
        %4641 = vmatprep.subr.bf16.mxu0 0
        %4642 = vmatpush2.bf16.xpose.msra.mxu0 0
        %4643 = vmatprep.mubr.bf16.mxu0 %v4520
        %4644 = vmatmul.mubr.bf16.gmra.mxu0 %v4519
        %v4645 = vpop.f32.mrf.mxu0
        %v4646 = vadd.f32 %v4606, %v4645
        %v4647 = vpop.f32.mrf.mxu0
        %v4648 = vpop.f32.mrf.mxu0
        %v4649 = vpop.f32.mrf.mxu0
        %4650 = vdwg.mxu0
        %4651 = vmatprep.subr.bf16.mxu0 0
        %4652 = vmatpush1.bf16.xpose.msra.mxu0 0
        %4653 = vmatprep.subr.bf16.mxu0 0
        %4654 = vmatpush1.bf16.xpose.msra.mxu0 0
        %4655 = vmatprep.subr.bf16.mxu0 0
        %4656 = vmatpush1.bf16.xpose.msra.mxu0 0
        %4657 = vmatprep.subr.bf16.mxu0 0
        %4658 = vmatpush1.bf16.xpose.msra.mxu0 0
        %4659 = vmatprep.subr.bf16.mxu0 0
        %4660 = vmatpush1.bf16.xpose.msra.mxu0 0
        %4661 = vmatprep.subr.bf16.mxu0 0
        %4662 = vmatpush1.bf16.xpose.msra.mxu0 0
        %4663 = vmatprep.subr.bf16.mxu0 0
        %4664 = vmatpush1.bf16.xpose.msra.mxu0 0
        %4665 = vmatprep.subr.bf16.mxu0 %v4246
        %4666 = vmatpush1.bf16.xpose.msra.mxu0 %v4245
        %4667 = vmatprep.subr.bf16.mxu0 0
        %4668 = vmatpush2.bf16.xpose.msra.mxu0 0
        %4669 = vmatprep.subr.bf16.mxu0 0
        %4670 = vmatpush2.bf16.xpose.msra.mxu0 0
        %4671 = vmatprep.subr.bf16.mxu0 0
        %4672 = vmatpush2.bf16.xpose.msra.mxu0 0
        %4673 = vmatprep.subr.bf16.mxu0 0
        %4674 = vmatpush2.bf16.xpose.msra.mxu0 0
        %4675 = vmatprep.subr.bf16.mxu0 0
        %4676 = vmatpush2.bf16.xpose.msra.mxu0 0
        %4677 = vmatprep.subr.bf16.mxu0 0
        %4678 = vmatpush2.bf16.xpose.msra.mxu0 0
        %4679 = vmatprep.subr.bf16.mxu0 0
        %4680 = vmatpush2.bf16.xpose.msra.mxu0 0
        %4681 = vmatprep.subr.bf16.mxu0 0
        %4682 = vmatpush2.bf16.xpose.msra.mxu0 0
        %4683 = vmatprep.mubr.bf16.mxu0 %v4522
        %4684 = vmatmul.mubr.bf16.gmra.mxu0 %v4521
        %v4685 = vpop.f32.mrf.mxu0
        %v4686 = vadd.f32 %v4646, %v4685
        %v4687 = vpop.f32.mrf.mxu0
        %v4688 = vpop.f32.mrf.mxu0
        %v4689 = vpop.f32.mrf.mxu0
        %4690 = vdwg.mxu0
        %4692 = vrot.lane.b32.xlu0 %v4686, 16
        %v4693 = vpop.permute.xlu0 %4692
        %v4695 = vsub.f32 %v360, %v4693
        %v4696 = vsel %vm844, %v4490, 0
        %v4697 = vadd.f32 %v4686, 0.0
        %v4698 = vmul.f32 %v4695, %v4695
        %4700 = vrot.lane.b32.xlu0 %v4698, 112
        %v4701 = vpop.permute.xlu0 %4700
        %v4703 = vadd.f32 %v4219, %v4701
        %s4704 = scalar_lea.vmem [#allocation2], 288
        %v4705 = vld [vmem:[%s4704] sm:$0xff]
        %v4706 = vld [vmem:[%s4704 + $0x8] sm:$0xff]
        %v4707 = vld [vmem:[%s4704 + $0x10] sm:$0xff]
        %v4708 = vld [vmem:[%s4704 + $0x18] sm:$0xff]
        %v4709 = vpack.c.bf16 %v4695, %v4695
        %4711 = vrot.lane.b32.xlu0 %v4709, 112
        %v4712 = vpop.permute.xlu0 %4711
        %v4717 = vunpack.c.l.b16 %v4705
        %v4718 = vunpack.c.h.b16 %v4705
        %v4719 = vunpack.c.l.b16 %v4706
        %v4720 = vunpack.c.h.b16 %v4706
        %v4721 = vunpack.c.l.b16 %v4707
        %v4722 = vunpack.c.h.b16 %v4707
        %v4723 = vunpack.c.l.b16 %v4708
        %v4724 = vunpack.c.h.b16 %v4708
        %v4725 = vpack.c.b16 %v4717, %v4717
        %v4726 = vpack.c.b16 %v4718, %v4718
        %v4727 = vpack.c.b16 %v4719, %v4719
        %v4728 = vpack.c.b16 %v4720, %v4720
        %v4729 = vpack.c.b16 %v4721, %v4721
        %v4730 = vpack.c.b16 %v4722, %v4722
        %v4731 = vpack.c.b16 %v4723, %v4723
        %v4732 = vpack.c.b16 %v4724, %v4724
        %v4734 = vsel %vm397, %v4712, 0
        %v4737 = vsel %vm401, %v4725, 0
        %v4740 = vsel %vm401, %v4726, 0
        %v4743 = vsel %vm401, %v4727, 0
        %v4746 = vsel %vm401, %v4728, 0
        %v4749 = vsel %vm401, %v4729, 0
        %v4752 = vsel %vm401, %v4730, 0
        %v4755 = vsel %vm401, %v4731, 0
        %v4758 = vsel %vm401, %v4732, 0
        %4760 = vmatprep.subr.bf16.mxu0 0
        %4761 = vmatpush1.bf16.msra.mxu0 0
        %4762 = vmatprep.subr.bf16.mxu0 0
        %4763 = vmatpush1.bf16.msra.mxu0 0
        %4764 = vmatprep.subr.bf16.mxu0 0
        %4765 = vmatpush1.bf16.msra.mxu0 0
        %4766 = vmatprep.subr.bf16.mxu0 0
        %4767 = vmatpush1.bf16.msra.mxu0 0
        %4768 = vmatprep.subr.bf16.mxu0 0
        %4769 = vmatpush1.bf16.msra.mxu0 0
        %4770 = vmatprep.subr.bf16.mxu0 0
        %4771 = vmatpush1.bf16.msra.mxu0 0
        %4772 = vmatprep.subr.bf16.mxu0 0
        %4773 = vmatpush1.bf16.msra.mxu0 0
        %4774 = vmatprep.subr.bf16.mxu0 %v4740
        %4775 = vmatpush1.bf16.msra.mxu0 %v4737
        %4776 = vmatprep.subr.bf16.mxu0 0
        %4777 = vmatpush2.bf16.msra.mxu0 0
        %4778 = vmatprep.subr.bf16.mxu0 0
        %4779 = vmatpush2.bf16.msra.mxu0 0
        %4780 = vmatprep.subr.bf16.mxu0 0
        %4781 = vmatpush2.bf16.msra.mxu0 0
        %4782 = vmatprep.subr.bf16.mxu0 0
        %4783 = vmatpush2.bf16.msra.mxu0 0
        %4784 = vmatprep.subr.bf16.mxu0 0
        %4785 = vmatpush2.bf16.msra.mxu0 0
        %4786 = vmatprep.subr.bf16.mxu0 0
        %4787 = vmatpush2.bf16.msra.mxu0 0
        %4788 = vmatprep.subr.bf16.mxu0 0
        %4789 = vmatpush2.bf16.msra.mxu0 0
        %4790 = vmatprep.subr.bf16.mxu0 0
        %4791 = vmatpush2.bf16.msra.mxu0 0
        %4792 = vmatprep.mubr.bf16.mxu0 0
        %4793 = vmatmul.mubr.bf16.gmra.mxu0 %v4734
        %v4794 = vpop.f32.mrf.mxu0
        %v4795 = vadd.f32 0.0, %v4794
        %v4796 = vpop.f32.mrf.mxu0
        %v4797 = vadd.f32 0.0, %v4796
        %v4798 = vpop.f32.mrf.mxu0
        %v4799 = vpop.f32.mrf.mxu0
        %4800 = vdwg.mxu0
        %4801 = vmatprep.subr.bf16.mxu0 0
        %4802 = vmatpush1.bf16.msra.mxu0 0
        %4803 = vmatprep.subr.bf16.mxu0 0
        %4804 = vmatpush1.bf16.msra.mxu0 0
        %4805 = vmatprep.subr.bf16.mxu0 0
        %4806 = vmatpush1.bf16.msra.mxu0 0
        %4807 = vmatprep.subr.bf16.mxu0 0
        %4808 = vmatpush1.bf16.msra.mxu0 0
        %4809 = vmatprep.subr.bf16.mxu0 0
        %4810 = vmatpush1.bf16.msra.mxu0 0
        %4811 = vmatprep.subr.bf16.mxu0 0
        %4812 = vmatpush1.bf16.msra.mxu0 0
        %4813 = vmatprep.subr.bf16.mxu0 0
        %4814 = vmatpush1.bf16.msra.mxu0 0
        %4815 = vmatprep.subr.bf16.mxu0 %v4746
        %4816 = vmatpush1.bf16.msra.mxu0 %v4743
        %4817 = vmatprep.subr.bf16.mxu0 0
        %4818 = vmatpush2.bf16.msra.mxu0 0
        %4819 = vmatprep.subr.bf16.mxu0 0
        %4820 = vmatpush2.bf16.msra.mxu0 0
        %4821 = vmatprep.subr.bf16.mxu0 0
        %4822 = vmatpush2.bf16.msra.mxu0 0
        %4823 = vmatprep.subr.bf16.mxu0 0
        %4824 = vmatpush2.bf16.msra.mxu0 0
        %4825 = vmatprep.subr.bf16.mxu0 0
        %4826 = vmatpush2.bf16.msra.mxu0 0
        %4827 = vmatprep.subr.bf16.mxu0 0
        %4828 = vmatpush2.bf16.msra.mxu0 0
        %4829 = vmatprep.subr.bf16.mxu0 0
        %4830 = vmatpush2.bf16.msra.mxu0 0
        %4831 = vmatprep.subr.bf16.mxu0 0
        %4832 = vmatpush2.bf16.msra.mxu0 0
        %4833 = vmatprep.mubr.bf16.mxu0 0
        %4834 = vmatmul.mubr.bf16.gmra.mxu0 %v4734
        %v4835 = vpop.f32.mrf.mxu0
        %v4836 = vadd.f32 0.0, %v4835
        %v4837 = vpop.f32.mrf.mxu0
        %v4838 = vadd.f32 0.0, %v4837
        %v4839 = vpop.f32.mrf.mxu0
        %v4840 = vpop.f32.mrf.mxu0
        %4841 = vdwg.mxu0
        %4842 = vmatprep.subr.bf16.mxu0 0
        %4843 = vmatpush1.bf16.msra.mxu0 0
        %4844 = vmatprep.subr.bf16.mxu0 0
        %4845 = vmatpush1.bf16.msra.mxu0 0
        %4846 = vmatprep.subr.bf16.mxu0 0
        %4847 = vmatpush1.bf16.msra.mxu0 0
        %4848 = vmatprep.subr.bf16.mxu0 0
        %4849 = vmatpush1.bf16.msra.mxu0 0
        %4850 = vmatprep.subr.bf16.mxu0 0
        %4851 = vmatpush1.bf16.msra.mxu0 0
        %4852 = vmatprep.subr.bf16.mxu0 0
        %4853 = vmatpush1.bf16.msra.mxu0 0
        %4854 = vmatprep.subr.bf16.mxu0 0
        %4855 = vmatpush1.bf16.msra.mxu0 0
        %4856 = vmatprep.subr.bf16.mxu0 %v4752
        %4857 = vmatpush1.bf16.msra.mxu0 %v4749
        %4858 = vmatprep.subr.bf16.mxu0 0
        %4859 = vmatpush2.bf16.msra.mxu0 0
        %4860 = vmatprep.subr.bf16.mxu0 0
        %4861 = vmatpush2.bf16.msra.mxu0 0
        %4862 = vmatprep.subr.bf16.mxu0 0
        %4863 = vmatpush2.bf16.msra.mxu0 0
        %4864 = vmatprep.subr.bf16.mxu0 0
        %4865 = vmatpush2.bf16.msra.mxu0 0
        %4866 = vmatprep.subr.bf16.mxu0 0
        %4867 = vmatpush2.bf16.msra.mxu0 0
        %4868 = vmatprep.subr.bf16.mxu0 0
        %4869 = vmatpush2.bf16.msra.mxu0 0
        %4870 = vmatprep.subr.bf16.mxu0 0
        %4871 = vmatpush2.bf16.msra.mxu0 0
        %4872 = vmatprep.subr.bf16.mxu0 0
        %4873 = vmatpush2.bf16.msra.mxu0 0
        %4874 = vmatprep.mubr.bf16.mxu0 0
        %4875 = vmatmul.mubr.bf16.gmra.mxu0 %v4734
        %v4876 = vpop.f32.mrf.mxu0
        %v4877 = vadd.f32 0.0, %v4876
        %v4878 = vpop.f32.mrf.mxu0
        %v4879 = vadd.f32 0.0, %v4878
        %v4880 = vpop.f32.mrf.mxu0
        %v4881 = vpop.f32.mrf.mxu0
        %4882 = vdwg.mxu0
        %4883 = vmatprep.subr.bf16.mxu0 0
        %4884 = vmatpush1.bf16.msra.mxu0 0
        %4885 = vmatprep.subr.bf16.mxu0 0
        %4886 = vmatpush1.bf16.msra.mxu0 0
        %4887 = vmatprep.subr.bf16.mxu0 0
        %4888 = vmatpush1.bf16.msra.mxu0 0
        %4889 = vmatprep.subr.bf16.mxu0 0
        %4890 = vmatpush1.bf16.msra.mxu0 0
        %4891 = vmatprep.subr.bf16.mxu0 0
        %4892 = vmatpush1.bf16.msra.mxu0 0
        %4893 = vmatprep.subr.bf16.mxu0 0
        %4894 = vmatpush1.bf16.msra.mxu0 0
        %4895 = vmatprep.subr.bf16.mxu0 0
        %4896 = vmatpush1.bf16.msra.mxu0 0
        %4897 = vmatprep.subr.bf16.mxu0 %v4758
        %4898 = vmatpush1.bf16.msra.mxu0 %v4755
        %4899 = vmatprep.subr.bf16.mxu0 0
        %4900 = vmatpush2.bf16.msra.mxu0 0
        %4901 = vmatprep.subr.bf16.mxu0 0
        %4902 = vmatpush2.bf16.msra.mxu0 0
        %4903 = vmatprep.subr.bf16.mxu0 0
        %4904 = vmatpush2.bf16.msra.mxu0 0
        %4905 = vmatprep.subr.bf16.mxu0 0
        %4906 = vmatpush2.bf16.msra.mxu0 0
        %4907 = vmatprep.subr.bf16.mxu0 0
        %4908 = vmatpush2.bf16.msra.mxu0 0
        %4909 = vmatprep.subr.bf16.mxu0 0
        %4910 = vmatpush2.bf16.msra.mxu0 0
        %4911 = vmatprep.subr.bf16.mxu0 0
        %4912 = vmatpush2.bf16.msra.mxu0 0
        %4913 = vmatprep.subr.bf16.mxu0 0
        %4914 = vmatpush2.bf16.msra.mxu0 0
        %4915 = vmatprep.mubr.bf16.mxu0 0
        %4916 = vmatmul.mubr.bf16.gmra.mxu0 %v4734
        %v4917 = vpop.f32.mrf.mxu0
        %v4918 = vadd.f32 0.0, %v4917
        %v4919 = vpop.f32.mrf.mxu0
        %v4920 = vadd.f32 0.0, %v4919
        %v4921 = vpop.f32.mrf.mxu0
        %v4922 = vpop.f32.mrf.mxu0
        %4923 = vdwg.mxu0
        %v4924 = vmax.f32 %v4795, %v4877
        %v4925 = vmax.f32 %v4797, %v4879
        %v4926 = vmax.f32 %v4836, %v4918
        %v4927 = vmax.f32 %v4838, %v4920
        %v4928 = vmax.f32 %v4924, %v4925
        %v4929 = vmax.f32 %v4926, %v4927
        %v4930 = vmax.f32 %v4928, %v4929
        %4931 = vmax.xlane.f32.xlu0 %v4930
        %v4932 = vpop.xlane.xlu0 %4931
        %vm4933 = vcmp.ge.f32.partialorder %v4795, %v4932
        %vm4934 = vcmp.ge.f32.partialorder %v4797, %v4932
        %vm4935 = vcmp.ge.f32.partialorder %v4836, %v4932
        %vm4936 = vcmp.ge.f32.partialorder %v4838, %v4932
        %vm4937 = vcmp.ge.f32.partialorder %v4877, %v4932
        %vm4938 = vcmp.ge.f32.partialorder %v4879, %v4932
        %vm4939 = vcmp.ge.f32.partialorder %v4918, %v4932
        %vm4940 = vcmp.ge.f32.partialorder %v4920, %v4932
        %v4941 = vsel %vm4933, %v364, 1024
        %v4942 = vsel %vm4934, %v365, 1024
        %v4943 = vsel %vm4935, %v366, 1024
        %v4944 = vsel %vm4936, %v367, 1024
        %v4945 = vsel %vm4937, %v368, 1024
        %v4946 = vsel %vm4938, %v369, 1024
        %v4947 = vsel %vm4939, %v370, 1024
        %v4948 = vsel %vm4940, %v371, 1024
        %vm4949 = vcmp.lt.s32.totalorder %v4941, %v4945
        %v4950 = vsel %vm4949, %v4941, %v4945
        %vm4951 = vcmp.lt.s32.totalorder %v4942, %v4946
        %v4952 = vsel %vm4951, %v4942, %v4946
        %vm4953 = vcmp.lt.s32.totalorder %v4943, %v4947
        %v4954 = vsel %vm4953, %v4943, %v4947
        %vm4955 = vcmp.lt.s32.totalorder %v4944, %v4948
        %v4956 = vsel %vm4955, %v4944, %v4948
        %vm4957 = vcmp.lt.s32.totalorder %v4950, %v4952
        %v4958 = vsel %vm4957, %v4950, %v4952
        %vm4959 = vcmp.lt.s32.totalorder %v4954, %v4956
        %v4960 = vsel %vm4959, %v4954, %v4956
        %vm4961 = vcmp.lt.s32.totalorder %v4958, %v4960
        %v4962 = vsel %vm4961, %v4958, %v4960
        %v4963 = vand.u32 %v4962, 65535
        %v4964 = vshra.s32 %v4962, 16
        %v4965 = vcvt.s32.f32 %v4963
        %v4966 = vcvt.s32.f32 %v4964
        %4967 = vmin.xlane.f32.xlu0 %v4966
        %v4968 = vpop.xlane.xlu0 %4967
        %vm4969 = vcmp.eq.f32.partialorder %v4966, %v4968
        %v4970 = vsel %vm4969, %v4965, inf
        %4971 = vmin.xlane.f32.xlu0 %v4970
        %v4972 = vpop.xlane.xlu0 %4971
        %v4973 = vcvt.f32.s32 %v4972
        %v4974 = vcvt.f32.s32 %v4968
        %v4975 = vshll.u32 %v4974, 16
        %v4976 = vadd.s32 %v4975, %v4973
        %vm4977 = vcmp.eq.s32.totalorder %v364, %v4976
        %vm4978 = vcmp.eq.s32.totalorder %v365, %v4976
        %vm4979 = vcmp.eq.s32.totalorder %v366, %v4976
        %vm4980 = vcmp.eq.s32.totalorder %v367, %v4976
        %vm4981 = vcmp.eq.s32.totalorder %v368, %v4976
        %vm4982 = vcmp.eq.s32.totalorder %v369, %v4976
        %vm4983 = vcmp.eq.s32.totalorder %v370, %v4976
        %vm4984 = vcmp.eq.s32.totalorder %v371, %v4976
        %v4985 = vsel %vm4977, 1, 0
        %v4986 = vsel %vm4978, 1, 0
        %v4987 = vsel %vm4979, 1, 0
        %v4988 = vsel %vm4980, 1, 0
        %v4989 = vsel %vm4981, 1, 0
        %v4990 = vsel %vm4982, 1, 0
        %v4991 = vsel %vm4983, 1, 0
        %v4992 = vsel %vm4984, 1, 0
        %v4993 = vcvt.s32.f32 %v4985
        %v4994 = vcvt.s32.f32 %v4986
        %v4995 = vcvt.s32.f32 %v4987
        %v4996 = vcvt.s32.f32 %v4988
        %v4997 = vcvt.s32.f32 %v4989
        %v4998 = vcvt.s32.f32 %v4990
        %v4999 = vcvt.s32.f32 %v4991
        %v5000 = vcvt.s32.f32 %v4992
        %v5001 = vpack.c.bf16 %v4993, %v4993
        %v5002 = vpack.c.bf16 %v4994, %v4994
        %v5003 = vpack.c.bf16 %v4995, %v4995
        %v5004 = vpack.c.bf16 %v4996, %v4996
        %v5005 = vpack.c.bf16 %v4997, %v4997
        %v5006 = vpack.c.bf16 %v4998, %v4998
        %v5007 = vpack.c.bf16 %v4999, %v4999
        %v5008 = vpack.c.bf16 %v5000, %v5000
        %5017 = vmatprep.subr.bf16.mxu0 0
        %5018 = vmatpush1.bf16.xpose.msra.mxu0 0
        %5019 = vmatprep.subr.bf16.mxu0 0
        %5020 = vmatpush1.bf16.xpose.msra.mxu0 0
        %5021 = vmatprep.subr.bf16.mxu0 0
        %5022 = vmatpush1.bf16.xpose.msra.mxu0 0
        %5023 = vmatprep.subr.bf16.mxu0 0
        %5024 = vmatpush1.bf16.xpose.msra.mxu0 0
        %5025 = vmatprep.subr.bf16.mxu0 0
        %5026 = vmatpush1.bf16.xpose.msra.mxu0 0
        %5027 = vmatprep.subr.bf16.mxu0 0
        %5028 = vmatpush1.bf16.xpose.msra.mxu0 0
        %5029 = vmatprep.subr.bf16.mxu0 0
        %5030 = vmatpush1.bf16.xpose.msra.mxu0 0
        %5031 = vmatprep.subr.bf16.mxu0 %v4726
        %5032 = vmatpush1.bf16.xpose.msra.mxu0 %v4725
        %5033 = vmatprep.subr.bf16.mxu0 0
        %5034 = vmatpush2.bf16.xpose.msra.mxu0 0
        %5035 = vmatprep.subr.bf16.mxu0 0
        %5036 = vmatpush2.bf16.xpose.msra.mxu0 0
        %5037 = vmatprep.subr.bf16.mxu0 0
        %5038 = vmatpush2.bf16.xpose.msra.mxu0 0
        %5039 = vmatprep.subr.bf16.mxu0 0
        %5040 = vmatpush2.bf16.xpose.msra.mxu0 0
        %5041 = vmatprep.subr.bf16.mxu0 0
        %5042 = vmatpush2.bf16.xpose.msra.mxu0 0
        %5043 = vmatprep.subr.bf16.mxu0 0
        %5044 = vmatpush2.bf16.xpose.msra.mxu0 0
        %5045 = vmatprep.subr.bf16.mxu0 0
        %5046 = vmatpush2.bf16.xpose.msra.mxu0 0
        %5047 = vmatprep.subr.bf16.mxu0 0
        %5048 = vmatpush2.bf16.xpose.msra.mxu0 0
        %5049 = vmatprep.mubr.bf16.mxu0 %v5002
        %5050 = vmatmul.mubr.bf16.gmra.mxu0 %v5001
        %v5051 = vpop.f32.mrf.mxu0
        %v5052 = vadd.f32 0.0, %v5051
        %v5053 = vpop.f32.mrf.mxu0
        %v5054 = vpop.f32.mrf.mxu0
        %v5055 = vpop.f32.mrf.mxu0
        %5056 = vdwg.mxu0
        %5057 = vmatprep.subr.bf16.mxu0 0
        %5058 = vmatpush1.bf16.xpose.msra.mxu0 0
        %5059 = vmatprep.subr.bf16.mxu0 0
        %5060 = vmatpush1.bf16.xpose.msra.mxu0 0
        %5061 = vmatprep.subr.bf16.mxu0 0
        %5062 = vmatpush1.bf16.xpose.msra.mxu0 0
        %5063 = vmatprep.subr.bf16.mxu0 0
        %5064 = vmatpush1.bf16.xpose.msra.mxu0 0
        %5065 = vmatprep.subr.bf16.mxu0 0
        %5066 = vmatpush1.bf16.xpose.msra.mxu0 0
        %5067 = vmatprep.subr.bf16.mxu0 0
        %5068 = vmatpush1.bf16.xpose.msra.mxu0 0
        %5069 = vmatprep.subr.bf16.mxu0 0
        %5070 = vmatpush1.bf16.xpose.msra.mxu0 0
        %5071 = vmatprep.subr.bf16.mxu0 %v4728
        %5072 = vmatpush1.bf16.xpose.msra.mxu0 %v4727
        %5073 = vmatprep.subr.bf16.mxu0 0
        %5074 = vmatpush2.bf16.xpose.msra.mxu0 0
        %5075 = vmatprep.subr.bf16.mxu0 0
        %5076 = vmatpush2.bf16.xpose.msra.mxu0 0
        %5077 = vmatprep.subr.bf16.mxu0 0
        %5078 = vmatpush2.bf16.xpose.msra.mxu0 0
        %5079 = vmatprep.subr.bf16.mxu0 0
        %5080 = vmatpush2.bf16.xpose.msra.mxu0 0
        %5081 = vmatprep.subr.bf16.mxu0 0
        %5082 = vmatpush2.bf16.xpose.msra.mxu0 0
        %5083 = vmatprep.subr.bf16.mxu0 0
        %5084 = vmatpush2.bf16.xpose.msra.mxu0 0
        %5085 = vmatprep.subr.bf16.mxu0 0
        %5086 = vmatpush2.bf16.xpose.msra.mxu0 0
        %5087 = vmatprep.subr.bf16.mxu0 0
        %5088 = vmatpush2.bf16.xpose.msra.mxu0 0
        %5089 = vmatprep.mubr.bf16.mxu0 %v5004
        %5090 = vmatmul.mubr.bf16.gmra.mxu0 %v5003
        %v5091 = vpop.f32.mrf.mxu0
        %v5092 = vadd.f32 %v5052, %v5091
        %v5093 = vpop.f32.mrf.mxu0
        %v5094 = vpop.f32.mrf.mxu0
        %v5095 = vpop.f32.mrf.mxu0
        %5096 = vdwg.mxu0
        %5097 = vmatprep.subr.bf16.mxu0 0
        %5098 = vmatpush1.bf16.xpose.msra.mxu0 0
        %5099 = vmatprep.subr.bf16.mxu0 0
        %5100 = vmatpush1.bf16.xpose.msra.mxu0 0
        %5101 = vmatprep.subr.bf16.mxu0 0
        %5102 = vmatpush1.bf16.xpose.msra.mxu0 0
        %5103 = vmatprep.subr.bf16.mxu0 0
        %5104 = vmatpush1.bf16.xpose.msra.mxu0 0
        %5105 = vmatprep.subr.bf16.mxu0 0
        %5106 = vmatpush1.bf16.xpose.msra.mxu0 0
        %5107 = vmatprep.subr.bf16.mxu0 0
        %5108 = vmatpush1.bf16.xpose.msra.mxu0 0
        %5109 = vmatprep.subr.bf16.mxu0 0
        %5110 = vmatpush1.bf16.xpose.msra.mxu0 0
        %5111 = vmatprep.subr.bf16.mxu0 %v4730
        %5112 = vmatpush1.bf16.xpose.msra.mxu0 %v4729
        %5113 = vmatprep.subr.bf16.mxu0 0
        %5114 = vmatpush2.bf16.xpose.msra.mxu0 0
        %5115 = vmatprep.subr.bf16.mxu0 0
        %5116 = vmatpush2.bf16.xpose.msra.mxu0 0
        %5117 = vmatprep.subr.bf16.mxu0 0
        %5118 = vmatpush2.bf16.xpose.msra.mxu0 0
        %5119 = vmatprep.subr.bf16.mxu0 0
        %5120 = vmatpush2.bf16.xpose.msra.mxu0 0
        %5121 = vmatprep.subr.bf16.mxu0 0
        %5122 = vmatpush2.bf16.xpose.msra.mxu0 0
        %5123 = vmatprep.subr.bf16.mxu0 0
        %5124 = vmatpush2.bf16.xpose.msra.mxu0 0
        %5125 = vmatprep.subr.bf16.mxu0 0
        %5126 = vmatpush2.bf16.xpose.msra.mxu0 0
        %5127 = vmatprep.subr.bf16.mxu0 0
        %5128 = vmatpush2.bf16.xpose.msra.mxu0 0
        %5129 = vmatprep.mubr.bf16.mxu0 %v5006
        %5130 = vmatmul.mubr.bf16.gmra.mxu0 %v5005
        %v5131 = vpop.f32.mrf.mxu0
        %v5132 = vadd.f32 %v5092, %v5131
        %v5133 = vpop.f32.mrf.mxu0
        %v5134 = vpop.f32.mrf.mxu0
        %v5135 = vpop.f32.mrf.mxu0
        %5136 = vdwg.mxu0
        %5137 = vmatprep.subr.bf16.mxu0 0
        %5138 = vmatpush1.bf16.xpose.msra.mxu0 0
        %5139 = vmatprep.subr.bf16.mxu0 0
        %5140 = vmatpush1.bf16.xpose.msra.mxu0 0
        %5141 = vmatprep.subr.bf16.mxu0 0
        %5142 = vmatpush1.bf16.xpose.msra.mxu0 0
        %5143 = vmatprep.subr.bf16.mxu0 0
        %5144 = vmatpush1.bf16.xpose.msra.mxu0 0
        %5145 = vmatprep.subr.bf16.mxu0 0
        %5146 = vmatpush1.bf16.xpose.msra.mxu0 0
        %5147 = vmatprep.subr.bf16.mxu0 0
        %5148 = vmatpush1.bf16.xpose.msra.mxu0 0
        %5149 = vmatprep.subr.bf16.mxu0 0
        %5150 = vmatpush1.bf16.xpose.msra.mxu0 0
        %5151 = vmatprep.subr.bf16.mxu0 %v4732
        %5152 = vmatpush1.bf16.xpose.msra.mxu0 %v4731
        %5153 = vmatprep.subr.bf16.mxu0 0
        %5154 = vmatpush2.bf16.xpose.msra.mxu0 0
        %5155 = vmatprep.subr.bf16.mxu0 0
        %5156 = vmatpush2.bf16.xpose.msra.mxu0 0
        %5157 = vmatprep.subr.bf16.mxu0 0
        %5158 = vmatpush2.bf16.xpose.msra.mxu0 0
        %5159 = vmatprep.subr.bf16.mxu0 0
        %5160 = vmatpush2.bf16.xpose.msra.mxu0 0
        %5161 = vmatprep.subr.bf16.mxu0 0
        %5162 = vmatpush2.bf16.xpose.msra.mxu0 0
        %5163 = vmatprep.subr.bf16.mxu0 0
        %5164 = vmatpush2.bf16.xpose.msra.mxu0 0
        %5165 = vmatprep.subr.bf16.mxu0 0
        %5166 = vmatpush2.bf16.xpose.msra.mxu0 0
        %5167 = vmatprep.subr.bf16.mxu0 0
        %5168 = vmatpush2.bf16.xpose.msra.mxu0 0
        %5169 = vmatprep.mubr.bf16.mxu0 %v5008
        %5170 = vmatmul.mubr.bf16.gmra.mxu0 %v5007
        %v5171 = vpop.f32.mrf.mxu0
        %v5172 = vadd.f32 %v5132, %v5171
        %v5173 = vpop.f32.mrf.mxu0
        %v5174 = vpop.f32.mrf.mxu0
        %v5175 = vpop.f32.mrf.mxu0
        %5176 = vdwg.mxu0
        %5178 = vrot.lane.b32.xlu0 %v5172, 16
        %v5179 = vpop.permute.xlu0 %5178
        %v5181 = vsub.f32 %v4695, %v5179
        %v5182 = vsel %vm1320, %v4976, %v4696
        %v5183 = vadd.f32 %v4697, %v5172
        %v5184 = vmul.f32 %v5181, %v5181
        %5186 = vrot.lane.b32.xlu0 %v5184, 112
        %v5187 = vpop.permute.xlu0 %5186
        %v5189 = vadd.f32 %v4703, %v5187
        %s5190 = scalar_lea.vmem [#allocation2], 320
        %v5191 = vld [vmem:[%s5190] sm:$0xff]
        %v5192 = vld [vmem:[%s5190 + $0x8] sm:$0xff]
        %v5193 = vld [vmem:[%s5190 + $0x10] sm:$0xff]
        %v5194 = vld [vmem:[%s5190 + $0x18] sm:$0xff]
        %v5195 = vpack.c.bf16 %v5181, %v5181
        %5197 = vrot.lane.b32.xlu0 %v5195, 112
        %v5198 = vpop.permute.xlu0 %5197
        %v5203 = vunpack.c.l.b16 %v5191
        %v5204 = vunpack.c.h.b16 %v5191
        %v5205 = vunpack.c.l.b16 %v5192
        %v5206 = vunpack.c.h.b16 %v5192
        %v5207 = vunpack.c.l.b16 %v5193
        %v5208 = vunpack.c.h.b16 %v5193
        %v5209 = vunpack.c.l.b16 %v5194
        %v5210 = vunpack.c.h.b16 %v5194
        %v5211 = vpack.c.b16 %v5203, %v5203
        %v5212 = vpack.c.b16 %v5204, %v5204
        %v5213 = vpack.c.b16 %v5205, %v5205
        %v5214 = vpack.c.b16 %v5206, %v5206
        %v5215 = vpack.c.b16 %v5207, %v5207
        %v5216 = vpack.c.b16 %v5208, %v5208
        %v5217 = vpack.c.b16 %v5209, %v5209
        %v5218 = vpack.c.b16 %v5210, %v5210
        %v5220 = vsel %vm397, %v5198, 0
        %v5223 = vsel %vm401, %v5211, 0
        %v5226 = vsel %vm401, %v5212, 0
        %v5229 = vsel %vm401, %v5213, 0
        %v5232 = vsel %vm401, %v5214, 0
        %v5235 = vsel %vm401, %v5215, 0
        %v5238 = vsel %vm401, %v5216, 0
        %v5241 = vsel %vm401, %v5217, 0
        %v5244 = vsel %vm401, %v5218, 0
        %5246 = vmatprep.subr.bf16.mxu0 0
        %5247 = vmatpush1.bf16.msra.mxu0 0
        %5248 = vmatprep.subr.bf16.mxu0 0
        %5249 = vmatpush1.bf16.msra.mxu0 0
        %5250 = vmatprep.subr.bf16.mxu0 0
        %5251 = vmatpush1.bf16.msra.mxu0 0
        %5252 = vmatprep.subr.bf16.mxu0 0
        %5253 = vmatpush1.bf16.msra.mxu0 0
        %5254 = vmatprep.subr.bf16.mxu0 0
        %5255 = vmatpush1.bf16.msra.mxu0 0
        %5256 = vmatprep.subr.bf16.mxu0 0
        %5257 = vmatpush1.bf16.msra.mxu0 0
        %5258 = vmatprep.subr.bf16.mxu0 0
        %5259 = vmatpush1.bf16.msra.mxu0 0
        %5260 = vmatprep.subr.bf16.mxu0 %v5226
        %5261 = vmatpush1.bf16.msra.mxu0 %v5223
        %5262 = vmatprep.subr.bf16.mxu0 0
        %5263 = vmatpush2.bf16.msra.mxu0 0
        %5264 = vmatprep.subr.bf16.mxu0 0
        %5265 = vmatpush2.bf16.msra.mxu0 0
        %5266 = vmatprep.subr.bf16.mxu0 0
        %5267 = vmatpush2.bf16.msra.mxu0 0
        %5268 = vmatprep.subr.bf16.mxu0 0
        %5269 = vmatpush2.bf16.msra.mxu0 0
        %5270 = vmatprep.subr.bf16.mxu0 0
        %5271 = vmatpush2.bf16.msra.mxu0 0
        %5272 = vmatprep.subr.bf16.mxu0 0
        %5273 = vmatpush2.bf16.msra.mxu0 0
        %5274 = vmatprep.subr.bf16.mxu0 0
        %5275 = vmatpush2.bf16.msra.mxu0 0
        %5276 = vmatprep.subr.bf16.mxu0 0
        %5277 = vmatpush2.bf16.msra.mxu0 0
        %5278 = vmatprep.mubr.bf16.mxu0 0
        %5279 = vmatmul.mubr.bf16.gmra.mxu0 %v5220
        %v5280 = vpop.f32.mrf.mxu0
        %v5281 = vadd.f32 0.0, %v5280
        %v5282 = vpop.f32.mrf.mxu0
        %v5283 = vadd.f32 0.0, %v5282
        %v5284 = vpop.f32.mrf.mxu0
        %v5285 = vpop.f32.mrf.mxu0
        %5286 = vdwg.mxu0
        %5287 = vmatprep.subr.bf16.mxu0 0
        %5288 = vmatpush1.bf16.msra.mxu0 0
        %5289 = vmatprep.subr.bf16.mxu0 0
        %5290 = vmatpush1.bf16.msra.mxu0 0
        %5291 = vmatprep.subr.bf16.mxu0 0
        %5292 = vmatpush1.bf16.msra.mxu0 0
        %5293 = vmatprep.subr.bf16.mxu0 0
        %5294 = vmatpush1.bf16.msra.mxu0 0
        %5295 = vmatprep.subr.bf16.mxu0 0
        %5296 = vmatpush1.bf16.msra.mxu0 0
        %5297 = vmatprep.subr.bf16.mxu0 0
        %5298 = vmatpush1.bf16.msra.mxu0 0
        %5299 = vmatprep.subr.bf16.mxu0 0
        %5300 = vmatpush1.bf16.msra.mxu0 0
        %5301 = vmatprep.subr.bf16.mxu0 %v5232
        %5302 = vmatpush1.bf16.msra.mxu0 %v5229
        %5303 = vmatprep.subr.bf16.mxu0 0
        %5304 = vmatpush2.bf16.msra.mxu0 0
        %5305 = vmatprep.subr.bf16.mxu0 0
        %5306 = vmatpush2.bf16.msra.mxu0 0
        %5307 = vmatprep.subr.bf16.mxu0 0
        %5308 = vmatpush2.bf16.msra.mxu0 0
        %5309 = vmatprep.subr.bf16.mxu0 0
        %5310 = vmatpush2.bf16.msra.mxu0 0
        %5311 = vmatprep.subr.bf16.mxu0 0
        %5312 = vmatpush2.bf16.msra.mxu0 0
        %5313 = vmatprep.subr.bf16.mxu0 0
        %5314 = vmatpush2.bf16.msra.mxu0 0
        %5315 = vmatprep.subr.bf16.mxu0 0
        %5316 = vmatpush2.bf16.msra.mxu0 0
        %5317 = vmatprep.subr.bf16.mxu0 0
        %5318 = vmatpush2.bf16.msra.mxu0 0
        %5319 = vmatprep.mubr.bf16.mxu0 0
        %5320 = vmatmul.mubr.bf16.gmra.mxu0 %v5220
        %v5321 = vpop.f32.mrf.mxu0
        %v5322 = vadd.f32 0.0, %v5321
        %v5323 = vpop.f32.mrf.mxu0
        %v5324 = vadd.f32 0.0, %v5323
        %v5325 = vpop.f32.mrf.mxu0
        %v5326 = vpop.f32.mrf.mxu0
        %5327 = vdwg.mxu0
        %5328 = vmatprep.subr.bf16.mxu0 0
        %5329 = vmatpush1.bf16.msra.mxu0 0
        %5330 = vmatprep.subr.bf16.mxu0 0
        %5331 = vmatpush1.bf16.msra.mxu0 0
        %5332 = vmatprep.subr.bf16.mxu0 0
        %5333 = vmatpush1.bf16.msra.mxu0 0
        %5334 = vmatprep.subr.bf16.mxu0 0
        %5335 = vmatpush1.bf16.msra.mxu0 0
        %5336 = vmatprep.subr.bf16.mxu0 0
        %5337 = vmatpush1.bf16.msra.mxu0 0
        %5338 = vmatprep.subr.bf16.mxu0 0
        %5339 = vmatpush1.bf16.msra.mxu0 0
        %5340 = vmatprep.subr.bf16.mxu0 0
        %5341 = vmatpush1.bf16.msra.mxu0 0
        %5342 = vmatprep.subr.bf16.mxu0 %v5238
        %5343 = vmatpush1.bf16.msra.mxu0 %v5235
        %5344 = vmatprep.subr.bf16.mxu0 0
        %5345 = vmatpush2.bf16.msra.mxu0 0
        %5346 = vmatprep.subr.bf16.mxu0 0
        %5347 = vmatpush2.bf16.msra.mxu0 0
        %5348 = vmatprep.subr.bf16.mxu0 0
        %5349 = vmatpush2.bf16.msra.mxu0 0
        %5350 = vmatprep.subr.bf16.mxu0 0
        %5351 = vmatpush2.bf16.msra.mxu0 0
        %5352 = vmatprep.subr.bf16.mxu0 0
        %5353 = vmatpush2.bf16.msra.mxu0 0
        %5354 = vmatprep.subr.bf16.mxu0 0
        %5355 = vmatpush2.bf16.msra.mxu0 0
        %5356 = vmatprep.subr.bf16.mxu0 0
        %5357 = vmatpush2.bf16.msra.mxu0 0
        %5358 = vmatprep.subr.bf16.mxu0 0
        %5359 = vmatpush2.bf16.msra.mxu0 0
        %5360 = vmatprep.mubr.bf16.mxu0 0
        %5361 = vmatmul.mubr.bf16.gmra.mxu0 %v5220
        %v5362 = vpop.f32.mrf.mxu0
        %v5363 = vadd.f32 0.0, %v5362
        %v5364 = vpop.f32.mrf.mxu0
        %v5365 = vadd.f32 0.0, %v5364
        %v5366 = vpop.f32.mrf.mxu0
        %v5367 = vpop.f32.mrf.mxu0
        %5368 = vdwg.mxu0
        %5369 = vmatprep.subr.bf16.mxu0 0
        %5370 = vmatpush1.bf16.msra.mxu0 0
        %5371 = vmatprep.subr.bf16.mxu0 0
        %5372 = vmatpush1.bf16.msra.mxu0 0
        %5373 = vmatprep.subr.bf16.mxu0 0
        %5374 = vmatpush1.bf16.msra.mxu0 0
        %5375 = vmatprep.subr.bf16.mxu0 0
        %5376 = vmatpush1.bf16.msra.mxu0 0
        %5377 = vmatprep.subr.bf16.mxu0 0
        %5378 = vmatpush1.bf16.msra.mxu0 0
        %5379 = vmatprep.subr.bf16.mxu0 0
        %5380 = vmatpush1.bf16.msra.mxu0 0
        %5381 = vmatprep.subr.bf16.mxu0 0
        %5382 = vmatpush1.bf16.msra.mxu0 0
        %5383 = vmatprep.subr.bf16.mxu0 %v5244
        %5384 = vmatpush1.bf16.msra.mxu0 %v5241
        %5385 = vmatprep.subr.bf16.mxu0 0
        %5386 = vmatpush2.bf16.msra.mxu0 0
        %5387 = vmatprep.subr.bf16.mxu0 0
        %5388 = vmatpush2.bf16.msra.mxu0 0
        %5389 = vmatprep.subr.bf16.mxu0 0
        %5390 = vmatpush2.bf16.msra.mxu0 0
        %5391 = vmatprep.subr.bf16.mxu0 0
        %5392 = vmatpush2.bf16.msra.mxu0 0
        %5393 = vmatprep.subr.bf16.mxu0 0
        %5394 = vmatpush2.bf16.msra.mxu0 0
        %5395 = vmatprep.subr.bf16.mxu0 0
        %5396 = vmatpush2.bf16.msra.mxu0 0
        %5397 = vmatprep.subr.bf16.mxu0 0
        %5398 = vmatpush2.bf16.msra.mxu0 0
        %5399 = vmatprep.subr.bf16.mxu0 0
        %5400 = vmatpush2.bf16.msra.mxu0 0
        %5401 = vmatprep.mubr.bf16.mxu0 0
        %5402 = vmatmul.mubr.bf16.gmra.mxu0 %v5220
        %v5403 = vpop.f32.mrf.mxu0
        %v5404 = vadd.f32 0.0, %v5403
        %v5405 = vpop.f32.mrf.mxu0
        %v5406 = vadd.f32 0.0, %v5405
        %v5407 = vpop.f32.mrf.mxu0
        %v5408 = vpop.f32.mrf.mxu0
        %5409 = vdwg.mxu0
        %v5410 = vmax.f32 %v5281, %v5363
        %v5411 = vmax.f32 %v5283, %v5365
        %v5412 = vmax.f32 %v5322, %v5404
        %v5413 = vmax.f32 %v5324, %v5406
        %v5414 = vmax.f32 %v5410, %v5411
        %v5415 = vmax.f32 %v5412, %v5413
        %v5416 = vmax.f32 %v5414, %v5415
        %5417 = vmax.xlane.f32.xlu0 %v5416
        %v5418 = vpop.xlane.xlu0 %5417
        %vm5419 = vcmp.ge.f32.partialorder %v5281, %v5418
        %vm5420 = vcmp.ge.f32.partialorder %v5283, %v5418
        %vm5421 = vcmp.ge.f32.partialorder %v5322, %v5418
        %vm5422 = vcmp.ge.f32.partialorder %v5324, %v5418
        %vm5423 = vcmp.ge.f32.partialorder %v5363, %v5418
        %vm5424 = vcmp.ge.f32.partialorder %v5365, %v5418
        %vm5425 = vcmp.ge.f32.partialorder %v5404, %v5418
        %vm5426 = vcmp.ge.f32.partialorder %v5406, %v5418
        %v5427 = vsel %vm5419, %v364, 1024
        %v5428 = vsel %vm5420, %v365, 1024
        %v5429 = vsel %vm5421, %v366, 1024
        %v5430 = vsel %vm5422, %v367, 1024
        %v5431 = vsel %vm5423, %v368, 1024
        %v5432 = vsel %vm5424, %v369, 1024
        %v5433 = vsel %vm5425, %v370, 1024
        %v5434 = vsel %vm5426, %v371, 1024
        %vm5435 = vcmp.lt.s32.totalorder %v5427, %v5431
        %v5436 = vsel %vm5435, %v5427, %v5431
        %vm5437 = vcmp.lt.s32.totalorder %v5428, %v5432
        %v5438 = vsel %vm5437, %v5428, %v5432
        %vm5439 = vcmp.lt.s32.totalorder %v5429, %v5433
        %v5440 = vsel %vm5439, %v5429, %v5433
        %vm5441 = vcmp.lt.s32.totalorder %v5430, %v5434
        %v5442 = vsel %vm5441, %v5430, %v5434
        %vm5443 = vcmp.lt.s32.totalorder %v5436, %v5438
        %v5444 = vsel %vm5443, %v5436, %v5438
        %vm5445 = vcmp.lt.s32.totalorder %v5440, %v5442
        %v5446 = vsel %vm5445, %v5440, %v5442
        %vm5447 = vcmp.lt.s32.totalorder %v5444, %v5446
        %v5448 = vsel %vm5447, %v5444, %v5446
        %v5449 = vand.u32 %v5448, 65535
        %v5450 = vshra.s32 %v5448, 16
        %v5451 = vcvt.s32.f32 %v5449
        %v5452 = vcvt.s32.f32 %v5450
        %5453 = vmin.xlane.f32.xlu0 %v5452
        %v5454 = vpop.xlane.xlu0 %5453
        %vm5455 = vcmp.eq.f32.partialorder %v5452, %v5454
        %v5456 = vsel %vm5455, %v5451, inf
        %5457 = vmin.xlane.f32.xlu0 %v5456
        %v5458 = vpop.xlane.xlu0 %5457
        %v5459 = vcvt.f32.s32 %v5458
        %v5460 = vcvt.f32.s32 %v5454
        %v5461 = vshll.u32 %v5460, 16
        %v5462 = vadd.s32 %v5461, %v5459
        %vm5463 = vcmp.eq.s32.totalorder %v364, %v5462
        %vm5464 = vcmp.eq.s32.totalorder %v365, %v5462
        %vm5465 = vcmp.eq.s32.totalorder %v366, %v5462
        %vm5466 = vcmp.eq.s32.totalorder %v367, %v5462
        %vm5467 = vcmp.eq.s32.totalorder %v368, %v5462
        %vm5468 = vcmp.eq.s32.totalorder %v369, %v5462
        %vm5469 = vcmp.eq.s32.totalorder %v370, %v5462
        %vm5470 = vcmp.eq.s32.totalorder %v371, %v5462
        %v5471 = vsel %vm5463, 1, 0
        %v5472 = vsel %vm5464, 1, 0
        %v5473 = vsel %vm5465, 1, 0
        %v5474 = vsel %vm5466, 1, 0
        %v5475 = vsel %vm5467, 1, 0
        %v5476 = vsel %vm5468, 1, 0
        %v5477 = vsel %vm5469, 1, 0
        %v5478 = vsel %vm5470, 1, 0
        %v5479 = vcvt.s32.f32 %v5471
        %v5480 = vcvt.s32.f32 %v5472
        %v5481 = vcvt.s32.f32 %v5473
        %v5482 = vcvt.s32.f32 %v5474
        %v5483 = vcvt.s32.f32 %v5475
        %v5484 = vcvt.s32.f32 %v5476
        %v5485 = vcvt.s32.f32 %v5477
        %v5486 = vcvt.s32.f32 %v5478
        %v5487 = vpack.c.bf16 %v5479, %v5479
        %v5488 = vpack.c.bf16 %v5480, %v5480
        %v5489 = vpack.c.bf16 %v5481, %v5481
        %v5490 = vpack.c.bf16 %v5482, %v5482
        %v5491 = vpack.c.bf16 %v5483, %v5483
        %v5492 = vpack.c.bf16 %v5484, %v5484
        %v5493 = vpack.c.bf16 %v5485, %v5485
        %v5494 = vpack.c.bf16 %v5486, %v5486
        %5503 = vmatprep.subr.bf16.mxu0 0
        %5504 = vmatpush1.bf16.xpose.msra.mxu0 0
        %5505 = vmatprep.subr.bf16.mxu0 0
        %5506 = vmatpush1.bf16.xpose.msra.mxu0 0
        %5507 = vmatprep.subr.bf16.mxu0 0
        %5508 = vmatpush1.bf16.xpose.msra.mxu0 0
        %5509 = vmatprep.subr.bf16.mxu0 0
        %5510 = vmatpush1.bf16.xpose.msra.mxu0 0
        %5511 = vmatprep.subr.bf16.mxu0 0
        %5512 = vmatpush1.bf16.xpose.msra.mxu0 0
        %5513 = vmatprep.subr.bf16.mxu0 0
        %5514 = vmatpush1.bf16.xpose.msra.mxu0 0
        %5515 = vmatprep.subr.bf16.mxu0 0
        %5516 = vmatpush1.bf16.xpose.msra.mxu0 0
        %5517 = vmatprep.subr.bf16.mxu0 %v5212
        %5518 = vmatpush1.bf16.xpose.msra.mxu0 %v5211
        %5519 = vmatprep.subr.bf16.mxu0 0
        %5520 = vmatpush2.bf16.xpose.msra.mxu0 0
        %5521 = vmatprep.subr.bf16.mxu0 0
        %5522 = vmatpush2.bf16.xpose.msra.mxu0 0
        %5523 = vmatprep.subr.bf16.mxu0 0
        %5524 = vmatpush2.bf16.xpose.msra.mxu0 0
        %5525 = vmatprep.subr.bf16.mxu0 0
        %5526 = vmatpush2.bf16.xpose.msra.mxu0 0
        %5527 = vmatprep.subr.bf16.mxu0 0
        %5528 = vmatpush2.bf16.xpose.msra.mxu0 0
        %5529 = vmatprep.subr.bf16.mxu0 0
        %5530 = vmatpush2.bf16.xpose.msra.mxu0 0
        %5531 = vmatprep.subr.bf16.mxu0 0
        %5532 = vmatpush2.bf16.xpose.msra.mxu0 0
        %5533 = vmatprep.subr.bf16.mxu0 0
        %5534 = vmatpush2.bf16.xpose.msra.mxu0 0
        %5535 = vmatprep.mubr.bf16.mxu0 %v5488
        %5536 = vmatmul.mubr.bf16.gmra.mxu0 %v5487
        %v5537 = vpop.f32.mrf.mxu0
        %v5538 = vadd.f32 0.0, %v5537
        %v5539 = vpop.f32.mrf.mxu0
        %v5540 = vpop.f32.mrf.mxu0
        %v5541 = vpop.f32.mrf.mxu0
        %5542 = vdwg.mxu0
        %5543 = vmatprep.subr.bf16.mxu0 0
        %5544 = vmatpush1.bf16.xpose.msra.mxu0 0
        %5545 = vmatprep.subr.bf16.mxu0 0
        %5546 = vmatpush1.bf16.xpose.msra.mxu0 0
        %5547 = vmatprep.subr.bf16.mxu0 0
        %5548 = vmatpush1.bf16.xpose.msra.mxu0 0
        %5549 = vmatprep.subr.bf16.mxu0 0
        %5550 = vmatpush1.bf16.xpose.msra.mxu0 0
        %5551 = vmatprep.subr.bf16.mxu0 0
        %5552 = vmatpush1.bf16.xpose.msra.mxu0 0
        %5553 = vmatprep.subr.bf16.mxu0 0
        %5554 = vmatpush1.bf16.xpose.msra.mxu0 0
        %5555 = vmatprep.subr.bf16.mxu0 0
        %5556 = vmatpush1.bf16.xpose.msra.mxu0 0
        %5557 = vmatprep.subr.bf16.mxu0 %v5214
        %5558 = vmatpush1.bf16.xpose.msra.mxu0 %v5213
        %5559 = vmatprep.subr.bf16.mxu0 0
        %5560 = vmatpush2.bf16.xpose.msra.mxu0 0
        %5561 = vmatprep.subr.bf16.mxu0 0
        %5562 = vmatpush2.bf16.xpose.msra.mxu0 0
        %5563 = vmatprep.subr.bf16.mxu0 0
        %5564 = vmatpush2.bf16.xpose.msra.mxu0 0
        %5565 = vmatprep.subr.bf16.mxu0 0
        %5566 = vmatpush2.bf16.xpose.msra.mxu0 0
        %5567 = vmatprep.subr.bf16.mxu0 0
        %5568 = vmatpush2.bf16.xpose.msra.mxu0 0
        %5569 = vmatprep.subr.bf16.mxu0 0
        %5570 = vmatpush2.bf16.xpose.msra.mxu0 0
        %5571 = vmatprep.subr.bf16.mxu0 0
        %5572 = vmatpush2.bf16.xpose.msra.mxu0 0
        %5573 = vmatprep.subr.bf16.mxu0 0
        %5574 = vmatpush2.bf16.xpose.msra.mxu0 0
        %5575 = vmatprep.mubr.bf16.mxu0 %v5490
        %5576 = vmatmul.mubr.bf16.gmra.mxu0 %v5489
        %v5577 = vpop.f32.mrf.mxu0
        %v5578 = vadd.f32 %v5538, %v5577
        %v5579 = vpop.f32.mrf.mxu0
        %v5580 = vpop.f32.mrf.mxu0
        %v5581 = vpop.f32.mrf.mxu0
        %5582 = vdwg.mxu0
        %5583 = vmatprep.subr.bf16.mxu0 0
        %5584 = vmatpush1.bf16.xpose.msra.mxu0 0
        %5585 = vmatprep.subr.bf16.mxu0 0
        %5586 = vmatpush1.bf16.xpose.msra.mxu0 0
        %5587 = vmatprep.subr.bf16.mxu0 0
        %5588 = vmatpush1.bf16.xpose.msra.mxu0 0
        %5589 = vmatprep.subr.bf16.mxu0 0
        %5590 = vmatpush1.bf16.xpose.msra.mxu0 0
        %5591 = vmatprep.subr.bf16.mxu0 0
        %5592 = vmatpush1.bf16.xpose.msra.mxu0 0
        %5593 = vmatprep.subr.bf16.mxu0 0
        %5594 = vmatpush1.bf16.xpose.msra.mxu0 0
        %5595 = vmatprep.subr.bf16.mxu0 0
        %5596 = vmatpush1.bf16.xpose.msra.mxu0 0
        %5597 = vmatprep.subr.bf16.mxu0 %v5216
        %5598 = vmatpush1.bf16.xpose.msra.mxu0 %v5215
        %5599 = vmatprep.subr.bf16.mxu0 0
        %5600 = vmatpush2.bf16.xpose.msra.mxu0 0
        %5601 = vmatprep.subr.bf16.mxu0 0
        %5602 = vmatpush2.bf16.xpose.msra.mxu0 0
        %5603 = vmatprep.subr.bf16.mxu0 0
        %5604 = vmatpush2.bf16.xpose.msra.mxu0 0
        %5605 = vmatprep.subr.bf16.mxu0 0
        %5606 = vmatpush2.bf16.xpose.msra.mxu0 0
        %5607 = vmatprep.subr.bf16.mxu0 0
        %5608 = vmatpush2.bf16.xpose.msra.mxu0 0
        %5609 = vmatprep.subr.bf16.mxu0 0
        %5610 = vmatpush2.bf16.xpose.msra.mxu0 0
        %5611 = vmatprep.subr.bf16.mxu0 0
        %5612 = vmatpush2.bf16.xpose.msra.mxu0 0
        %5613 = vmatprep.subr.bf16.mxu0 0
        %5614 = vmatpush2.bf16.xpose.msra.mxu0 0
        %5615 = vmatprep.mubr.bf16.mxu0 %v5492
        %5616 = vmatmul.mubr.bf16.gmra.mxu0 %v5491
        %v5617 = vpop.f32.mrf.mxu0
        %v5618 = vadd.f32 %v5578, %v5617
        %v5619 = vpop.f32.mrf.mxu0
        %v5620 = vpop.f32.mrf.mxu0
        %v5621 = vpop.f32.mrf.mxu0
        %5622 = vdwg.mxu0
        %5623 = vmatprep.subr.bf16.mxu0 0
        %5624 = vmatpush1.bf16.xpose.msra.mxu0 0
        %5625 = vmatprep.subr.bf16.mxu0 0
        %5626 = vmatpush1.bf16.xpose.msra.mxu0 0
        %5627 = vmatprep.subr.bf16.mxu0 0
        %5628 = vmatpush1.bf16.xpose.msra.mxu0 0
        %5629 = vmatprep.subr.bf16.mxu0 0
        %5630 = vmatpush1.bf16.xpose.msra.mxu0 0
        %5631 = vmatprep.subr.bf16.mxu0 0
        %5632 = vmatpush1.bf16.xpose.msra.mxu0 0
        %5633 = vmatprep.subr.bf16.mxu0 0
        %5634 = vmatpush1.bf16.xpose.msra.mxu0 0
        %5635 = vmatprep.subr.bf16.mxu0 0
        %5636 = vmatpush1.bf16.xpose.msra.mxu0 0
        %5637 = vmatprep.subr.bf16.mxu0 %v5218
        %5638 = vmatpush1.bf16.xpose.msra.mxu0 %v5217
        %5639 = vmatprep.subr.bf16.mxu0 0
        %5640 = vmatpush2.bf16.xpose.msra.mxu0 0
        %5641 = vmatprep.subr.bf16.mxu0 0
        %5642 = vmatpush2.bf16.xpose.msra.mxu0 0
        %5643 = vmatprep.subr.bf16.mxu0 0
        %5644 = vmatpush2.bf16.xpose.msra.mxu0 0
        %5645 = vmatprep.subr.bf16.mxu0 0
        %5646 = vmatpush2.bf16.xpose.msra.mxu0 0
        %5647 = vmatprep.subr.bf16.mxu0 0
        %5648 = vmatpush2.bf16.xpose.msra.mxu0 0
        %5649 = vmatprep.subr.bf16.mxu0 0
        %5650 = vmatpush2.bf16.xpose.msra.mxu0 0
        %5651 = vmatprep.subr.bf16.mxu0 0
        %5652 = vmatpush2.bf16.xpose.msra.mxu0 0
        %5653 = vmatprep.subr.bf16.mxu0 0
        %5654 = vmatpush2.bf16.xpose.msra.mxu0 0
        %5655 = vmatprep.mubr.bf16.mxu0 %v5494
        %5656 = vmatmul.mubr.bf16.gmra.mxu0 %v5493
        %v5657 = vpop.f32.mrf.mxu0
        %v5658 = vadd.f32 %v5618, %v5657
        %v5659 = vpop.f32.mrf.mxu0
        %v5660 = vpop.f32.mrf.mxu0
        %v5661 = vpop.f32.mrf.mxu0
        %5662 = vdwg.mxu0
        %5664 = vrot.lane.b32.xlu0 %v5658, 16
        %v5665 = vpop.permute.xlu0 %5664
        %v5667 = vsub.f32 %v5181, %v5665
        %v5668 = vsel %vm1796, %v5462, %v5182
        %v5669 = vadd.f32 %v5183, %v5658
        %v5670 = vmul.f32 %v5667, %v5667
        %5672 = vrot.lane.b32.xlu0 %v5670, 112
        %v5673 = vpop.permute.xlu0 %5672
        %v5675 = vadd.f32 %v5189, %v5673
        %s5676 = scalar_lea.vmem [#allocation2], 352
        %v5677 = vld [vmem:[%s5676] sm:$0xff]
        %v5678 = vld [vmem:[%s5676 + $0x8] sm:$0xff]
        %v5679 = vld [vmem:[%s5676 + $0x10] sm:$0xff]
        %v5680 = vld [vmem:[%s5676 + $0x18] sm:$0xff]
        %v5681 = vpack.c.bf16 %v5667, %v5667
        %5683 = vrot.lane.b32.xlu0 %v5681, 112
        %v5684 = vpop.permute.xlu0 %5683
        %v5689 = vunpack.c.l.b16 %v5677
        %v5690 = vunpack.c.h.b16 %v5677
        %v5691 = vunpack.c.l.b16 %v5678
        %v5692 = vunpack.c.h.b16 %v5678
        %v5693 = vunpack.c.l.b16 %v5679
        %v5694 = vunpack.c.h.b16 %v5679
        %v5695 = vunpack.c.l.b16 %v5680
        %v5696 = vunpack.c.h.b16 %v5680
        %v5697 = vpack.c.b16 %v5689, %v5689
        %v5698 = vpack.c.b16 %v5690, %v5690
        %v5699 = vpack.c.b16 %v5691, %v5691
        %v5700 = vpack.c.b16 %v5692, %v5692
        %v5701 = vpack.c.b16 %v5693, %v5693
        %v5702 = vpack.c.b16 %v5694, %v5694
        %v5703 = vpack.c.b16 %v5695, %v5695
        %v5704 = vpack.c.b16 %v5696, %v5696
        %v5706 = vsel %vm397, %v5684, 0
        %v5709 = vsel %vm401, %v5697, 0
        %v5712 = vsel %vm401, %v5698, 0
        %v5715 = vsel %vm401, %v5699, 0
        %v5718 = vsel %vm401, %v5700, 0
        %v5721 = vsel %vm401, %v5701, 0
        %v5724 = vsel %vm401, %v5702, 0
        %v5727 = vsel %vm401, %v5703, 0
        %v5730 = vsel %vm401, %v5704, 0
        %5732 = vmatprep.subr.bf16.mxu0 0
        %5733 = vmatpush1.bf16.msra.mxu0 0
        %5734 = vmatprep.subr.bf16.mxu0 0
        %5735 = vmatpush1.bf16.msra.mxu0 0
        %5736 = vmatprep.subr.bf16.mxu0 0
        %5737 = vmatpush1.bf16.msra.mxu0 0
        %5738 = vmatprep.subr.bf16.mxu0 0
        %5739 = vmatpush1.bf16.msra.mxu0 0
        %5740 = vmatprep.subr.bf16.mxu0 0
        %5741 = vmatpush1.bf16.msra.mxu0 0
        %5742 = vmatprep.subr.bf16.mxu0 0
        %5743 = vmatpush1.bf16.msra.mxu0 0
        %5744 = vmatprep.subr.bf16.mxu0 0
        %5745 = vmatpush1.bf16.msra.mxu0 0
        %5746 = vmatprep.subr.bf16.mxu0 %v5712
        %5747 = vmatpush1.bf16.msra.mxu0 %v5709
        %5748 = vmatprep.subr.bf16.mxu0 0
        %5749 = vmatpush2.bf16.msra.mxu0 0
        %5750 = vmatprep.subr.bf16.mxu0 0
        %5751 = vmatpush2.bf16.msra.mxu0 0
        %5752 = vmatprep.subr.bf16.mxu0 0
        %5753 = vmatpush2.bf16.msra.mxu0 0
        %5754 = vmatprep.subr.bf16.mxu0 0
        %5755 = vmatpush2.bf16.msra.mxu0 0
        %5756 = vmatprep.subr.bf16.mxu0 0
        %5757 = vmatpush2.bf16.msra.mxu0 0
        %5758 = vmatprep.subr.bf16.mxu0 0
        %5759 = vmatpush2.bf16.msra.mxu0 0
        %5760 = vmatprep.subr.bf16.mxu0 0
        %5761 = vmatpush2.bf16.msra.mxu0 0
        %5762 = vmatprep.subr.bf16.mxu0 0
        %5763 = vmatpush2.bf16.msra.mxu0 0
        %5764 = vmatprep.mubr.bf16.mxu0 0
        %5765 = vmatmul.mubr.bf16.gmra.mxu0 %v5706
        %v5766 = vpop.f32.mrf.mxu0
        %v5767 = vadd.f32 0.0, %v5766
        %v5768 = vpop.f32.mrf.mxu0
        %v5769 = vadd.f32 0.0, %v5768
        %v5770 = vpop.f32.mrf.mxu0
        %v5771 = vpop.f32.mrf.mxu0
        %5772 = vdwg.mxu0
        %5773 = vmatprep.subr.bf16.mxu0 0
        %5774 = vmatpush1.bf16.msra.mxu0 0
        %5775 = vmatprep.subr.bf16.mxu0 0
        %5776 = vmatpush1.bf16.msra.mxu0 0
        %5777 = vmatprep.subr.bf16.mxu0 0
        %5778 = vmatpush1.bf16.msra.mxu0 0
        %5779 = vmatprep.subr.bf16.mxu0 0
        %5780 = vmatpush1.bf16.msra.mxu0 0
        %5781 = vmatprep.subr.bf16.mxu0 0
        %5782 = vmatpush1.bf16.msra.mxu0 0
        %5783 = vmatprep.subr.bf16.mxu0 0
        %5784 = vmatpush1.bf16.msra.mxu0 0
        %5785 = vmatprep.subr.bf16.mxu0 0
        %5786 = vmatpush1.bf16.msra.mxu0 0
        %5787 = vmatprep.subr.bf16.mxu0 %v5718
        %5788 = vmatpush1.bf16.msra.mxu0 %v5715
        %5789 = vmatprep.subr.bf16.mxu0 0
        %5790 = vmatpush2.bf16.msra.mxu0 0
        %5791 = vmatprep.subr.bf16.mxu0 0
        %5792 = vmatpush2.bf16.msra.mxu0 0
        %5793 = vmatprep.subr.bf16.mxu0 0
        %5794 = vmatpush2.bf16.msra.mxu0 0
        %5795 = vmatprep.subr.bf16.mxu0 0
        %5796 = vmatpush2.bf16.msra.mxu0 0
        %5797 = vmatprep.subr.bf16.mxu0 0
        %5798 = vmatpush2.bf16.msra.mxu0 0
        %5799 = vmatprep.subr.bf16.mxu0 0
        %5800 = vmatpush2.bf16.msra.mxu0 0
        %5801 = vmatprep.subr.bf16.mxu0 0
        %5802 = vmatpush2.bf16.msra.mxu0 0
        %5803 = vmatprep.subr.bf16.mxu0 0
        %5804 = vmatpush2.bf16.msra.mxu0 0
        %5805 = vmatprep.mubr.bf16.mxu0 0
        %5806 = vmatmul.mubr.bf16.gmra.mxu0 %v5706
        %v5807 = vpop.f32.mrf.mxu0
        %v5808 = vadd.f32 0.0, %v5807
        %v5809 = vpop.f32.mrf.mxu0
        %v5810 = vadd.f32 0.0, %v5809
        %v5811 = vpop.f32.mrf.mxu0
        %v5812 = vpop.f32.mrf.mxu0
        %5813 = vdwg.mxu0
        %5814 = vmatprep.subr.bf16.mxu0 0
        %5815 = vmatpush1.bf16.msra.mxu0 0
        %5816 = vmatprep.subr.bf16.mxu0 0
        %5817 = vmatpush1.bf16.msra.mxu0 0
        %5818 = vmatprep.subr.bf16.mxu0 0
        %5819 = vmatpush1.bf16.msra.mxu0 0
        %5820 = vmatprep.subr.bf16.mxu0 0
        %5821 = vmatpush1.bf16.msra.mxu0 0
        %5822 = vmatprep.subr.bf16.mxu0 0
        %5823 = vmatpush1.bf16.msra.mxu0 0
        %5824 = vmatprep.subr.bf16.mxu0 0
        %5825 = vmatpush1.bf16.msra.mxu0 0
        %5826 = vmatprep.subr.bf16.mxu0 0
        %5827 = vmatpush1.bf16.msra.mxu0 0
        %5828 = vmatprep.subr.bf16.mxu0 %v5724
        %5829 = vmatpush1.bf16.msra.mxu0 %v5721
        %5830 = vmatprep.subr.bf16.mxu0 0
        %5831 = vmatpush2.bf16.msra.mxu0 0
        %5832 = vmatprep.subr.bf16.mxu0 0
        %5833 = vmatpush2.bf16.msra.mxu0 0
        %5834 = vmatprep.subr.bf16.mxu0 0
        %5835 = vmatpush2.bf16.msra.mxu0 0
        %5836 = vmatprep.subr.bf16.mxu0 0
        %5837 = vmatpush2.bf16.msra.mxu0 0
        %5838 = vmatprep.subr.bf16.mxu0 0
        %5839 = vmatpush2.bf16.msra.mxu0 0
        %5840 = vmatprep.subr.bf16.mxu0 0
        %5841 = vmatpush2.bf16.msra.mxu0 0
        %5842 = vmatprep.subr.bf16.mxu0 0
        %5843 = vmatpush2.bf16.msra.mxu0 0
        %5844 = vmatprep.subr.bf16.mxu0 0
        %5845 = vmatpush2.bf16.msra.mxu0 0
        %5846 = vmatprep.mubr.bf16.mxu0 0
        %5847 = vmatmul.mubr.bf16.gmra.mxu0 %v5706
        %v5848 = vpop.f32.mrf.mxu0
        %v5849 = vadd.f32 0.0, %v5848
        %v5850 = vpop.f32.mrf.mxu0
        %v5851 = vadd.f32 0.0, %v5850
        %v5852 = vpop.f32.mrf.mxu0
        %v5853 = vpop.f32.mrf.mxu0
        %5854 = vdwg.mxu0
        %5855 = vmatprep.subr.bf16.mxu0 0
        %5856 = vmatpush1.bf16.msra.mxu0 0
        %5857 = vmatprep.subr.bf16.mxu0 0
        %5858 = vmatpush1.bf16.msra.mxu0 0
        %5859 = vmatprep.subr.bf16.mxu0 0
        %5860 = vmatpush1.bf16.msra.mxu0 0
        %5861 = vmatprep.subr.bf16.mxu0 0
        %5862 = vmatpush1.bf16.msra.mxu0 0
        %5863 = vmatprep.subr.bf16.mxu0 0
        %5864 = vmatpush1.bf16.msra.mxu0 0
        %5865 = vmatprep.subr.bf16.mxu0 0
        %5866 = vmatpush1.bf16.msra.mxu0 0
        %5867 = vmatprep.subr.bf16.mxu0 0
        %5868 = vmatpush1.bf16.msra.mxu0 0
        %5869 = vmatprep.subr.bf16.mxu0 %v5730
        %5870 = vmatpush1.bf16.msra.mxu0 %v5727
        %5871 = vmatprep.subr.bf16.mxu0 0
        %5872 = vmatpush2.bf16.msra.mxu0 0
        %5873 = vmatprep.subr.bf16.mxu0 0
        %5874 = vmatpush2.bf16.msra.mxu0 0
        %5875 = vmatprep.subr.bf16.mxu0 0
        %5876 = vmatpush2.bf16.msra.mxu0 0
        %5877 = vmatprep.subr.bf16.mxu0 0
        %5878 = vmatpush2.bf16.msra.mxu0 0
        %5879 = vmatprep.subr.bf16.mxu0 0
        %5880 = vmatpush2.bf16.msra.mxu0 0
        %5881 = vmatprep.subr.bf16.mxu0 0
        %5882 = vmatpush2.bf16.msra.mxu0 0
        %5883 = vmatprep.subr.bf16.mxu0 0
        %5884 = vmatpush2.bf16.msra.mxu0 0
        %5885 = vmatprep.subr.bf16.mxu0 0
        %5886 = vmatpush2.bf16.msra.mxu0 0
        %5887 = vmatprep.mubr.bf16.mxu0 0
        %5888 = vmatmul.mubr.bf16.gmra.mxu0 %v5706
        %v5889 = vpop.f32.mrf.mxu0
        %v5890 = vadd.f32 0.0, %v5889
        %v5891 = vpop.f32.mrf.mxu0
        %v5892 = vadd.f32 0.0, %v5891
        %v5893 = vpop.f32.mrf.mxu0
        %v5894 = vpop.f32.mrf.mxu0
        %5895 = vdwg.mxu0
        %v5896 = vmax.f32 %v5767, %v5849
        %v5897 = vmax.f32 %v5769, %v5851
        %v5898 = vmax.f32 %v5808, %v5890
        %v5899 = vmax.f32 %v5810, %v5892
        %v5900 = vmax.f32 %v5896, %v5897
        %v5901 = vmax.f32 %v5898, %v5899
        %v5902 = vmax.f32 %v5900, %v5901
        %5903 = vmax.xlane.f32.xlu0 %v5902
        %v5904 = vpop.xlane.xlu0 %5903
        %vm5905 = vcmp.ge.f32.partialorder %v5767, %v5904
        %vm5906 = vcmp.ge.f32.partialorder %v5769, %v5904
        %vm5907 = vcmp.ge.f32.partialorder %v5808, %v5904
        %vm5908 = vcmp.ge.f32.partialorder %v5810, %v5904
        %vm5909 = vcmp.ge.f32.partialorder %v5849, %v5904
        %vm5910 = vcmp.ge.f32.partialorder %v5851, %v5904
        %vm5911 = vcmp.ge.f32.partialorder %v5890, %v5904
        %vm5912 = vcmp.ge.f32.partialorder %v5892, %v5904
        %v5913 = vsel %vm5905, %v364, 1024
        %v5914 = vsel %vm5906, %v365, 1024
        %v5915 = vsel %vm5907, %v366, 1024
        %v5916 = vsel %vm5908, %v367, 1024
        %v5917 = vsel %vm5909, %v368, 1024
        %v5918 = vsel %vm5910, %v369, 1024
        %v5919 = vsel %vm5911, %v370, 1024
        %v5920 = vsel %vm5912, %v371, 1024
        %vm5921 = vcmp.lt.s32.totalorder %v5913, %v5917
        %v5922 = vsel %vm5921, %v5913, %v5917
        %vm5923 = vcmp.lt.s32.totalorder %v5914, %v5918
        %v5924 = vsel %vm5923, %v5914, %v5918
        %vm5925 = vcmp.lt.s32.totalorder %v5915, %v5919
        %v5926 = vsel %vm5925, %v5915, %v5919
        %vm5927 = vcmp.lt.s32.totalorder %v5916, %v5920
        %v5928 = vsel %vm5927, %v5916, %v5920
        %vm5929 = vcmp.lt.s32.totalorder %v5922, %v5924
        %v5930 = vsel %vm5929, %v5922, %v5924
        %vm5931 = vcmp.lt.s32.totalorder %v5926, %v5928
        %v5932 = vsel %vm5931, %v5926, %v5928
        %vm5933 = vcmp.lt.s32.totalorder %v5930, %v5932
        %v5934 = vsel %vm5933, %v5930, %v5932
        %v5935 = vand.u32 %v5934, 65535
        %v5936 = vshra.s32 %v5934, 16
        %v5937 = vcvt.s32.f32 %v5935
        %v5938 = vcvt.s32.f32 %v5936
        %5939 = vmin.xlane.f32.xlu0 %v5938
        %v5940 = vpop.xlane.xlu0 %5939
        %vm5941 = vcmp.eq.f32.partialorder %v5938, %v5940
        %v5942 = vsel %vm5941, %v5937, inf
        %5943 = vmin.xlane.f32.xlu0 %v5942
        %v5944 = vpop.xlane.xlu0 %5943
        %v5945 = vcvt.f32.s32 %v5944
        %v5946 = vcvt.f32.s32 %v5940
        %v5947 = vshll.u32 %v5946, 16
        %v5948 = vadd.s32 %v5947, %v5945
        %vm5949 = vcmp.eq.s32.totalorder %v364, %v5948
        %vm5950 = vcmp.eq.s32.totalorder %v365, %v5948
        %vm5951 = vcmp.eq.s32.totalorder %v366, %v5948
        %vm5952 = vcmp.eq.s32.totalorder %v367, %v5948
        %vm5953 = vcmp.eq.s32.totalorder %v368, %v5948
        %vm5954 = vcmp.eq.s32.totalorder %v369, %v5948
        %vm5955 = vcmp.eq.s32.totalorder %v370, %v5948
        %vm5956 = vcmp.eq.s32.totalorder %v371, %v5948
        %v5957 = vsel %vm5949, 1, 0
        %v5958 = vsel %vm5950, 1, 0
        %v5959 = vsel %vm5951, 1, 0
        %v5960 = vsel %vm5952, 1, 0
        %v5961 = vsel %vm5953, 1, 0
        %v5962 = vsel %vm5954, 1, 0
        %v5963 = vsel %vm5955, 1, 0
        %v5964 = vsel %vm5956, 1, 0
        %v5965 = vcvt.s32.f32 %v5957
        %v5966 = vcvt.s32.f32 %v5958
        %v5967 = vcvt.s32.f32 %v5959
        %v5968 = vcvt.s32.f32 %v5960
        %v5969 = vcvt.s32.f32 %v5961
        %v5970 = vcvt.s32.f32 %v5962
        %v5971 = vcvt.s32.f32 %v5963
        %v5972 = vcvt.s32.f32 %v5964
        %v5973 = vpack.c.bf16 %v5965, %v5965
        %v5974 = vpack.c.bf16 %v5966, %v5966
        %v5975 = vpack.c.bf16 %v5967, %v5967
        %v5976 = vpack.c.bf16 %v5968, %v5968
        %v5977 = vpack.c.bf16 %v5969, %v5969
        %v5978 = vpack.c.bf16 %v5970, %v5970
        %v5979 = vpack.c.bf16 %v5971, %v5971
        %v5980 = vpack.c.bf16 %v5972, %v5972
        %5989 = vmatprep.subr.bf16.mxu0 0
        %5990 = vmatpush1.bf16.xpose.msra.mxu0 0
        %5991 = vmatprep.subr.bf16.mxu0 0
        %5992 = vmatpush1.bf16.xpose.msra.mxu0 0
        %5993 = vmatprep.subr.bf16.mxu0 0
        %5994 = vmatpush1.bf16.xpose.msra.mxu0 0
        %5995 = vmatprep.subr.bf16.mxu0 0
        %5996 = vmatpush1.bf16.xpose.msra.mxu0 0
        %5997 = vmatprep.subr.bf16.mxu0 0
        %5998 = vmatpush1.bf16.xpose.msra.mxu0 0
        %5999 = vmatprep.subr.bf16.mxu0 0
        %6000 = vmatpush1.bf16.xpose.msra.mxu0 0
        %6001 = vmatprep.subr.bf16.mxu0 0
        %6002 = vmatpush1.bf16.xpose.msra.mxu0 0
        %6003 = vmatprep.subr.bf16.mxu0 %v5698
        %6004 = vmatpush1.bf16.xpose.msra.mxu0 %v5697
        %6005 = vmatprep.subr.bf16.mxu0 0
        %6006 = vmatpush2.bf16.xpose.msra.mxu0 0
        %6007 = vmatprep.subr.bf16.mxu0 0
        %6008 = vmatpush2.bf16.xpose.msra.mxu0 0
        %6009 = vmatprep.subr.bf16.mxu0 0
        %6010 = vmatpush2.bf16.xpose.msra.mxu0 0
        %6011 = vmatprep.subr.bf16.mxu0 0
        %6012 = vmatpush2.bf16.xpose.msra.mxu0 0
        %6013 = vmatprep.subr.bf16.mxu0 0
        %6014 = vmatpush2.bf16.xpose.msra.mxu0 0
        %6015 = vmatprep.subr.bf16.mxu0 0
        %6016 = vmatpush2.bf16.xpose.msra.mxu0 0
        %6017 = vmatprep.subr.bf16.mxu0 0
        %6018 = vmatpush2.bf16.xpose.msra.mxu0 0
        %6019 = vmatprep.subr.bf16.mxu0 0
        %6020 = vmatpush2.bf16.xpose.msra.mxu0 0
        %6021 = vmatprep.mubr.bf16.mxu0 %v5974
        %6022 = vmatmul.mubr.bf16.gmra.mxu0 %v5973
        %v6023 = vpop.f32.mrf.mxu0
        %v6024 = vadd.f32 0.0, %v6023
        %v6025 = vpop.f32.mrf.mxu0
        %v6026 = vpop.f32.mrf.mxu0
        %v6027 = vpop.f32.mrf.mxu0
        %6028 = vdwg.mxu0
        %6029 = vmatprep.subr.bf16.mxu0 0
        %6030 = vmatpush1.bf16.xpose.msra.mxu0 0
        %6031 = vmatprep.subr.bf16.mxu0 0
        %6032 = vmatpush1.bf16.xpose.msra.mxu0 0
        %6033 = vmatprep.subr.bf16.mxu0 0
        %6034 = vmatpush1.bf16.xpose.msra.mxu0 0
        %6035 = vmatprep.subr.bf16.mxu0 0
        %6036 = vmatpush1.bf16.xpose.msra.mxu0 0
        %6037 = vmatprep.subr.bf16.mxu0 0
        %6038 = vmatpush1.bf16.xpose.msra.mxu0 0
        %6039 = vmatprep.subr.bf16.mxu0 0
        %6040 = vmatpush1.bf16.xpose.msra.mxu0 0
        %6041 = vmatprep.subr.bf16.mxu0 0
        %6042 = vmatpush1.bf16.xpose.msra.mxu0 0
        %6043 = vmatprep.subr.bf16.mxu0 %v5700
        %6044 = vmatpush1.bf16.xpose.msra.mxu0 %v5699
        %6045 = vmatprep.subr.bf16.mxu0 0
        %6046 = vmatpush2.bf16.xpose.msra.mxu0 0
        %6047 = vmatprep.subr.bf16.mxu0 0
        %6048 = vmatpush2.bf16.xpose.msra.mxu0 0
        %6049 = vmatprep.subr.bf16.mxu0 0
        %6050 = vmatpush2.bf16.xpose.msra.mxu0 0
        %6051 = vmatprep.subr.bf16.mxu0 0
        %6052 = vmatpush2.bf16.xpose.msra.mxu0 0
        %6053 = vmatprep.subr.bf16.mxu0 0
        %6054 = vmatpush2.bf16.xpose.msra.mxu0 0
        %6055 = vmatprep.subr.bf16.mxu0 0
        %6056 = vmatpush2.bf16.xpose.msra.mxu0 0
        %6057 = vmatprep.subr.bf16.mxu0 0
        %6058 = vmatpush2.bf16.xpose.msra.mxu0 0
        %6059 = vmatprep.subr.bf16.mxu0 0
        %6060 = vmatpush2.bf16.xpose.msra.mxu0 0
        %6061 = vmatprep.mubr.bf16.mxu0 %v5976
        %6062 = vmatmul.mubr.bf16.gmra.mxu0 %v5975
        %v6063 = vpop.f32.mrf.mxu0
        %v6064 = vadd.f32 %v6024, %v6063
        %v6065 = vpop.f32.mrf.mxu0
        %v6066 = vpop.f32.mrf.mxu0
        %v6067 = vpop.f32.mrf.mxu0
        %6068 = vdwg.mxu0
        %6069 = vmatprep.subr.bf16.mxu0 0
        %6070 = vmatpush1.bf16.xpose.msra.mxu0 0
        %6071 = vmatprep.subr.bf16.mxu0 0
        %6072 = vmatpush1.bf16.xpose.msra.mxu0 0
        %6073 = vmatprep.subr.bf16.mxu0 0
        %6074 = vmatpush1.bf16.xpose.msra.mxu0 0
        %6075 = vmatprep.subr.bf16.mxu0 0
        %6076 = vmatpush1.bf16.xpose.msra.mxu0 0
        %6077 = vmatprep.subr.bf16.mxu0 0
        %6078 = vmatpush1.bf16.xpose.msra.mxu0 0
        %6079 = vmatprep.subr.bf16.mxu0 0
        %6080 = vmatpush1.bf16.xpose.msra.mxu0 0
        %6081 = vmatprep.subr.bf16.mxu0 0
        %6082 = vmatpush1.bf16.xpose.msra.mxu0 0
        %6083 = vmatprep.subr.bf16.mxu0 %v5702
        %6084 = vmatpush1.bf16.xpose.msra.mxu0 %v5701
        %6085 = vmatprep.subr.bf16.mxu0 0
        %6086 = vmatpush2.bf16.xpose.msra.mxu0 0
        %6087 = vmatprep.subr.bf16.mxu0 0
        %6088 = vmatpush2.bf16.xpose.msra.mxu0 0
        %6089 = vmatprep.subr.bf16.mxu0 0
        %6090 = vmatpush2.bf16.xpose.msra.mxu0 0
        %6091 = vmatprep.subr.bf16.mxu0 0
        %6092 = vmatpush2.bf16.xpose.msra.mxu0 0
        %6093 = vmatprep.subr.bf16.mxu0 0
        %6094 = vmatpush2.bf16.xpose.msra.mxu0 0
        %6095 = vmatprep.subr.bf16.mxu0 0
        %6096 = vmatpush2.bf16.xpose.msra.mxu0 0
        %6097 = vmatprep.subr.bf16.mxu0 0
        %6098 = vmatpush2.bf16.xpose.msra.mxu0 0
        %6099 = vmatprep.subr.bf16.mxu0 0
        %6100 = vmatpush2.bf16.xpose.msra.mxu0 0
        %6101 = vmatprep.mubr.bf16.mxu0 %v5978
        %6102 = vmatmul.mubr.bf16.gmra.mxu0 %v5977
        %v6103 = vpop.f32.mrf.mxu0
        %v6104 = vadd.f32 %v6064, %v6103
        %v6105 = vpop.f32.mrf.mxu0
        %v6106 = vpop.f32.mrf.mxu0
        %v6107 = vpop.f32.mrf.mxu0
        %6108 = vdwg.mxu0
        %6109 = vmatprep.subr.bf16.mxu0 0
        %6110 = vmatpush1.bf16.xpose.msra.mxu0 0
        %6111 = vmatprep.subr.bf16.mxu0 0
        %6112 = vmatpush1.bf16.xpose.msra.mxu0 0
        %6113 = vmatprep.subr.bf16.mxu0 0
        %6114 = vmatpush1.bf16.xpose.msra.mxu0 0
        %6115 = vmatprep.subr.bf16.mxu0 0
        %6116 = vmatpush1.bf16.xpose.msra.mxu0 0
        %6117 = vmatprep.subr.bf16.mxu0 0
        %6118 = vmatpush1.bf16.xpose.msra.mxu0 0
        %6119 = vmatprep.subr.bf16.mxu0 0
        %6120 = vmatpush1.bf16.xpose.msra.mxu0 0
        %6121 = vmatprep.subr.bf16.mxu0 0
        %6122 = vmatpush1.bf16.xpose.msra.mxu0 0
        %6123 = vmatprep.subr.bf16.mxu0 %v5704
        %6124 = vmatpush1.bf16.xpose.msra.mxu0 %v5703
        %6125 = vmatprep.subr.bf16.mxu0 0
        %6126 = vmatpush2.bf16.xpose.msra.mxu0 0
        %6127 = vmatprep.subr.bf16.mxu0 0
        %6128 = vmatpush2.bf16.xpose.msra.mxu0 0
        %6129 = vmatprep.subr.bf16.mxu0 0
        %6130 = vmatpush2.bf16.xpose.msra.mxu0 0
        %6131 = vmatprep.subr.bf16.mxu0 0
        %6132 = vmatpush2.bf16.xpose.msra.mxu0 0
        %6133 = vmatprep.subr.bf16.mxu0 0
        %6134 = vmatpush2.bf16.xpose.msra.mxu0 0
        %6135 = vmatprep.subr.bf16.mxu0 0
        %6136 = vmatpush2.bf16.xpose.msra.mxu0 0
        %6137 = vmatprep.subr.bf16.mxu0 0
        %6138 = vmatpush2.bf16.xpose.msra.mxu0 0
        %6139 = vmatprep.subr.bf16.mxu0 0
        %6140 = vmatpush2.bf16.xpose.msra.mxu0 0
        %6141 = vmatprep.mubr.bf16.mxu0 %v5980
        %6142 = vmatmul.mubr.bf16.gmra.mxu0 %v5979
        %v6143 = vpop.f32.mrf.mxu0
        %v6144 = vadd.f32 %v6104, %v6143
        %v6145 = vpop.f32.mrf.mxu0
        %v6146 = vpop.f32.mrf.mxu0
        %v6147 = vpop.f32.mrf.mxu0
        %6148 = vdwg.mxu0
        %6150 = vrot.lane.b32.xlu0 %v6144, 16
        %v6151 = vpop.permute.xlu0 %6150
        %v6153 = vsub.f32 %v5667, %v6151
        %v6154 = vsel %vm2272, %v5948, %v5668
        %v6155 = vadd.f32 %v5669, %v6144
        %v6156 = vmul.f32 %v6153, %v6153
        %6158 = vrot.lane.b32.xlu0 %v6156, 112
        %v6159 = vpop.permute.xlu0 %6158
        %v6161 = vadd.f32 %v5675, %v6159
        %6163 = vrot.lane.b32.xlu0 %v4213, 8
        %v6164 = vpop.permute.xlu0 %6163
        %6167 = vrot.lane.b32.xlu0 %v6155, 16
        %v6168 = vpop.permute.xlu0 %6167
        %v6170 = vsel %vm397, %v2274, %v6164
        %vm6171 = vcmask 130048
        %v6172 = vsel %vm6171, %v6170, %v6168
        %v6173 = vld [vmem:[%s2] sm:$0xff]
        %v6174 = vld [vmem:[%s2 + $0x8] sm:$0xff]
        %v6175 = vld [vmem:[%s2 + $0x10] sm:$0xff]
        %vm6176 = vcmask 195584
        %v6178 = vsel %vm6176, %v6172, 0
        %6180 = vmatprep.subr.mxu0 0.0
        %6181 = vmatpush1.msra.mxu0 0.0
        %6182 = vmatprep.subr.mxu0 0.0
        %6183 = vmatpush1.msra.mxu0 0.0
        %6184 = vmatprep.subr.mxu0 0.0
        %6185 = vmatpush1.msra.mxu0 0.0
        %6186 = vmatprep.subr.mxu0 0.0
        %6187 = vmatpush1.msra.mxu0 0.0
        %6188 = vmatprep.subr.mxu0 0.0
        %6189 = vmatpush1.msra.mxu0 0.0
        %6190 = vmatprep.subr.mxu0 0.0
        %6191 = vmatpush1.msra.mxu0 0.0
        %6192 = vmatprep.subr.mxu0 0.0
        %6193 = vmatpush1.msra.mxu0 0.0
        %6194 = vmatprep.subr.mxu0 0.0
        %6195 = vmatpush1.msra.mxu0 0.0
        %6196 = vmatprep.subr.mxu0 0.0
        %6197 = vmatpush1.msra.mxu0 0.0
        %6198 = vmatprep.subr.mxu0 0.0
        %6199 = vmatpush1.msra.mxu0 0.0
        %6200 = vmatprep.subr.mxu0 0.0
        %6201 = vmatpush1.msra.mxu0 0.0
        %6202 = vmatprep.subr.mxu0 0.0
        %6203 = vmatpush1.msra.mxu0 0.0
        %6204 = vmatprep.subr.mxu0 0.0
        %6205 = vmatpush1.msra.mxu0 0.0
        %6206 = vmatprep.subr.mxu0 0.0
        %6207 = vmatpush1.msra.mxu0 %v6175
        %6208 = vmatprep.subr.mxu0 0.0
        %6209 = vmatpush1.msra.mxu0 %v6174
        %6210 = vmatprep.subr.mxu0 0.0
        %6211 = vmatpush1.msra.mxu0 %v6173
        %6212 = vmatprep.subr.mxu0 0.0
        %6213 = vmatpush2.msra.mxu0 0.0
        %6214 = vmatprep.subr.mxu0 0.0
        %6215 = vmatpush2.msra.mxu0 0.0
        %6216 = vmatprep.subr.mxu0 0.0
        %6217 = vmatpush2.msra.mxu0 0.0
        %6218 = vmatprep.subr.mxu0 0.0
        %6219 = vmatpush2.msra.mxu0 0.0
        %6220 = vmatprep.subr.mxu0 0.0
        %6221 = vmatpush2.msra.mxu0 0.0
        %6222 = vmatprep.subr.mxu0 0.0
        %6223 = vmatpush2.msra.mxu0 0.0
        %6224 = vmatprep.subr.mxu0 0.0
        %6225 = vmatpush2.msra.mxu0 0.0
        %6226 = vmatprep.subr.mxu0 0.0
        %6227 = vmatpush2.msra.mxu0 0.0
        %6228 = vmatprep.subr.mxu0 0.0
        %6229 = vmatpush2.msra.mxu0 0.0
        %6230 = vmatprep.subr.mxu0 0.0
        %6231 = vmatpush2.msra.mxu0 0.0
        %6232 = vmatprep.subr.mxu0 0.0
        %6233 = vmatpush2.msra.mxu0 0.0
        %6234 = vmatprep.subr.mxu0 0.0
        %6235 = vmatpush2.msra.mxu0 0.0
        %6236 = vmatprep.subr.mxu0 0.0
        %6237 = vmatpush2.msra.mxu0 0.0
        %6238 = vmatprep.subr.mxu0 0.0
        %6239 = vmatpush2.msra.mxu0 0.0
        %6240 = vmatprep.subr.mxu0 0.0
        %6241 = vmatpush2.msra.mxu0 0.0
        %6242 = vmatprep.subr.mxu0 0.0
        %6243 = vmatpush2.msra.mxu0 0.0
        %6244 = vmatprep.mubr.f32.mxu0 0.0
        %6245 = vmatmul.mubr.f32.gmra.mxu0 %v6178
        %v6246 = vpop.f32.mrf.mxu0
        %v6247 = vadd.f32 0.0, %v6246
        %v6248 = vpop.f32.mrf.mxu0
        %6249 = vdwg.mxu0
        %6250 = vst.msk [vmem:[%s261] sm:$0xff] %vm289, %v6247
        %6251 = vrot.lane.b32.xlu0 %v4212, 4
        %v6252 = vpop.permute.xlu0 %6251
        %6253 = vrot.lane.b32.xlu0 %v6154, 8
        %v6254 = vpop.permute.xlu0 %6253
        %vm6255 = vcmask 31744
        %v6256 = vsel %vm6255, %v2273, %v6252
        %v6257 = vsel %vm397, %v6256, %v6254
        %vm6258 = vcmask 97280
        %6259 = vst.msk [vmem:[%s268] sm:$0xff] %vm6258, %v6257
        %v6260 = vsel %vm397, %v6161, 0.0
        %6261 = vadd.xlane.f32.xlu0 %v6260
        %v6262 = vpop.xlane.xlu0 %6261
        %v6263 = vrot.slane %v6262, 4
        %v6264 = vadd.f32 %v6262, %v6263
        %v6265 = vrot.slane %v6264, 2
        %v6266 = vadd.f32 %v6264, %v6265
        %v6267 = vrot.slane %v6266, 1
        %v6268 = vadd.f32 %v6266, %v6267
        %s6269 = vtos %v6268
        %v6270 = vstv %s6269
        %6271 = vst [vmem:[%s274] sm:$0x1] %v6270
        %s6272 = sand.u32 %s122, 1
        %s6273 = scalar_lea.sflag [#allocation4], %s6272
        %s6274 = sand.u32 %s122, 1
        %s6275 = smul.addr %s6274, 8
        %s6276 = scalar_lea.vmem [#allocation5], %s6275
        %s6277 = sand.u32 %s25, 1
        %s6278 = scalar_lea.sflag [#allocation7], %s6277
        %s6279 = sand.u32 %s148, 1
        %s6280 = smul.addr %s6279, 8
        %s6281 = scalar_lea.vmem [#allocation6], %s6280
        %s6282 = sand.u32 %s25, 1
        %s6283 = scalar_lea.sflag [#allocation7], %s6282
        %s6284 = sand.u32 %s174, 1
        %s6285 = scalar_lea.vmem [#allocation8], %s6284
        // Predicated region
        $region41: #{tpu_custom_call.1} parent=35 // pred_check
          %p6286 = pneg %p132
        $region42: #{tpu_custom_call.1} parent=35 // pred_check_branch
          %6288 = sbr.rel (%p6286) target = $region44
        $region43: #{tpu_custom_call.1} parent=35 // pred_region
          %s6290 = ssub.s32 128, 128
          %6291 = vsyncadd %s6273, %s6290
          %s6292 = smul.addr %s25, 128
          %s6293 = scalar_lea.hbm %s4, %s6292
          %s6295 = sshll.u32 %s6276, 4
          %s6296 = int_to_ptr.vmem [resolvable:$true] %s6295
          %6298 = dma.vmem_to_hbm [thread:$0]  %s6296, 128, %s6293, %s6273
        $region44: #{tpu_custom_call.1} parent=35 // pred_fallthru
          _
        // Predicated region
        $region45: #{tpu_custom_call.1} parent=35 // pred_check
          %p6299 = pneg %p158
        $region46: #{tpu_custom_call.1} parent=35 // pred_check_branch
          %6301 = sbr.rel (%p6299) target = $region48
        $region47: #{tpu_custom_call.1} parent=35 // pred_region
          %s6303 = ssub.s32 128, 128
          %6304 = vsyncadd %s6278, %s6303
          %s6305 = smul.addr %s25, 128
          %s6306 = scalar_lea.hbm %s5, %s6305
          %s6308 = sshll.u32 %s6281, 4
          %s6309 = int_to_ptr.vmem [resolvable:$true] %s6308
          %6311 = dma.vmem_to_hbm [thread:$0]  %s6309, 128, %s6306, %s6278
        $region48: #{tpu_custom_call.1} parent=35 // pred_fallthru
          _
        // Predicated region
        $region49: #{tpu_custom_call.1} parent=35 // pred_check
          %p6312 = pneg %p184
        $region50: #{tpu_custom_call.1} parent=35 // pred_check_branch
          %6314 = sbr.rel (%p6312) target = $region52
        $region51: #{tpu_custom_call.1} parent=35 // pred_region
          %s6316 = ssub.s32 16, 16
          %6317 = vsyncadd %s6283, %s6316
          %s6318 = smul.addr %s25, 16
          %s6319 = scalar_lea.hbm %s6, %s6318
          %s6321 = sshll.u32 %s6285, 4
          %s6322 = int_to_ptr.vmem [resolvable:$true] %s6321
          %6324 = dma.vmem_to_hbm [thread:$0]  %s6322, 16, %s6319, %s6283
        $region52: #{tpu_custom_call.1} parent=35 // pred_fallthru
          _
      $region36: #{tpu_custom_call.1} parent=5 // pred_fallthru
        _
      %p6325 = scmp.le.s32.totalorder 2, %s20
      // Predicated region
      $region53: #{tpu_custom_call.1} parent=5 // pred_check
        %p6326 = pneg %p6325
      $region54: #{tpu_custom_call.1} parent=5 // pred_check_branch
        %6328 = sbr.rel (%p6326) target = $region56
      $region55: #{tpu_custom_call.1} parent=5 // pred_region
        %s6329 = ssub.s32 %s20, 2
        // Predicated region
        $region57: #{tpu_custom_call.1} parent=55 // pred_check
          %p6330 = pneg %p138
        $region58: #{tpu_custom_call.1} parent=55 // pred_check_branch
          %6332 = sbr.rel (%p6330) target = $region60
        $region59: #{tpu_custom_call.1} parent=55 // pred_region
          %s6333 = sand.u32 %s123, 1
          %s6334 = scalar_lea.sflag [#allocation4], %s6333
          %s6335 = sand.u32 %s123, 1
          %s6336 = smul.addr %s6335, 8
          %s6337 = scalar_lea.vmem [#allocation5], %s6336
          %6338 = dma.done %s6334, 128
        $region60: #{tpu_custom_call.1} parent=55 // pred_fallthru
          _
        // Predicated region
        $region61: #{tpu_custom_call.1} parent=55 // pred_check
          %p6339 = pneg %p164
        $region62: #{tpu_custom_call.1} parent=55 // pred_check_branch
          %6341 = sbr.rel (%p6339) target = $region64
        $region63: #{tpu_custom_call.1} parent=55 // pred_region
          %s6342 = sand.u32 %s26, 1
          %s6343 = scalar_lea.sflag [#allocation7], %s6342
          %s6344 = sand.u32 %s149, 1
          %s6345 = smul.addr %s6344, 8
          %s6346 = scalar_lea.vmem [#allocation6], %s6345
          %6347 = dma.done %s6343, 128
        $region64: #{tpu_custom_call.1} parent=55 // pred_fallthru
          _
        // Predicated region
        $region65: #{tpu_custom_call.1} parent=55 // pred_check
          %p6348 = pneg %p190
        $region66: #{tpu_custom_call.1} parent=55 // pred_check_branch
          %6350 = sbr.rel (%p6348) target = $region68
        $region67: #{tpu_custom_call.1} parent=55 // pred_region
          %s6351 = sand.u32 %s26, 1
          %s6352 = scalar_lea.sflag [#allocation7], %s6351
          %s6353 = sand.u32 %s175, 1
          %s6354 = scalar_lea.vmem [#allocation8], %s6353
          %6355 = dma.done %s6352, 16
        $region68: #{tpu_custom_call.1} parent=55 // pred_fallthru
          _
      $region56: #{tpu_custom_call.1} parent=5 // pred_fallthru
        _
    $region6: #{tpu_custom_call.1} parent=1 // loop_footer
      %s24 = sadd.s32 1, %s20
    $region7: #{tpu_custom_call.1} parent=1 // loop_footer_branch
      %19 = sbr.rel target = $region3
    $region8: #{tpu_custom_call.1} parent=1 // loop_exit
      _
    %6356 = vsyncpa [#allocation3], 1
    %s6357 = scalar_lea.sflag [#allocation3], 1
    %6358 = vsyncpa %s6357, 1
    %6359 = vsyncpa [#allocation4], 1
    %s6360 = scalar_lea.sflag [#allocation4], 1
    %6361 = vsyncpa %s6360, 1
    %6362 = vsyncpa [#allocation7], 1
    %s6363 = scalar_lea.sflag [#allocation7], 1
    %6364 = vsyncpa %s6363, 1

</llo_original>
